<compile_context>
chip_gen: v6e
topology: v6e:2x2x1
jax: 0.10.0
libtpu: 0.0.40
codegen_flags: <defaults>
</compile_context>

<pallas_src>
import math

import jax
import jax.numpy as jnp
from jax import lax
from jax.experimental import pallas as pl
from jax.experimental.pallas import tpu as pltpu

_SLOPE = 0.2  # LeakyReLU negative slope used throughout the module


def _leaky(x):
    return jnp.where(x >= 0.0, x, x * _SLOPE)


# ----------------------------------------------------------------------------
# Pallas kernel 1: generic conv layer as ONE fused K*Cin-deep matmul.
#   x_ext: (N, L_ext, Cin) flattened + halo-extended feature map (bf16).
#   The K taps are row-shifted windows of it (static offsets).  mask codes:
#   0 = none, 1 = zero tap where output column == 0, 2 = zero where col == width-1.
# ----------------------------------------------------------------------------
def _flat_conv_kernel(offsets, masks, m_out, width, relu):
    def kernel(x_ref, w_ref, b_ref, o_ref):
        need_mask = any(m != 0 for m in masks)
        if need_mask:
            col = lax.broadcasted_iota(jnp.int32, (m_out, 1), 0) % width
            not_first = col != 0
            not_last = col != width - 1
        taps = []
        for off, mc in zip(offsets, masks):
            t = x_ref[0, pl.ds(off, m_out), :]          # (m_out, Cin), in-VMEM window
            if mc == 1:
                t = jnp.where(not_first, t, 0.0)
            elif mc == 2:
                t = jnp.where(not_last, t, 0.0)
            taps.append(t)
        lhs = taps[0] if len(taps) == 1 else jnp.concatenate(taps, axis=-1)  # (m_out, K*Cin)
        acc = jnp.dot(lhs, w_ref[...], preferred_element_type=jnp.float32)
        acc = acc + b_ref[...]
        if relu:
            acc = _leaky(acc)
        o_ref[0] = acc.astype(o_ref.dtype)
    return kernel


def flat_conv(x_ext, offsets, masks, m_out, width, w2, b, *, relu, out_dtype):
    n, l_ext, cin = x_ext.shape
    kc, cout = w2.shape
    assert kc == len(offsets) * cin
    kern = _flat_conv_kernel(tuple(offsets), tuple(masks), m_out, width, relu)
    return pl.pallas_call(
        kern,
        grid=(n,),
        in_specs=[
            pl.BlockSpec((1, l_ext, cin), lambda i: (i, 0, 0)),
            pl.BlockSpec((kc, cout), lambda i: (0, 0)),
            pl.BlockSpec((1, cout), lambda i: (0, 0)),
        ],
        out_specs=pl.BlockSpec((1, m_out, cout), lambda i: (i, 0, 0)),
        out_shape=jax.ShapeDtypeStruct((n, m_out, cout), out_dtype),
        compiler_params=pltpu.CompilerParams(dimension_semantics=("parallel",)),
    )(x_ext.astype(jnp.bfloat16), w2.astype(jnp.bfloat16),
      b.reshape(1, cout).astype(jnp.float32))


# ----------------------------------------------------------------------------
# Pallas kernel 2: 8 ResConv layers + phase-decomposed ConvTranspose fused in ONE call.
#   fbf_ref : (L_ext, c) bf16 VMEM scratch -- extended feature map feeding the MXU taps.
#   f32_ref : (M, c)     f32  VMEM scratch -- full-precision residual carrier.
#   Per layer: one (M, 9c) x (9c, c) bf16 matmul, epilogue ((Wx+b)*beta + x, LeakyReLU).
#   Final:     one (M, 9c) x (9c, 96) bf16 matmul (the 4-phase ConvTranspose2d).
# ----------------------------------------------------------------------------
def _res_last_kernel(n_layers, m_out, width, pad_left):
    base0 = pad_left - width - 1   # ext-row offset of tap (dy=0, dx=0)

    def kernel(x_ref, w_ref, b_ref, beta_ref, wl_ref, bl_ref, o_ref,
               fbf_ref, f32_ref):
        fbf_ref[...] = x_ref[0]                                         # bf16, incl. zero halo
        f32_ref[...] = x_ref[0, pl.ds(pad_left, m_out), :].astype(jnp.float32)

        col = lax.broadcasted_iota(jnp.int32, (m_out, 1), 0) % width
        not_first = col != 0
        not_last = col != width - 1

        def taps9():
            taps = []
            for dy in range(3):
                for dx in range(3):
                    t = fbf_ref[pl.ds(base0 + dy * width + dx, m_out), :]
                    if dx == 0:
                        t = jnp.where(not_first, t, 0.0)
                    elif dx == 2:
                        t = jnp.where(not_last, t, 0.0)
                    taps.append(t)
            return jnp.concatenate(taps, axis=-1)                       # (m_out, 9c) bf16

        for l in range(n_layers):
            lhs = taps9()
            acc = jnp.dot(lhs, w_ref[l], preferred_element_type=jnp.float32)
            y = _leaky((acc + b_ref[l]) * beta_ref[l] + f32_ref[...])
            f32_ref[...] = y
            fbf_ref[pl.ds(pad_left, m_out), :] = y.astype(fbf_ref.dtype)

        # fused lastconv: phase-decomposed ConvTranspose2d(c, 24, 4, 2, 1) -> 96 channels
        lhs = taps9()
        acc = jnp.dot(lhs, wl_ref[...], preferred_element_type=jnp.float32) + bl_ref[...]
        o_ref[0] = acc.astype(o_ref.dtype)
    return kernel


def resconv_lastconv(feat, ws, bs, betas, w_last9, b_last):
    """feat (N, hf, wf, c) bf16 -> (N, hf*wf, 96) f32 (4-phase ConvTranspose output)."""
    n, hf, wf, c = feat.shape
    m = hf * wf
    pad_left = ((wf + 1 + 15) // 16) * 16       # sublane-aligned (bf16 packs 16 rows/vreg)
    pad_right = wf + 1
    l_ext = m + pad_left + pad_right
    xf = jnp.pad(feat.reshape(n, m, c), ((0, 0), (pad_left, pad_right), (0, 0)))
    n_layers = ws.shape[0]
    cout = w_last9.shape[1]                     # 96
    kern = _res_last_kernel(n_layers, m, wf, pad_left)
    return pl.pallas_call(
        kern,
        grid=(n,),
        in_specs=[
            pl.BlockSpec((1, l_ext, c), lambda i: (i, 0, 0)),
            pl.BlockSpec((n_layers, 9 * c, c), lambda i: (0, 0, 0)),
            pl.BlockSpec((n_layers, 1, c), lambda i: (0, 0, 0)),
            pl.BlockSpec((n_layers, 1, c), lambda i: (0, 0, 0)),
            pl.BlockSpec((9 * c, cout), lambda i: (0, 0)),
            pl.BlockSpec((1, cout), lambda i: (0, 0)),
        ],
        out_specs=pl.BlockSpec((1, m, cout), lambda i: (i, 0, 0)),
        out_shape=jax.ShapeDtypeStruct((n, m, cout), jnp.float32),
        scratch_shapes=[
            pltpu.VMEM((l_ext, c), jnp.bfloat16),
            pltpu.VMEM((m, c), jnp.float32),
        ],
        compiler_params=pltpu.CompilerParams(dimension_semantics=("parallel",)),
    )(xf.astype(jnp.bfloat16), ws.astype(jnp.bfloat16),
      bs.astype(jnp.float32), betas.astype(jnp.float32),
      w_last9.astype(jnp.bfloat16), b_last.reshape(1, cout).astype(jnp.float32))


# ----------------------------------------------------------------------------
# JAX glue: layer wrappers (weight packing, padding, space-to-depth, resize, ...)
# ----------------------------------------------------------------------------
def conv_s2_replicate(x, w, b):
    """3x3 / stride 2 / padding 1 (replicate) conv + LeakyReLU(0.2), NHWC -> NHWC (bf16)."""
    n, h, wd, cin = x.shape
    cout = w.shape[0]
    ho = (h - 1) // 2 + 1
    wo = (wd - 1) // 2 + 1
    xp = jnp.pad(x, ((0, 0), (1, 1), (1, 1), (0, 0)), mode="edge")
    hs, ws_ = 2 * ho + 2, 2 * wo + 2
    dh, dw = hs - xp.shape[1], ws_ - xp.shape[2]
    if dh > 0 or dw > 0:
        xp = jnp.pad(xp, ((0, 0), (0, max(dh, 0)), (0, max(dw, 0)), (0, 0)))
    xp = xp[:, :hs, :ws_, :]
    # space-to-depth: 2x2 spatial parity -> channels; the stride-2 conv becomes a
    # 4-tap stride-1 conv over a (ho+1, wo+1, 4*cin) map (flattened row-major).
    s = xp.reshape(n, ho + 1, 2, wo + 1, 2, cin)
    s = jnp.transpose(s, (0, 1, 3, 2, 4, 5)).reshape(n, (ho + 1) * (wo + 1), 4 * cin)
    s = jnp.pad(s, ((0, 0), (0, wo + 2), (0, 0)))     # keep all shifted windows in-bounds
    # pack the 3x3 weight into (4 taps x 4 parity planes x cin, cout); 7/16 blocks are 0
    wt = jnp.transpose(w, (2, 3, 1, 0))               # (ky, kx, cin, cout)
    w2 = jnp.zeros((2, 2, 2, 2, cin, cout), w.dtype)  # (dy', dx', py, px, cin, cout)
    for dyp in range(2):
        for py in range(2):
            ky = 2 * dyp + py
            if ky > 2:
                continue
            for dxp in range(2):
                for px in range(2):
                    kx = 2 * dxp + px
                    if kx > 2:
                        continue
                    w2 = w2.at[dyp, dxp, py, px].set(wt[ky, kx])
    w2 = w2.reshape(16 * cin, cout)
    offs = (0, 1, wo + 1, wo + 2)
    out = flat_conv(s, offs, (0, 0, 0, 0), (ho + 1) * (wo + 1), wo + 1,
                    w2, b, relu=True, out_dtype=jnp.bfloat16)
    return out.reshape(n, ho + 1, wo + 1, cout)[:, :ho, :wo, :]


def pack_lastconv_weight(w_t, c):
    """ConvTranspose2d(c, 24, 4, 2, 1) weight (c, 24, 4, 4) -> (9c, 96) phase-packed."""
    co = w_t.shape[1]                                     # 24
    pairs = {0: ((0, 1), (-1, 3)), 1: ((1, 0), (0, 2))}   # phase -> ((input offset, k idx), ...)
    w9 = jnp.zeros((3, 3, c, 4, co), w_t.dtype)           # (dy, dx, cin, phase, cout)
    for py in (0, 1):
        for (iy, ky) in pairs[py]:
            for px in (0, 1):
                for (ix, kx) in pairs[px]:
                    w9 = w9.at[iy + 1, ix + 1, :, py * 2 + px, :].set(w_t[:, :, ky, kx])
    return w9.reshape(9 * c, 4 * co)


def pixelshuffle_rearrange(out_flat, hf, wf, co):
    """Undo the phase decomposition + PixelShuffle(2): (N, hf*wf, 4*co) -> (N, 4hf, 4wf, co//4)."""
    n = out_flat.shape[0]
    out = out_flat.reshape(n, hf, wf, 2, 2, co // 4, 2, 2)   # (n, oy, ox, py, px, c6, ry, rx)
    out = jnp.transpose(out, (0, 1, 3, 6, 2, 4, 7, 5))       # (n, oy, py, ry, ox, px, rx, c6)
    return out.reshape(n, 4 * hf, 4 * wf, co // 4)


def bilinear_resize_nhwc(x, out_h, out_w):
    """torch.nn.functional.interpolate(mode='bilinear', align_corners=False) equivalent."""
    # TODO(synk): gather-based resize stays in plain XLA; no clean Pallas gather here.
    n, h, w, c = x.shape
    if out_h == h and out_w == w:
        return x

    def idx(out_size, in_size):
        d = jnp.arange(out_size, dtype=jnp.float32)
        src = jnp.maximum((d + 0.5) * (in_size / out_size) - 0.5, 0.0)
        i0 = jnp.minimum(jnp.floor(src).astype(jnp.int32), in_size - 1)
        i1 = jnp.minimum(i0 + 1, in_size - 1)
        frac = src - i0.astype(jnp.float32)
        return i0, i1, frac

    y0, y1, fy = idx(out_h, h)
    x0, x1, fx = idx(out_w, w)
    top = jnp.take(x, y0, axis=1)
    bot = jnp.take(x, y1, axis=1)
    xh = top * (1.0 - fy)[None, :, None, None] + bot * fy[None, :, None, None]
    left = jnp.take(xh, x0, axis=2)
    right = jnp.take(xh, x1, axis=2)
    return left * (1.0 - fx)[None, None, :, None] + right * fx[None, None, :, None]


# ----------------------------------------------------------------------------
# IFBlock parameters + forward
# ----------------------------------------------------------------------------
def init_ifblock_params(key, in_planes, c=64):
    keys = jax.random.split(key, 32)

    def w_init(k, shape, scale=0.05):
        return scale * jax.random.normal(k, shape, dtype=jnp.float32)

    p = {
        "conv0_0_w": w_init(keys[0], (c // 2, in_planes, 3, 3)),
        "conv0_0_b": w_init(keys[1], (c // 2,)),
        "conv0_1_w": w_init(keys[2], (c, c // 2, 3, 3)),
        "conv0_1_b": w_init(keys[3], (c,)),
        "res": [],
        "last_w": w_init(keys[28], (c, 4 * 6, 4, 4)),   # ConvTranspose2d weight (Cin, Cout, 4, 4)
        "last_b": w_init(keys[29], (4 * 6,)),
    }
    for i in range(8):
        p["res"].append({
            "w": w_init(keys[4 + 3 * i], (c, c, 3, 3)),
            "b": w_init(keys[5 + 3 * i], (c,)),
            "beta": jnp.ones((1, c, 1, 1), jnp.float32),
        })
    return p


def ifblock_forward(params, x, h, w, flow=None, scale=1):
    """x: (N, C, H, W) NCHW f32; returns (flow (N,4,h,w), mask (N,1,h,w)) NCHW."""
    x = jnp.transpose(x, (0, 2, 3, 1))  # -> NHWC
    N, H, W, _ = x.shape
    oh = int(math.floor(H * (1.0 / scale)))
    ow = int(math.floor(W * (1.0 / scale)))
    x = bilinear_resize_nhwc(x, oh, ow)
    if flow is not None:
        fl = jnp.transpose(flow, (0, 2, 3, 1))
        fl = bilinear_resize_nhwc(fl, oh, ow) * (1.0 / scale)
        x = jnp.concatenate([x, fl], axis=-1)

    # conv0: two stride-2 replicate-padded convs + LeakyReLU(0.2)
    f = conv_s2_replicate(x, params["conv0_0_w"], params["conv0_0_b"])
    f = conv_s2_replicate(f, params["conv0_1_w"], params["conv0_1_b"])

    # convblock (8 ResConv) + lastconv (phase-decomposed ConvTranspose2d) fused in ONE call
    c = params["res"][0]["w"].shape[0]
    ws = jnp.stack([jnp.transpose(rp["w"], (2, 3, 1, 0)).reshape(9 * c, c)
                    for rp in params["res"]], axis=0)
    bs = jnp.stack([rp["b"] for rp in params["res"]], axis=0).reshape(-1, 1, c)
    betas = jnp.stack([rp["beta"].reshape(c) for rp in params["res"]], axis=0).reshape(-1, 1, c)
    w9 = pack_lastconv_weight(params["last_w"], c)
    b96 = jnp.tile(params["last_b"], (4,))

    nb, hf, wf, _ = f.shape
    out_flat = resconv_lastconv(f, ws, bs, betas, w9, b96)          # (N, hf*wf, 96) f32
    tmp = pixelshuffle_rearrange(out_flat, hf, wf, params["last_w"].shape[1])

    tmp = bilinear_resize_nhwc(tmp, h, w)
    flow_out = tmp[..., :4] * scale
    mask = tmp[..., 4:5]
    return (jnp.transpose(flow_out, (0, 3, 1, 2)),
            jnp.transpose(mask, (0, 3, 1, 2)))


if __name__ == "__main__":
    key = jax.random.PRNGKey(0)
    k1, k2, k3 = jax.random.split(key, 3)

    N, H, W = 2, 32, 32
    x = jax.random.normal(k1, (N, 6, H, W), jnp.float32)    # two stacked RGB frames
    fl = jax.random.normal(k2, (N, 4, H, W), jnp.float32)   # previous flow estimate
    in_planes = 6 + 4                                        # concat(x, flow) channels
    c = 32

    params = init_ifblock_params(k3, in_planes, c=c)
    fwd = jax.jit(ifblock_forward, static_argnums=(2, 3, 5))
    flow_out, mask = fwd(params, x, H, W, fl, 2)
    flow_out = jax.block_until_ready(flow_out)
    mask = jax.block_until_ready(mask)

    assert flow_out.shape == (N, 4, H, W), flow_out.shape
    assert mask.shape == (N, 1, H, W), mask.shape
    assert bool(jnp.all(jnp.isfinite(flow_out))) and bool(jnp.all(jnp.isfinite(mask)))
    print("KERNEL_OK")
</pallas_src>

<mosaic_0001>
module attributes {stable_mosaic.version = 11 : i64} {
  func.func @kernel(%arg0: i32, %arg1: memref<1x91x40xbf16, #tpu.memory_space<vmem>>, %arg2: memref<160x16xbf16, #tpu.memory_space<vmem>>, %arg3: memref<1x16xf32, #tpu.memory_space<vmem>>, %arg4: memref<1x81x16xbf16, #tpu.memory_space<vmem>>) attributes {dimension_semantics = [#tpu.dimension_semantics<parallel>], iteration_bounds = array<i64: 2>, scalar_prefetch = 0 : i64, scratch_operands = 0 : i64, tpu.core_type = #tpu.core_type<tc>, window_params = [{transform_indices = @transform_0, window_bounds = array<i64: 1, 91, 40>}, {pipeline_mode = #tpu.pipeline_mode<synchronous>, transform_indices = @transform_1, window_bounds = array<i64: 160, 16>}, {pipeline_mode = #tpu.pipeline_mode<synchronous>, transform_indices = @transform_2, window_bounds = array<i64: 1, 16>}, {transform_indices = @transform_3, window_bounds = array<i64: 1, 81, 16>}]} {
    %c0 = arith.constant 0 : index
    %c0_0 = arith.constant 0 : index
    %c0_1 = arith.constant 0 : index
    %0 = vector.load %arg1[%c0, %c0_0, %c0_1] : memref<1x91x40xbf16, #tpu.memory_space<vmem>>, vector<1x81x40xbf16>
    %1 = vector.shape_cast %0 : vector<1x81x40xbf16> to vector<81x40xbf16>
    %c0_2 = arith.constant 0 : index
    %c1 = arith.constant 1 : index
    %c0_3 = arith.constant 0 : index
    %2 = vector.load %arg1[%c0_2, %c1, %c0_3] : memref<1x91x40xbf16, #tpu.memory_space<vmem>>, vector<1x81x40xbf16>
    %3 = vector.shape_cast %2 : vector<1x81x40xbf16> to vector<81x40xbf16>
    %c0_4 = arith.constant 0 : index
    %c9 = arith.constant 9 : index
    %c0_5 = arith.constant 0 : index
    %4 = vector.load %arg1[%c0_4, %c9, %c0_5] : memref<1x91x40xbf16, #tpu.memory_space<vmem>>, vector<1x81x40xbf16>
    %5 = vector.shape_cast %4 : vector<1x81x40xbf16> to vector<81x40xbf16>
    %c0_6 = arith.constant 0 : index
    %c10 = arith.constant 10 : index
    %c0_7 = arith.constant 0 : index
    %6 = vector.load %arg1[%c0_6, %c10, %c0_7] : memref<1x91x40xbf16, #tpu.memory_space<vmem>>, vector<1x81x40xbf16>
    %7 = vector.shape_cast %6 : vector<1x81x40xbf16> to vector<81x40xbf16>
    %8 = tpu.concatenate %1, %3, %5, %7 in 1 : vector<81x40xbf16>, vector<81x40xbf16>, vector<81x40xbf16>, vector<81x40xbf16> -> vector<81x160xbf16>
    %c0_8 = arith.constant 0 : index
    %c0_9 = arith.constant 0 : index
    %9 = vector.load %arg2[%c0_8, %c0_9] : memref<160x16xbf16, #tpu.memory_space<vmem>>, vector<160x16xbf16>
    %cst = arith.constant dense<0.000000e+00> : vector<81x16xf32>
    %10 = tpu.matmul %8, %9, %cst {dimension_numbers = #tpu.dot_dimension_numbers<[1], [0], [0], [1], [0, 0, 1, 1], [], []>} : vector<81x160xbf16>, vector<160x16xbf16>, vector<81x16xf32> -> vector<81x16xf32>
    %c0_10 = arith.constant 0 : index
    %c0_11 = arith.constant 0 : index
    %11 = vector.load %arg3[%c0_10, %c0_11] : memref<1x16xf32, #tpu.memory_space<vmem>>, vector<1x16xf32>
    %12 = vector.broadcast %11 : vector<1x16xf32> to vector<81x16xf32>
    %13 = arith.addf %10, %12 : vector<81x16xf32>
    %cst_12 = arith.constant 0.000000e+00 : f32
    %14 = vector.broadcast %cst_12 : f32 to vector<81x16xf32>
    %15 = arith.cmpf oge, %13, %14 : vector<81x16xf32>
    %cst_13 = arith.constant 2.000000e-01 : f32
    %16 = vector.broadcast %cst_13 : f32 to vector<81x16xf32>
    %17 = arith.mulf %13, %16 : vector<81x16xf32>
    %18 = arith.select %15, %13, %17 : vector<81x16xi1>, vector<81x16xf32>
    %19 = arith.truncf %18 : vector<81x16xf32> to vector<81x16xbf16>
    %c0_14 = arith.constant 0 : index
    %c0_15 = arith.constant 0 : index
    %c0_16 = arith.constant 0 : index
    %20 = vector.load %arg4[%c0_14, %c0_15, %c0_16] : memref<1x81x16xbf16, #tpu.memory_space<vmem>>, vector<1x81x16xbf16>
    %21 = vector.shape_cast %20 : vector<1x81x16xbf16> to vector<81x16xbf16>
    %22 = vector.shape_cast %19 : vector<81x16xbf16> to vector<1x81x16xbf16>
    tpu.vector_store %arg4[%c0_14, %c0_15, %c0_16], %22 {strides = array<i32>} : memref<1x81x16xbf16, #tpu.memory_space<vmem>>, vector<1x81x16xbf16>,
    return
  }
  func.func @transform_0(%arg0: i32) -> (i32, i32, i32) {
    %c0_i32 = arith.constant 0 : i32
    %c0_i32_0 = arith.constant 0 : i32
    %c0_i32_1 = arith.constant 0 : i32
    return %arg0, %c0_i32, %c0_i32_0 : i32, i32, i32
  }
  func.func @transform_1(%arg0: i32) -> (i32, i32) {
    %c0_i32 = arith.constant 0 : i32
    %c0_i32_0 = arith.constant 0 : i32
    %c0_i32_1 = arith.constant 0 : i32
    return %c0_i32, %c0_i32_0 : i32, i32
  }
  func.func @transform_2(%arg0: i32) -> (i32, i32) {
    %c0_i32 = arith.constant 0 : i32
    %c0_i32_0 = arith.constant 0 : i32
    %c0_i32_1 = arith.constant 0 : i32
    return %c0_i32, %c0_i32_0 : i32, i32
  }
  func.func @transform_3(%arg0: i32) -> (i32, i32, i32) {
    %c0_i32 = arith.constant 0 : i32
    %c0_i32_0 = arith.constant 0 : i32
    %c0_i32_1 = arith.constant 0 : i32
    return %arg0, %c0_i32, %c0_i32_0 : i32, i32, i32
  }
}

module attributes {stable_mosaic.version = 11 : i64} {
  func.func @kernel(%arg0: i32, %arg1: memref<1x31x64xbf16, #tpu.memory_space<vmem>>, %arg2: memref<256x32xbf16, #tpu.memory_space<vmem>>, %arg3: memref<1x32xf32, #tpu.memory_space<vmem>>, %arg4: memref<1x25x32xbf16, #tpu.memory_space<vmem>>) attributes {dimension_semantics = [#tpu.dimension_semantics<parallel>], iteration_bounds = array<i64: 2>, scalar_prefetch = 0 : i64, scratch_operands = 0 : i64, tpu.core_type = #tpu.core_type<tc>, window_params = [{transform_indices = @transform_0, window_bounds = array<i64: 1, 31, 64>}, {pipeline_mode = #tpu.pipeline_mode<synchronous>, transform_indices = @transform_1, window_bounds = array<i64: 256, 32>}, {pipeline_mode = #tpu.pipeline_mode<synchronous>, transform_indices = @transform_2, window_bounds = array<i64: 1, 32>}, {transform_indices = @transform_3, window_bounds = array<i64: 1, 25, 32>}]} {
    %c0 = arith.constant 0 : index
    %c0_0 = arith.constant 0 : index
    %c0_1 = arith.constant 0 : index
    %0 = vector.load %arg1[%c0, %c0_0, %c0_1] : memref<1x31x64xbf16, #tpu.memory_space<vmem>>, vector<1x25x64xbf16>
    %1 = vector.shape_cast %0 : vector<1x25x64xbf16> to vector<25x64xbf16>
    %c0_2 = arith.constant 0 : index
    %c1 = arith.constant 1 : index
    %c0_3 = arith.constant 0 : index
    %2 = vector.load %arg1[%c0_2, %c1, %c0_3] : memref<1x31x64xbf16, #tpu.memory_space<vmem>>, vector<1x25x64xbf16>
    %3 = vector.shape_cast %2 : vector<1x25x64xbf16> to vector<25x64xbf16>
    %c0_4 = arith.constant 0 : index
    %c5 = arith.constant 5 : index
    %c0_5 = arith.constant 0 : index
    %4 = vector.load %arg1[%c0_4, %c5, %c0_5] : memref<1x31x64xbf16, #tpu.memory_space<vmem>>, vector<1x25x64xbf16>
    %5 = vector.shape_cast %4 : vector<1x25x64xbf16> to vector<25x64xbf16>
    %c0_6 = arith.constant 0 : index
    %c6 = arith.constant 6 : index
    %c0_7 = arith.constant 0 : index
    %6 = vector.load %arg1[%c0_6, %c6, %c0_7] : memref<1x31x64xbf16, #tpu.memory_space<vmem>>, vector<1x25x64xbf16>
    %7 = vector.shape_cast %6 : vector<1x25x64xbf16> to vector<25x64xbf16>
    %8 = tpu.concatenate %1, %3, %5, %7 in 1 : vector<25x64xbf16>, vector<25x64xbf16>, vector<25x64xbf16>, vector<25x64xbf16> -> vector<25x256xbf16>
    %c0_8 = arith.constant 0 : index
    %c0_9 = arith.constant 0 : index
    %9 = vector.load %arg2[%c0_8, %c0_9] : memref<256x32xbf16, #tpu.memory_space<vmem>>, vector<256x32xbf16>
    %cst = arith.constant dense<0.000000e+00> : vector<25x32xf32>
    %10 = tpu.matmul %8, %9, %cst {dimension_numbers = #tpu.dot_dimension_numbers<[1], [0], [0], [1], [0, 0, 1, 1], [], []>} : vector<25x256xbf16>, vector<256x32xbf16>, vector<25x32xf32> -> vector<25x32xf32>
    %c0_10 = arith.constant 0 : index
    %c0_11 = arith.constant 0 : index
    %11 = vector.load %arg3[%c0_10, %c0_11] : memref<1x32xf32, #tpu.memory_space<vmem>>, vector<1x32xf32>
    %12 = vector.broadcast %11 : vector<1x32xf32> to vector<25x32xf32>
    %13 = arith.addf %10, %12 : vector<25x32xf32>
    %cst_12 = arith.constant 0.000000e+00 : f32
    %14 = vector.broadcast %cst_12 : f32 to vector<25x32xf32>
    %15 = arith.cmpf oge, %13, %14 : vector<25x32xf32>
    %cst_13 = arith.constant 2.000000e-01 : f32
    %16 = vector.broadcast %cst_13 : f32 to vector<25x32xf32>
    %17 = arith.mulf %13, %16 : vector<25x32xf32>
    %18 = arith.select %15, %13, %17 : vector<25x32xi1>, vector<25x32xf32>
    %19 = arith.truncf %18 : vector<25x32xf32> to vector<25x32xbf16>
    %c0_14 = arith.constant 0 : index
    %c0_15 = arith.constant 0 : index
    %c0_16 = arith.constant 0 : index
    %20 = vector.load %arg4[%c0_14, %c0_15, %c0_16] : memref<1x25x32xbf16, #tpu.memory_space<vmem>>, vector<1x25x32xbf16>
    %21 = vector.shape_cast %20 : vector<1x25x32xbf16> to vector<25x32xbf16>
    %22 = vector.shape_cast %19 : vector<25x32xbf16> to vector<1x25x32xbf16>
    tpu.vector_store %arg4[%c0_14, %c0_15, %c0_16], %22 {strides = array<i32>} : memref<1x25x32xbf16, #tpu.memory_space<vmem>>, vector<1x25x32xbf16>,
    return
  }
  func.func @transform_0(%arg0: i32) -> (i32, i32, i32) {
    %c0_i32 = arith.constant 0 : i32
    %c0_i32_0 = arith.constant 0 : i32
    %c0_i32_1 = arith.constant 0 : i32
    return %arg0, %c0_i32, %c0_i32_0 : i32, i32, i32
  }
  func.func @transform_1(%arg0: i32) -> (i32, i32) {
    %c0_i32 = arith.constant 0 : i32
    %c0_i32_0 = arith.constant 0 : i32
    %c0_i32_1 = arith.constant 0 : i32
    return %c0_i32, %c0_i32_0 : i32, i32
  }
  func.func @transform_2(%arg0: i32) -> (i32, i32) {
    %c0_i32 = arith.constant 0 : i32
    %c0_i32_0 = arith.constant 0 : i32
    %c0_i32_1 = arith.constant 0 : i32
    return %c0_i32, %c0_i32_0 : i32, i32
  }
  func.func @transform_3(%arg0: i32) -> (i32, i32, i32) {
    %c0_i32 = arith.constant 0 : i32
    %c0_i32_0 = arith.constant 0 : i32
    %c0_i32_1 = arith.constant 0 : i32
    return %arg0, %c0_i32, %c0_i32_0 : i32, i32, i32
  }
}

module attributes {stable_mosaic.version = 11 : i64} {
  func.func @kernel(%arg0: i32, %arg1: memref<1x37x32xbf16, #tpu.memory_space<vmem>>, %arg2: memref<8x288x32xbf16, #tpu.memory_space<vmem>>, %arg3: memref<8x1x32xf32, #tpu.memory_space<vmem>>, %arg4: memref<8x1x32xf32, #tpu.memory_space<vmem>>, %arg5: memref<288x96xbf16, #tpu.memory_space<vmem>>, %arg6: memref<1x96xf32, #tpu.memory_space<vmem>>, %arg7: memref<1x16x96xf32, #tpu.memory_space<vmem>>, %arg8: memref<37x32xbf16, #tpu.memory_space<vmem>>, %arg9: memref<16x32xf32, #tpu.memory_space<vmem>>) attributes {dimension_semantics = [#tpu.dimension_semantics<parallel>], iteration_bounds = array<i64: 2>, scalar_prefetch = 0 : i64, scratch_operands = 2 : i64, tpu.core_type = #tpu.core_type<tc>, window_params = [{transform_indices = @transform_0, window_bounds = array<i64: 1, 37, 32>}, {pipeline_mode = #tpu.pipeline_mode<synchronous>, transform_indices = @transform_1, window_bounds = array<i64: 8, 288, 32>}, {pipeline_mode = #tpu.pipeline_mode<synchronous>, transform_indices = @transform_2, window_bounds = array<i64: 8, 1, 32>}, {pipeline_mode = #tpu.pipeline_mode<synchronous>, transform_indices = @transform_3, window_bounds = array<i64: 8, 1, 32>}, {pipeline_mode = #tpu.pipeline_mode<synchronous>, transform_indices = @transform_4, window_bounds = array<i64: 288, 96>}, {pipeline_mode = #tpu.pipeline_mode<synchronous>, transform_indices = @transform_5, window_bounds = array<i64: 1, 96>}, {transform_indices = @transform_6, window_bounds = array<i64: 1, 16, 96>}]} {
    %c0 = arith.constant 0 : index
    %c0_0 = arith.constant 0 : index
    %c0_1 = arith.constant 0 : index
    %0 = vector.load %arg1[%c0, %c0_0, %c0_1] : memref<1x37x32xbf16, #tpu.memory_space<vmem>>, vector<1x37x32xbf16>
    %1 = vector.shape_cast %0 : vector<1x37x32xbf16> to vector<37x32xbf16>
    %c0_2 = arith.constant 0 : index
    %c0_3 = arith.constant 0 : index
    %2 = vector.load %arg8[%c0_2, %c0_3] : memref<37x32xbf16, #tpu.memory_space<vmem>>, vector<37x32xbf16>
    tpu.vector_store %arg8[%c0_2, %c0_3], %1 {strides = array<i32>} : memref<37x32xbf16, #tpu.memory_space<vmem>>, vector<37x32xbf16>,
    %c0_4 = arith.constant 0 : index
    %c16 = arith.constant 16 : index
    %c0_5 = arith.constant 0 : index
    %3 = vector.load %arg1[%c0_4, %c16, %c0_5] : memref<1x37x32xbf16, #tpu.memory_space<vmem>>, vector<1x16x32xbf16>
    %4 = vector.shape_cast %3 : vector<1x16x32xbf16> to vector<16x32xbf16>
    %5 = arith.extf %4 : vector<16x32xbf16> to vector<16x32xf32>
    %c0_6 = arith.constant 0 : index
    %c0_7 = arith.constant 0 : index
    %6 = vector.load %arg9[%c0_6, %c0_7] : memref<16x32xf32, #tpu.memory_space<vmem>>, vector<16x32xf32>
    tpu.vector_store %arg9[%c0_6, %c0_7], %5 {strides = array<i32>} : memref<16x32xf32, #tpu.memory_space<vmem>>, vector<16x32xf32>,
    %7 = tpu.iota {dimensions = array<i32: 0>} : vector<16x1xi32>
    %c4_i32 = arith.constant 4 : i32
    %c0_i32 = arith.constant 0 : i32
    %8 = arith.cmpi eq, %c4_i32, %c0_i32 : i32
    %c1_i32 = arith.constant 1 : i32
    %9 = arith.select %8, %c1_i32, %c4_i32 : i32
    %10 = vector.broadcast %9 : i32 to vector<16x1xi32>
    %11 = arith.remsi %7, %10 : vector<16x1xi32>
    %c0_i32_8 = arith.constant 0 : i32
    %12 = vector.broadcast %c0_i32_8 : i32 to vector<16x1xi32>
    %13 = arith.cmpi ne, %11, %12 : vector<16x1xi32>
    %c0_i32_9 = arith.constant 0 : i32
    %14 = vector.broadcast %c0_i32_9 : i32 to vector<16x1xi32>
    %15 = arith.cmpi slt, %11, %14 : vector<16x1xi32>
    %c0_i32_10 = arith.constant 0 : i32
    %16 = arith.cmpi slt, %9, %c0_i32_10 : i32
    %17 = vector.broadcast %16 : i1 to vector<16x1xi1>
    %18 = vector.broadcast %17 : vector<16x1xi1> to vector<16x1xi1>
    %19 = arith.xori %15, %18 : vector<16x1xi1>
    %20 = arith.andi %19, %13 : vector<16x1xi1>
    %21 = vector.broadcast %9 : i32 to vector<16x1xi32>
    %22 = arith.addi %11, %21 : vector<16x1xi32>
    %23 = arith.select %20, %22, %11 : vector<16x1xi1>, vector<16x1xi32>
    %c0_i32_11 = arith.constant 0 : i32
    %24 = vector.broadcast %c0_i32_11 : i32 to vector<16x1xi32>
    %25 = arith.cmpi ne, %23, %24 : vector<16x1xi32>
    %c3_i32 = arith.constant 3 : i32
    %26 = vector.broadcast %c3_i32 : i32 to vector<16x1xi32>
    %27 = arith.cmpi ne, %23, %26 : vector<16x1xi32>
    %c11 = arith.constant 11 : index
    %c0_12 = arith.constant 0 : index
    %28 = vector.load %arg8[%c11, %c0_12] : memref<37x32xbf16, #tpu.memory_space<vmem>>, vector<16x32xbf16>
    %cst = arith.constant 0.000000e+00 : f32
    %29 = arith.truncf %cst : f32 to bf16
    %30 = vector.shape_cast %25 : vector<16x1xi1> to vector<16x1xi1>
    %31 = vector.broadcast %30 : vector<16x1xi1> to vector<16x32xi1>
    %32 = vector.broadcast %29 : bf16 to vector<16x32xbf16>
    %33 = arith.select %31, %28, %32 : vector<16x32xi1>, vector<16x32xbf16>
    %c12 = arith.constant 12 : index
    %c0_13 = arith.constant 0 : index
    %34 = vector.load %arg8[%c12, %c0_13] : memref<37x32xbf16, #tpu.memory_space<vmem>>, vector<16x32xbf16>
    %c13 = arith.constant 13 : index
    %c0_14 = arith.constant 0 : index
    %35 = vector.load %arg8[%c13, %c0_14] : memref<37x32xbf16, #tpu.memory_space<vmem>>, vector<16x32xbf16>
    %cst_15 = arith.constant 0.000000e+00 : f32
    %36 = arith.truncf %cst_15 : f32 to bf16
    %37 = vector.shape_cast %27 : vector<16x1xi1> to vector<16x1xi1>
    %38 = vector.broadcast %37 : vector<16x1xi1> to vector<16x32xi1>
    %39 = vector.broadcast %36 : bf16 to vector<16x32xbf16>
    %40 = arith.select %38, %35, %39 : vector<16x32xi1>, vector<16x32xbf16>
    %c15 = arith.constant 15 : index
    %c0_16 = arith.constant 0 : index
    %41 = vector.load %arg8[%c15, %c0_16] : memref<37x32xbf16, #tpu.memory_space<vmem>>, vector<16x32xbf16>
    %cst_17 = arith.constant 0.000000e+00 : f32
    %42 = arith.truncf %cst_17 : f32 to bf16
    %43 = vector.shape_cast %25 : vector<16x1xi1> to vector<16x1xi1>
    %44 = vector.broadcast %43 : vector<16x1xi1> to vector<16x32xi1>
    %45 = vector.broadcast %42 : bf16 to vector<16x32xbf16>
    %46 = arith.select %44, %41, %45 : vector<16x32xi1>, vector<16x32xbf16>
    %c16_18 = arith.constant 16 : index
    %c0_19 = arith.constant 0 : index
    %47 = vector.load %arg8[%c16_18, %c0_19] : memref<37x32xbf16, #tpu.memory_space<vmem>>, vector<16x32xbf16>
    %c17 = arith.constant 17 : index
    %c0_20 = arith.constant 0 : index
    %48 = vector.load %arg8[%c17, %c0_20] : memref<37x32xbf16, #tpu.memory_space<vmem>>, vector<16x32xbf16>
    %cst_21 = arith.constant 0.000000e+00 : f32
    %49 = arith.truncf %cst_21 : f32 to bf16
    %50 = vector.shape_cast %27 : vector<16x1xi1> to vector<16x1xi1>
    %51 = vector.broadcast %50 : vector<16x1xi1> to vector<16x32xi1>
    %52 = vector.broadcast %49 : bf16 to vector<16x32xbf16>
    %53 = arith.select %51, %48, %52 : vector<16x32xi1>, vector<16x32xbf16>
    %c19 = arith.constant 19 : index
    %c0_22 = arith.constant 0 : index
    %54 = vector.load %arg8[%c19, %c0_22] : memref<37x32xbf16, #tpu.memory_space<vmem>>, vector<16x32xbf16>
    %cst_23 = arith.constant 0.000000e+00 : f32
    %55 = arith.truncf %cst_23 : f32 to bf16
    %56 = vector.shape_cast %25 : vector<16x1xi1> to vector<16x1xi1>
    %57 = vector.broadcast %56 : vector<16x1xi1> to vector<16x32xi1>
    %58 = vector.broadcast %55 : bf16 to vector<16x32xbf16>
    %59 = arith.select %57, %54, %58 : vector<16x32xi1>, vector<16x32xbf16>
    %c20 = arith.constant 20 : index
    %c0_24 = arith.constant 0 : index
    %60 = vector.load %arg8[%c20, %c0_24] : memref<37x32xbf16, #tpu.memory_space<vmem>>, vector<16x32xbf16>
    %c21 = arith.constant 21 : index
    %c0_25 = arith.constant 0 : index
    %61 = vector.load %arg8[%c21, %c0_25] : memref<37x32xbf16, #tpu.memory_space<vmem>>, vector<16x32xbf16>
    %cst_26 = arith.constant 0.000000e+00 : f32
    %62 = arith.truncf %cst_26 : f32 to bf16
    %63 = vector.shape_cast %27 : vector<16x1xi1> to vector<16x1xi1>
    %64 = vector.broadcast %63 : vector<16x1xi1> to vector<16x32xi1>
    %65 = vector.broadcast %62 : bf16 to vector<16x32xbf16>
    %66 = arith.select %64, %61, %65 : vector<16x32xi1>, vector<16x32xbf16>
    %67 = tpu.concatenate %33, %34, %40, %46, %47, %53, %59, %60, %66 in 1 : vector<16x32xbf16>, vector<16x32xbf16>, vector<16x32xbf16>, vector<16x32xbf16>, vector<16x32xbf16>, vector<16x32xbf16>, vector<16x32xbf16>, vector<16x32xbf16>, vector<16x32xbf16> -> vector<16x288xbf16>
    %c0_27 = arith.constant 0 : index
    %c0_28 = arith.constant 0 : index
    %c0_29 = arith.constant 0 : index
    %68 = vector.load %arg2[%c0_27, %c0_28, %c0_29] : memref<8x288x32xbf16, #tpu.memory_space<vmem>>, vector<1x288x32xbf16>
    %69 = vector.shape_cast %68 : vector<1x288x32xbf16> to vector<288x32xbf16>
    %cst_30 = arith.constant dense<0.000000e+00> : vector<16x32xf32>
    %70 = tpu.matmul %67, %69, %cst_30 {dimension_numbers = #tpu.dot_dimension_numbers<[1], [0], [0], [1], [0, 0, 1, 1], [], []>} : vector<16x288xbf16>, vector<288x32xbf16>, vector<16x32xf32> -> vector<16x32xf32>
    %c0_31 = arith.constant 0 : index
    %c0_32 = arith.constant 0 : index
    %c0_33 = arith.constant 0 : index
    %71 = vector.load %arg3[%c0_31, %c0_32, %c0_33] : memref<8x1x32xf32, #tpu.memory_space<vmem>>, vector<1x1x32xf32>
    %72 = vector.shape_cast %71 : vector<1x1x32xf32> to vector<1x32xf32>
    %73 = vector.broadcast %72 : vector<1x32xf32> to vector<16x32xf32>
    %74 = arith.addf %70, %73 : vector<16x32xf32>
    %c0_34 = arith.constant 0 : index
    %c0_35 = arith.constant 0 : index
    %c0_36 = arith.constant 0 : index
    %75 = vector.load %arg4[%c0_34, %c0_35, %c0_36] : memref<8x1x32xf32, #tpu.memory_space<vmem>>, vector<1x1x32xf32>
    %76 = vector.shape_cast %75 : vector<1x1x32xf32> to vector<1x32xf32>
    %77 = vector.broadcast %76 : vector<1x32xf32> to vector<16x32xf32>
    %78 = arith.mulf %74, %77 : vector<16x32xf32>
    %c0_37 = arith.constant 0 : index
    %c0_38 = arith.constant 0 : index
    %79 = vector.load %arg9[%c0_37, %c0_38] : memref<16x32xf32, #tpu.memory_space<vmem>>, vector<16x32xf32>
    %80 = arith.addf %78, %79 : vector<16x32xf32>
    %cst_39 = arith.constant 0.000000e+00 : f32
    %81 = vector.broadcast %cst_39 : f32 to vector<16x32xf32>
    %82 = arith.cmpf oge, %80, %81 : vector<16x32xf32>
    %cst_40 = arith.constant 2.000000e-01 : f32
    %83 = vector.broadcast %cst_40 : f32 to vector<16x32xf32>
    %84 = arith.mulf %80, %83 : vector<16x32xf32>
    %85 = arith.select %82, %80, %84 : vector<16x32xi1>, vector<16x32xf32>
    %c0_41 = arith.constant 0 : index
    %c0_42 = arith.constant 0 : index
    %86 = vector.load %arg9[%c0_41, %c0_42] : memref<16x32xf32, #tpu.memory_space<vmem>>, vector<16x32xf32>
    tpu.vector_store %arg9[%c0_41, %c0_42], %85 {strides = array<i32>} : memref<16x32xf32, #tpu.memory_space<vmem>>, vector<16x32xf32>,
    %87 = arith.truncf %85 : vector<16x32xf32> to vector<16x32xbf16>
    %c16_43 = arith.constant 16 : index
    %c0_44 = arith.constant 0 : index
    %88 = vector.load %arg8[%c16_43, %c0_44] : memref<37x32xbf16, #tpu.memory_space<vmem>>, vector<16x32xbf16>
    tpu.vector_store %arg8[%c16_43, %c0_44], %87 {strides = array<i32>} : memref<37x32xbf16, #tpu.memory_space<vmem>>, vector<16x32xbf16>,
    %c11_45 = arith.constant 11 : index
    %c0_46 = arith.constant 0 : index
    %89 = vector.load %arg8[%c11_45, %c0_46] : memref<37x32xbf16, #tpu.memory_space<vmem>>, vector<16x32xbf16>
    %cst_47 = arith.constant 0.000000e+00 : f32
    %90 = arith.truncf %cst_47 : f32 to bf16
    %91 = vector.shape_cast %25 : vector<16x1xi1> to vector<16x1xi1>
    %92 = vector.broadcast %91 : vector<16x1xi1> to vector<16x32xi1>
    %93 = vector.broadcast %90 : bf16 to vector<16x32xbf16>
    %94 = arith.select %92, %89, %93 : vector<16x32xi1>, vector<16x32xbf16>
    %c12_48 = arith.constant 12 : index
    %c0_49 = arith.constant 0 : index
    %95 = vector.load %arg8[%c12_48, %c0_49] : memref<37x32xbf16, #tpu.memory_space<vmem>>, vector<16x32xbf16>
    %c13_50 = arith.constant 13 : index
    %c0_51 = arith.constant 0 : index
    %96 = vector.load %arg8[%c13_50, %c0_51] : memref<37x32xbf16, #tpu.memory_space<vmem>>, vector<16x32xbf16>
    %cst_52 = arith.constant 0.000000e+00 : f32
    %97 = arith.truncf %cst_52 : f32 to bf16
    %98 = vector.shape_cast %27 : vector<16x1xi1> to vector<16x1xi1>
    %99 = vector.broadcast %98 : vector<16x1xi1> to vector<16x32xi1>
    %100 = vector.broadcast %97 : bf16 to vector<16x32xbf16>
    %101 = arith.select %99, %96, %100 : vector<16x32xi1>, vector<16x32xbf16>
    %c15_53 = arith.constant 15 : index
    %c0_54 = arith.constant 0 : index
    %102 = vector.load %arg8[%c15_53, %c0_54] : memref<37x32xbf16, #tpu.memory_space<vmem>>, vector<16x32xbf16>
    %cst_55 = arith.constant 0.000000e+00 : f32
    %103 = arith.truncf %cst_55 : f32 to bf16
    %104 = vector.shape_cast %25 : vector<16x1xi1> to vector<16x1xi1>
    %105 = vector.broadcast %104 : vector<16x1xi1> to vector<16x32xi1>
    %106 = vector.broadcast %103 : bf16 to vector<16x32xbf16>
    %107 = arith.select %105, %102, %106 : vector<16x32xi1>, vector<16x32xbf16>
    %c16_56 = arith.constant 16 : index
    %c0_57 = arith.constant 0 : index
    %108 = vector.load %arg8[%c16_56, %c0_57] : memref<37x32xbf16, #tpu.memory_space<vmem>>, vector<16x32xbf16>
    %c17_58 = arith.constant 17 : index
    %c0_59 = arith.constant 0 : index
    %109 = vector.load %arg8[%c17_58, %c0_59] : memref<37x32xbf16, #tpu.memory_space<vmem>>, vector<16x32xbf16>
    %cst_60 = arith.constant 0.000000e+00 : f32
    %110 = arith.truncf %cst_60 : f32 to bf16
    %111 = vector.shape_cast %27 : vector<16x1xi1> to vector<16x1xi1>
    %112 = vector.broadcast %111 : vector<16x1xi1> to vector<16x32xi1>
    %113 = vector.broadcast %110 : bf16 to vector<16x32xbf16>
    %114 = arith.select %112, %109, %113 : vector<16x32xi1>, vector<16x32xbf16>
    %c19_61 = arith.constant 19 : index
    %c0_62 = arith.constant 0 : index
    %115 = vector.load %arg8[%c19_61, %c0_62] : memref<37x32xbf16, #tpu.memory_space<vmem>>, vector<16x32xbf16>
    %cst_63 = arith.constant 0.000000e+00 : f32
    %116 = arith.truncf %cst_63 : f32 to bf16
    %117 = vector.shape_cast %25 : vector<16x1xi1> to vector<16x1xi1>
    %118 = vector.broadcast %117 : vector<16x1xi1> to vector<16x32xi1>
    %119 = vector.broadcast %116 : bf16 to vector<16x32xbf16>
    %120 = arith.select %118, %115, %119 : vector<16x32xi1>, vector<16x32xbf16>
    %c20_64 = arith.constant 20 : index
    %c0_65 = arith.constant 0 : index
    %121 = vector.load %arg8[%c20_64, %c0_65] : memref<37x32xbf16, #tpu.memory_space<vmem>>, vector<16x32xbf16>
    %c21_66 = arith.constant 21 : index
    %c0_67 = arith.constant 0 : index
    %122 = vector.load %arg8[%c21_66, %c0_67] : memref<37x32xbf16, #tpu.memory_space<vmem>>, vector<16x32xbf16>
    %cst_68 = arith.constant 0.000000e+00 : f32
    %123 = arith.truncf %cst_68 : f32 to bf16
    %124 = vector.shape_cast %27 : vector<16x1xi1> to vector<16x1xi1>
    %125 = vector.broadcast %124 : vector<16x1xi1> to vector<16x32xi1>
    %126 = vector.broadcast %123 : bf16 to vector<16x32xbf16>
    %127 = arith.select %125, %122, %126 : vector<16x32xi1>, vector<16x32xbf16>
    %128 = tpu.concatenate %94, %95, %101, %107, %108, %114, %120, %121, %127 in 1 : vector<16x32xbf16>, vector<16x32xbf16>, vector<16x32xbf16>, vector<16x32xbf16>, vector<16x32xbf16>, vector<16x32xbf16>, vector<16x32xbf16>, vector<16x32xbf16>, vector<16x32xbf16> -> vector<16x288xbf16>
    %c1 = arith.constant 1 : index
    %c0_69 = arith.constant 0 : index
    %c0_70 = arith.constant 0 : index
    %129 = vector.load %arg2[%c1, %c0_69, %c0_70] : memref<8x288x32xbf16, #tpu.memory_space<vmem>>, vector<1x288x32xbf16>
    %130 = vector.shape_cast %129 : vector<1x288x32xbf16> to vector<288x32xbf16>
    %cst_71 = arith.constant dense<0.000000e+00> : vector<16x32xf32>
    %131 = tpu.matmul %128, %130, %cst_71 {dimension_numbers = #tpu.dot_dimension_numbers<[1], [0], [0], [1], [0, 0, 1, 1], [], []>} : vector<16x288xbf16>, vector<288x32xbf16>, vector<16x32xf32> -> vector<16x32xf32>
    %c1_72 = arith.constant 1 : index
    %c0_73 = arith.constant 0 : index
    %c0_74 = arith.constant 0 : index
    %132 = vector.load %arg3[%c1_72, %c0_73, %c0_74] : memref<8x1x32xf32, #tpu.memory_space<vmem>>, vector<1x1x32xf32>
    %133 = vector.shape_cast %132 : vector<1x1x32xf32> to vector<1x32xf32>
    %134 = vector.broadcast %133 : vector<1x32xf32> to vector<16x32xf32>
    %135 = arith.addf %131, %134 : vector<16x32xf32>
    %c1_75 = arith.constant 1 : index
    %c0_76 = arith.constant 0 : index
    %c0_77 = arith.constant 0 : index
    %136 = vector.load %arg4[%c1_75, %c0_76, %c0_77] : memref<8x1x32xf32, #tpu.memory_space<vmem>>, vector<1x1x32xf32>
    %137 = vector.shape_cast %136 : vector<1x1x32xf32> to vector<1x32xf32>
    %138 = vector.broadcast %137 : vector<1x32xf32> to vector<16x32xf32>
    %139 = arith.mulf %135, %138 : vector<16x32xf32>
    %c0_78 = arith.constant 0 : index
    %c0_79 = arith.constant 0 : index
    %140 = vector.load %arg9[%c0_78, %c0_79] : memref<16x32xf32, #tpu.memory_space<vmem>>, vector<16x32xf32>
    %141 = arith.addf %139, %140 : vector<16x32xf32>
    %cst_80 = arith.constant 0.000000e+00 : f32
    %142 = vector.broadcast %cst_80 : f32 to vector<16x32xf32>
    %143 = arith.cmpf oge, %141, %142 : vector<16x32xf32>
    %cst_81 = arith.constant 2.000000e-01 : f32
    %144 = vector.broadcast %cst_81 : f32 to vector<16x32xf32>
    %145 = arith.mulf %141, %144 : vector<16x32xf32>
    %146 = arith.select %143, %141, %145 : vector<16x32xi1>, vector<16x32xf32>
    %c0_82 = arith.constant 0 : index
    %c0_83 = arith.constant 0 : index
    %147 = vector.load %arg9[%c0_82, %c0_83] : memref<16x32xf32, #tpu.memory_space<vmem>>, vector<16x32xf32>
    tpu.vector_store %arg9[%c0_82, %c0_83], %146 {strides = array<i32>} : memref<16x32xf32, #tpu.memory_space<vmem>>, vector<16x32xf32>,
    %148 = arith.truncf %146 : vector<16x32xf32> to vector<16x32xbf16>
    %c16_84 = arith.constant 16 : index
    %c0_85 = arith.constant 0 : index
    %149 = vector.load %arg8[%c16_84, %c0_85] : memref<37x32xbf16, #tpu.memory_space<vmem>>, vector<16x32xbf16>
    tpu.vector_store %arg8[%c16_84, %c0_85], %148 {strides = array<i32>} : memref<37x32xbf16, #tpu.memory_space<vmem>>, vector<16x32xbf16>,
    %c11_86 = arith.constant 11 : index
    %c0_87 = arith.constant 0 : index
    %150 = vector.load %arg8[%c11_86, %c0_87] : memref<37x32xbf16, #tpu.memory_space<vmem>>, vector<16x32xbf16>
    %cst_88 = arith.constant 0.000000e+00 : f32
    %151 = arith.truncf %cst_88 : f32 to bf16
    %152 = vector.shape_cast %25 : vector<16x1xi1> to vector<16x1xi1>
    %153 = vector.broadcast %152 : vector<16x1xi1> to vector<16x32xi1>
    %154 = vector.broadcast %151 : bf16 to vector<16x32xbf16>
    %155 = arith.select %153, %150, %154 : vector<16x32xi1>, vector<16x32xbf16>
    %c12_89 = arith.constant 12 : index
    %c0_90 = arith.constant 0 : index
    %156 = vector.load %arg8[%c12_89, %c0_90] : memref<37x32xbf16, #tpu.memory_space<vmem>>, vector<16x32xbf16>
    %c13_91 = arith.constant 13 : index
    %c0_92 = arith.constant 0 : index
    %157 = vector.load %arg8[%c13_91, %c0_92] : memref<37x32xbf16, #tpu.memory_space<vmem>>, vector<16x32xbf16>
    %cst_93 = arith.constant 0.000000e+00 : f32
    %158 = arith.truncf %cst_93 : f32 to bf16
    %159 = vector.shape_cast %27 : vector<16x1xi1> to vector<16x1xi1>
    %160 = vector.broadcast %159 : vector<16x1xi1> to vector<16x32xi1>
    %161 = vector.broadcast %158 : bf16 to vector<16x32xbf16>
    %162 = arith.select %160, %157, %161 : vector<16x32xi1>, vector<16x32xbf16>
    %c15_94 = arith.constant 15 : index
    %c0_95 = arith.constant 0 : index
    %163 = vector.load %arg8[%c15_94, %c0_95] : memref<37x32xbf16, #tpu.memory_space<vmem>>, vector<16x32xbf16>
    %cst_96 = arith.constant 0.000000e+00 : f32
    %164 = arith.truncf %cst_96 : f32 to bf16
    %165 = vector.shape_cast %25 : vector<16x1xi1> to vector<16x1xi1>
    %166 = vector.broadcast %165 : vector<16x1xi1> to vector<16x32xi1>
    %167 = vector.broadcast %164 : bf16 to vector<16x32xbf16>
    %168 = arith.select %166, %163, %167 : vector<16x32xi1>, vector<16x32xbf16>
    %c16_97 = arith.constant 16 : index
    %c0_98 = arith.constant 0 : index
    %169 = vector.load %arg8[%c16_97, %c0_98] : memref<37x32xbf16, #tpu.memory_space<vmem>>, vector<16x32xbf16>
    %c17_99 = arith.constant 17 : index
    %c0_100 = arith.constant 0 : index
    %170 = vector.load %arg8[%c17_99, %c0_100] : memref<37x32xbf16, #tpu.memory_space<vmem>>, vector<16x32xbf16>
    %cst_101 = arith.constant 0.000000e+00 : f32
    %171 = arith.truncf %cst_101 : f32 to bf16
    %172 = vector.shape_cast %27 : vector<16x1xi1> to vector<16x1xi1>
    %173 = vector.broadcast %172 : vector<16x1xi1> to vector<16x32xi1>
    %174 = vector.broadcast %171 : bf16 to vector<16x32xbf16>
    %175 = arith.select %173, %170, %174 : vector<16x32xi1>, vector<16x32xbf16>
    %c19_102 = arith.constant 19 : index
    %c0_103 = arith.constant 0 : index
    %176 = vector.load %arg8[%c19_102, %c0_103] : memref<37x32xbf16, #tpu.memory_space<vmem>>, vector<16x32xbf16>
    %cst_104 = arith.constant 0.000000e+00 : f32
    %177 = arith.truncf %cst_104 : f32 to bf16
    %178 = vector.shape_cast %25 : vector<16x1xi1> to vector<16x1xi1>
    %179 = vector.broadcast %178 : vector<16x1xi1> to vector<16x32xi1>
    %180 = vector.broadcast %177 : bf16 to vector<16x32xbf16>
    %181 = arith.select %179, %176, %180 : vector<16x32xi1>, vector<16x32xbf16>
    %c20_105 = arith.constant 20 : index
    %c0_106 = arith.constant 0 : index
    %182 = vector.load %arg8[%c20_105, %c0_106] : memref<37x32xbf16, #tpu.memory_space<vmem>>, vector<16x32xbf16>
    %c21_107 = arith.constant 21 : index
    %c0_108 = arith.constant 0 : index
    %183 = vector.load %arg8[%c21_107, %c0_108] : memref<37x32xbf16, #tpu.memory_space<vmem>>, vector<16x32xbf16>
    %cst_109 = arith.constant 0.000000e+00 : f32
    %184 = arith.truncf %cst_109 : f32 to bf16
    %185 = vector.shape_cast %27 : vector<16x1xi1> to vector<16x1xi1>
    %186 = vector.broadcast %185 : vector<16x1xi1> to vector<16x32xi1>
    %187 = vector.broadcast %184 : bf16 to vector<16x32xbf16>
    %188 = arith.select %186, %183, %187 : vector<16x32xi1>, vector<16x32xbf16>
    %189 = tpu.concatenate %155, %156, %162, %168, %169, %175, %181, %182, %188 in 1 : vector<16x32xbf16>, vector<16x32xbf16>, vector<16x32xbf16>, vector<16x32xbf16>, vector<16x32xbf16>, vector<16x32xbf16>, vector<16x32xbf16>, vector<16x32xbf16>, vector<16x32xbf16> -> vector<16x288xbf16>
    %c2 = arith.constant 2 : index
    %c0_110 = arith.constant 0 : index
    %c0_111 = arith.constant 0 : index
    %190 = vector.load %arg2[%c2, %c0_110, %c0_111] : memref<8x288x32xbf16, #tpu.memory_space<vmem>>, vector<1x288x32xbf16>
    %191 = vector.shape_cast %190 : vector<1x288x32xbf16> to vector<288x32xbf16>
    %cst_112 = arith.constant dense<0.000000e+00> : vector<16x32xf32>
    %192 = tpu.matmul %189, %191, %cst_112 {dimension_numbers = #tpu.dot_dimension_numbers<[1], [0], [0], [1], [0, 0, 1, 1], [], []>} : vector<16x288xbf16>, vector<288x32xbf16>, vector<16x32xf32> -> vector<16x32xf32>
    %c2_113 = arith.constant 2 : index
    %c0_114 = arith.constant 0 : index
    %c0_115 = arith.constant 0 : index
    %193 = vector.load %arg3[%c2_113, %c0_114, %c0_115] : memref<8x1x32xf32, #tpu.memory_space<vmem>>, vector<1x1x32xf32>
    %194 = vector.shape_cast %193 : vector<1x1x32xf32> to vector<1x32xf32>
    %195 = vector.broadcast %194 : vector<1x32xf32> to vector<16x32xf32>
    %196 = arith.addf %192, %195 : vector<16x32xf32>
    %c2_116 = arith.constant 2 : index
    %c0_117 = arith.constant 0 : index
    %c0_118 = arith.constant 0 : index
    %197 = vector.load %arg4[%c2_116, %c0_117, %c0_118] : memref<8x1x32xf32, #tpu.memory_space<vmem>>, vector<1x1x32xf32>
    %198 = vector.shape_cast %197 : vector<1x1x32xf32> to vector<1x32xf32>
    %199 = vector.broadcast %198 : vector<1x32xf32> to vector<16x32xf32>
    %200 = arith.mulf %196, %199 : vector<16x32xf32>
    %c0_119 = arith.constant 0 : index
    %c0_120 = arith.constant 0 : index
    %201 = vector.load %arg9[%c0_119, %c0_120] : memref<16x32xf32, #tpu.memory_space<vmem>>, vector<16x32xf32>
    %202 = arith.addf %200, %201 : vector<16x32xf32>
    %cst_121 = arith.constant 0.000000e+00 : f32
    %203 = vector.broadcast %cst_121 : f32 to vector<16x32xf32>
    %204 = arith.cmpf oge, %202, %203 : vector<16x32xf32>
    %cst_122 = arith.constant 2.000000e-01 : f32
    %205 = vector.broadcast %cst_122 : f32 to vector<16x32xf32>
    %206 = arith.mulf %202, %205 : vector<16x32xf32>
    %207 = arith.select %204, %202, %206 : vector<16x32xi1>, vector<16x32xf32>
    %c0_123 = arith.constant 0 : index
    %c0_124 = arith.constant 0 : index
    %208 = vector.load %arg9[%c0_123, %c0_124] : memref<16x32xf32, #tpu.memory_space<vmem>>, vector<16x32xf32>
    tpu.vector_store %arg9[%c0_123, %c0_124], %207 {strides = array<i32>} : memref<16x32xf32, #tpu.memory_space<vmem>>, vector<16x32xf32>,
    %209 = arith.truncf %207 : vector<16x32xf32> to vector<16x32xbf16>
    %c16_125 = arith.constant 16 : index
    %c0_126 = arith.constant 0 : index
    %210 = vector.load %arg8[%c16_125, %c0_126] : memref<37x32xbf16, #tpu.memory_space<vmem>>, vector<16x32xbf16>
    tpu.vector_store %arg8[%c16_125, %c0_126], %209 {strides = array<i32>} : memref<37x32xbf16, #tpu.memory_space<vmem>>, vector<16x32xbf16>,
    %c11_127 = arith.constant 11 : index
    %c0_128 = arith.constant 0 : index
    %211 = vector.load %arg8[%c11_127, %c0_128] : memref<37x32xbf16, #tpu.memory_space<vmem>>, vector<16x32xbf16>
    %cst_129 = arith.constant 0.000000e+00 : f32
    %212 = arith.truncf %cst_129 : f32 to bf16
    %213 = vector.shape_cast %25 : vector<16x1xi1> to vector<16x1xi1>
    %214 = vector.broadcast %213 : vector<16x1xi1> to vector<16x32xi1>
    %215 = vector.broadcast %212 : bf16 to vector<16x32xbf16>
    %216 = arith.select %214, %211, %215 : vector<16x32xi1>, vector<16x32xbf16>
    %c12_130 = arith.constant 12 : index
    %c0_131 = arith.constant 0 : index
    %217 = vector.load %arg8[%c12_130, %c0_131] : memref<37x32xbf16, #tpu.memory_space<vmem>>, vector<16x32xbf16>
    %c13_132 = arith.constant 13 : index
    %c0_133 = arith.constant 0 : index
    %218 = vector.load %arg8[%c13_132, %c0_133] : memref<37x32xbf16, #tpu.memory_space<vmem>>, vector<16x32xbf16>
    %cst_134 = arith.constant 0.000000e+00 : f32
    %219 = arith.truncf %cst_134 : f32 to bf16
    %220 = vector.shape_cast %27 : vector<16x1xi1> to vector<16x1xi1>
    %221 = vector.broadcast %220 : vector<16x1xi1> to vector<16x32xi1>
    %222 = vector.broadcast %219 : bf16 to vector<16x32xbf16>
    %223 = arith.select %221, %218, %222 : vector<16x32xi1>, vector<16x32xbf16>
    %c15_135 = arith.constant 15 : index
    %c0_136 = arith.constant 0 : index
    %224 = vector.load %arg8[%c15_135, %c0_136] : memref<37x32xbf16, #tpu.memory_space<vmem>>, vector<16x32xbf16>
    %cst_137 = arith.constant 0.000000e+00 : f32
    %225 = arith.truncf %cst_137 : f32 to bf16
    %226 = vector.shape_cast %25 : vector<16x1xi1> to vector<16x1xi1>
    %227 = vector.broadcast %226 : vector<16x1xi1> to vector<16x32xi1>
    %228 = vector.broadcast %225 : bf16 to vector<16x32xbf16>
    %229 = arith.select %227, %224, %228 : vector<16x32xi1>, vector<16x32xbf16>
    %c16_138 = arith.constant 16 : index
    %c0_139 = arith.constant 0 : index
    %230 = vector.load %arg8[%c16_138, %c0_139] : memref<37x32xbf16, #tpu.memory_space<vmem>>, vector<16x32xbf16>
    %c17_140 = arith.constant 17 : index
    %c0_141 = arith.constant 0 : index
    %231 = vector.load %arg8[%c17_140, %c0_141] : memref<37x32xbf16, #tpu.memory_space<vmem>>, vector<16x32xbf16>
    %cst_142 = arith.constant 0.000000e+00 : f32
    %232 = arith.truncf %cst_142 : f32 to bf16
    %233 = vector.shape_cast %27 : vector<16x1xi1> to vector<16x1xi1>
    %234 = vector.broadcast %233 : vector<16x1xi1> to vector<16x32xi1>
    %235 = vector.broadcast %232 : bf16 to vector<16x32xbf16>
    %236 = arith.select %234, %231, %235 : vector<16x32xi1>, vector<16x32xbf16>
    %c19_143 = arith.constant 19 : index
    %c0_144 = arith.constant 0 : index
    %237 = vector.load %arg8[%c19_143, %c0_144] : memref<37x32xbf16, #tpu.memory_space<vmem>>, vector<16x32xbf16>
    %cst_145 = arith.constant 0.000000e+00 : f32
    %238 = arith.truncf %cst_145 : f32 to bf16
    %239 = vector.shape_cast %25 : vector<16x1xi1> to vector<16x1xi1>
    %240 = vector.broadcast %239 : vector<16x1xi1> to vector<16x32xi1>
    %241 = vector.broadcast %238 : bf16 to vector<16x32xbf16>
    %242 = arith.select %240, %237, %241 : vector<16x32xi1>, vector<16x32xbf16>
    %c20_146 = arith.constant 20 : index
    %c0_147 = arith.constant 0 : index
    %243 = vector.load %arg8[%c20_146, %c0_147] : memref<37x32xbf16, #tpu.memory_space<vmem>>, vector<16x32xbf16>
    %c21_148 = arith.constant 21 : index
    %c0_149 = arith.constant 0 : index
    %244 = vector.load %arg8[%c21_148, %c0_149] : memref<37x32xbf16, #tpu.memory_space<vmem>>, vector<16x32xbf16>
    %cst_150 = arith.constant 0.000000e+00 : f32
    %245 = arith.truncf %cst_150 : f32 to bf16
    %246 = vector.shape_cast %27 : vector<16x1xi1> to vector<16x1xi1>
    %247 = vector.broadcast %246 : vector<16x1xi1> to vector<16x32xi1>
    %248 = vector.broadcast %245 : bf16 to vector<16x32xbf16>
    %249 = arith.select %247, %244, %248 : vector<16x32xi1>, vector<16x32xbf16>
    %250 = tpu.concatenate %216, %217, %223, %229, %230, %236, %242, %243, %249 in 1 : vector<16x32xbf16>, vector<16x32xbf16>, vector<16x32xbf16>, vector<16x32xbf16>, vector<16x32xbf16>, vector<16x32xbf16>, vector<16x32xbf16>, vector<16x32xbf16>, vector<16x32xbf16> -> vector<16x288xbf16>
    %c3 = arith.constant 3 : index
    %c0_151 = arith.constant 0 : index
    %c0_152 = arith.constant 0 : index
    %251 = vector.load %arg2[%c3, %c0_151, %c0_152] : memref<8x288x32xbf16, #tpu.memory_space<vmem>>, vector<1x288x32xbf16>
    %252 = vector.shape_cast %251 : vector<1x288x32xbf16> to vector<288x32xbf16>
    %cst_153 = arith.constant dense<0.000000e+00> : vector<16x32xf32>
    %253 = tpu.matmul %250, %252, %cst_153 {dimension_numbers = #tpu.dot_dimension_numbers<[1], [0], [0], [1], [0, 0, 1, 1], [], []>} : vector<16x288xbf16>, vector<288x32xbf16>, vector<16x32xf32> -> vector<16x32xf32>
    %c3_154 = arith.constant 3 : index
    %c0_155 = arith.constant 0 : index
    %c0_156 = arith.constant 0 : index
    %254 = vector.load %arg3[%c3_154, %c0_155, %c0_156] : memref<8x1x32xf32, #tpu.memory_space<vmem>>, vector<1x1x32xf32>
    %255 = vector.shape_cast %254 : vector<1x1x32xf32> to vector<1x32xf32>
    %256 = vector.broadcast %255 : vector<1x32xf32> to vector<16x32xf32>
    %257 = arith.addf %253, %256 : vector<16x32xf32>
    %c3_157 = arith.constant 3 : index
    %c0_158 = arith.constant 0 : index
    %c0_159 = arith.constant 0 : index
    %258 = vector.load %arg4[%c3_157, %c0_158, %c0_159] : memref<8x1x32xf32, #tpu.memory_space<vmem>>, vector<1x1x32xf32>
    %259 = vector.shape_cast %258 : vector<1x1x32xf32> to vector<1x32xf32>
    %260 = vector.broadcast %259 : vector<1x32xf32> to vector<16x32xf32>
    %261 = arith.mulf %257, %260 : vector<16x32xf32>
    %c0_160 = arith.constant 0 : index
    %c0_161 = arith.constant 0 : index
    %262 = vector.load %arg9[%c0_160, %c0_161] : memref<16x32xf32, #tpu.memory_space<vmem>>, vector<16x32xf32>
    %263 = arith.addf %261, %262 : vector<16x32xf32>
    %cst_162 = arith.constant 0.000000e+00 : f32
    %264 = vector.broadcast %cst_162 : f32 to vector<16x32xf32>
    %265 = arith.cmpf oge, %263, %264 : vector<16x32xf32>
    %cst_163 = arith.constant 2.000000e-01 : f32
    %266 = vector.broadcast %cst_163 : f32 to vector<16x32xf32>
    %267 = arith.mulf %263, %266 : vector<16x32xf32>
    %268 = arith.select %265, %263, %267 : vector<16x32xi1>, vector<16x32xf32>
    %c0_164 = arith.constant 0 : index
    %c0_165 = arith.constant 0 : index
    %269 = vector.load %arg9[%c0_164, %c0_165] : memref<16x32xf32, #tpu.memory_space<vmem>>, vector<16x32xf32>
    tpu.vector_store %arg9[%c0_164, %c0_165], %268 {strides = array<i32>} : memref<16x32xf32, #tpu.memory_space<vmem>>, vector<16x32xf32>,
    %270 = arith.truncf %268 : vector<16x32xf32> to vector<16x32xbf16>
    %c16_166 = arith.constant 16 : index
    %c0_167 = arith.constant 0 : index
    %271 = vector.load %arg8[%c16_166, %c0_167] : memref<37x32xbf16, #tpu.memory_space<vmem>>, vector<16x32xbf16>
    tpu.vector_store %arg8[%c16_166, %c0_167], %270 {strides = array<i32>} : memref<37x32xbf16, #tpu.memory_space<vmem>>, vector<16x32xbf16>,
    %c11_168 = arith.constant 11 : index
    %c0_169 = arith.constant 0 : index
    %272 = vector.load %arg8[%c11_168, %c0_169] : memref<37x32xbf16, #tpu.memory_space<vmem>>, vector<16x32xbf16>
    %cst_170 = arith.constant 0.000000e+00 : f32
    %273 = arith.truncf %cst_170 : f32 to bf16
    %274 = vector.shape_cast %25 : vector<16x1xi1> to vector<16x1xi1>
    %275 = vector.broadcast %274 : vector<16x1xi1> to vector<16x32xi1>
    %276 = vector.broadcast %273 : bf16 to vector<16x32xbf16>
    %277 = arith.select %275, %272, %276 : vector<16x32xi1>, vector<16x32xbf16>
    %c12_171 = arith.constant 12 : index
    %c0_172 = arith.constant 0 : index
    %278 = vector.load %arg8[%c12_171, %c0_172] : memref<37x32xbf16, #tpu.memory_space<vmem>>, vector<16x32xbf16>
    %c13_173 = arith.constant 13 : index
    %c0_174 = arith.constant 0 : index
    %279 = vector.load %arg8[%c13_173, %c0_174] : memref<37x32xbf16, #tpu.memory_space<vmem>>, vector<16x32xbf16>
    %cst_175 = arith.constant 0.000000e+00 : f32
    %280 = arith.truncf %cst_175 : f32 to bf16
    %281 = vector.shape_cast %27 : vector<16x1xi1> to vector<16x1xi1>
    %282 = vector.broadcast %281 : vector<16x1xi1> to vector<16x32xi1>
    %283 = vector.broadcast %280 : bf16 to vector<16x32xbf16>
    %284 = arith.select %282, %279, %283 : vector<16x32xi1>, vector<16x32xbf16>
    %c15_176 = arith.constant 15 : index
    %c0_177 = arith.constant 0 : index
    %285 = vector.load %arg8[%c15_176, %c0_177] : memref<37x32xbf16, #tpu.memory_space<vmem>>, vector<16x32xbf16>
    %cst_178 = arith.constant 0.000000e+00 : f32
    %286 = arith.truncf %cst_178 : f32 to bf16
    %287 = vector.shape_cast %25 : vector<16x1xi1> to vector<16x1xi1>
    %288 = vector.broadcast %287 : vector<16x1xi1> to vector<16x32xi1>
    %289 = vector.broadcast %286 : bf16 to vector<16x32xbf16>
    %290 = arith.select %288, %285, %289 : vector<16x32xi1>, vector<16x32xbf16>
    %c16_179 = arith.constant 16 : index
    %c0_180 = arith.constant 0 : index
    %291 = vector.load %arg8[%c16_179, %c0_180] : memref<37x32xbf16, #tpu.memory_space<vmem>>, vector<16x32xbf16>
    %c17_181 = arith.constant 17 : index
    %c0_182 = arith.constant 0 : index
    %292 = vector.load %arg8[%c17_181, %c0_182] : memref<37x32xbf16, #tpu.memory_space<vmem>>, vector<16x32xbf16>
    %cst_183 = arith.constant 0.000000e+00 : f32
    %293 = arith.truncf %cst_183 : f32 to bf16
    %294 = vector.shape_cast %27 : vector<16x1xi1> to vector<16x1xi1>
    %295 = vector.broadcast %294 : vector<16x1xi1> to vector<16x32xi1>
    %296 = vector.broadcast %293 : bf16 to vector<16x32xbf16>
    %297 = arith.select %295, %292, %296 : vector<16x32xi1>, vector<16x32xbf16>
    %c19_184 = arith.constant 19 : index
    %c0_185 = arith.constant 0 : index
    %298 = vector.load %arg8[%c19_184, %c0_185] : memref<37x32xbf16, #tpu.memory_space<vmem>>, vector<16x32xbf16>
    %cst_186 = arith.constant 0.000000e+00 : f32
    %299 = arith.truncf %cst_186 : f32 to bf16
    %300 = vector.shape_cast %25 : vector<16x1xi1> to vector<16x1xi1>
    %301 = vector.broadcast %300 : vector<16x1xi1> to vector<16x32xi1>
    %302 = vector.broadcast %299 : bf16 to vector<16x32xbf16>
    %303 = arith.select %301, %298, %302 : vector<16x32xi1>, vector<16x32xbf16>
    %c20_187 = arith.constant 20 : index
    %c0_188 = arith.constant 0 : index
    %304 = vector.load %arg8[%c20_187, %c0_188] : memref<37x32xbf16, #tpu.memory_space<vmem>>, vector<16x32xbf16>
    %c21_189 = arith.constant 21 : index
    %c0_190 = arith.constant 0 : index
    %305 = vector.load %arg8[%c21_189, %c0_190] : memref<37x32xbf16, #tpu.memory_space<vmem>>, vector<16x32xbf16>
    %cst_191 = arith.constant 0.000000e+00 : f32
    %306 = arith.truncf %cst_191 : f32 to bf16
    %307 = vector.shape_cast %27 : vector<16x1xi1> to vector<16x1xi1>
    %308 = vector.broadcast %307 : vector<16x1xi1> to vector<16x32xi1>
    %309 = vector.broadcast %306 : bf16 to vector<16x32xbf16>
    %310 = arith.select %308, %305, %309 : vector<16x32xi1>, vector<16x32xbf16>
    %311 = tpu.concatenate %277, %278, %284, %290, %291, %297, %303, %304, %310 in 1 : vector<16x32xbf16>, vector<16x32xbf16>, vector<16x32xbf16>, vector<16x32xbf16>, vector<16x32xbf16>, vector<16x32xbf16>, vector<16x32xbf16>, vector<16x32xbf16>, vector<16x32xbf16> -> vector<16x288xbf16>
    %c4 = arith.constant 4 : index
    %c0_192 = arith.constant 0 : index
    %c0_193 = arith.constant 0 : index
    %312 = vector.load %arg2[%c4, %c0_192, %c0_193] : memref<8x288x32xbf16, #tpu.memory_space<vmem>>, vector<1x288x32xbf16>
    %313 = vector.shape_cast %312 : vector<1x288x32xbf16> to vector<288x32xbf16>
    %cst_194 = arith.constant dense<0.000000e+00> : vector<16x32xf32>
    %314 = tpu.matmul %311, %313, %cst_194 {dimension_numbers = #tpu.dot_dimension_numbers<[1], [0], [0], [1], [0, 0, 1, 1], [], []>} : vector<16x288xbf16>, vector<288x32xbf16>, vector<16x32xf32> -> vector<16x32xf32>
    %c4_195 = arith.constant 4 : index
    %c0_196 = arith.constant 0 : index
    %c0_197 = arith.constant 0 : index
    %315 = vector.load %arg3[%c4_195, %c0_196, %c0_197] : memref<8x1x32xf32, #tpu.memory_space<vmem>>, vector<1x1x32xf32>
    %316 = vector.shape_cast %315 : vector<1x1x32xf32> to vector<1x32xf32>
    %317 = vector.broadcast %316 : vector<1x32xf32> to vector<16x32xf32>
    %318 = arith.addf %314, %317 : vector<16x32xf32>
    %c4_198 = arith.constant 4 : index
    %c0_199 = arith.constant 0 : index
    %c0_200 = arith.constant 0 : index
    %319 = vector.load %arg4[%c4_198, %c0_199, %c0_200] : memref<8x1x32xf32, #tpu.memory_space<vmem>>, vector<1x1x32xf32>
    %320 = vector.shape_cast %319 : vector<1x1x32xf32> to vector<1x32xf32>
    %321 = vector.broadcast %320 : vector<1x32xf32> to vector<16x32xf32>
    %322 = arith.mulf %318, %321 : vector<16x32xf32>
    %c0_201 = arith.constant 0 : index
    %c0_202 = arith.constant 0 : index
    %323 = vector.load %arg9[%c0_201, %c0_202] : memref<16x32xf32, #tpu.memory_space<vmem>>, vector<16x32xf32>
    %324 = arith.addf %322, %323 : vector<16x32xf32>
    %cst_203 = arith.constant 0.000000e+00 : f32
    %325 = vector.broadcast %cst_203 : f32 to vector<16x32xf32>
    %326 = arith.cmpf oge, %324, %325 : vector<16x32xf32>
    %cst_204 = arith.constant 2.000000e-01 : f32
    %327 = vector.broadcast %cst_204 : f32 to vector<16x32xf32>
    %328 = arith.mulf %324, %327 : vector<16x32xf32>
    %329 = arith.select %326, %324, %328 : vector<16x32xi1>, vector<16x32xf32>
    %c0_205 = arith.constant 0 : index
    %c0_206 = arith.constant 0 : index
    %330 = vector.load %arg9[%c0_205, %c0_206] : memref<16x32xf32, #tpu.memory_space<vmem>>, vector<16x32xf32>
    tpu.vector_store %arg9[%c0_205, %c0_206], %329 {strides = array<i32>} : memref<16x32xf32, #tpu.memory_space<vmem>>, vector<16x32xf32>,
    %331 = arith.truncf %329 : vector<16x32xf32> to vector<16x32xbf16>
    %c16_207 = arith.constant 16 : index
    %c0_208 = arith.constant 0 : index
    %332 = vector.load %arg8[%c16_207, %c0_208] : memref<37x32xbf16, #tpu.memory_space<vmem>>, vector<16x32xbf16>
    tpu.vector_store %arg8[%c16_207, %c0_208], %331 {strides = array<i32>} : memref<37x32xbf16, #tpu.memory_space<vmem>>, vector<16x32xbf16>,
    %c11_209 = arith.constant 11 : index
    %c0_210 = arith.constant 0 : index
    %333 = vector.load %arg8[%c11_209, %c0_210] : memref<37x32xbf16, #tpu.memory_space<vmem>>, vector<16x32xbf16>
    %cst_211 = arith.constant 0.000000e+00 : f32
    %334 = arith.truncf %cst_211 : f32 to bf16
    %335 = vector.shape_cast %25 : vector<16x1xi1> to vector<16x1xi1>
    %336 = vector.broadcast %335 : vector<16x1xi1> to vector<16x32xi1>
    %337 = vector.broadcast %334 : bf16 to vector<16x32xbf16>
    %338 = arith.select %336, %333, %337 : vector<16x32xi1>, vector<16x32xbf16>
    %c12_212 = arith.constant 12 : index
    %c0_213 = arith.constant 0 : index
    %339 = vector.load %arg8[%c12_212, %c0_213] : memref<37x32xbf16, #tpu.memory_space<vmem>>, vector<16x32xbf16>
    %c13_214 = arith.constant 13 : index
    %c0_215 = arith.constant 0 : index
    %340 = vector.load %arg8[%c13_214, %c0_215] : memref<37x32xbf16, #tpu.memory_space<vmem>>, vector<16x32xbf16>
    %cst_216 = arith.constant 0.000000e+00 : f32
    %341 = arith.truncf %cst_216 : f32 to bf16
    %342 = vector.shape_cast %27 : vector<16x1xi1> to vector<16x1xi1>
    %343 = vector.broadcast %342 : vector<16x1xi1> to vector<16x32xi1>
    %344 = vector.broadcast %341 : bf16 to vector<16x32xbf16>
    %345 = arith.select %343, %340, %344 : vector<16x32xi1>, vector<16x32xbf16>
    %c15_217 = arith.constant 15 : index
    %c0_218 = arith.constant 0 : index
    %346 = vector.load %arg8[%c15_217, %c0_218] : memref<37x32xbf16, #tpu.memory_space<vmem>>, vector<16x32xbf16>
    %cst_219 = arith.constant 0.000000e+00 : f32
    %347 = arith.truncf %cst_219 : f32 to bf16
    %348 = vector.shape_cast %25 : vector<16x1xi1> to vector<16x1xi1>
    %349 = vector.broadcast %348 : vector<16x1xi1> to vector<16x32xi1>
    %350 = vector.broadcast %347 : bf16 to vector<16x32xbf16>
    %351 = arith.select %349, %346, %350 : vector<16x32xi1>, vector<16x32xbf16>
    %c16_220 = arith.constant 16 : index
    %c0_221 = arith.constant 0 : index
    %352 = vector.load %arg8[%c16_220, %c0_221] : memref<37x32xbf16, #tpu.memory_space<vmem>>, vector<16x32xbf16>
    %c17_222 = arith.constant 17 : index
    %c0_223 = arith.constant 0 : index
    %353 = vector.load %arg8[%c17_222, %c0_223] : memref<37x32xbf16, #tpu.memory_space<vmem>>, vector<16x32xbf16>
    %cst_224 = arith.constant 0.000000e+00 : f32
    %354 = arith.truncf %cst_224 : f32 to bf16
    %355 = vector.shape_cast %27 : vector<16x1xi1> to vector<16x1xi1>
    %356 = vector.broadcast %355 : vector<16x1xi1> to vector<16x32xi1>
    %357 = vector.broadcast %354 : bf16 to vector<16x32xbf16>
    %358 = arith.select %356, %353, %357 : vector<16x32xi1>, vector<16x32xbf16>
    %c19_225 = arith.constant 19 : index
    %c0_226 = arith.constant 0 : index
    %359 = vector.load %arg8[%c19_225, %c0_226] : memref<37x32xbf16, #tpu.memory_space<vmem>>, vector<16x32xbf16>
    %cst_227 = arith.constant 0.000000e+00 : f32
    %360 = arith.truncf %cst_227 : f32 to bf16
    %361 = vector.shape_cast %25 : vector<16x1xi1> to vector<16x1xi1>
    %362 = vector.broadcast %361 : vector<16x1xi1> to vector<16x32xi1>
    %363 = vector.broadcast %360 : bf16 to vector<16x32xbf16>
    %364 = arith.select %362, %359, %363 : vector<16x32xi1>, vector<16x32xbf16>
    %c20_228 = arith.constant 20 : index
    %c0_229 = arith.constant 0 : index
    %365 = vector.load %arg8[%c20_228, %c0_229] : memref<37x32xbf16, #tpu.memory_space<vmem>>, vector<16x32xbf16>
    %c21_230 = arith.constant 21 : index
    %c0_231 = arith.constant 0 : index
    %366 = vector.load %arg8[%c21_230, %c0_231] : memref<37x32xbf16, #tpu.memory_space<vmem>>, vector<16x32xbf16>
    %cst_232 = arith.constant 0.000000e+00 : f32
    %367 = arith.truncf %cst_232 : f32 to bf16
    %368 = vector.shape_cast %27 : vector<16x1xi1> to vector<16x1xi1>
    %369 = vector.broadcast %368 : vector<16x1xi1> to vector<16x32xi1>
    %370 = vector.broadcast %367 : bf16 to vector<16x32xbf16>
    %371 = arith.select %369, %366, %370 : vector<16x32xi1>, vector<16x32xbf16>
    %372 = tpu.concatenate %338, %339, %345, %351, %352, %358, %364, %365, %371 in 1 : vector<16x32xbf16>, vector<16x32xbf16>, vector<16x32xbf16>, vector<16x32xbf16>, vector<16x32xbf16>, vector<16x32xbf16>, vector<16x32xbf16>, vector<16x32xbf16>, vector<16x32xbf16> -> vector<16x288xbf16>
    %c5 = arith.constant 5 : index
    %c0_233 = arith.constant 0 : index
    %c0_234 = arith.constant 0 : index
    %373 = vector.load %arg2[%c5, %c0_233, %c0_234] : memref<8x288x32xbf16, #tpu.memory_space<vmem>>, vector<1x288x32xbf16>
    %374 = vector.shape_cast %373 : vector<1x288x32xbf16> to vector<288x32xbf16>
    %cst_235 = arith.constant dense<0.000000e+00> : vector<16x32xf32>
    %375 = tpu.matmul %372, %374, %cst_235 {dimension_numbers = #tpu.dot_dimension_numbers<[1], [0], [0], [1], [0, 0, 1, 1], [], []>} : vector<16x288xbf16>, vector<288x32xbf16>, vector<16x32xf32> -> vector<16x32xf32>
    %c5_236 = arith.constant 5 : index
    %c0_237 = arith.constant 0 : index
    %c0_238 = arith.constant 0 : index
    %376 = vector.load %arg3[%c5_236, %c0_237, %c0_238] : memref<8x1x32xf32, #tpu.memory_space<vmem>>, vector<1x1x32xf32>
    %377 = vector.shape_cast %376 : vector<1x1x32xf32> to vector<1x32xf32>
    %378 = vector.broadcast %377 : vector<1x32xf32> to vector<16x32xf32>
    %379 = arith.addf %375, %378 : vector<16x32xf32>
    %c5_239 = arith.constant 5 : index
    %c0_240 = arith.constant 0 : index
    %c0_241 = arith.constant 0 : index
    %380 = vector.load %arg4[%c5_239, %c0_240, %c0_241] : memref<8x1x32xf32, #tpu.memory_space<vmem>>, vector<1x1x32xf32>
    %381 = vector.shape_cast %380 : vector<1x1x32xf32> to vector<1x32xf32>
    %382 = vector.broadcast %381 : vector<1x32xf32> to vector<16x32xf32>
    %383 = arith.mulf %379, %382 : vector<16x32xf32>
    %c0_242 = arith.constant 0 : index
    %c0_243 = arith.constant 0 : index
    %384 = vector.load %arg9[%c0_242, %c0_243] : memref<16x32xf32, #tpu.memory_space<vmem>>, vector<16x32xf32>
    %385 = arith.addf %383, %384 : vector<16x32xf32>
    %cst_244 = arith.constant 0.000000e+00 : f32
    %386 = vector.broadcast %cst_244 : f32 to vector<16x32xf32>
    %387 = arith.cmpf oge, %385, %386 : vector<16x32xf32>
    %cst_245 = arith.constant 2.000000e-01 : f32
    %388 = vector.broadcast %cst_245 : f32 to vector<16x32xf32>
    %389 = arith.mulf %385, %388 : vector<16x32xf32>
    %390 = arith.select %387, %385, %389 : vector<16x32xi1>, vector<16x32xf32>
    %c0_246 = arith.constant 0 : index
    %c0_247 = arith.constant 0 : index
    %391 = vector.load %arg9[%c0_246, %c0_247] : memref<16x32xf32, #tpu.memory_space<vmem>>, vector<16x32xf32>
    tpu.vector_store %arg9[%c0_246, %c0_247], %390 {strides = array<i32>} : memref<16x32xf32, #tpu.memory_space<vmem>>, vector<16x32xf32>,
    %392 = arith.truncf %390 : vector<16x32xf32> to vector<16x32xbf16>
    %c16_248 = arith.constant 16 : index
    %c0_249 = arith.constant 0 : index
    %393 = vector.load %arg8[%c16_248, %c0_249] : memref<37x32xbf16, #tpu.memory_space<vmem>>, vector<16x32xbf16>
    tpu.vector_store %arg8[%c16_248, %c0_249], %392 {strides = array<i32>} : memref<37x32xbf16, #tpu.memory_space<vmem>>, vector<16x32xbf16>,
    %c11_250 = arith.constant 11 : index
    %c0_251 = arith.constant 0 : index
    %394 = vector.load %arg8[%c11_250, %c0_251] : memref<37x32xbf16, #tpu.memory_space<vmem>>, vector<16x32xbf16>
    %cst_252 = arith.constant 0.000000e+00 : f32
    %395 = arith.truncf %cst_252 : f32 to bf16
    %396 = vector.shape_cast %25 : vector<16x1xi1> to vector<16x1xi1>
    %397 = vector.broadcast %396 : vector<16x1xi1> to vector<16x32xi1>
    %398 = vector.broadcast %395 : bf16 to vector<16x32xbf16>
    %399 = arith.select %397, %394, %398 : vector<16x32xi1>, vector<16x32xbf16>
    %c12_253 = arith.constant 12 : index
    %c0_254 = arith.constant 0 : index
    %400 = vector.load %arg8[%c12_253, %c0_254] : memref<37x32xbf16, #tpu.memory_space<vmem>>, vector<16x32xbf16>
    %c13_255 = arith.constant 13 : index
    %c0_256 = arith.constant 0 : index
    %401 = vector.load %arg8[%c13_255, %c0_256] : memref<37x32xbf16, #tpu.memory_space<vmem>>, vector<16x32xbf16>
    %cst_257 = arith.constant 0.000000e+00 : f32
    %402 = arith.truncf %cst_257 : f32 to bf16
    %403 = vector.shape_cast %27 : vector<16x1xi1> to vector<16x1xi1>
    %404 = vector.broadcast %403 : vector<16x1xi1> to vector<16x32xi1>
    %405 = vector.broadcast %402 : bf16 to vector<16x32xbf16>
    %406 = arith.select %404, %401, %405 : vector<16x32xi1>, vector<16x32xbf16>
    %c15_258 = arith.constant 15 : index
    %c0_259 = arith.constant 0 : index
    %407 = vector.load %arg8[%c15_258, %c0_259] : memref<37x32xbf16, #tpu.memory_space<vmem>>, vector<16x32xbf16>
    %cst_260 = arith.constant 0.000000e+00 : f32
    %408 = arith.truncf %cst_260 : f32 to bf16
    %409 = vector.shape_cast %25 : vector<16x1xi1> to vector<16x1xi1>
    %410 = vector.broadcast %409 : vector<16x1xi1> to vector<16x32xi1>
    %411 = vector.broadcast %408 : bf16 to vector<16x32xbf16>
    %412 = arith.select %410, %407, %411 : vector<16x32xi1>, vector<16x32xbf16>
    %c16_261 = arith.constant 16 : index
    %c0_262 = arith.constant 0 : index
    %413 = vector.load %arg8[%c16_261, %c0_262] : memref<37x32xbf16, #tpu.memory_space<vmem>>, vector<16x32xbf16>
    %c17_263 = arith.constant 17 : index
    %c0_264 = arith.constant 0 : index
    %414 = vector.load %arg8[%c17_263, %c0_264] : memref<37x32xbf16, #tpu.memory_space<vmem>>, vector<16x32xbf16>
    %cst_265 = arith.constant 0.000000e+00 : f32
    %415 = arith.truncf %cst_265 : f32 to bf16
    %416 = vector.shape_cast %27 : vector<16x1xi1> to vector<16x1xi1>
    %417 = vector.broadcast %416 : vector<16x1xi1> to vector<16x32xi1>
    %418 = vector.broadcast %415 : bf16 to vector<16x32xbf16>
    %419 = arith.select %417, %414, %418 : vector<16x32xi1>, vector<16x32xbf16>
    %c19_266 = arith.constant 19 : index
    %c0_267 = arith.constant 0 : index
    %420 = vector.load %arg8[%c19_266, %c0_267] : memref<37x32xbf16, #tpu.memory_space<vmem>>, vector<16x32xbf16>
    %cst_268 = arith.constant 0.000000e+00 : f32
    %421 = arith.truncf %cst_268 : f32 to bf16
    %422 = vector.shape_cast %25 : vector<16x1xi1> to vector<16x1xi1>
    %423 = vector.broadcast %422 : vector<16x1xi1> to vector<16x32xi1>
    %424 = vector.broadcast %421 : bf16 to vector<16x32xbf16>
    %425 = arith.select %423, %420, %424 : vector<16x32xi1>, vector<16x32xbf16>
    %c20_269 = arith.constant 20 : index
    %c0_270 = arith.constant 0 : index
    %426 = vector.load %arg8[%c20_269, %c0_270] : memref<37x32xbf16, #tpu.memory_space<vmem>>, vector<16x32xbf16>
    %c21_271 = arith.constant 21 : index
    %c0_272 = arith.constant 0 : index
    %427 = vector.load %arg8[%c21_271, %c0_272] : memref<37x32xbf16, #tpu.memory_space<vmem>>, vector<16x32xbf16>
    %cst_273 = arith.constant 0.000000e+00 : f32
    %428 = arith.truncf %cst_273 : f32 to bf16
    %429 = vector.shape_cast %27 : vector<16x1xi1> to vector<16x1xi1>
    %430 = vector.broadcast %429 : vector<16x1xi1> to vector<16x32xi1>
    %431 = vector.broadcast %428 : bf16 to vector<16x32xbf16>
    %432 = arith.select %430, %427, %431 : vector<16x32xi1>, vector<16x32xbf16>
    %433 = tpu.concatenate %399, %400, %406, %412, %413, %419, %425, %426, %432 in 1 : vector<16x32xbf16>, vector<16x32xbf16>, vector<16x32xbf16>, vector<16x32xbf16>, vector<16x32xbf16>, vector<16x32xbf16>, vector<16x32xbf16>, vector<16x32xbf16>, vector<16x32xbf16> -> vector<16x288xbf16>
    %c6 = arith.constant 6 : index
    %c0_274 = arith.constant 0 : index
    %c0_275 = arith.constant 0 : index
    %434 = vector.load %arg2[%c6, %c0_274, %c0_275] : memref<8x288x32xbf16, #tpu.memory_space<vmem>>, vector<1x288x32xbf16>
    %435 = vector.shape_cast %434 : vector<1x288x32xbf16> to vector<288x32xbf16>
    %cst_276 = arith.constant dense<0.000000e+00> : vector<16x32xf32>
    %436 = tpu.matmul %433, %435, %cst_276 {dimension_numbers = #tpu.dot_dimension_numbers<[1], [0], [0], [1], [0, 0, 1, 1], [], []>} : vector<16x288xbf16>, vector<288x32xbf16>, vector<16x32xf32> -> vector<16x32xf32>
    %c6_277 = arith.constant 6 : index
    %c0_278 = arith.constant 0 : index
    %c0_279 = arith.constant 0 : index
    %437 = vector.load %arg3[%c6_277, %c0_278, %c0_279] : memref<8x1x32xf32, #tpu.memory_space<vmem>>, vector<1x1x32xf32>
    %438 = vector.shape_cast %437 : vector<1x1x32xf32> to vector<1x32xf32>
    %439 = vector.broadcast %438 : vector<1x32xf32> to vector<16x32xf32>
    %440 = arith.addf %436, %439 : vector<16x32xf32>
    %c6_280 = arith.constant 6 : index
    %c0_281 = arith.constant 0 : index
    %c0_282 = arith.constant 0 : index
    %441 = vector.load %arg4[%c6_280, %c0_281, %c0_282] : memref<8x1x32xf32, #tpu.memory_space<vmem>>, vector<1x1x32xf32>
    %442 = vector.shape_cast %441 : vector<1x1x32xf32> to vector<1x32xf32>
    %443 = vector.broadcast %442 : vector<1x32xf32> to vector<16x32xf32>
    %444 = arith.mulf %440, %443 : vector<16x32xf32>
    %c0_283 = arith.constant 0 : index
    %c0_284 = arith.constant 0 : index
    %445 = vector.load %arg9[%c0_283, %c0_284] : memref<16x32xf32, #tpu.memory_space<vmem>>, vector<16x32xf32>
    %446 = arith.addf %444, %445 : vector<16x32xf32>
    %cst_285 = arith.constant 0.000000e+00 : f32
    %447 = vector.broadcast %cst_285 : f32 to vector<16x32xf32>
    %448 = arith.cmpf oge, %446, %447 : vector<16x32xf32>
    %cst_286 = arith.constant 2.000000e-01 : f32
    %449 = vector.broadcast %cst_286 : f32 to vector<16x32xf32>
    %450 = arith.mulf %446, %449 : vector<16x32xf32>
    %451 = arith.select %448, %446, %450 : vector<16x32xi1>, vector<16x32xf32>
    %c0_287 = arith.constant 0 : index
    %c0_288 = arith.constant 0 : index
    %452 = vector.load %arg9[%c0_287, %c0_288] : memref<16x32xf32, #tpu.memory_space<vmem>>, vector<16x32xf32>
    tpu.vector_store %arg9[%c0_287, %c0_288], %451 {strides = array<i32>} : memref<16x32xf32, #tpu.memory_space<vmem>>, vector<16x32xf32>,
    %453 = arith.truncf %451 : vector<16x32xf32> to vector<16x32xbf16>
    %c16_289 = arith.constant 16 : index
    %c0_290 = arith.constant 0 : index
    %454 = vector.load %arg8[%c16_289, %c0_290] : memref<37x32xbf16, #tpu.memory_space<vmem>>, vector<16x32xbf16>
    tpu.vector_store %arg8[%c16_289, %c0_290], %453 {strides = array<i32>} : memref<37x32xbf16, #tpu.memory_space<vmem>>, vector<16x32xbf16>,
    %c11_291 = arith.constant 11 : index
    %c0_292 = arith.constant 0 : index
    %455 = vector.load %arg8[%c11_291, %c0_292] : memref<37x32xbf16, #tpu.memory_space<vmem>>, vector<16x32xbf16>
    %cst_293 = arith.constant 0.000000e+00 : f32
    %456 = arith.truncf %cst_293 : f32 to bf16
    %457 = vector.shape_cast %25 : vector<16x1xi1> to vector<16x1xi1>
    %458 = vector.broadcast %457 : vector<16x1xi1> to vector<16x32xi1>
    %459 = vector.broadcast %456 : bf16 to vector<16x32xbf16>
    %460 = arith.select %458, %455, %459 : vector<16x32xi1>, vector<16x32xbf16>
    %c12_294 = arith.constant 12 : index
    %c0_295 = arith.constant 0 : index
    %461 = vector.load %arg8[%c12_294, %c0_295] : memref<37x32xbf16, #tpu.memory_space<vmem>>, vector<16x32xbf16>
    %c13_296 = arith.constant 13 : index
    %c0_297 = arith.constant 0 : index
    %462 = vector.load %arg8[%c13_296, %c0_297] : memref<37x32xbf16, #tpu.memory_space<vmem>>, vector<16x32xbf16>
    %cst_298 = arith.constant 0.000000e+00 : f32
    %463 = arith.truncf %cst_298 : f32 to bf16
    %464 = vector.shape_cast %27 : vector<16x1xi1> to vector<16x1xi1>
    %465 = vector.broadcast %464 : vector<16x1xi1> to vector<16x32xi1>
    %466 = vector.broadcast %463 : bf16 to vector<16x32xbf16>
    %467 = arith.select %465, %462, %466 : vector<16x32xi1>, vector<16x32xbf16>
    %c15_299 = arith.constant 15 : index
    %c0_300 = arith.constant 0 : index
    %468 = vector.load %arg8[%c15_299, %c0_300] : memref<37x32xbf16, #tpu.memory_space<vmem>>, vector<16x32xbf16>
    %cst_301 = arith.constant 0.000000e+00 : f32
    %469 = arith.truncf %cst_301 : f32 to bf16
    %470 = vector.shape_cast %25 : vector<16x1xi1> to vector<16x1xi1>
    %471 = vector.broadcast %470 : vector<16x1xi1> to vector<16x32xi1>
    %472 = vector.broadcast %469 : bf16 to vector<16x32xbf16>
    %473 = arith.select %471, %468, %472 : vector<16x32xi1>, vector<16x32xbf16>
    %c16_302 = arith.constant 16 : index
    %c0_303 = arith.constant 0 : index
    %474 = vector.load %arg8[%c16_302, %c0_303] : memref<37x32xbf16, #tpu.memory_space<vmem>>, vector<16x32xbf16>
    %c17_304 = arith.constant 17 : index
    %c0_305 = arith.constant 0 : index
    %475 = vector.load %arg8[%c17_304, %c0_305] : memref<37x32xbf16, #tpu.memory_space<vmem>>, vector<16x32xbf16>
    %cst_306 = arith.constant 0.000000e+00 : f32
    %476 = arith.truncf %cst_306 : f32 to bf16
    %477 = vector.shape_cast %27 : vector<16x1xi1> to vector<16x1xi1>
    %478 = vector.broadcast %477 : vector<16x1xi1> to vector<16x32xi1>
    %479 = vector.broadcast %476 : bf16 to vector<16x32xbf16>
    %480 = arith.select %478, %475, %479 : vector<16x32xi1>, vector<16x32xbf16>
    %c19_307 = arith.constant 19 : index
    %c0_308 = arith.constant 0 : index
    %481 = vector.load %arg8[%c19_307, %c0_308] : memref<37x32xbf16, #tpu.memory_space<vmem>>, vector<16x32xbf16>
    %cst_309 = arith.constant 0.000000e+00 : f32
    %482 = arith.truncf %cst_309 : f32 to bf16
    %483 = vector.shape_cast %25 : vector<16x1xi1> to vector<16x1xi1>
    %484 = vector.broadcast %483 : vector<16x1xi1> to vector<16x32xi1>
    %485 = vector.broadcast %482 : bf16 to vector<16x32xbf16>
    %486 = arith.select %484, %481, %485 : vector<16x32xi1>, vector<16x32xbf16>
    %c20_310 = arith.constant 20 : index
    %c0_311 = arith.constant 0 : index
    %487 = vector.load %arg8[%c20_310, %c0_311] : memref<37x32xbf16, #tpu.memory_space<vmem>>, vector<16x32xbf16>
    %c21_312 = arith.constant 21 : index
    %c0_313 = arith.constant 0 : index
    %488 = vector.load %arg8[%c21_312, %c0_313] : memref<37x32xbf16, #tpu.memory_space<vmem>>, vector<16x32xbf16>
    %cst_314 = arith.constant 0.000000e+00 : f32
    %489 = arith.truncf %cst_314 : f32 to bf16
    %490 = vector.shape_cast %27 : vector<16x1xi1> to vector<16x1xi1>
    %491 = vector.broadcast %490 : vector<16x1xi1> to vector<16x32xi1>
    %492 = vector.broadcast %489 : bf16 to vector<16x32xbf16>
    %493 = arith.select %491, %488, %492 : vector<16x32xi1>, vector<16x32xbf16>
    %494 = tpu.concatenate %460, %461, %467, %473, %474, %480, %486, %487, %493 in 1 : vector<16x32xbf16>, vector<16x32xbf16>, vector<16x32xbf16>, vector<16x32xbf16>, vector<16x32xbf16>, vector<16x32xbf16>, vector<16x32xbf16>, vector<16x32xbf16>, vector<16x32xbf16> -> vector<16x288xbf16>
    %c7 = arith.constant 7 : index
    %c0_315 = arith.constant 0 : index
    %c0_316 = arith.constant 0 : index
    %495 = vector.load %arg2[%c7, %c0_315, %c0_316] : memref<8x288x32xbf16, #tpu.memory_space<vmem>>, vector<1x288x32xbf16>
    %496 = vector.shape_cast %495 : vector<1x288x32xbf16> to vector<288x32xbf16>
    %cst_317 = arith.constant dense<0.000000e+00> : vector<16x32xf32>
    %497 = tpu.matmul %494, %496, %cst_317 {dimension_numbers = #tpu.dot_dimension_numbers<[1], [0], [0], [1], [0, 0, 1, 1], [], []>} : vector<16x288xbf16>, vector<288x32xbf16>, vector<16x32xf32> -> vector<16x32xf32>
    %c7_318 = arith.constant 7 : index
    %c0_319 = arith.constant 0 : index
    %c0_320 = arith.constant 0 : index
    %498 = vector.load %arg3[%c7_318, %c0_319, %c0_320] : memref<8x1x32xf32, #tpu.memory_space<vmem>>, vector<1x1x32xf32>
    %499 = vector.shape_cast %498 : vector<1x1x32xf32> to vector<1x32xf32>
    %500 = vector.broadcast %499 : vector<1x32xf32> to vector<16x32xf32>
    %501 = arith.addf %497, %500 : vector<16x32xf32>
    %c7_321 = arith.constant 7 : index
    %c0_322 = arith.constant 0 : index
    %c0_323 = arith.constant 0 : index
    %502 = vector.load %arg4[%c7_321, %c0_322, %c0_323] : memref<8x1x32xf32, #tpu.memory_space<vmem>>, vector<1x1x32xf32>
    %503 = vector.shape_cast %502 : vector<1x1x32xf32> to vector<1x32xf32>
    %504 = vector.broadcast %503 : vector<1x32xf32> to vector<16x32xf32>
    %505 = arith.mulf %501, %504 : vector<16x32xf32>
    %c0_324 = arith.constant 0 : index
    %c0_325 = arith.constant 0 : index
    %506 = vector.load %arg9[%c0_324, %c0_325] : memref<16x32xf32, #tpu.memory_space<vmem>>, vector<16x32xf32>
    %507 = arith.addf %505, %506 : vector<16x32xf32>
    %cst_326 = arith.constant 0.000000e+00 : f32
    %508 = vector.broadcast %cst_326 : f32 to vector<16x32xf32>
    %509 = arith.cmpf oge, %507, %508 : vector<16x32xf32>
    %cst_327 = arith.constant 2.000000e-01 : f32
    %510 = vector.broadcast %cst_327 : f32 to vector<16x32xf32>
    %511 = arith.mulf %507, %510 : vector<16x32xf32>
    %512 = arith.select %509, %507, %511 : vector<16x32xi1>, vector<16x32xf32>
    %c0_328 = arith.constant 0 : index
    %c0_329 = arith.constant 0 : index
    %513 = vector.load %arg9[%c0_328, %c0_329] : memref<16x32xf32, #tpu.memory_space<vmem>>, vector<16x32xf32>
    tpu.vector_store %arg9[%c0_328, %c0_329], %512 {strides = array<i32>} : memref<16x32xf32, #tpu.memory_space<vmem>>, vector<16x32xf32>,
    %514 = arith.truncf %512 : vector<16x32xf32> to vector<16x32xbf16>
    %c16_330 = arith.constant 16 : index
    %c0_331 = arith.constant 0 : index
    %515 = vector.load %arg8[%c16_330, %c0_331] : memref<37x32xbf16, #tpu.memory_space<vmem>>, vector<16x32xbf16>
    tpu.vector_store %arg8[%c16_330, %c0_331], %514 {strides = array<i32>} : memref<37x32xbf16, #tpu.memory_space<vmem>>, vector<16x32xbf16>,
    %c11_332 = arith.constant 11 : index
    %c0_333 = arith.constant 0 : index
    %516 = vector.load %arg8[%c11_332, %c0_333] : memref<37x32xbf16, #tpu.memory_space<vmem>>, vector<16x32xbf16>
    %cst_334 = arith.constant 0.000000e+00 : f32
    %517 = arith.truncf %cst_334 : f32 to bf16
    %518 = vector.shape_cast %25 : vector<16x1xi1> to vector<16x1xi1>
    %519 = vector.broadcast %518 : vector<16x1xi1> to vector<16x32xi1>
    %520 = vector.broadcast %517 : bf16 to vector<16x32xbf16>
    %521 = arith.select %519, %516, %520 : vector<16x32xi1>, vector<16x32xbf16>
    %c12_335 = arith.constant 12 : index
    %c0_336 = arith.constant 0 : index
    %522 = vector.load %arg8[%c12_335, %c0_336] : memref<37x32xbf16, #tpu.memory_space<vmem>>, vector<16x32xbf16>
    %c13_337 = arith.constant 13 : index
    %c0_338 = arith.constant 0 : index
    %523 = vector.load %arg8[%c13_337, %c0_338] : memref<37x32xbf16, #tpu.memory_space<vmem>>, vector<16x32xbf16>
    %cst_339 = arith.constant 0.000000e+00 : f32
    %524 = arith.truncf %cst_339 : f32 to bf16
    %525 = vector.shape_cast %27 : vector<16x1xi1> to vector<16x1xi1>
    %526 = vector.broadcast %525 : vector<16x1xi1> to vector<16x32xi1>
    %527 = vector.broadcast %524 : bf16 to vector<16x32xbf16>
    %528 = arith.select %526, %523, %527 : vector<16x32xi1>, vector<16x32xbf16>
    %c15_340 = arith.constant 15 : index
    %c0_341 = arith.constant 0 : index
    %529 = vector.load %arg8[%c15_340, %c0_341] : memref<37x32xbf16, #tpu.memory_space<vmem>>, vector<16x32xbf16>
    %cst_342 = arith.constant 0.000000e+00 : f32
    %530 = arith.truncf %cst_342 : f32 to bf16
    %531 = vector.shape_cast %25 : vector<16x1xi1> to vector<16x1xi1>
    %532 = vector.broadcast %531 : vector<16x1xi1> to vector<16x32xi1>
    %533 = vector.broadcast %530 : bf16 to vector<16x32xbf16>
    %534 = arith.select %532, %529, %533 : vector<16x32xi1>, vector<16x32xbf16>
    %c16_343 = arith.constant 16 : index
    %c0_344 = arith.constant 0 : index
    %535 = vector.load %arg8[%c16_343, %c0_344] : memref<37x32xbf16, #tpu.memory_space<vmem>>, vector<16x32xbf16>
    %c17_345 = arith.constant 17 : index
    %c0_346 = arith.constant 0 : index
    %536 = vector.load %arg8[%c17_345, %c0_346] : memref<37x32xbf16, #tpu.memory_space<vmem>>, vector<16x32xbf16>
    %cst_347 = arith.constant 0.000000e+00 : f32
    %537 = arith.truncf %cst_347 : f32 to bf16
    %538 = vector.shape_cast %27 : vector<16x1xi1> to vector<16x1xi1>
    %539 = vector.broadcast %538 : vector<16x1xi1> to vector<16x32xi1>
    %540 = vector.broadcast %537 : bf16 to vector<16x32xbf16>
    %541 = arith.select %539, %536, %540 : vector<16x32xi1>, vector<16x32xbf16>
    %c19_348 = arith.constant 19 : index
    %c0_349 = arith.constant 0 : index
    %542 = vector.load %arg8[%c19_348, %c0_349] : memref<37x32xbf16, #tpu.memory_space<vmem>>, vector<16x32xbf16>
    %cst_350 = arith.constant 0.000000e+00 : f32
    %543 = arith.truncf %cst_350 : f32 to bf16
    %544 = vector.shape_cast %25 : vector<16x1xi1> to vector<16x1xi1>
    %545 = vector.broadcast %544 : vector<16x1xi1> to vector<16x32xi1>
    %546 = vector.broadcast %543 : bf16 to vector<16x32xbf16>
    %547 = arith.select %545, %542, %546 : vector<16x32xi1>, vector<16x32xbf16>
    %c20_351 = arith.constant 20 : index
    %c0_352 = arith.constant 0 : index
    %548 = vector.load %arg8[%c20_351, %c0_352] : memref<37x32xbf16, #tpu.memory_space<vmem>>, vector<16x32xbf16>
    %c21_353 = arith.constant 21 : index
    %c0_354 = arith.constant 0 : index
    %549 = vector.load %arg8[%c21_353, %c0_354] : memref<37x32xbf16, #tpu.memory_space<vmem>>, vector<16x32xbf16>
    %cst_355 = arith.constant 0.000000e+00 : f32
    %550 = arith.truncf %cst_355 : f32 to bf16
    %551 = vector.shape_cast %27 : vector<16x1xi1> to vector<16x1xi1>
    %552 = vector.broadcast %551 : vector<16x1xi1> to vector<16x32xi1>
    %553 = vector.broadcast %550 : bf16 to vector<16x32xbf16>
    %554 = arith.select %552, %549, %553 : vector<16x32xi1>, vector<16x32xbf16>
    %555 = tpu.concatenate %521, %522, %528, %534, %535, %541, %547, %548, %554 in 1 : vector<16x32xbf16>, vector<16x32xbf16>, vector<16x32xbf16>, vector<16x32xbf16>, vector<16x32xbf16>, vector<16x32xbf16>, vector<16x32xbf16>, vector<16x32xbf16>, vector<16x32xbf16> -> vector<16x288xbf16>
    %c0_356 = arith.constant 0 : index
    %c0_357 = arith.constant 0 : index
    %556 = vector.load %arg5[%c0_356, %c0_357] : memref<288x96xbf16, #tpu.memory_space<vmem>>, vector<288x96xbf16>
    %cst_358 = arith.constant dense<0.000000e+00> : vector<16x96xf32>
    %557 = tpu.matmul %555, %556, %cst_358 {dimension_numbers = #tpu.dot_dimension_numbers<[1], [0], [0], [1], [0, 0, 1, 1], [], []>} : vector<16x288xbf16>, vector<288x96xbf16>, vector<16x96xf32> -> vector<16x96xf32>
    %c0_359 = arith.constant 0 : index
    %c0_360 = arith.constant 0 : index
    %558 = vector.load %arg6[%c0_359, %c0_360] : memref<1x96xf32, #tpu.memory_space<vmem>>, vector<1x96xf32>
    %559 = vector.broadcast %558 : vector<1x96xf32> to vector<16x96xf32>
    %560 = arith.addf %557, %559 : vector<16x96xf32>
    %c0_361 = arith.constant 0 : index
    %c0_362 = arith.constant 0 : index
    %c0_363 = arith.constant 0 : index
    %561 = vector.load %arg7[%c0_361, %c0_362, %c0_363] : memref<1x16x96xf32, #tpu.memory_space<vmem>>, vector<1x16x96xf32>
    %562 = vector.shape_cast %561 : vector<1x16x96xf32> to vector<16x96xf32>
    %563 = vector.shape_cast %560 : vector<16x96xf32> to vector<1x16x96xf32>
    tpu.vector_store %arg7[%c0_361, %c0_362, %c0_363], %563 {strides = array<i32>} : memref<1x16x96xf32, #tpu.memory_space<vmem>>, vector<1x16x96xf32>,
    return
  }
  func.func @transform_0(%arg0: i32) -> (i32, i32, i32) {
    %c0_i32 = arith.constant 0 : i32
    %c0_i32_0 = arith.constant 0 : i32
    %c0_i32_1 = arith.constant 0 : i32
    return %arg0, %c0_i32, %c0_i32_0 : i32, i32, i32
  }
  func.func @transform_1(%arg0: i32) -> (i32, i32, i32) {
    %c0_i32 = arith.constant 0 : i32
    %c0_i32_0 = arith.constant 0 : i32
    %c0_i32_1 = arith.constant 0 : i32
    %c0_i32_2 = arith.constant 0 : i32
    return %c0_i32, %c0_i32_0, %c0_i32_1 : i32, i32, i32
  }
  func.func @transform_2(%arg0: i32) -> (i32, i32, i32) {
    %c0_i32 = arith.constant 0 : i32
    %c0_i32_0 = arith.constant 0 : i32
    %c0_i32_1 = arith.constant 0 : i32
    %c0_i32_2 = arith.constant 0 : i32
    return %c0_i32, %c0_i32_0, %c0_i32_1 : i32, i32, i32
  }
  func.func @transform_3(%arg0: i32) -> (i32, i32, i32) {
    %c0_i32 = arith.constant 0 : i32
    %c0_i32_0 = arith.constant 0 : i32
    %c0_i32_1 = arith.constant 0 : i32
    %c0_i32_2 = arith.constant 0 : i32
    return %c0_i32, %c0_i32_0, %c0_i32_1 : i32, i32, i32
  }
  func.func @transform_4(%arg0: i32) -> (i32, i32) {
    %c0_i32 = arith.constant 0 : i32
    %c0_i32_0 = arith.constant 0 : i32
    %c0_i32_1 = arith.constant 0 : i32
    return %c0_i32, %c0_i32_0 : i32, i32
  }
  func.func @transform_5(%arg0: i32) -> (i32, i32) {
    %c0_i32 = arith.constant 0 : i32
    %c0_i32_0 = arith.constant 0 : i32
    %c0_i32_1 = arith.constant 0 : i32
    return %c0_i32, %c0_i32_0 : i32, i32
  }
  func.func @transform_6(%arg0: i32) -> (i32, i32, i32) {
    %c0_i32 = arith.constant 0 : i32
    %c0_i32_0 = arith.constant 0 : i32
    %c0_i32_1 = arith.constant 0 : i32
    return %arg0, %c0_i32, %c0_i32_0 : i32, i32, i32
  }
}

</mosaic_0001>

<llo_original>
// kernel: ifblock_forward.3
$region0: #{ifblock_forward.3}
  #allocation0 [shape = 'u32[]', space=smem, size = 0x4, offset = 0x4, fixed_abs, tag = 'smem constant byte address 0x4 - core index']
  #allocation1 [shape = 'u32[144,128]{1,0:T(1,128)}', space=vmem, size = 0x12000, scoped, tag = 'internal scratch']
  %s0 = inlined_call_operand.vmem [shape: bf16[2,91,40], index: 0, kind: input, shape index: {}]
  %s1 = inlined_call_operand.vmem [shape: bf16[160,16], index: 1, kind: input, shape index: {}]
  %s2 = inlined_call_operand.vmem [shape: f32[1,16], index: 2, kind: input, shape index: {}]
  %s3 = inlined_call_operand.vmem [shape: bf16[2,81,16], index: 3, kind: output, shape index: {}]
  %s4 = sld [smem:[#allocation0]]
  $region45: #{ifblock_forward.3} parent=0
    _
  %s6 = ssub.s32 1, %s4
  %s7 = scalar_select 0, %s6, %s4
  loop: start=0, step=1, limit=4
  $region2: #{ifblock_forward.3} parent=0 // loop_pre_header
    _
  $region3: #{ifblock_forward.3} parent=0 // loop_header
    %s9 = sphi 0, %s13
    %p10 = scmp.ge.s32.totalorder %s9, 4
    %s19 = sphi 0, %s21
    %s22 = sphi 0, %s19
    %s23 = sphi 0, %s22
    %s39 = sphi 0, %s23
    %s43 = sphi 0, %s43
    %s45 = sphi 0, %s43
    %s46 = sphi 0, %s45
    %s60 = sphi 0, %s46
    %s64 = sphi 0, %s64
    %s66 = sphi 0, %s64
    %s67 = sphi 0, %s66
    %s81 = sphi 0, %s67
    %s87 = sphi 0, %s89
    %s90 = sphi 0, %s87
    %s91 = sphi 0, %s90
    %s107 = sphi 0, %s91
  $region4: #{ifblock_forward.3} parent=0 // loop_header_branch
    %12 = sbr.rel (%p10) target = $region8
  $region5: #{ifblock_forward.3} parent=0 // loop_body
    %s14 = ssub.s32 %s9, 1
    %s15 = ssub.s32 %s9, 2
    %s16 = sadd.s32 %s9, 1
    %s17 = ssub.s32 %s9, %s16
    %p18 = scmp.eq.s32.totalorder %s17, 0
    %s20 = sadd.s32 %s19, 1
    %s21 = scalar_select %p18, %s19, %s20
    %p24 = pneg %p18
    %p25 = scmp.eq.s32.totalorder %s9, 1
    %p26 = por %p24, %p25
    %p27 = scmp.ne.s32.totalorder %s19, %s22
    %p28 = scmp.eq.s32.totalorder %s9, 0
    %p29 = por %p27, %p28
    %p30 = scmp.ne.s32.totalorder %s19, %s22
    %p31 = scmp.eq.s32.totalorder %s14, 1
    %p32 = por %p30, %p31
    %p33 = scmp.ne.s32.totalorder %s22, %s23
    %p34 = scmp.eq.s32.totalorder %s14, 0
    %p35 = por %p33, %p34
    %p36 = scmp.ne.s32.totalorder %s22, %s23
    %p37 = scmp.eq.s32.totalorder %s15, 1
    %p38 = por %p36, %p37
    %p40 = scmp.ne.s32.totalorder %s23, %s39
    %p41 = scmp.eq.s32.totalorder %s15, 0
    %p42 = por %p40, %p41
    %s44 = sadd.s32 %s43, 1
    %p47 = scmp.eq.s32.totalorder %s9, 1
    %p48 = scmp.ne.s32.totalorder %s43, %s45
    %p49 = scmp.eq.s32.totalorder %s9, 0
    %p50 = por %p48, %p49
    %p51 = scmp.ne.s32.totalorder %s43, %s45
    %p52 = scmp.eq.s32.totalorder %s14, 1
    %p53 = por %p51, %p52
    %p54 = scmp.ne.s32.totalorder %s45, %s46
    %p55 = scmp.eq.s32.totalorder %s14, 0
    %p56 = por %p54, %p55
    %p57 = scmp.ne.s32.totalorder %s45, %s46
    %p58 = scmp.eq.s32.totalorder %s15, 1
    %p59 = por %p57, %p58
    %p61 = scmp.ne.s32.totalorder %s46, %s60
    %p62 = scmp.eq.s32.totalorder %s15, 0
    %p63 = por %p61, %p62
    %s65 = sadd.s32 %s64, 1
    %p68 = scmp.eq.s32.totalorder %s9, 1
    %p69 = scmp.ne.s32.totalorder %s64, %s66
    %p70 = scmp.eq.s32.totalorder %s9, 0
    %p71 = por %p69, %p70
    %p72 = scmp.ne.s32.totalorder %s64, %s66
    %p73 = scmp.eq.s32.totalorder %s14, 1
    %p74 = por %p72, %p73
    %p75 = scmp.ne.s32.totalorder %s66, %s67
    %p76 = scmp.eq.s32.totalorder %s14, 0
    %p77 = por %p75, %p76
    %p78 = scmp.ne.s32.totalorder %s66, %s67
    %p79 = scmp.eq.s32.totalorder %s15, 1
    %p80 = por %p78, %p79
    %p82 = scmp.ne.s32.totalorder %s67, %s81
    %p83 = scmp.eq.s32.totalorder %s15, 0
    %p84 = por %p82, %p83
    %s85 = ssub.s32 %s9, %s16
    %p86 = scmp.eq.s32.totalorder %s85, 0
    %s88 = sadd.s32 %s87, 1
    %s89 = scalar_select %p86, %s87, %s88
    %p92 = pneg %p86
    %p93 = scmp.eq.s32.totalorder %s9, 1
    %p94 = por %p92, %p93
    %p95 = scmp.ne.s32.totalorder %s87, %s90
    %p96 = scmp.eq.s32.totalorder %s9, 0
    %p97 = por %p95, %p96
    %p98 = scmp.ne.s32.totalorder %s87, %s90
    %p99 = scmp.eq.s32.totalorder %s14, 1
    %p100 = por %p98, %p99
    %p101 = scmp.ne.s32.totalorder %s90, %s91
    %p102 = scmp.eq.s32.totalorder %s14, 0
    %p103 = por %p101, %p102
    %p104 = scmp.ne.s32.totalorder %s90, %s91
    %p105 = scmp.eq.s32.totalorder %s15, 1
    %p106 = por %p104, %p105
    %p108 = scmp.ne.s32.totalorder %s91, %s107
    %p109 = scmp.eq.s32.totalorder %s15, 0
    %p110 = por %p108, %p109
    %p111 = scmp.le.s32.totalorder 1, %s9
    %p112 = scmp.lt.s32.totalorder %s9, 3
    %p113 = pnand %p111, %p112
    %p114 = pneg %p113
    // Predicated region
    $region9: #{ifblock_forward.3} parent=5 // pred_check
      _
    $region10: #{ifblock_forward.3} parent=5 // pred_check_branch
      %116 = sbr.rel (%p113) target = $region12
    $region11: #{ifblock_forward.3} parent=5 // pred_region
      %s117 = ssub.s32 %s9, 1
      // Predicated region
      $region13: #{ifblock_forward.3} parent=11 // pred_check
        %p118 = pneg %p56
      $region14: #{ifblock_forward.3} parent=11 // pred_check_branch
        %120 = sbr.rel (%p118) target = $region16
      $region15: #{ifblock_forward.3} parent=11 // pred_region
        _
      $region16: #{ifblock_forward.3} parent=11 // pred_fallthru
        _
      // Predicated region
      $region17: #{ifblock_forward.3} parent=11 // pred_check
        %p121 = pneg %p77
      $region18: #{ifblock_forward.3} parent=11 // pred_check_branch
        %123 = sbr.rel (%p121) target = $region20
      $region19: #{ifblock_forward.3} parent=11 // pred_region
        _
      $region20: #{ifblock_forward.3} parent=11 // pred_fallthru
        _
    $region12: #{ifblock_forward.3} parent=5 // pred_fallthru
      _
    %p124 = scmp.lt.s32.totalorder %s9, 2
    // Predicated region
    $region21: #{ifblock_forward.3} parent=5 // pred_check
      %p125 = pneg %p124
    $region22: #{ifblock_forward.3} parent=5 // pred_check_branch
      %127 = sbr.rel (%p125) target = $region24
    $region23: #{ifblock_forward.3} parent=5 // pred_region
      // Predicated region
      $region25: #{ifblock_forward.3} parent=23 // pred_check
        %p128 = pneg %p29
      $region26: #{ifblock_forward.3} parent=23 // pred_check_branch
        %130 = sbr.rel (%p128) target = $region28
      $region27: #{ifblock_forward.3} parent=23 // pred_region
        %p131 = scmp.lt.s32.totalorder %s9, 1
        %s132 = scalar_select %p131, %s9, 1
        %s133 = smul.addr %s132, 12
        %s134 = smul.addr %s133, 4
        %s135 = scalar_lea.vmem %s0, %s134
      $region28: #{ifblock_forward.3} parent=23 // pred_fallthru
        _
    $region24: #{ifblock_forward.3} parent=5 // pred_fallthru
      _
    %p136 = scmp.le.s32.totalorder 1, %s9
    %p137 = scmp.lt.s32.totalorder %s9, 3
    %p138 = pnand %p136, %p137
    %p139 = pneg %p138
    // Predicated region
    $region29: #{ifblock_forward.3} parent=5 // pred_check
      _
    $region30: #{ifblock_forward.3} parent=5 // pred_check_branch
      %141 = sbr.rel (%p138) target = $region32
    $region31: #{ifblock_forward.3} parent=5 // pred_region
      %s142 = ssub.s32 %s9, 1
      %p143 = scmp.lt.s32.totalorder %s14, 1
      %s144 = scalar_select %p143, %s14, 1
      %s145 = smul.addr %s144, 12
      %s146 = smul.addr %s145, 4
      %s147 = scalar_lea.vmem %s0, %s146
      %p148 = pneg %p35
      %p149 = pneg %p32
      %p150 = pneg %p56
      %p151 = pneg %p53
      %p152 = pneg %p77
      %p153 = pneg %p74
      %p154 = pneg %p103
      %p155 = pneg %p100
      %p156 = scmp.lt.s32.totalorder %s14, 1
      %s157 = scalar_select %p156, %s14, 1
      %s158 = smul.addr %s157, 11
      %s159 = smul.addr %s158, 4
      %s160 = scalar_lea.vmem %s3, %s159
      %p161 = scmp.lt.s32.totalorder %s14, 1
      %s162 = scalar_select %p161, %s14, 1
      %s163 = smul.addr %s162, 12
      %s164 = smul.addr %s163, 4
      %s165 = scalar_lea.vmem %s0, %s164
      %p166 = scmp.lt.s32.totalorder %s14, 1
      %s167 = scalar_select %p166, %s14, 1
      %s168 = smul.addr %s167, 11
      %s169 = smul.addr %s168, 4
      %s170 = scalar_lea.vmem %s3, %s169
      %v172 = vld [vmem:[%s165] sm:$0xf]
      %v173 = vld [vmem:[%s165 + $0x4] sm:$0xf]
      %v174 = vld [vmem:[%s165 + $0x8] sm:$0xf]
      %v175 = vld [vmem:[%s165 + $0xc] sm:$0xf]
      %v176 = vld [vmem:[%s165 + $0x10] sm:$0xf]
      %v177 = vld [vmem:[%s165 + $0x14] sm:$0xf]
      %v178 = vld [vmem:[%s165 + $0x18] sm:$0xf]
      %v179 = vld [vmem:[%s165 + $0x1c] sm:$0xf]
      %v180 = vld [vmem:[%s165 + $0x20] sm:$0xf]
      %v181 = vld [vmem:[%s165 + $0x24] sm:$0xf]
      %v182 = vld [vmem:[%s165 + $0x28] sm:$0x1]
      %v183 = vld [vmem:[%s165 + $0x28] sm:$0xf]
      %v184 = vld [vmem:[%s165 + $0x2c] sm:$0x1]
      %v185 = vld [vmem:[%s165 + $0x4] sm:$0xe]
      %v186 = vld [vmem:[%s165 + $0x2c] sm:$0x3]
      %v198 = vunpack.c.l.b16 %v172
      %v199 = vunpack.c.l.b16 %v173
      %v200 = vunpack.c.l.b16 %v174
      %v201 = vunpack.c.l.b16 %v175
      %v202 = vunpack.c.l.b16 %v176
      %v203 = vunpack.c.l.b16 %v177
      %v204 = vunpack.c.l.b16 %v178
      %v205 = vunpack.c.l.b16 %v179
      %v206 = vunpack.c.l.b16 %v180
      %v207 = vunpack.c.l.b16 %v181
      %v208 = vunpack.c.l.b16 %v182
      %v209 = vpack.c.b16 %v199, %v198
      %v210 = vpack.c.b16 %v201, %v200
      %v211 = vpack.c.b16 %v203, %v202
      %v212 = vpack.c.b16 %v205, %v204
      %v213 = vpack.c.b16 %v207, %v206
      %v214 = vpack.c.b16 %v208, %v208
      %vm215 = vsmask.f32 7424
      %v217 = vshrl.u32 %v209, 16
      %v219 = vshll.u32 %v209, 16
      %v221 = vrot.slane %v219, 1
      %v222 = vor.u32 %v217, %v221
      %v224 = vshll.u32 %v210, 16
      %v226 = vrot.slane %v224, 1
      %v227 = vsel %vm215, %v222, %v226
      %v228 = vshrl.u32 %v210, 16
      %v230 = vor.u32 %v228, %v226
      %v232 = vshll.u32 %v211, 16
      %v234 = vrot.slane %v232, 1
      %v235 = vsel %vm215, %v230, %v234
      %v236 = vshrl.u32 %v211, 16
      %v238 = vor.u32 %v236, %v234
      %v240 = vshll.u32 %v212, 16
      %v242 = vrot.slane %v240, 1
      %v243 = vsel %vm215, %v238, %v242
      %v244 = vshrl.u32 %v212, 16
      %v246 = vor.u32 %v244, %v242
      %v248 = vshll.u32 %v213, 16
      %v250 = vrot.slane %v248, 1
      %v251 = vsel %vm215, %v246, %v250
      %v252 = vshrl.u32 %v213, 16
      %v254 = vor.u32 %v252, %v250
      %v256 = vshll.u32 %v214, 16
      %v258 = vrot.slane %v256, 1
      %v259 = vsel %vm215, %v254, %v258
      %v260 = vshrl.u32 %v214, 16
      %262 = vrot.lane.b32.xlu0 %v227, 40
      %v263 = vpop.permute.xlu0 %262
      %264 = vrot.lane.b32.xlu0 %v235, 40
      %v265 = vpop.permute.xlu0 %264
      %266 = vrot.lane.b32.xlu0 %v243, 40
      %v267 = vpop.permute.xlu0 %266
      %268 = vrot.lane.b32.xlu0 %v251, 40
      %v269 = vpop.permute.xlu0 %268
      %270 = vrot.lane.b32.xlu0 %v259, 40
      %v271 = vpop.permute.xlu0 %270
      %272 = vrot.lane.b32.xlu0 %v260, 40
      %v273 = vpop.permute.xlu0 %272
      %v276 = vunpack.c.l.b16 %v183
      %v277 = vunpack.c.l.b16 %v184
      %v278 = vpack.c.b16 %v200, %v199
      %v279 = vpack.c.b16 %v202, %v201
      %v280 = vpack.c.b16 %v204, %v203
      %v281 = vpack.c.b16 %v206, %v205
      %v282 = vpack.c.b16 %v276, %v207
      %v283 = vpack.c.b16 %v277, %v277
      %v285 = vshrl.u32 %v278, 16
      %v287 = vshll.u32 %v278, 16
      %v289 = vrot.slane %v287, 1
      %v290 = vor.u32 %v285, %v289
      %v292 = vshll.u32 %v279, 16
      %v294 = vrot.slane %v292, 1
      %v295 = vsel %vm215, %v290, %v294
      %v296 = vshrl.u32 %v279, 16
      %v298 = vor.u32 %v296, %v294
      %v300 = vshll.u32 %v280, 16
      %v302 = vrot.slane %v300, 1
      %v303 = vsel %vm215, %v298, %v302
      %v304 = vshrl.u32 %v280, 16
      %v306 = vor.u32 %v304, %v302
      %v308 = vshll.u32 %v281, 16
      %v310 = vrot.slane %v308, 1
      %v311 = vsel %vm215, %v306, %v310
      %v312 = vshrl.u32 %v281, 16
      %v314 = vor.u32 %v312, %v310
      %v316 = vshll.u32 %v282, 16
      %v318 = vrot.slane %v316, 1
      %v319 = vsel %vm215, %v314, %v318
      %v320 = vshrl.u32 %v282, 16
      %v322 = vor.u32 %v320, %v318
      %v324 = vshll.u32 %v283, 16
      %v326 = vrot.slane %v324, 1
      %v327 = vsel %vm215, %v322, %v326
      %v328 = vshrl.u32 %v283, 16
      %330 = vrot.lane.b32.xlu0 %v295, 80
      %v331 = vpop.permute.xlu0 %330
      %332 = vrot.lane.b32.xlu0 %v303, 80
      %v333 = vpop.permute.xlu0 %332
      %334 = vrot.lane.b32.xlu0 %v311, 80
      %v335 = vpop.permute.xlu0 %334
      %336 = vrot.lane.b32.xlu0 %v319, 80
      %v337 = vpop.permute.xlu0 %336
      %338 = vrot.lane.b32.xlu0 %v327, 80
      %v339 = vpop.permute.xlu0 %338
      %340 = vrot.lane.b32.xlu0 %v328, 80
      %v341 = vpop.permute.xlu0 %340
      %v344 = vunpack.c.l.b16 %v185
      %v345 = vunpack.c.l.b16 %v186
      %v346 = vpack.c.b16 %v200, %v344
      %v347 = vpack.c.b16 %v345, %v345
      %vm348 = vcmask 1046528
      %v349 = vrot.slane %v346, 1
      %v350 = vrot.slane %v279, 1
      %v351 = vsel %vm348, %v349, %v350
      %v352 = vrot.slane %v280, 1
      %v353 = vsel %vm348, %v350, %v352
      %v354 = vrot.slane %v281, 1
      %v355 = vsel %vm348, %v352, %v354
      %v356 = vrot.slane %v282, 1
      %v357 = vsel %vm348, %v354, %v356
      %v358 = vrot.slane %v347, 1
      %v359 = vsel %vm348, %v356, %v358
      %360 = vrot.lane.b32.xlu0 %v351, 120
      %v361 = vpop.permute.xlu0 %360
      %362 = vrot.lane.b32.xlu0 %v353, 120
      %v363 = vpop.permute.xlu0 %362
      %364 = vrot.lane.b32.xlu0 %v355, 120
      %v365 = vpop.permute.xlu0 %364
      %366 = vrot.lane.b32.xlu0 %v357, 120
      %v367 = vpop.permute.xlu0 %366
      %368 = vrot.lane.b32.xlu0 %v359, 120
      %v369 = vpop.permute.xlu0 %368
      %370 = vrot.lane.b32.xlu0 %v358, 120
      %v371 = vpop.permute.xlu0 %370
      %vm372 = vcmask 326656
      %v374 = vsel %vm372, %v209, %v263
      %v376 = vsel %vm372, %v210, %v265
      %v378 = vsel %vm372, %v211, %v267
      %v380 = vsel %vm372, %v212, %v269
      %v382 = vsel %vm372, %v213, %v271
      %v384 = vsel %vm372, %v214, %v273
      %vm385 = vcmask 654336
      %v387 = vsel %vm385, %v374, %v331
      %v389 = vsel %vm385, %v376, %v333
      %v391 = vsel %vm385, %v378, %v335
      %v393 = vsel %vm385, %v380, %v337
      %v395 = vsel %vm385, %v382, %v339
      %v397 = vsel %vm385, %v384, %v341
      %vm398 = vcmask 982016
      %v400 = vsel %vm398, %v387, %v361
      %v403 = vsel %vm398, %v389, %v363
      %v406 = vsel %vm398, %v391, %v365
      %v409 = vsel %vm398, %v393, %v367
      %v412 = vsel %vm398, %v395, %v369
      %v415 = vsel %vm398, %v397, %v371
      %v417 = vld [vmem:[%s1] sm:$0xf]
      %v418 = vld [vmem:[%s1 + $0x4] sm:$0xf]
      %v419 = vld [vmem:[%s1 + $0x8] sm:$0xf]
      %v420 = vld [vmem:[%s1 + $0xc] sm:$0xf]
      %v421 = vld [vmem:[%s1 + $0x10] sm:$0xf]
      %v422 = vld [vmem:[%s1 + $0x14] sm:$0xf]
      %v423 = vld [vmem:[%s1 + $0x18] sm:$0xf]
      %v424 = vld [vmem:[%s1 + $0x1c] sm:$0xf]
      %v425 = vld [vmem:[%s1 + $0x20] sm:$0xf]
      %v426 = vld [vmem:[%s1 + $0x24] sm:$0xf]
      %v427 = vld [vmem:[%s1 + $0x28] sm:$0xf]
      %v428 = vld [vmem:[%s1 + $0x2c] sm:$0xf]
      %v429 = vld [vmem:[%s1 + $0x30] sm:$0xf]
      %v430 = vld [vmem:[%s1 + $0x34] sm:$0xf]
      %v431 = vld [vmem:[%s1 + $0x38] sm:$0xf]
      %v432 = vld [vmem:[%s1 + $0x3c] sm:$0xf]
      %v433 = vld [vmem:[%s1 + $0x40] sm:$0xf]
      %v434 = vld [vmem:[%s1 + $0x44] sm:$0xf]
      %v435 = vld [vmem:[%s1 + $0x48] sm:$0xf]
      %v436 = vld [vmem:[%s1 + $0x4c] sm:$0xf]
      %v437 = vld [vmem:[%s2] sm:$0x1]
      %v439 = vlaneseq
      %v440 = vshrl.u32 %v439, 7
      %v441 = vsub.s32 0, %v440
      %v442 = vrot.slane %v437, %v441
      %v464 = vunpack.c.l.b16 %v417
      %v465 = vunpack.c.l.b16 %v418
      %v466 = vunpack.c.l.b16 %v419
      %v467 = vunpack.c.l.b16 %v420
      %v468 = vunpack.c.l.b16 %v421
      %v469 = vunpack.c.l.b16 %v422
      %v470 = vunpack.c.l.b16 %v423
      %v471 = vunpack.c.l.b16 %v424
      %v472 = vunpack.c.l.b16 %v425
      %v473 = vunpack.c.l.b16 %v426
      %v474 = vunpack.c.l.b16 %v427
      %v475 = vunpack.c.l.b16 %v428
      %v476 = vunpack.c.l.b16 %v429
      %v477 = vunpack.c.l.b16 %v430
      %v478 = vunpack.c.l.b16 %v431
      %v479 = vunpack.c.l.b16 %v432
      %v480 = vunpack.c.l.b16 %v433
      %v481 = vunpack.c.l.b16 %v434
      %v482 = vunpack.c.l.b16 %v435
      %v483 = vunpack.c.l.b16 %v436
      %v484 = vpack.c.b16 %v465, %v464
      %v485 = vpack.c.b16 %v467, %v466
      %v486 = vpack.c.b16 %v469, %v468
      %v487 = vpack.c.b16 %v471, %v470
      %v488 = vpack.c.b16 %v473, %v472
      %v489 = vpack.c.b16 %v475, %v474
      %v490 = vpack.c.b16 %v477, %v476
      %v491 = vpack.c.b16 %v479, %v478
      %v492 = vpack.c.b16 %v481, %v480
      %v493 = vpack.c.b16 %v483, %v482
      %vm504 = vcmask 261120
      %v505 = vsel %vm504, %v361, 0
      %v507 = vsel %vm504, %v363, 0
      %v509 = vsel %vm504, %v365, 0
      %v511 = vsel %vm504, %v367, 0
      %v513 = vsel %vm504, %v369, 0
      %v515 = vsel %vm504, %v371, 0
      %517 = vmatprep.subr.bf16.mxu0 0
      %518 = vmatpush1.bf16.msra.mxu0 %v491
      %519 = vmatprep.subr.bf16.mxu0 0
      %520 = vmatpush1.bf16.msra.mxu0 %v490
      %521 = vmatprep.subr.bf16.mxu0 0
      %522 = vmatpush1.bf16.msra.mxu0 %v489
      %523 = vmatprep.subr.bf16.mxu0 0
      %524 = vmatpush1.bf16.msra.mxu0 %v488
      %525 = vmatprep.subr.bf16.mxu0 0
      %526 = vmatpush1.bf16.msra.mxu0 %v487
      %527 = vmatprep.subr.bf16.mxu0 0
      %528 = vmatpush1.bf16.msra.mxu0 %v486
      %529 = vmatprep.subr.bf16.mxu0 0
      %530 = vmatpush1.bf16.msra.mxu0 %v485
      %531 = vmatprep.subr.bf16.mxu0 0
      %532 = vmatpush1.bf16.msra.mxu0 %v484
      %533 = vmatprep.subr.bf16.mxu0 0
      %534 = vmatpush2.bf16.msra.mxu0 0
      %535 = vmatprep.subr.bf16.mxu0 0
      %536 = vmatpush2.bf16.msra.mxu0 0
      %537 = vmatprep.subr.bf16.mxu0 0
      %538 = vmatpush2.bf16.msra.mxu0 0
      %539 = vmatprep.subr.bf16.mxu0 0
      %540 = vmatpush2.bf16.msra.mxu0 0
      %541 = vmatprep.subr.bf16.mxu0 0
      %542 = vmatpush2.bf16.msra.mxu0 0
      %543 = vmatprep.subr.bf16.mxu0 0
      %544 = vmatpush2.bf16.msra.mxu0 0
      %545 = vmatprep.subr.bf16.mxu0 0
      %546 = vmatpush2.bf16.msra.mxu0 %v493
      %547 = vmatprep.subr.bf16.mxu0 0
      %548 = vmatpush2.bf16.msra.mxu0 %v492
      %549 = vmatprep.mubr.bf16.mxu0 %v505
      %550 = vmatmul.mubr.bf16.gmra.mxu0 %v400
      %v551 = vpop.f32.mrf.mxu0
      %v552 = vadd.f32 %v442, %v551
      %v553 = vpop.f32.mrf.mxu0
      %v554 = vpop.f32.mrf.mxu0
      %v555 = vadd.f32 %v442, %v554
      %v556 = vpop.f32.mrf.mxu0
      %557 = vmatprep.mubr.bf16.mxu0 %v507
      %558 = vmatmul.mubr.bf16.gmra.mxu0 %v403
      %v559 = vpop.f32.mrf.mxu0
      %v560 = vadd.f32 %v442, %v559
      %v561 = vpop.f32.mrf.mxu0
      %v562 = vpop.f32.mrf.mxu0
      %v563 = vadd.f32 %v442, %v562
      %v564 = vpop.f32.mrf.mxu0
      %565 = vmatprep.mubr.bf16.mxu0 %v509
      %566 = vmatmul.mubr.bf16.gmra.mxu0 %v406
      %v567 = vpop.f32.mrf.mxu0
      %v568 = vadd.f32 %v442, %v567
      %v569 = vpop.f32.mrf.mxu0
      %v570 = vpop.f32.mrf.mxu0
      %v571 = vadd.f32 %v442, %v570
      %v572 = vpop.f32.mrf.mxu0
      %573 = vmatprep.mubr.bf16.mxu0 %v511
      %574 = vmatmul.mubr.bf16.gmra.mxu0 %v409
      %v575 = vpop.f32.mrf.mxu0
      %v576 = vadd.f32 %v442, %v575
      %v577 = vpop.f32.mrf.mxu0
      %v578 = vpop.f32.mrf.mxu0
      %v579 = vadd.f32 %v442, %v578
      %v580 = vpop.f32.mrf.mxu0
      %581 = vmatprep.mubr.bf16.mxu0 %v513
      %582 = vmatmul.mubr.bf16.gmra.mxu0 %v412
      %v583 = vpop.f32.mrf.mxu0
      %v584 = vadd.f32 %v442, %v583
      %v585 = vpop.f32.mrf.mxu0
      %v586 = vpop.f32.mrf.mxu0
      %v587 = vadd.f32 %v442, %v586
      %v588 = vpop.f32.mrf.mxu0
      %589 = vmatprep.mubr.bf16.mxu0 %v515
      %590 = vmatmul.mubr.bf16.gmra.mxu0 %v415
      %v591 = vpop.f32.mrf.mxu0
      %v592 = vadd.f32 %v442, %v591
      %v593 = vpop.f32.mrf.mxu0
      %v594 = vpop.f32.mrf.mxu0
      %v595 = vpop.f32.mrf.mxu0
      %596 = vdwg.mxu0
      %vm597 = vcmp.ge.f32.partialorder %v552, 0.0
      %vm598 = vcmp.ge.f32.partialorder %v555, 0.0
      %vm599 = vcmp.ge.f32.partialorder %v560, 0.0
      %vm600 = vcmp.ge.f32.partialorder %v563, 0.0
      %vm601 = vcmp.ge.f32.partialorder %v568, 0.0
      %vm602 = vcmp.ge.f32.partialorder %v571, 0.0
      %vm603 = vcmp.ge.f32.partialorder %v576, 0.0
      %vm604 = vcmp.ge.f32.partialorder %v579, 0.0
      %vm605 = vcmp.ge.f32.partialorder %v584, 0.0
      %vm606 = vcmp.ge.f32.partialorder %v587, 0.0
      %vm607 = vcmp.ge.f32.partialorder %v592, 0.0
      %v608 = vmul.f32 %v552, 0.2
      %v609 = vmul.f32 %v555, 0.2
      %v610 = vmul.f32 %v560, 0.2
      %v611 = vmul.f32 %v563, 0.2
      %v612 = vmul.f32 %v568, 0.2
      %v613 = vmul.f32 %v571, 0.2
      %v614 = vmul.f32 %v576, 0.2
      %v615 = vmul.f32 %v579, 0.2
      %v616 = vmul.f32 %v584, 0.2
      %v617 = vmul.f32 %v587, 0.2
      %v618 = vmul.f32 %v592, 0.2
      %v619 = vsel %vm597, %v552, %v608
      %v620 = vsel %vm598, %v555, %v609
      %v621 = vsel %vm599, %v560, %v610
      %v622 = vsel %vm600, %v563, %v611
      %v623 = vsel %vm601, %v568, %v612
      %v624 = vsel %vm602, %v571, %v613
      %v625 = vsel %vm603, %v576, %v614
      %v626 = vsel %vm604, %v579, %v615
      %v627 = vsel %vm605, %v584, %v616
      %v628 = vsel %vm606, %v587, %v617
      %v629 = vsel %vm607, %v592, %v618
      %v630 = vpack.c.bf16 %v620, %v619
      %v631 = vpack.c.bf16 %v622, %v621
      %v632 = vpack.c.bf16 %v624, %v623
      %v633 = vpack.c.bf16 %v626, %v625
      %v634 = vpack.c.bf16 %v628, %v627
      %v635 = vpack.c.bf16 %v629, %v629
      %v642 = vunpack.c.l.b16 %v630
      %v643 = vunpack.c.h.b16 %v630
      %v644 = vunpack.c.l.b16 %v631
      %v645 = vunpack.c.h.b16 %v631
      %v646 = vunpack.c.l.b16 %v632
      %v647 = vunpack.c.h.b16 %v632
      %v648 = vunpack.c.l.b16 %v633
      %v649 = vunpack.c.h.b16 %v633
      %v650 = vunpack.c.l.b16 %v634
      %v651 = vunpack.c.h.b16 %v634
      %v652 = vunpack.c.l.b16 %v635
      %v653 = vpack.c.b16 %v642, %v642
      %v654 = vpack.c.b16 %v643, %v643
      %v655 = vpack.c.b16 %v644, %v644
      %v656 = vpack.c.b16 %v645, %v645
      %v657 = vpack.c.b16 %v646, %v646
      %v658 = vpack.c.b16 %v647, %v647
      %v659 = vpack.c.b16 %v648, %v648
      %v660 = vpack.c.b16 %v649, %v649
      %v661 = vpack.c.b16 %v650, %v650
      %v662 = vpack.c.b16 %v651, %v651
      %v663 = vpack.c.b16 %v652, %v652
      %vm675 = vcmask 125952
      %676 = vst.msk [vmem:[%s170] sm:$0xf] %vm675, %v653
      %677 = vst.msk [vmem:[%s170 + $0x4] sm:$0xf] %vm675, %v654
      %678 = vst.msk [vmem:[%s170 + $0x8] sm:$0xf] %vm675, %v655
      %679 = vst.msk [vmem:[%s170 + $0xc] sm:$0xf] %vm675, %v656
      %680 = vst.msk [vmem:[%s170 + $0x10] sm:$0xf] %vm675, %v657
      %681 = vst.msk [vmem:[%s170 + $0x14] sm:$0xf] %vm675, %v658
      %682 = vst.msk [vmem:[%s170 + $0x18] sm:$0xf] %vm675, %v659
      %683 = vst.msk [vmem:[%s170 + $0x1c] sm:$0xf] %vm675, %v660
      %684 = vst.msk [vmem:[%s170 + $0x20] sm:$0xf] %vm675, %v661
      %685 = vst.msk [vmem:[%s170 + $0x24] sm:$0xf] %vm675, %v662
      %vm686 = vcmask 122880
      %vm687 = vsmask.f32 256
      %vm688 = vmand %vm686, %vm687
      %v689 = vld [vmem:[%s170 + $0x28] sm:$0x1]
      %v690 = vsel %vm688, %v663, %v689
      %691 = vst [vmem:[%s170 + $0x28] sm:$0x1] %v690
      %p692 = scmp.lt.s32.totalorder %s14, 1
      %s693 = scalar_select %p692, %s14, 1
      %s694 = smul.addr %s693, 11
      %s695 = smul.addr %s694, 4
      %s696 = scalar_lea.vmem %s3, %s695
      // Predicated region
      $region33: #{ifblock_forward.3} parent=31 // pred_check
        %p697 = pneg %p100
      $region34: #{ifblock_forward.3} parent=31 // pred_check_branch
        %699 = sbr.rel (%p697) target = $region36
      $region35: #{ifblock_forward.3} parent=31 // pred_region
        _
      $region36: #{ifblock_forward.3} parent=31 // pred_fallthru
        _
    $region32: #{ifblock_forward.3} parent=5 // pred_fallthru
      _
    %p700 = scmp.le.s32.totalorder 2, %s9
    // Predicated region
    $region37: #{ifblock_forward.3} parent=5 // pred_check
      %p701 = pneg %p700
    $region38: #{ifblock_forward.3} parent=5 // pred_check_branch
      %703 = sbr.rel (%p701) target = $region40
    $region39: #{ifblock_forward.3} parent=5 // pred_region
      %s704 = ssub.s32 %s9, 2
      // Predicated region
      $region41: #{ifblock_forward.3} parent=39 // pred_check
        %p705 = pneg %p106
      $region42: #{ifblock_forward.3} parent=39 // pred_check_branch
        %707 = sbr.rel (%p705) target = $region44
      $region43: #{ifblock_forward.3} parent=39 // pred_region
        %p708 = scmp.lt.s32.totalorder %s15, 1
        %s709 = scalar_select %p708, %s15, 1
        %s710 = smul.addr %s709, 11
        %s711 = smul.addr %s710, 4
        %s712 = scalar_lea.vmem %s3, %s711
      $region44: #{ifblock_forward.3} parent=39 // pred_fallthru
        _
    $region40: #{ifblock_forward.3} parent=5 // pred_fallthru
      _
  $region6: #{ifblock_forward.3} parent=0 // loop_footer
    %s13 = sadd.s32 1, %s9
  $region7: #{ifblock_forward.3} parent=0 // loop_footer_branch
    %8 = sbr.rel target = $region3
  $region8: #{ifblock_forward.3} parent=0 // loop_exit
    _

// kernel: ifblock_forward.4
$region0: #{ifblock_forward.4}
  #allocation0 [shape = 'u32[]', space=smem, size = 0x4, offset = 0x4, fixed_abs, tag = 'smem constant byte address 0x4 - core index']
  #allocation1 [shape = 'u32[144,128]{1,0:T(1,128)}', space=vmem, size = 0x12000, scoped, tag = 'internal scratch']
  %s0 = inlined_call_operand.vmem [shape: bf16[2,31,64], index: 0, kind: input, shape index: {}]
  %s1 = inlined_call_operand.vmem [shape: bf16[256,32], index: 1, kind: input, shape index: {}]
  %s2 = inlined_call_operand.vmem [shape: f32[1,32], index: 2, kind: input, shape index: {}]
  %s3 = inlined_call_operand.vmem [shape: bf16[2,25,32], index: 3, kind: output, shape index: {}]
  %s4 = sld [smem:[#allocation0]]
  $region45: #{ifblock_forward.4} parent=0
    _
  %s6 = ssub.s32 1, %s4
  %s7 = scalar_select 0, %s6, %s4
  loop: start=0, step=1, limit=4
  $region2: #{ifblock_forward.4} parent=0 // loop_pre_header
    _
  $region3: #{ifblock_forward.4} parent=0 // loop_header
    %s9 = sphi 0, %s13
    %p10 = scmp.ge.s32.totalorder %s9, 4
    %s19 = sphi 0, %s21
    %s22 = sphi 0, %s19
    %s23 = sphi 0, %s22
    %s39 = sphi 0, %s23
    %s43 = sphi 0, %s43
    %s45 = sphi 0, %s43
    %s46 = sphi 0, %s45
    %s60 = sphi 0, %s46
    %s64 = sphi 0, %s64
    %s66 = sphi 0, %s64
    %s67 = sphi 0, %s66
    %s81 = sphi 0, %s67
    %s87 = sphi 0, %s89
    %s90 = sphi 0, %s87
    %s91 = sphi 0, %s90
    %s107 = sphi 0, %s91
  $region4: #{ifblock_forward.4} parent=0 // loop_header_branch
    %12 = sbr.rel (%p10) target = $region8
  $region5: #{ifblock_forward.4} parent=0 // loop_body
    %s14 = ssub.s32 %s9, 1
    %s15 = ssub.s32 %s9, 2
    %s16 = sadd.s32 %s9, 1
    %s17 = ssub.s32 %s9, %s16
    %p18 = scmp.eq.s32.totalorder %s17, 0
    %s20 = sadd.s32 %s19, 1
    %s21 = scalar_select %p18, %s19, %s20
    %p24 = pneg %p18
    %p25 = scmp.eq.s32.totalorder %s9, 1
    %p26 = por %p24, %p25
    %p27 = scmp.ne.s32.totalorder %s19, %s22
    %p28 = scmp.eq.s32.totalorder %s9, 0
    %p29 = por %p27, %p28
    %p30 = scmp.ne.s32.totalorder %s19, %s22
    %p31 = scmp.eq.s32.totalorder %s14, 1
    %p32 = por %p30, %p31
    %p33 = scmp.ne.s32.totalorder %s22, %s23
    %p34 = scmp.eq.s32.totalorder %s14, 0
    %p35 = por %p33, %p34
    %p36 = scmp.ne.s32.totalorder %s22, %s23
    %p37 = scmp.eq.s32.totalorder %s15, 1
    %p38 = por %p36, %p37
    %p40 = scmp.ne.s32.totalorder %s23, %s39
    %p41 = scmp.eq.s32.totalorder %s15, 0
    %p42 = por %p40, %p41
    %s44 = sadd.s32 %s43, 1
    %p47 = scmp.eq.s32.totalorder %s9, 1
    %p48 = scmp.ne.s32.totalorder %s43, %s45
    %p49 = scmp.eq.s32.totalorder %s9, 0
    %p50 = por %p48, %p49
    %p51 = scmp.ne.s32.totalorder %s43, %s45
    %p52 = scmp.eq.s32.totalorder %s14, 1
    %p53 = por %p51, %p52
    %p54 = scmp.ne.s32.totalorder %s45, %s46
    %p55 = scmp.eq.s32.totalorder %s14, 0
    %p56 = por %p54, %p55
    %p57 = scmp.ne.s32.totalorder %s45, %s46
    %p58 = scmp.eq.s32.totalorder %s15, 1
    %p59 = por %p57, %p58
    %p61 = scmp.ne.s32.totalorder %s46, %s60
    %p62 = scmp.eq.s32.totalorder %s15, 0
    %p63 = por %p61, %p62
    %s65 = sadd.s32 %s64, 1
    %p68 = scmp.eq.s32.totalorder %s9, 1
    %p69 = scmp.ne.s32.totalorder %s64, %s66
    %p70 = scmp.eq.s32.totalorder %s9, 0
    %p71 = por %p69, %p70
    %p72 = scmp.ne.s32.totalorder %s64, %s66
    %p73 = scmp.eq.s32.totalorder %s14, 1
    %p74 = por %p72, %p73
    %p75 = scmp.ne.s32.totalorder %s66, %s67
    %p76 = scmp.eq.s32.totalorder %s14, 0
    %p77 = por %p75, %p76
    %p78 = scmp.ne.s32.totalorder %s66, %s67
    %p79 = scmp.eq.s32.totalorder %s15, 1
    %p80 = por %p78, %p79
    %p82 = scmp.ne.s32.totalorder %s67, %s81
    %p83 = scmp.eq.s32.totalorder %s15, 0
    %p84 = por %p82, %p83
    %s85 = ssub.s32 %s9, %s16
    %p86 = scmp.eq.s32.totalorder %s85, 0
    %s88 = sadd.s32 %s87, 1
    %s89 = scalar_select %p86, %s87, %s88
    %p92 = pneg %p86
    %p93 = scmp.eq.s32.totalorder %s9, 1
    %p94 = por %p92, %p93
    %p95 = scmp.ne.s32.totalorder %s87, %s90
    %p96 = scmp.eq.s32.totalorder %s9, 0
    %p97 = por %p95, %p96
    %p98 = scmp.ne.s32.totalorder %s87, %s90
    %p99 = scmp.eq.s32.totalorder %s14, 1
    %p100 = por %p98, %p99
    %p101 = scmp.ne.s32.totalorder %s90, %s91
    %p102 = scmp.eq.s32.totalorder %s14, 0
    %p103 = por %p101, %p102
    %p104 = scmp.ne.s32.totalorder %s90, %s91
    %p105 = scmp.eq.s32.totalorder %s15, 1
    %p106 = por %p104, %p105
    %p108 = scmp.ne.s32.totalorder %s91, %s107
    %p109 = scmp.eq.s32.totalorder %s15, 0
    %p110 = por %p108, %p109
    %p111 = scmp.le.s32.totalorder 1, %s9
    %p112 = scmp.lt.s32.totalorder %s9, 3
    %p113 = pnand %p111, %p112
    %p114 = pneg %p113
    // Predicated region
    $region9: #{ifblock_forward.4} parent=5 // pred_check
      _
    $region10: #{ifblock_forward.4} parent=5 // pred_check_branch
      %116 = sbr.rel (%p113) target = $region12
    $region11: #{ifblock_forward.4} parent=5 // pred_region
      %s117 = ssub.s32 %s9, 1
      // Predicated region
      $region13: #{ifblock_forward.4} parent=11 // pred_check
        %p118 = pneg %p56
      $region14: #{ifblock_forward.4} parent=11 // pred_check_branch
        %120 = sbr.rel (%p118) target = $region16
      $region15: #{ifblock_forward.4} parent=11 // pred_region
        _
      $region16: #{ifblock_forward.4} parent=11 // pred_fallthru
        _
      // Predicated region
      $region17: #{ifblock_forward.4} parent=11 // pred_check
        %p121 = pneg %p77
      $region18: #{ifblock_forward.4} parent=11 // pred_check_branch
        %123 = sbr.rel (%p121) target = $region20
      $region19: #{ifblock_forward.4} parent=11 // pred_region
        _
      $region20: #{ifblock_forward.4} parent=11 // pred_fallthru
        _
    $region12: #{ifblock_forward.4} parent=5 // pred_fallthru
      _
    %p124 = scmp.lt.s32.totalorder %s9, 2
    // Predicated region
    $region21: #{ifblock_forward.4} parent=5 // pred_check
      %p125 = pneg %p124
    $region22: #{ifblock_forward.4} parent=5 // pred_check_branch
      %127 = sbr.rel (%p125) target = $region24
    $region23: #{ifblock_forward.4} parent=5 // pred_region
      // Predicated region
      $region25: #{ifblock_forward.4} parent=23 // pred_check
        %p128 = pneg %p29
      $region26: #{ifblock_forward.4} parent=23 // pred_check_branch
        %130 = sbr.rel (%p128) target = $region28
      $region27: #{ifblock_forward.4} parent=23 // pred_region
        %p131 = scmp.lt.s32.totalorder %s9, 1
        %s132 = scalar_select %p131, %s9, 1
        %s133 = smul.addr %s132, 4
        %s134 = smul.addr %s133, 4
        %s135 = scalar_lea.vmem %s0, %s134
      $region28: #{ifblock_forward.4} parent=23 // pred_fallthru
        _
    $region24: #{ifblock_forward.4} parent=5 // pred_fallthru
      _
    %p136 = scmp.le.s32.totalorder 1, %s9
    %p137 = scmp.lt.s32.totalorder %s9, 3
    %p138 = pnand %p136, %p137
    %p139 = pneg %p138
    // Predicated region
    $region29: #{ifblock_forward.4} parent=5 // pred_check
      _
    $region30: #{ifblock_forward.4} parent=5 // pred_check_branch
      %141 = sbr.rel (%p138) target = $region32
    $region31: #{ifblock_forward.4} parent=5 // pred_region
      %s142 = ssub.s32 %s9, 1
      %p143 = scmp.lt.s32.totalorder %s14, 1
      %s144 = scalar_select %p143, %s14, 1
      %s145 = smul.addr %s144, 4
      %s146 = smul.addr %s145, 4
      %s147 = scalar_lea.vmem %s0, %s146
      %p148 = pneg %p35
      %p149 = pneg %p32
      %p150 = pneg %p56
      %p151 = pneg %p53
      %p152 = pneg %p77
      %p153 = pneg %p74
      %p154 = pneg %p103
      %p155 = pneg %p100
      %p156 = scmp.lt.s32.totalorder %s14, 1
      %s157 = scalar_select %p156, %s14, 1
      %s158 = smul.addr %s157, 4
      %s159 = smul.addr %s158, 4
      %s160 = scalar_lea.vmem %s3, %s159
      %p161 = scmp.lt.s32.totalorder %s14, 1
      %s162 = scalar_select %p161, %s14, 1
      %s163 = smul.addr %s162, 4
      %s164 = smul.addr %s163, 4
      %s165 = scalar_lea.vmem %s0, %s164
      %p166 = scmp.lt.s32.totalorder %s14, 1
      %s167 = scalar_select %p166, %s14, 1
      %s168 = smul.addr %s167, 4
      %s169 = smul.addr %s168, 4
      %s170 = scalar_lea.vmem %s3, %s169
      %v172 = vld [vmem:[%s165] sm:$0xf]
      %v173 = vld [vmem:[%s165 + $0x4] sm:$0xf]
      %v174 = vld [vmem:[%s165 + $0x8] sm:$0xf]
      %v175 = vld [vmem:[%s165 + $0xc] sm:$0x1]
      %v176 = vld [vmem:[%s165] sm:$0xc]
      %v177 = vld [vmem:[%s165 + $0xc] sm:$0x7]
      %v178 = vld [vmem:[%s165] sm:$0x8]
      %v179 = vld [vmem:[%s165 + $0xc] sm:$0xf]
      %v184 = vunpack.c.l.b16 %v172
      %v185 = vunpack.c.l.b16 %v173
      %v186 = vunpack.c.l.b16 %v174
      %v187 = vunpack.c.l.b16 %v175
      %v188 = vpack.c.b16 %v185, %v184
      %v189 = vpack.c.b16 %v187, %v186
      %vm190 = vsmask.f32 7424
      %v192 = vshrl.u32 %v188, 16
      %v194 = vshll.u32 %v188, 16
      %v196 = vrot.slane %v194, 1
      %v197 = vor.u32 %v192, %v196
      %v199 = vshll.u32 %v189, 16
      %v201 = vrot.slane %v199, 1
      %v202 = vsel %vm190, %v197, %v201
      %v203 = vshrl.u32 %v189, 16
      %v205 = vor.u32 %v203, %v201
      %206 = vrot.lane.b32.xlu0 %v202, 64
      %v207 = vpop.permute.xlu0 %206
      %208 = vrot.lane.b32.xlu0 %v205, 64
      %v209 = vpop.permute.xlu0 %208
      %v212 = vunpack.c.l.b16 %v176
      %v213 = vunpack.c.l.b16 %v177
      %v214 = vpack.c.b16 %v185, %v212
      %v215 = vpack.c.b16 %v213, %v186
      %vm216 = vsmask.f32 5376
      %v218 = vshrl.u32 %v214, 16
      %v220 = vrot.slane %v218, 2
      %v221 = vshll.u32 %v214, 16
      %v223 = vrot.slane %v221, 3
      %v224 = vor.u32 %v220, %v223
      %v226 = vshrl.u32 %v215, 16
      %v228 = vrot.slane %v226, 2
      %v229 = vshll.u32 %v215, 16
      %v231 = vrot.slane %v229, 3
      %v232 = vor.u32 %v228, %v231
      %v233 = vsel %vm216, %v224, %v232
      %v236 = vunpack.c.l.b16 %v178
      %v237 = vunpack.c.l.b16 %v179
      %v238 = vpack.c.b16 %v185, %v236
      %v239 = vpack.c.b16 %v237, %v186
      %vm240 = vcmask 1044480
      %v241 = vrot.slane %v238, 3
      %v242 = vrot.slane %v239, 3
      %v243 = vsel %vm240, %v241, %v242
      %244 = vrot.lane.b32.xlu0 %v243, 64
      %v245 = vpop.permute.xlu0 %244
      %246 = vrot.lane.b32.xlu0 %v242, 64
      %v247 = vpop.permute.xlu0 %246
      %vm248 = vcmask 523264
      %v250 = vsel %vm248, %v188, %v207
      %v253 = vsel %vm248, %v189, %v209
      %v257 = vsel %vm248, %v233, %v245
      %v261 = vsel %vm248, %v232, %v247
      %v263 = vld [vmem:[%s1] sm:$0xf]
      %v264 = vld [vmem:[%s1 + $0x4] sm:$0xf]
      %v265 = vld [vmem:[%s1 + $0x8] sm:$0xf]
      %v266 = vld [vmem:[%s1 + $0xc] sm:$0xf]
      %v267 = vld [vmem:[%s1 + $0x10] sm:$0xf]
      %v268 = vld [vmem:[%s1 + $0x14] sm:$0xf]
      %v269 = vld [vmem:[%s1 + $0x18] sm:$0xf]
      %v270 = vld [vmem:[%s1 + $0x1c] sm:$0xf]
      %v271 = vld [vmem:[%s1 + $0x20] sm:$0xf]
      %v272 = vld [vmem:[%s1 + $0x24] sm:$0xf]
      %v273 = vld [vmem:[%s1 + $0x28] sm:$0xf]
      %v274 = vld [vmem:[%s1 + $0x2c] sm:$0xf]
      %v275 = vld [vmem:[%s1 + $0x30] sm:$0xf]
      %v276 = vld [vmem:[%s1 + $0x34] sm:$0xf]
      %v277 = vld [vmem:[%s1 + $0x38] sm:$0xf]
      %v278 = vld [vmem:[%s1 + $0x3c] sm:$0xf]
      %v279 = vld [vmem:[%s1 + $0x40] sm:$0xf]
      %v280 = vld [vmem:[%s1 + $0x44] sm:$0xf]
      %v281 = vld [vmem:[%s1 + $0x48] sm:$0xf]
      %v282 = vld [vmem:[%s1 + $0x4c] sm:$0xf]
      %v283 = vld [vmem:[%s1 + $0x50] sm:$0xf]
      %v284 = vld [vmem:[%s1 + $0x54] sm:$0xf]
      %v285 = vld [vmem:[%s1 + $0x58] sm:$0xf]
      %v286 = vld [vmem:[%s1 + $0x5c] sm:$0xf]
      %v287 = vld [vmem:[%s1 + $0x60] sm:$0xf]
      %v288 = vld [vmem:[%s1 + $0x64] sm:$0xf]
      %v289 = vld [vmem:[%s1 + $0x68] sm:$0xf]
      %v290 = vld [vmem:[%s1 + $0x6c] sm:$0xf]
      %v291 = vld [vmem:[%s1 + $0x70] sm:$0xf]
      %v292 = vld [vmem:[%s1 + $0x74] sm:$0xf]
      %v293 = vld [vmem:[%s1 + $0x78] sm:$0xf]
      %v294 = vld [vmem:[%s1 + $0x7c] sm:$0xf]
      %v295 = vld [vmem:[%s2] sm:$0x1]
      %v297 = vlaneseq
      %v298 = vshrl.u32 %v297, 7
      %v299 = vsub.s32 0, %v298
      %v300 = vrot.slane %v295, %v299
      %v334 = vunpack.c.l.b16 %v263
      %v335 = vunpack.c.l.b16 %v264
      %v336 = vunpack.c.l.b16 %v265
      %v337 = vunpack.c.l.b16 %v266
      %v338 = vunpack.c.l.b16 %v267
      %v339 = vunpack.c.l.b16 %v268
      %v340 = vunpack.c.l.b16 %v269
      %v341 = vunpack.c.l.b16 %v270
      %v342 = vunpack.c.l.b16 %v271
      %v343 = vunpack.c.l.b16 %v272
      %v344 = vunpack.c.l.b16 %v273
      %v345 = vunpack.c.l.b16 %v274
      %v346 = vunpack.c.l.b16 %v275
      %v347 = vunpack.c.l.b16 %v276
      %v348 = vunpack.c.l.b16 %v277
      %v349 = vunpack.c.l.b16 %v278
      %v350 = vunpack.c.l.b16 %v279
      %v351 = vunpack.c.l.b16 %v280
      %v352 = vunpack.c.l.b16 %v281
      %v353 = vunpack.c.l.b16 %v282
      %v354 = vunpack.c.l.b16 %v283
      %v355 = vunpack.c.l.b16 %v284
      %v356 = vunpack.c.l.b16 %v285
      %v357 = vunpack.c.l.b16 %v286
      %v358 = vunpack.c.l.b16 %v287
      %v359 = vunpack.c.l.b16 %v288
      %v360 = vunpack.c.l.b16 %v289
      %v361 = vunpack.c.l.b16 %v290
      %v362 = vunpack.c.l.b16 %v291
      %v363 = vunpack.c.l.b16 %v292
      %v364 = vunpack.c.l.b16 %v293
      %v365 = vunpack.c.l.b16 %v294
      %v366 = vpack.c.b16 %v335, %v334
      %v367 = vpack.c.b16 %v337, %v336
      %v368 = vpack.c.b16 %v339, %v338
      %v369 = vpack.c.b16 %v341, %v340
      %v370 = vpack.c.b16 %v343, %v342
      %v371 = vpack.c.b16 %v345, %v344
      %v372 = vpack.c.b16 %v347, %v346
      %v373 = vpack.c.b16 %v349, %v348
      %v374 = vpack.c.b16 %v351, %v350
      %v375 = vpack.c.b16 %v353, %v352
      %v376 = vpack.c.b16 %v355, %v354
      %v377 = vpack.c.b16 %v357, %v356
      %v378 = vpack.c.b16 %v359, %v358
      %v379 = vpack.c.b16 %v361, %v360
      %v380 = vpack.c.b16 %v363, %v362
      %v381 = vpack.c.b16 %v365, %v364
      %398 = vmatprep.subr.bf16.mxu0 0
      %399 = vmatpush1.bf16.msra.mxu0 %v373
      %400 = vmatprep.subr.bf16.mxu0 0
      %401 = vmatpush1.bf16.msra.mxu0 %v372
      %402 = vmatprep.subr.bf16.mxu0 0
      %403 = vmatpush1.bf16.msra.mxu0 %v371
      %404 = vmatprep.subr.bf16.mxu0 0
      %405 = vmatpush1.bf16.msra.mxu0 %v370
      %406 = vmatprep.subr.bf16.mxu0 0
      %407 = vmatpush1.bf16.msra.mxu0 %v369
      %408 = vmatprep.subr.bf16.mxu0 0
      %409 = vmatpush1.bf16.msra.mxu0 %v368
      %410 = vmatprep.subr.bf16.mxu0 0
      %411 = vmatpush1.bf16.msra.mxu0 %v367
      %412 = vmatprep.subr.bf16.mxu0 0
      %413 = vmatpush1.bf16.msra.mxu0 %v366
      %414 = vmatprep.subr.bf16.mxu0 0
      %415 = vmatpush2.bf16.msra.mxu0 %v381
      %416 = vmatprep.subr.bf16.mxu0 0
      %417 = vmatpush2.bf16.msra.mxu0 %v380
      %418 = vmatprep.subr.bf16.mxu0 0
      %419 = vmatpush2.bf16.msra.mxu0 %v379
      %420 = vmatprep.subr.bf16.mxu0 0
      %421 = vmatpush2.bf16.msra.mxu0 %v378
      %422 = vmatprep.subr.bf16.mxu0 0
      %423 = vmatpush2.bf16.msra.mxu0 %v377
      %424 = vmatprep.subr.bf16.mxu0 0
      %425 = vmatpush2.bf16.msra.mxu0 %v376
      %426 = vmatprep.subr.bf16.mxu0 0
      %427 = vmatpush2.bf16.msra.mxu0 %v375
      %428 = vmatprep.subr.bf16.mxu0 0
      %429 = vmatpush2.bf16.msra.mxu0 %v374
      %430 = vmatprep.mubr.bf16.mxu0 %v257
      %431 = vmatmul.mubr.bf16.gmra.mxu0 %v250
      %v432 = vpop.f32.mrf.mxu0
      %v433 = vadd.f32 %v300, %v432
      %v434 = vpop.f32.mrf.mxu0
      %v435 = vpop.f32.mrf.mxu0
      %v436 = vadd.f32 %v300, %v435
      %v437 = vpop.f32.mrf.mxu0
      %438 = vmatprep.mubr.bf16.mxu0 %v261
      %439 = vmatmul.mubr.bf16.gmra.mxu0 %v253
      %v440 = vpop.f32.mrf.mxu0
      %v441 = vadd.f32 %v300, %v440
      %v442 = vpop.f32.mrf.mxu0
      %v443 = vpop.f32.mrf.mxu0
      %v444 = vadd.f32 %v300, %v443
      %v445 = vpop.f32.mrf.mxu0
      %446 = vdwg.mxu0
      %vm447 = vcmp.ge.f32.partialorder %v433, 0.0
      %vm448 = vcmp.ge.f32.partialorder %v436, 0.0
      %vm449 = vcmp.ge.f32.partialorder %v441, 0.0
      %vm450 = vcmp.ge.f32.partialorder %v444, 0.0
      %v451 = vmul.f32 %v433, 0.2
      %v452 = vmul.f32 %v436, 0.2
      %v453 = vmul.f32 %v441, 0.2
      %v454 = vmul.f32 %v444, 0.2
      %v455 = vsel %vm447, %v433, %v451
      %v456 = vsel %vm448, %v436, %v452
      %v457 = vsel %vm449, %v441, %v453
      %v458 = vsel %vm450, %v444, %v454
      %v459 = vpack.c.bf16 %v456, %v455
      %v460 = vpack.c.bf16 %v458, %v457
      %v463 = vunpack.c.l.b16 %v459
      %v464 = vunpack.c.h.b16 %v459
      %v465 = vunpack.c.l.b16 %v460
      %v466 = vunpack.c.h.b16 %v460
      %v467 = vpack.c.b16 %v463, %v463
      %v468 = vpack.c.b16 %v464, %v464
      %v469 = vpack.c.b16 %v465, %v465
      %v470 = vpack.c.b16 %v466, %v466
      %vm475 = vcmask 257024
      %476 = vst.msk [vmem:[%s170] sm:$0xf] %vm475, %v467
      %477 = vst.msk [vmem:[%s170 + $0x4] sm:$0xf] %vm475, %v468
      %478 = vst.msk [vmem:[%s170 + $0x8] sm:$0xf] %vm475, %v469
      %vm479 = vcmask 253952
      %vm480 = vsmask.f32 256
      %vm481 = vmand %vm479, %vm480
      %v482 = vld [vmem:[%s170 + $0xc] sm:$0x1]
      %v483 = vsel %vm481, %v470, %v482
      %484 = vst [vmem:[%s170 + $0xc] sm:$0x1] %v483
      %p485 = scmp.lt.s32.totalorder %s14, 1
      %s486 = scalar_select %p485, %s14, 1
      %s487 = smul.addr %s486, 4
      %s488 = smul.addr %s487, 4
      %s489 = scalar_lea.vmem %s3, %s488
      // Predicated region
      $region33: #{ifblock_forward.4} parent=31 // pred_check
        %p490 = pneg %p100
      $region34: #{ifblock_forward.4} parent=31 // pred_check_branch
        %492 = sbr.rel (%p490) target = $region36
      $region35: #{ifblock_forward.4} parent=31 // pred_region
        _
      $region36: #{ifblock_forward.4} parent=31 // pred_fallthru
        _
    $region32: #{ifblock_forward.4} parent=5 // pred_fallthru
      _
    %p493 = scmp.le.s32.totalorder 2, %s9
    // Predicated region
    $region37: #{ifblock_forward.4} parent=5 // pred_check
      %p494 = pneg %p493
    $region38: #{ifblock_forward.4} parent=5 // pred_check_branch
      %496 = sbr.rel (%p494) target = $region40
    $region39: #{ifblock_forward.4} parent=5 // pred_region
      %s497 = ssub.s32 %s9, 2
      // Predicated region
      $region41: #{ifblock_forward.4} parent=39 // pred_check
        %p498 = pneg %p106
      $region42: #{ifblock_forward.4} parent=39 // pred_check_branch
        %500 = sbr.rel (%p498) target = $region44
      $region43: #{ifblock_forward.4} parent=39 // pred_region
        %p501 = scmp.lt.s32.totalorder %s15, 1
        %s502 = scalar_select %p501, %s15, 1
        %s503 = smul.addr %s502, 4
        %s504 = smul.addr %s503, 4
        %s505 = scalar_lea.vmem %s3, %s504
      $region44: #{ifblock_forward.4} parent=39 // pred_fallthru
        _
    $region40: #{ifblock_forward.4} parent=5 // pred_fallthru
      _
  $region6: #{ifblock_forward.4} parent=0 // loop_footer
    %s13 = sadd.s32 1, %s9
  $region7: #{ifblock_forward.4} parent=0 // loop_footer_branch
    %8 = sbr.rel target = $region3
  $region8: #{ifblock_forward.4} parent=0 // loop_exit
    _

// kernel: tile.8
$region0: #{tile.8}
  #allocation0 [shape = 's32[1]{0}', space=sflag, size = 0x4, scoped, tag = 'scoped memory for tile.8']
  %s0 = inlined_call_operand.vmem [shape: f32[24], index: 0, kind: input, shape index: {}]
  %s1 = inlined_call_operand.vmem [shape: f32[4,24], index: 1, kind: output, shape index: {}]
  // Predicated region
  $region2: #{tile.8} parent=0 // pred_check
    _
  $region3: #{tile.8} parent=0 // pred_check_branch
    %3 = sbr.rel (0) target = $region5
  $region4: #{tile.8} parent=0 // pred_region
    _
  $region5: #{tile.8} parent=0 // pred_fallthru
    _
  %v4 = vld [vmem:[%s0] ss:$0 sm:$0xff]
  %5 = vst [vmem:[%s1] sm:$0xf] %v4

// kernel: tile.9
$region0: #{tile.9}
  %s0 = inlined_call_operand.vmem [shape: f32[4,24], index: 0, kind: input, shape index: {}]
  %s1 = inlined_call_operand.vmem [shape: f32[1,96], index: 1, kind: output, shape index: {}]
  $region1: #{tile.9} parent=0
    #allocation0 [shape = 'u8[4096]{0}', space=vmem, size = 0x1000, scoped, tag = 'scoped mem for output reshape']
    #allocation1 [shape = 'u8[4096]{0}', space=vmem, size = 0x1000, scoped, tag = 'scoped mem for input reshape']
    %s3 = sshll.u32 1, 4
    %s4 = ssub.s32 %s3, 1
    %v5 = vld [vmem:[%s0] sm:%s4]
    %6 = vst [vmem:[#allocation1] sm:%s4] %v5
    %v7 = vld [vmem:[#allocation1] sm:$0x1]
    %vm8 = vcmask 195584
    %9 = vst.msk [vmem:[#allocation0] sm:$0x1] %vm8, %v7
    %s10 = scalar_lea.vmem [#allocation1], 3
    %v11 = vld [vmem:[%s10] sm:$0x1]
    %12 = vrot.lane.b32.xlu0 %v11, 72
    %v13 = vpop.permute.xlu0 %12
    %vm14 = vcmask 785984
    %15 = vst.msk [vmem:[#allocation0] sm:$0x1] %vm14, %v13
    %s16 = scalar_lea.vmem [#allocation1], 2
    %v17 = vld [vmem:[%s16] sm:$0x1]
    %18 = vrot.lane.b32.xlu0 %v17, 48
    %v19 = vpop.permute.xlu0 %18
    %vm20 = vcmask 589184
    %21 = vst.msk [vmem:[#allocation0] sm:$0x1] %vm20, %v19
    %s22 = scalar_lea.vmem [#allocation1], 1
    %v23 = vld [vmem:[%s22] sm:$0x1]
    %24 = vrot.lane.b32.xlu0 %v23, 24
    %v25 = vpop.permute.xlu0 %24
    %vm26 = vcmask 392384
    %27 = vst.msk [vmem:[#allocation0] sm:$0x1] %vm26, %v25
    %s29 = sshll.u32 1, 1
    %s30 = ssub.s32 %s29, 1
    %v32 = vld [vmem:[#allocation0] sm:%s30]
    %s33 = sshll.u32 1, 1
    %s34 = ssub.s32 %s33, 1
    %35 = vst [vmem:[%s1] sm:%s34] %v32

// kernel: ifblock_forward.5
$region0: #{ifblock_forward.5}
  #allocation0 [shape = 'u32[]', space=smem, size = 0x4, offset = 0x4, fixed_abs, tag = 'smem constant byte address 0x4 - core index']
  #allocation1 [shape = 'u32[144,128]{1,0:T(1,128)}', space=vmem, size = 0x12000, scoped, tag = 'internal scratch']
  #allocation2 [shape = 'bf16[37,32]{1,0:T(8,128)(2,1)}', space=vmem, size = 0x2800, scoped, tag = 'scratch operand']
  #allocation3 [shape = 'f32[16,32]{1,0:T(8,128)}', space=vmem, size = 0x2000, scoped, tag = 'scratch operand']
  %s0 = inlined_call_operand.vmem [shape: bf16[2,37,32], index: 0, kind: input, shape index: {}]
  %s1 = inlined_call_operand.vmem [shape: bf16[8,288,32], index: 1, kind: input, shape index: {}]
  %s2 = inlined_call_operand.vmem [shape: f32[8,1,32], index: 2, kind: input, shape index: {}]
  %s3 = inlined_call_operand.vmem [shape: f32[8,1,32], index: 3, kind: input, shape index: {}]
  %s4 = inlined_call_operand.vmem [shape: bf16[288,96], index: 4, kind: input, shape index: {}]
  %s5 = inlined_call_operand.vmem [shape: f32[1,96], index: 5, kind: input, shape index: {}]
  %s6 = inlined_call_operand.vmem [shape: f32[2,16,96], index: 6, kind: output, shape index: {}]
  %s7 = sld [smem:[#allocation0]]
  $region57: #{ifblock_forward.5} parent=0
    _
  %s9 = ssub.s32 1, %s7
  %s10 = scalar_select 0, %s9, %s7
  loop: start=0, step=1, limit=4
  $region2: #{ifblock_forward.5} parent=0 // loop_pre_header
    _
  $region3: #{ifblock_forward.5} parent=0 // loop_header
    %s12 = sphi 0, %s16
    %p13 = scmp.ge.s32.totalorder %s12, 4
    %s22 = sphi 0, %s24
    %s25 = sphi 0, %s22
    %s26 = sphi 0, %s25
    %s42 = sphi 0, %s26
    %s46 = sphi 0, %s46
    %s48 = sphi 0, %s46
    %s49 = sphi 0, %s48
    %s63 = sphi 0, %s49
    %s67 = sphi 0, %s67
    %s69 = sphi 0, %s67
    %s70 = sphi 0, %s69
    %s84 = sphi 0, %s70
    %s88 = sphi 0, %s88
    %s90 = sphi 0, %s88
    %s91 = sphi 0, %s90
    %s105 = sphi 0, %s91
    %s109 = sphi 0, %s109
    %s111 = sphi 0, %s109
    %s112 = sphi 0, %s111
    %s126 = sphi 0, %s112
    %s130 = sphi 0, %s130
    %s132 = sphi 0, %s130
    %s133 = sphi 0, %s132
    %s147 = sphi 0, %s133
    %s153 = sphi 0, %s155
    %s156 = sphi 0, %s153
    %s157 = sphi 0, %s156
    %s173 = sphi 0, %s157
  $region4: #{ifblock_forward.5} parent=0 // loop_header_branch
    %15 = sbr.rel (%p13) target = $region8
  $region5: #{ifblock_forward.5} parent=0 // loop_body
    %s17 = ssub.s32 %s12, 1
    %s18 = ssub.s32 %s12, 2
    %s19 = sadd.s32 %s12, 1
    %s20 = ssub.s32 %s12, %s19
    %p21 = scmp.eq.s32.totalorder %s20, 0
    %s23 = sadd.s32 %s22, 1
    %s24 = scalar_select %p21, %s22, %s23
    %p27 = pneg %p21
    %p28 = scmp.eq.s32.totalorder %s12, 1
    %p29 = por %p27, %p28
    %p30 = scmp.ne.s32.totalorder %s22, %s25
    %p31 = scmp.eq.s32.totalorder %s12, 0
    %p32 = por %p30, %p31
    %p33 = scmp.ne.s32.totalorder %s22, %s25
    %p34 = scmp.eq.s32.totalorder %s17, 1
    %p35 = por %p33, %p34
    %p36 = scmp.ne.s32.totalorder %s25, %s26
    %p37 = scmp.eq.s32.totalorder %s17, 0
    %p38 = por %p36, %p37
    %p39 = scmp.ne.s32.totalorder %s25, %s26
    %p40 = scmp.eq.s32.totalorder %s18, 1
    %p41 = por %p39, %p40
    %p43 = scmp.ne.s32.totalorder %s26, %s42
    %p44 = scmp.eq.s32.totalorder %s18, 0
    %p45 = por %p43, %p44
    %s47 = sadd.s32 %s46, 1
    %p50 = scmp.eq.s32.totalorder %s12, 1
    %p51 = scmp.ne.s32.totalorder %s46, %s48
    %p52 = scmp.eq.s32.totalorder %s12, 0
    %p53 = por %p51, %p52
    %p54 = scmp.ne.s32.totalorder %s46, %s48
    %p55 = scmp.eq.s32.totalorder %s17, 1
    %p56 = por %p54, %p55
    %p57 = scmp.ne.s32.totalorder %s48, %s49
    %p58 = scmp.eq.s32.totalorder %s17, 0
    %p59 = por %p57, %p58
    %p60 = scmp.ne.s32.totalorder %s48, %s49
    %p61 = scmp.eq.s32.totalorder %s18, 1
    %p62 = por %p60, %p61
    %p64 = scmp.ne.s32.totalorder %s49, %s63
    %p65 = scmp.eq.s32.totalorder %s18, 0
    %p66 = por %p64, %p65
    %s68 = sadd.s32 %s67, 1
    %p71 = scmp.eq.s32.totalorder %s12, 1
    %p72 = scmp.ne.s32.totalorder %s67, %s69
    %p73 = scmp.eq.s32.totalorder %s12, 0
    %p74 = por %p72, %p73
    %p75 = scmp.ne.s32.totalorder %s67, %s69
    %p76 = scmp.eq.s32.totalorder %s17, 1
    %p77 = por %p75, %p76
    %p78 = scmp.ne.s32.totalorder %s69, %s70
    %p79 = scmp.eq.s32.totalorder %s17, 0
    %p80 = por %p78, %p79
    %p81 = scmp.ne.s32.totalorder %s69, %s70
    %p82 = scmp.eq.s32.totalorder %s18, 1
    %p83 = por %p81, %p82
    %p85 = scmp.ne.s32.totalorder %s70, %s84
    %p86 = scmp.eq.s32.totalorder %s18, 0
    %p87 = por %p85, %p86
    %s89 = sadd.s32 %s88, 1
    %p92 = scmp.eq.s32.totalorder %s12, 1
    %p93 = scmp.ne.s32.totalorder %s88, %s90
    %p94 = scmp.eq.s32.totalorder %s12, 0
    %p95 = por %p93, %p94
    %p96 = scmp.ne.s32.totalorder %s88, %s90
    %p97 = scmp.eq.s32.totalorder %s17, 1
    %p98 = por %p96, %p97
    %p99 = scmp.ne.s32.totalorder %s90, %s91
    %p100 = scmp.eq.s32.totalorder %s17, 0
    %p101 = por %p99, %p100
    %p102 = scmp.ne.s32.totalorder %s90, %s91
    %p103 = scmp.eq.s32.totalorder %s18, 1
    %p104 = por %p102, %p103
    %p106 = scmp.ne.s32.totalorder %s91, %s105
    %p107 = scmp.eq.s32.totalorder %s18, 0
    %p108 = por %p106, %p107
    %s110 = sadd.s32 %s109, 1
    %p113 = scmp.eq.s32.totalorder %s12, 1
    %p114 = scmp.ne.s32.totalorder %s109, %s111
    %p115 = scmp.eq.s32.totalorder %s12, 0
    %p116 = por %p114, %p115
    %p117 = scmp.ne.s32.totalorder %s109, %s111
    %p118 = scmp.eq.s32.totalorder %s17, 1
    %p119 = por %p117, %p118
    %p120 = scmp.ne.s32.totalorder %s111, %s112
    %p121 = scmp.eq.s32.totalorder %s17, 0
    %p122 = por %p120, %p121
    %p123 = scmp.ne.s32.totalorder %s111, %s112
    %p124 = scmp.eq.s32.totalorder %s18, 1
    %p125 = por %p123, %p124
    %p127 = scmp.ne.s32.totalorder %s112, %s126
    %p128 = scmp.eq.s32.totalorder %s18, 0
    %p129 = por %p127, %p128
    %s131 = sadd.s32 %s130, 1
    %p134 = scmp.eq.s32.totalorder %s12, 1
    %p135 = scmp.ne.s32.totalorder %s130, %s132
    %p136 = scmp.eq.s32.totalorder %s12, 0
    %p137 = por %p135, %p136
    %p138 = scmp.ne.s32.totalorder %s130, %s132
    %p139 = scmp.eq.s32.totalorder %s17, 1
    %p140 = por %p138, %p139
    %p141 = scmp.ne.s32.totalorder %s132, %s133
    %p142 = scmp.eq.s32.totalorder %s17, 0
    %p143 = por %p141, %p142
    %p144 = scmp.ne.s32.totalorder %s132, %s133
    %p145 = scmp.eq.s32.totalorder %s18, 1
    %p146 = por %p144, %p145
    %p148 = scmp.ne.s32.totalorder %s133, %s147
    %p149 = scmp.eq.s32.totalorder %s18, 0
    %p150 = por %p148, %p149
    %s151 = ssub.s32 %s12, %s19
    %p152 = scmp.eq.s32.totalorder %s151, 0
    %s154 = sadd.s32 %s153, 1
    %s155 = scalar_select %p152, %s153, %s154
    %p158 = pneg %p152
    %p159 = scmp.eq.s32.totalorder %s12, 1
    %p160 = por %p158, %p159
    %p161 = scmp.ne.s32.totalorder %s153, %s156
    %p162 = scmp.eq.s32.totalorder %s12, 0
    %p163 = por %p161, %p162
    %p164 = scmp.ne.s32.totalorder %s153, %s156
    %p165 = scmp.eq.s32.totalorder %s17, 1
    %p166 = por %p164, %p165
    %p167 = scmp.ne.s32.totalorder %s156, %s157
    %p168 = scmp.eq.s32.totalorder %s17, 0
    %p169 = por %p167, %p168
    %p170 = scmp.ne.s32.totalorder %s156, %s157
    %p171 = scmp.eq.s32.totalorder %s18, 1
    %p172 = por %p170, %p171
    %p174 = scmp.ne.s32.totalorder %s157, %s173
    %p175 = scmp.eq.s32.totalorder %s18, 0
    %p176 = por %p174, %p175
    %p177 = scmp.le.s32.totalorder 1, %s12
    %p178 = scmp.lt.s32.totalorder %s12, 3
    %p179 = pnand %p177, %p178
    %p180 = pneg %p179
    // Predicated region
    $region9: #{ifblock_forward.5} parent=5 // pred_check
      _
    $region10: #{ifblock_forward.5} parent=5 // pred_check_branch
      %182 = sbr.rel (%p179) target = $region12
    $region11: #{ifblock_forward.5} parent=5 // pred_region
      %s183 = ssub.s32 %s12, 1
      // Predicated region
      $region13: #{ifblock_forward.5} parent=11 // pred_check
        %p184 = pneg %p59
      $region14: #{ifblock_forward.5} parent=11 // pred_check_branch
        %186 = sbr.rel (%p184) target = $region16
      $region15: #{ifblock_forward.5} parent=11 // pred_region
        _
      $region16: #{ifblock_forward.5} parent=11 // pred_fallthru
        _
      // Predicated region
      $region17: #{ifblock_forward.5} parent=11 // pred_check
        %p187 = pneg %p80
      $region18: #{ifblock_forward.5} parent=11 // pred_check_branch
        %189 = sbr.rel (%p187) target = $region20
      $region19: #{ifblock_forward.5} parent=11 // pred_region
        _
      $region20: #{ifblock_forward.5} parent=11 // pred_fallthru
        _
      // Predicated region
      $region21: #{ifblock_forward.5} parent=11 // pred_check
        %p190 = pneg %p101
      $region22: #{ifblock_forward.5} parent=11 // pred_check_branch
        %192 = sbr.rel (%p190) target = $region24
      $region23: #{ifblock_forward.5} parent=11 // pred_region
        _
      $region24: #{ifblock_forward.5} parent=11 // pred_fallthru
        _
      // Predicated region
      $region25: #{ifblock_forward.5} parent=11 // pred_check
        %p193 = pneg %p122
      $region26: #{ifblock_forward.5} parent=11 // pred_check_branch
        %195 = sbr.rel (%p193) target = $region28
      $region27: #{ifblock_forward.5} parent=11 // pred_region
        _
      $region28: #{ifblock_forward.5} parent=11 // pred_fallthru
        _
      // Predicated region
      $region29: #{ifblock_forward.5} parent=11 // pred_check
        %p196 = pneg %p143
      $region30: #{ifblock_forward.5} parent=11 // pred_check_branch
        %198 = sbr.rel (%p196) target = $region32
      $region31: #{ifblock_forward.5} parent=11 // pred_region
        _
      $region32: #{ifblock_forward.5} parent=11 // pred_fallthru
        _
    $region12: #{ifblock_forward.5} parent=5 // pred_fallthru
      _
    %p199 = scmp.lt.s32.totalorder %s12, 2
    // Predicated region
    $region33: #{ifblock_forward.5} parent=5 // pred_check
      %p200 = pneg %p199
    $region34: #{ifblock_forward.5} parent=5 // pred_check_branch
      %202 = sbr.rel (%p200) target = $region36
    $region35: #{ifblock_forward.5} parent=5 // pred_region
      // Predicated region
      $region37: #{ifblock_forward.5} parent=35 // pred_check
        %p203 = pneg %p32
      $region38: #{ifblock_forward.5} parent=35 // pred_check_branch
        %205 = sbr.rel (%p203) target = $region40
      $region39: #{ifblock_forward.5} parent=35 // pred_region
        %p206 = scmp.lt.s32.totalorder %s12, 1
        %s207 = scalar_select %p206, %s12, 1
        %s208 = smul.addr %s207, 5
        %s209 = smul.addr %s208, 4
        %s210 = scalar_lea.vmem %s0, %s209
      $region40: #{ifblock_forward.5} parent=35 // pred_fallthru
        _
    $region36: #{ifblock_forward.5} parent=5 // pred_fallthru
      _
    %p211 = scmp.le.s32.totalorder 1, %s12
    %p212 = scmp.lt.s32.totalorder %s12, 3
    %p213 = pnand %p211, %p212
    %p214 = pneg %p213
    // Predicated region
    $region41: #{ifblock_forward.5} parent=5 // pred_check
      _
    $region42: #{ifblock_forward.5} parent=5 // pred_check_branch
      %216 = sbr.rel (%p213) target = $region44
    $region43: #{ifblock_forward.5} parent=5 // pred_region
      %s217 = ssub.s32 %s12, 1
      %p218 = scmp.lt.s32.totalorder %s17, 1
      %s219 = scalar_select %p218, %s17, 1
      %s220 = smul.addr %s219, 5
      %s221 = smul.addr %s220, 4
      %s222 = scalar_lea.vmem %s0, %s221
      %p223 = pneg %p38
      %p224 = pneg %p35
      %p225 = pneg %p59
      %p226 = pneg %p56
      %p227 = pneg %p80
      %p228 = pneg %p77
      %p229 = pneg %p101
      %p230 = pneg %p98
      %p231 = pneg %p122
      %p232 = pneg %p119
      %p233 = pneg %p143
      %p234 = pneg %p140
      %p235 = pneg %p169
      %p236 = pneg %p166
      %p237 = scmp.lt.s32.totalorder %s17, 1
      %s238 = scalar_select %p237, %s17, 1
      %s239 = smul.addr %s238, 2
      %s240 = smul.addr %s239, 8
      %s241 = scalar_lea.vmem %s6, %s240
      %p242 = scmp.lt.s32.totalorder %s17, 1
      %s243 = scalar_select %p242, %s17, 1
      %s244 = smul.addr %s243, 5
      %s245 = smul.addr %s244, 4
      %s246 = scalar_lea.vmem %s0, %s245
      %p247 = scmp.lt.s32.totalorder %s17, 1
      %s248 = scalar_select %p247, %s17, 1
      %s249 = smul.addr %s248, 2
      %s250 = smul.addr %s249, 8
      %s251 = scalar_lea.vmem %s6, %s250
      %v255 = vld [vmem:[%s246] sm:$0xf]
      %v256 = vld [vmem:[%s246 + $0x4] sm:$0xf]
      %v257 = vld [vmem:[%s246 + $0x8] sm:$0xf]
      %v258 = vld [vmem:[%s246 + $0xc] sm:$0xf]
      %v259 = vld [vmem:[%s246 + $0x10] sm:$0x7]
      %vm260 = vcmask 257024
      %261 = vst.msk [vmem:[#allocation2] sm:$0xf] %vm260, %v255
      %262 = vst.msk [vmem:[#allocation2 + $0x4] sm:$0xf] %vm260, %v256
      %263 = vst.msk [vmem:[#allocation2 + $0x8] sm:$0xf] %vm260, %v257
      %264 = vst.msk [vmem:[#allocation2 + $0xc] sm:$0xf] %vm260, %v258
      %vm265 = vcmask 256000
      %vm266 = vsmask.f32 2304
      %vm267 = vmand %vm265, %vm266
      %v268 = vld [vmem:[#allocation2 + $0x10] sm:$0x7]
      %v269 = vsel %vm267, %v259, %v268
      %270 = vst [vmem:[#allocation2 + $0x10] sm:$0x7] %v269
      %v271 = vld [vmem:[%s246 + $0x8] sm:$0xf]
      %v272 = vld [vmem:[%s246 + $0xc] sm:$0xf]
      %v273 = vunpack.c.l.bf16 %v271
      %v274 = vunpack.c.l.bf16 %v272
      %vm275 = vcmask 261120
      %276 = vst.msk [vmem:[#allocation3] sm:$0xff] %vm275, %v273
      %277 = vst.msk [vmem:[#allocation3 + $0x8] sm:$0xff] %vm275, %v274
      %v278 = vlaneseq
      %v279 = vshrl.u32 %v278, 7
      %v280 = vadd.s32 %v279, 8
      %vm281 = vcmp.lt.s32.totalorder %v279, 0
      %v282 = vsub.s32 0, %v279
      %v283 = vsel %vm281, %v282, %v279
      %v284 = vshrl.u32 %v283, 2
      %v285 = vand.u32 %v283, 3
      %v286 = vsub.s32 0, %v285
      %v287 = vsel %vm281, %v286, %v285
      %vm288 = vcmp.lt.s32.totalorder %v280, 0
      %v289 = vsub.s32 0, %v280
      %v290 = vsel %vm288, %v289, %v280
      %v291 = vshrl.u32 %v290, 2
      %v292 = vand.u32 %v290, 3
      %v293 = vsub.s32 0, %v292
      %v294 = vsel %vm288, %v293, %v292
      %vm295 = vcmp.ne.s32.totalorder %v287, 0
      %vm296 = vcmp.ne.s32.totalorder %v294, 0
      %vm297 = vcmp.lt.s32.totalorder %v287, 0
      %vm298 = vcmp.lt.s32.totalorder %v294, 0
      %vm299 = vmand %vm297, %vm295
      %vm300 = vmand %vm298, %vm296
      %v301 = vadd.s32 %v287, 4
      %v302 = vadd.s32 %v294, 4
      %v303 = vsel %vm299, %v301, %v287
      %v304 = vsel %vm300, %v302, %v294
      %vm305 = vcmp.ne.s32.totalorder %v303, 0
      %vm306 = vcmp.ne.s32.totalorder %v304, 0
      %vm307 = vcmp.ne.s32.totalorder %v303, 3
      %vm308 = vcmp.ne.s32.totalorder %v304, 3
      %v309 = vld [vmem:[#allocation2 + $0x4] sm:$0xe]
      %v310 = vld [vmem:[#allocation2 + $0x8] sm:$0xf]
      %v311 = vld [vmem:[#allocation2 + $0xc] sm:$0x3]
      %v312 = vsel %vm305, 1, 0
      %v313 = vsel %vm306, 1, 0
      %vm314 = vcmp.eq.s32.totalorder %v312, 1
      %vm315 = vcmp.eq.s32.totalorder %v313, 1
      %vm316 = vmpackc.low %vm314, %vm314
      %vm317 = vmpackc.low %vm315, %vm315
      %v318 = vsel %vm316, 65537, 0
      %v319 = vsel %vm317, 65537, 0
      %vm320 = vsmask.f32 1280
      %vm321 = vsmask.f32 5392
      %vm322 = vmor %vm320, %vm321
      %v324 = vshrl.u32 %v318, 16
      %v326 = vrot.slane %v324, 6
      %v327 = vshll.u32 %v318, 16
      %v329 = vrot.slane %v327, 7
      %v330 = vor.u32 %v326, %v329
      %v331 = vrot.slane %v330, 4
      %v333 = vshrl.u32 %v319, 16
      %v335 = vrot.slane %v333, 6
      %v336 = vshll.u32 %v319, 16
      %v338 = vrot.slane %v336, 7
      %v339 = vor.u32 %v335, %v338
      %v340 = vsel %vm322, %v331, %v339
      %v341 = vrot.slane %v339, 4
      %vm342 = vcmp.ne.s16.totalorder %v330, 0
      %vm343 = vcmp.ne.s16.totalorder %v340, 0
      %vm344 = vcmp.ne.s16.totalorder %v341, 0
      %v345 = vsel %vm342, %v309, 0
      %v346 = vsel %vm343, %v310, 0
      %v347 = vsel %vm344, %v311, 0
      %v348 = vld [vmem:[#allocation2 + $0x4] sm:$0xc]
      %v349 = vld [vmem:[#allocation2 + $0xc] sm:$0x7]
      %v350 = vsel %vm307, 1, 0
      %v351 = vsel %vm308, 1, 0
      %vm352 = vcmp.eq.s32.totalorder %v350, 1
      %vm353 = vcmp.eq.s32.totalorder %v351, 1
      %vm354 = vmpackc.low %vm352, %vm352
      %vm355 = vmpackc.low %vm353, %vm353
      %v356 = vsel %vm354, 65537, 0
      %v357 = vsel %vm355, 65537, 0
      %vm358 = vsmask.f32 6416
      %vm359 = vmor %vm266, %vm358
      %v361 = vshrl.u32 %v356, 16
      %v363 = vrot.slane %v361, 5
      %v364 = vshll.u32 %v356, 16
      %v366 = vrot.slane %v364, 6
      %v367 = vor.u32 %v363, %v366
      %v368 = vrot.slane %v367, 4
      %v370 = vshrl.u32 %v357, 16
      %v372 = vrot.slane %v370, 5
      %v373 = vshll.u32 %v357, 16
      %v375 = vrot.slane %v373, 6
      %v376 = vor.u32 %v372, %v375
      %v377 = vsel %vm359, %v368, %v376
      %v378 = vrot.slane %v376, 4
      %vm379 = vcmp.ne.s16.totalorder %v367, 0
      %vm380 = vcmp.ne.s16.totalorder %v377, 0
      %vm381 = vcmp.ne.s16.totalorder %v378, 0
      %v382 = vsel %vm379, %v348, 0
      %v383 = vsel %vm380, %v310, 0
      %v384 = vsel %vm381, %v349, 0
      %v385 = vld [vmem:[#allocation2 + $0x4] sm:$0x8]
      %v386 = vld [vmem:[#allocation2 + $0xc] sm:$0xf]
      %vm387 = vsmask.f32 3328
      %vm388 = vsmask.f32 7440
      %vm389 = vmor %vm387, %vm388
      %v390 = vrot.slane %v327, 5
      %v391 = vrot.slane %v324, 4
      %v392 = vor.u32 %v391, %v390
      %v393 = vrot.slane %v392, 4
      %v394 = vrot.slane %v336, 5
      %v395 = vsel %vm389, %v393, %v394
      %v396 = vrot.slane %v333, 4
      %v397 = vor.u32 %v396, %v394
      %v398 = vrot.slane %v397, 4
      %vm399 = vcmp.ne.s16.totalorder %v390, 0
      %vm400 = vcmp.ne.s16.totalorder %v395, 0
      %vm401 = vcmp.ne.s16.totalorder %v398, 0
      %v402 = vsel %vm399, %v385, 0
      %v403 = vsel %vm400, %v310, 0
      %v404 = vsel %vm401, %v386, 0
      %v405 = vld [vmem:[#allocation2 + $0x10] sm:$0x1]
      %vm406 = vsmask.f32 256
      %vm407 = vsmask.f32 4368
      %vm408 = vmor %vm406, %vm407
      %v409 = vrot.slane %v361, 7
      %v410 = vor.u32 %v409, %v364
      %v411 = vrot.slane %v409, 4
      %v412 = vrot.slane %v370, 7
      %v413 = vor.u32 %v412, %v373
      %v414 = vsel %vm408, %v411, %v413
      %v415 = vrot.slane %v412, 4
      %vm416 = vcmp.ne.s16.totalorder %v410, 0
      %vm417 = vcmp.ne.s16.totalorder %v414, 0
      %vm418 = vcmp.ne.s16.totalorder %v415, 0
      %v419 = vsel %vm416, %v310, 0
      %v420 = vsel %vm417, %v386, 0
      %v421 = vsel %vm418, %v405, 0
      %v422 = vld [vmem:[#allocation2 + $0x8] sm:$0xe]
      %v423 = vld [vmem:[#allocation2 + $0x10] sm:$0x3]
      %v424 = vsel %vm342, %v422, 0
      %v425 = vsel %vm343, %v386, 0
      %v426 = vsel %vm344, %v423, 0
      %v427 = vld [vmem:[#allocation2 + $0x8] sm:$0xc]
      %v428 = vld [vmem:[#allocation2 + $0x10] sm:$0x7]
      %v429 = vsel %vm379, %v427, 0
      %v430 = vsel %vm380, %v386, 0
      %v431 = vsel %vm381, %v428, 0
      %v435 = vunpack.c.l.b16 %v345
      %v436 = vunpack.c.l.b16 %v346
      %v437 = vunpack.c.l.b16 %v347
      %v438 = vpack.c.b16 %v436, %v435
      %v439 = vpack.c.b16 %v437, %v437
      %v443 = vunpack.c.l.b16 %v348
      %v444 = vunpack.c.l.b16 %v310
      %v445 = vunpack.c.l.b16 %v311
      %v446 = vpack.c.b16 %v444, %v443
      %v447 = vpack.c.b16 %v445, %v445
      %vm448 = vsmask.f32 7424
      %v450 = vshrl.u32 %v446, 16
      %v452 = vshll.u32 %v446, 16
      %v454 = vrot.slane %v452, 1
      %v455 = vor.u32 %v450, %v454
      %v457 = vshll.u32 %v447, 16
      %v459 = vrot.slane %v457, 1
      %v460 = vsel %vm448, %v455, %v459
      %v461 = vshrl.u32 %v447, 16
      %v463 = vor.u32 %v461, %v459
      %464 = vrot.lane.b32.xlu0 %v460, 32
      %v465 = vpop.permute.xlu0 %464
      %466 = vrot.lane.b32.xlu0 %v463, 32
      %v467 = vpop.permute.xlu0 %466
      %v471 = vunpack.c.l.b16 %v382
      %v472 = vunpack.c.l.b16 %v383
      %v473 = vunpack.c.l.b16 %v384
      %v474 = vpack.c.b16 %v472, %v471
      %v475 = vpack.c.b16 %v473, %v473
      %vm476 = vcmask 1046528
      %v477 = vrot.slane %v474, 1
      %v478 = vrot.slane %v475, 1
      %v479 = vsel %vm476, %v477, %v478
      %480 = vrot.lane.b32.xlu0 %v479, 64
      %v481 = vpop.permute.xlu0 %480
      %482 = vrot.lane.b32.xlu0 %v478, 64
      %v483 = vpop.permute.xlu0 %482
      %v487 = vunpack.c.l.b16 %v402
      %v488 = vunpack.c.l.b16 %v403
      %v489 = vunpack.c.l.b16 %v404
      %v490 = vpack.c.b16 %v488, %v487
      %v491 = vpack.c.b16 %v489, %v489
      %vm492 = vcmask 1045504
      %v493 = vrot.slane %v490, 2
      %v494 = vrot.slane %v491, 2
      %v495 = vsel %vm492, %v493, %v494
      %496 = vrot.lane.b32.xlu0 %v495, 96
      %v497 = vpop.permute.xlu0 %496
      %498 = vrot.lane.b32.xlu0 %v494, 96
      %v499 = vpop.permute.xlu0 %498
      %v501 = vunpack.c.l.b16 %v386
      %v502 = vpack.c.b16 %v501, %v444
      %v504 = vshrl.u32 %v502, 16
      %v506 = vrot.slane %v504, 6
      %v507 = vshll.u32 %v502, 16
      %v509 = vrot.slane %v507, 7
      %v510 = vor.u32 %v506, %v509
      %v514 = vunpack.c.l.b16 %v419
      %v515 = vunpack.c.l.b16 %v420
      %v516 = vunpack.c.l.b16 %v421
      %v517 = vpack.c.b16 %v515, %v514
      %v518 = vpack.c.b16 %v516, %v516
      %vm519 = vcmask 1040384
      %v520 = vrot.slane %v517, 7
      %v521 = vrot.slane %v518, 7
      %v522 = vsel %vm519, %v520, %v521
      %523 = vrot.lane.b32.xlu0 %v520, 32
      %v524 = vpop.permute.xlu0 %523
      %525 = vrot.lane.b32.xlu0 %v522, 32
      %v526 = vpop.permute.xlu0 %525
      %v530 = vunpack.c.l.b16 %v424
      %v531 = vunpack.c.l.b16 %v425
      %v532 = vunpack.c.l.b16 %v426
      %v533 = vpack.c.b16 %v531, %v530
      %v534 = vpack.c.b16 %v532, %v532
      %535 = vrot.lane.b32.xlu0 %v533, 64
      %v536 = vpop.permute.xlu0 %535
      %537 = vrot.lane.b32.xlu0 %v534, 64
      %v538 = vpop.permute.xlu0 %537
      %v541 = vunpack.c.l.b16 %v427
      %v542 = vunpack.c.l.b16 %v423
      %v543 = vpack.c.b16 %v501, %v541
      %v544 = vpack.c.b16 %v542, %v542
      %v546 = vshrl.u32 %v543, 16
      %v548 = vshll.u32 %v543, 16
      %v550 = vrot.slane %v548, 1
      %v551 = vor.u32 %v546, %v550
      %v553 = vshll.u32 %v544, 16
      %v555 = vrot.slane %v553, 1
      %v556 = vsel %vm448, %v551, %v555
      %v557 = vshrl.u32 %v544, 16
      %v559 = vor.u32 %v557, %v555
      %560 = vrot.lane.b32.xlu0 %v556, 96
      %v561 = vpop.permute.xlu0 %560
      %562 = vrot.lane.b32.xlu0 %v559, 96
      %v563 = vpop.permute.xlu0 %562
      %v567 = vunpack.c.l.b16 %v429
      %v568 = vunpack.c.l.b16 %v430
      %v569 = vunpack.c.l.b16 %v431
      %v570 = vpack.c.b16 %v568, %v567
      %v571 = vpack.c.b16 %v569, %v569
      %v572 = vrot.slane %v570, 1
      %v573 = vrot.slane %v571, 1
      %v574 = vsel %vm476, %v572, %v573
      %v577 = vsel %vm275, %v438, %v465
      %v580 = vsel %vm275, %v439, %v467
      %vm581 = vcmask 523264
      %v583 = vsel %vm581, %v577, %v481
      %v585 = vsel %vm581, %v580, %v483
      %vm586 = vcmask 785408
      %v588 = vsel %vm586, %v583, %v497
      %v590 = vsel %vm586, %v585, %v499
      %v593 = vsel %vm275, %v510, %v524
      %v595 = vsel %vm275, %v510, %v526
      %v597 = vsel %vm581, %v593, %v536
      %v599 = vsel %vm581, %v595, %v538
      %v601 = vsel %vm586, %v597, %v561
      %v603 = vsel %vm586, %v599, %v563
      %v604 = vld [vmem:[%s1] sm:$0xf]
      %v605 = vld [vmem:[%s1 + $0x4] sm:$0xf]
      %v606 = vld [vmem:[%s1 + $0x8] sm:$0xf]
      %v607 = vld [vmem:[%s1 + $0xc] sm:$0xf]
      %v608 = vld [vmem:[%s1 + $0x10] sm:$0xf]
      %v609 = vld [vmem:[%s1 + $0x14] sm:$0xf]
      %v610 = vld [vmem:[%s1 + $0x18] sm:$0xf]
      %v611 = vld [vmem:[%s1 + $0x1c] sm:$0xf]
      %v612 = vld [vmem:[%s1 + $0x20] sm:$0xf]
      %v613 = vld [vmem:[%s1 + $0x24] sm:$0xf]
      %v614 = vld [vmem:[%s1 + $0x28] sm:$0xf]
      %v615 = vld [vmem:[%s1 + $0x2c] sm:$0xf]
      %v616 = vld [vmem:[%s1 + $0x30] sm:$0xf]
      %v617 = vld [vmem:[%s1 + $0x34] sm:$0xf]
      %v618 = vld [vmem:[%s1 + $0x38] sm:$0xf]
      %v619 = vld [vmem:[%s1 + $0x3c] sm:$0xf]
      %v620 = vld [vmem:[%s1 + $0x40] sm:$0xf]
      %v621 = vld [vmem:[%s1 + $0x44] sm:$0xf]
      %v622 = vld [vmem:[%s1 + $0x48] sm:$0xf]
      %v623 = vld [vmem:[%s1 + $0x4c] sm:$0xf]
      %v624 = vld [vmem:[%s1 + $0x50] sm:$0xf]
      %v625 = vld [vmem:[%s1 + $0x54] sm:$0xf]
      %v626 = vld [vmem:[%s1 + $0x58] sm:$0xf]
      %v627 = vld [vmem:[%s1 + $0x5c] sm:$0xf]
      %v628 = vld [vmem:[%s1 + $0x60] sm:$0xf]
      %v629 = vld [vmem:[%s1 + $0x64] sm:$0xf]
      %v630 = vld [vmem:[%s1 + $0x68] sm:$0xf]
      %v631 = vld [vmem:[%s1 + $0x6c] sm:$0xf]
      %v632 = vld [vmem:[%s1 + $0x70] sm:$0xf]
      %v633 = vld [vmem:[%s1 + $0x74] sm:$0xf]
      %v634 = vld [vmem:[%s1 + $0x78] sm:$0xf]
      %v635 = vld [vmem:[%s1 + $0x7c] sm:$0xf]
      %v636 = vld [vmem:[%s1 + $0x80] sm:$0xf]
      %v637 = vld [vmem:[%s1 + $0x84] sm:$0xf]
      %v638 = vld [vmem:[%s1 + $0x88] sm:$0xf]
      %v639 = vld [vmem:[%s1 + $0x8c] sm:$0xf]
      %v640 = vld [vmem:[%s2] sm:$0x1]
      %v642 = vlaneseq
      %v643 = vshrl.u32 %v642, 7
      %v644 = vsub.s32 0, %v643
      %v645 = vrot.slane %v640, %v644
      %vm647 = vsmask.f32 6400
      %v648 = vshrl.u32 %v588, 16
      %v650 = vrot.slane %v648, 1
      %v651 = vshll.u32 %v588, 16
      %v653 = vrot.slane %v651, 2
      %v654 = vor.u32 %v650, %v653
      %v655 = vshrl.u32 %v590, 16
      %v657 = vrot.slane %v655, 1
      %v658 = vshll.u32 %v590, 16
      %v660 = vrot.slane %v658, 2
      %v661 = vor.u32 %v657, %v660
      %v662 = vsel %vm647, %v654, %v661
      %v663 = vshrl.u32 %v601, 16
      %v665 = vrot.slane %v663, 1
      %v666 = vshll.u32 %v601, 16
      %v668 = vrot.slane %v666, 2
      %v669 = vor.u32 %v665, %v668
      %v670 = vshrl.u32 %v603, 16
      %v672 = vrot.slane %v670, 1
      %v673 = vshll.u32 %v603, 16
      %v675 = vrot.slane %v673, 2
      %v676 = vor.u32 %v672, %v675
      %v677 = vsel %vm647, %v669, %v676
      %v679 = vshrl.u32 %v574, 16
      %v681 = vrot.slane %v679, 1
      %v682 = vshll.u32 %v574, 16
      %v684 = vrot.slane %v682, 2
      %v685 = vor.u32 %v681, %v684
      %v687 = vshrl.u32 %v573, 16
      %v689 = vrot.slane %v687, 1
      %v690 = vshll.u32 %v573, 16
      %v692 = vrot.slane %v690, 2
      %v693 = vor.u32 %v689, %v692
      %v694 = vsel %vm647, %v685, %v693
      %v733 = vunpack.c.l.b16 %v604
      %v734 = vunpack.c.l.b16 %v605
      %v735 = vunpack.c.l.b16 %v606
      %v736 = vunpack.c.l.b16 %v607
      %v737 = vunpack.c.l.b16 %v608
      %v738 = vunpack.c.l.b16 %v609
      %v739 = vunpack.c.l.b16 %v610
      %v740 = vunpack.c.l.b16 %v611
      %v741 = vunpack.c.l.b16 %v612
      %v742 = vunpack.c.l.b16 %v613
      %v743 = vunpack.c.l.b16 %v614
      %v744 = vunpack.c.l.b16 %v615
      %v745 = vunpack.c.l.b16 %v616
      %v746 = vunpack.c.l.b16 %v617
      %v747 = vunpack.c.l.b16 %v618
      %v748 = vunpack.c.l.b16 %v619
      %v749 = vunpack.c.l.b16 %v620
      %v750 = vunpack.c.l.b16 %v621
      %v751 = vunpack.c.l.b16 %v622
      %v752 = vunpack.c.l.b16 %v623
      %v753 = vunpack.c.l.b16 %v624
      %v754 = vunpack.c.l.b16 %v625
      %v755 = vunpack.c.l.b16 %v626
      %v756 = vunpack.c.l.b16 %v627
      %v757 = vunpack.c.l.b16 %v628
      %v758 = vunpack.c.l.b16 %v629
      %v759 = vunpack.c.l.b16 %v630
      %v760 = vunpack.c.l.b16 %v631
      %v761 = vunpack.c.l.b16 %v632
      %v762 = vunpack.c.l.b16 %v633
      %v763 = vunpack.c.l.b16 %v634
      %v764 = vunpack.c.l.b16 %v635
      %v765 = vunpack.c.l.b16 %v636
      %v766 = vunpack.c.l.b16 %v637
      %v767 = vunpack.c.l.b16 %v638
      %v768 = vunpack.c.l.b16 %v639
      %v769 = vpack.c.b16 %v734, %v733
      %v770 = vpack.c.b16 %v736, %v735
      %v771 = vpack.c.b16 %v738, %v737
      %v772 = vpack.c.b16 %v740, %v739
      %v773 = vpack.c.b16 %v742, %v741
      %v774 = vpack.c.b16 %v744, %v743
      %v775 = vpack.c.b16 %v746, %v745
      %v776 = vpack.c.b16 %v748, %v747
      %v777 = vpack.c.b16 %v750, %v749
      %v778 = vpack.c.b16 %v752, %v751
      %v779 = vpack.c.b16 %v754, %v753
      %v780 = vpack.c.b16 %v756, %v755
      %v781 = vpack.c.b16 %v758, %v757
      %v782 = vpack.c.b16 %v760, %v759
      %v783 = vpack.c.b16 %v762, %v761
      %v784 = vpack.c.b16 %v764, %v763
      %v785 = vpack.c.b16 %v766, %v765
      %v786 = vpack.c.b16 %v768, %v767
      %v806 = vsel %vm275, %v694, 0
      %808 = vmatprep.subr.bf16.mxu0 0
      %809 = vmatpush1.bf16.msra.mxu0 %v776
      %810 = vmatprep.subr.bf16.mxu0 0
      %811 = vmatpush1.bf16.msra.mxu0 %v775
      %812 = vmatprep.subr.bf16.mxu0 0
      %813 = vmatpush1.bf16.msra.mxu0 %v774
      %814 = vmatprep.subr.bf16.mxu0 0
      %815 = vmatpush1.bf16.msra.mxu0 %v773
      %816 = vmatprep.subr.bf16.mxu0 0
      %817 = vmatpush1.bf16.msra.mxu0 %v772
      %818 = vmatprep.subr.bf16.mxu0 0
      %819 = vmatpush1.bf16.msra.mxu0 %v771
      %820 = vmatprep.subr.bf16.mxu0 0
      %821 = vmatpush1.bf16.msra.mxu0 %v770
      %822 = vmatprep.subr.bf16.mxu0 0
      %823 = vmatpush1.bf16.msra.mxu0 %v769
      %824 = vmatprep.subr.bf16.mxu0 0
      %825 = vmatpush2.bf16.msra.mxu0 %v784
      %826 = vmatprep.subr.bf16.mxu0 0
      %827 = vmatpush2.bf16.msra.mxu0 %v783
      %828 = vmatprep.subr.bf16.mxu0 0
      %829 = vmatpush2.bf16.msra.mxu0 %v782
      %830 = vmatprep.subr.bf16.mxu0 0
      %831 = vmatpush2.bf16.msra.mxu0 %v781
      %832 = vmatprep.subr.bf16.mxu0 0
      %833 = vmatpush2.bf16.msra.mxu0 %v780
      %834 = vmatprep.subr.bf16.mxu0 0
      %835 = vmatpush2.bf16.msra.mxu0 %v779
      %836 = vmatprep.subr.bf16.mxu0 0
      %837 = vmatpush2.bf16.msra.mxu0 %v778
      %838 = vmatprep.subr.bf16.mxu0 0
      %839 = vmatpush2.bf16.msra.mxu0 %v777
      %840 = vmatprep.mubr.bf16.mxu0 %v677
      %841 = vmatmul.mubr.bf16.gmra.mxu0 %v662
      %v842 = vpop.f32.mrf.mxu0
      %v843 = vadd.f32 %v645, %v842
      %v844 = vpop.f32.mrf.mxu0
      %v845 = vpop.f32.mrf.mxu0
      %v846 = vadd.f32 %v645, %v845
      %v847 = vpop.f32.mrf.mxu0
      %848 = vdwg.mxu0
      %849 = vmatprep.subr.bf16.mxu0 0
      %850 = vmatpush1.bf16.msra.mxu0 0
      %851 = vmatprep.subr.bf16.mxu0 0
      %852 = vmatpush1.bf16.msra.mxu0 0
      %853 = vmatprep.subr.bf16.mxu0 0
      %854 = vmatpush1.bf16.msra.mxu0 0
      %855 = vmatprep.subr.bf16.mxu0 0
      %856 = vmatpush1.bf16.msra.mxu0 0
      %857 = vmatprep.subr.bf16.mxu0 0
      %858 = vmatpush1.bf16.msra.mxu0 0
      %859 = vmatprep.subr.bf16.mxu0 0
      %860 = vmatpush1.bf16.msra.mxu0 0
      %861 = vmatprep.subr.bf16.mxu0 0
      %862 = vmatpush1.bf16.msra.mxu0 %v786
      %863 = vmatprep.subr.bf16.mxu0 0
      %864 = vmatpush1.bf16.msra.mxu0 %v785
      %865 = vmatprep.subr.bf16.mxu0 0
      %866 = vmatpush2.bf16.msra.mxu0 0
      %867 = vmatprep.subr.bf16.mxu0 0
      %868 = vmatpush2.bf16.msra.mxu0 0
      %869 = vmatprep.subr.bf16.mxu0 0
      %870 = vmatpush2.bf16.msra.mxu0 0
      %871 = vmatprep.subr.bf16.mxu0 0
      %872 = vmatpush2.bf16.msra.mxu0 0
      %873 = vmatprep.subr.bf16.mxu0 0
      %874 = vmatpush2.bf16.msra.mxu0 0
      %875 = vmatprep.subr.bf16.mxu0 0
      %876 = vmatpush2.bf16.msra.mxu0 0
      %877 = vmatprep.subr.bf16.mxu0 0
      %878 = vmatpush2.bf16.msra.mxu0 0
      %879 = vmatprep.subr.bf16.mxu0 0
      %880 = vmatpush2.bf16.msra.mxu0 0
      %881 = vmatprep.mubr.bf16.mxu0 0
      %882 = vmatmul.mubr.bf16.gmra.mxu0 %v806
      %v883 = vpop.f32.mrf.mxu0
      %v884 = vadd.f32 %v843, %v883
      %v885 = vpop.f32.mrf.mxu0
      %v886 = vpop.f32.mrf.mxu0
      %v887 = vadd.f32 %v846, %v886
      %v888 = vpop.f32.mrf.mxu0
      %889 = vdwg.mxu0
      %v890 = vld [vmem:[%s3] sm:$0x1]
      %v892 = vlaneseq
      %v893 = vshrl.u32 %v892, 7
      %v894 = vsub.s32 0, %v893
      %v895 = vrot.slane %v890, %v894
      %v897 = vmul.f32 %v884, %v895
      %v898 = vmul.f32 %v887, %v895
      %v899 = vld [vmem:[#allocation3] sm:$0xff]
      %v900 = vld [vmem:[#allocation3 + $0x8] sm:$0xff]
      %v901 = vadd.f32 %v897, %v899
      %v902 = vadd.f32 %v898, %v900
      %vm903 = vcmp.ge.f32.partialorder %v901, 0.0
      %vm904 = vcmp.ge.f32.partialorder %v902, 0.0
      %v905 = vmul.f32 %v901, 0.2
      %v906 = vmul.f32 %v902, 0.2
      %v907 = vsel %vm903, %v901, %v905
      %v908 = vsel %vm904, %v902, %v906
      %909 = vst.msk [vmem:[#allocation3] sm:$0xff] %vm275, %v907
      %910 = vst.msk [vmem:[#allocation3 + $0x8] sm:$0xff] %vm275, %v908
      %v911 = vpack.c.bf16 %v908, %v907
      %v913 = vunpack.c.l.b16 %v911
      %v914 = vunpack.c.h.b16 %v911
      %v915 = vpack.c.b16 %v913, %v913
      %v916 = vpack.c.b16 %v914, %v914
      %919 = vst.msk [vmem:[#allocation2 + $0x8] sm:$0xf] %vm260, %v915
      %920 = vst.msk [vmem:[#allocation2 + $0xc] sm:$0xf] %vm260, %v916
      %v921 = vld [vmem:[#allocation2 + $0x4] sm:$0xe]
      %v922 = vld [vmem:[#allocation2 + $0x8] sm:$0xf]
      %v923 = vld [vmem:[#allocation2 + $0xc] sm:$0x3]
      %v924 = vsel %vm342, %v921, 0
      %v925 = vsel %vm343, %v922, 0
      %v926 = vsel %vm344, %v923, 0
      %v927 = vld [vmem:[#allocation2 + $0x4] sm:$0xc]
      %v928 = vld [vmem:[#allocation2 + $0xc] sm:$0x7]
      %v929 = vsel %vm379, %v927, 0
      %v930 = vsel %vm380, %v922, 0
      %v931 = vsel %vm381, %v928, 0
      %v932 = vld [vmem:[#allocation2 + $0x4] sm:$0x8]
      %v933 = vld [vmem:[#allocation2 + $0xc] sm:$0xf]
      %v934 = vsel %vm399, %v932, 0
      %v935 = vsel %vm400, %v922, 0
      %v936 = vsel %vm401, %v933, 0
      %v937 = vld [vmem:[#allocation2 + $0x10] sm:$0x1]
      %v938 = vsel %vm416, %v922, 0
      %v939 = vsel %vm417, %v933, 0
      %v940 = vsel %vm418, %v937, 0
      %v941 = vld [vmem:[#allocation2 + $0x8] sm:$0xe]
      %v942 = vld [vmem:[#allocation2 + $0x10] sm:$0x3]
      %v943 = vsel %vm342, %v941, 0
      %v944 = vsel %vm343, %v933, 0
      %v945 = vsel %vm344, %v942, 0
      %v946 = vld [vmem:[#allocation2 + $0x8] sm:$0xc]
      %v947 = vld [vmem:[#allocation2 + $0x10] sm:$0x7]
      %v948 = vsel %vm379, %v946, 0
      %v949 = vsel %vm380, %v933, 0
      %v950 = vsel %vm381, %v947, 0
      %v954 = vunpack.c.l.b16 %v924
      %v955 = vunpack.c.l.b16 %v925
      %v956 = vunpack.c.l.b16 %v926
      %v957 = vpack.c.b16 %v955, %v954
      %v958 = vpack.c.b16 %v956, %v956
      %v962 = vunpack.c.l.b16 %v927
      %v963 = vunpack.c.l.b16 %v922
      %v964 = vunpack.c.l.b16 %v923
      %v965 = vpack.c.b16 %v963, %v962
      %v966 = vpack.c.b16 %v964, %v964
      %v968 = vshrl.u32 %v965, 16
      %v970 = vshll.u32 %v965, 16
      %v972 = vrot.slane %v970, 1
      %v973 = vor.u32 %v968, %v972
      %v975 = vshll.u32 %v966, 16
      %v977 = vrot.slane %v975, 1
      %v978 = vsel %vm448, %v973, %v977
      %v979 = vshrl.u32 %v966, 16
      %v981 = vor.u32 %v979, %v977
      %982 = vrot.lane.b32.xlu0 %v978, 32
      %v983 = vpop.permute.xlu0 %982
      %984 = vrot.lane.b32.xlu0 %v981, 32
      %v985 = vpop.permute.xlu0 %984
      %v989 = vunpack.c.l.b16 %v929
      %v990 = vunpack.c.l.b16 %v930
      %v991 = vunpack.c.l.b16 %v931
      %v992 = vpack.c.b16 %v990, %v989
      %v993 = vpack.c.b16 %v991, %v991
      %v994 = vrot.slane %v992, 1
      %v995 = vrot.slane %v993, 1
      %v996 = vsel %vm476, %v994, %v995
      %997 = vrot.lane.b32.xlu0 %v996, 64
      %v998 = vpop.permute.xlu0 %997
      %999 = vrot.lane.b32.xlu0 %v995, 64
      %v1000 = vpop.permute.xlu0 %999
      %v1004 = vunpack.c.l.b16 %v934
      %v1005 = vunpack.c.l.b16 %v935
      %v1006 = vunpack.c.l.b16 %v936
      %v1007 = vpack.c.b16 %v1005, %v1004
      %v1008 = vpack.c.b16 %v1006, %v1006
      %v1009 = vrot.slane %v1007, 2
      %v1010 = vrot.slane %v1008, 2
      %v1011 = vsel %vm492, %v1009, %v1010
      %1012 = vrot.lane.b32.xlu0 %v1011, 96
      %v1013 = vpop.permute.xlu0 %1012
      %1014 = vrot.lane.b32.xlu0 %v1010, 96
      %v1015 = vpop.permute.xlu0 %1014
      %v1017 = vunpack.c.l.b16 %v933
      %v1018 = vpack.c.b16 %v1017, %v963
      %v1020 = vshrl.u32 %v1018, 16
      %v1022 = vrot.slane %v1020, 6
      %v1023 = vshll.u32 %v1018, 16
      %v1025 = vrot.slane %v1023, 7
      %v1026 = vor.u32 %v1022, %v1025
      %v1030 = vunpack.c.l.b16 %v938
      %v1031 = vunpack.c.l.b16 %v939
      %v1032 = vunpack.c.l.b16 %v940
      %v1033 = vpack.c.b16 %v1031, %v1030
      %v1034 = vpack.c.b16 %v1032, %v1032
      %v1035 = vrot.slane %v1033, 7
      %v1036 = vrot.slane %v1034, 7
      %v1037 = vsel %vm519, %v1035, %v1036
      %1038 = vrot.lane.b32.xlu0 %v1035, 32
      %v1039 = vpop.permute.xlu0 %1038
      %1040 = vrot.lane.b32.xlu0 %v1037, 32
      %v1041 = vpop.permute.xlu0 %1040
      %v1045 = vunpack.c.l.b16 %v943
      %v1046 = vunpack.c.l.b16 %v944
      %v1047 = vunpack.c.l.b16 %v945
      %v1048 = vpack.c.b16 %v1046, %v1045
      %v1049 = vpack.c.b16 %v1047, %v1047
      %1050 = vrot.lane.b32.xlu0 %v1048, 64
      %v1051 = vpop.permute.xlu0 %1050
      %1052 = vrot.lane.b32.xlu0 %v1049, 64
      %v1053 = vpop.permute.xlu0 %1052
      %v1056 = vunpack.c.l.b16 %v946
      %v1057 = vunpack.c.l.b16 %v942
      %v1058 = vpack.c.b16 %v1017, %v1056
      %v1059 = vpack.c.b16 %v1057, %v1057
      %v1061 = vshrl.u32 %v1058, 16
      %v1063 = vshll.u32 %v1058, 16
      %v1065 = vrot.slane %v1063, 1
      %v1066 = vor.u32 %v1061, %v1065
      %v1068 = vshll.u32 %v1059, 16
      %v1070 = vrot.slane %v1068, 1
      %v1071 = vsel %vm448, %v1066, %v1070
      %v1072 = vshrl.u32 %v1059, 16
      %v1074 = vor.u32 %v1072, %v1070
      %1075 = vrot.lane.b32.xlu0 %v1071, 96
      %v1076 = vpop.permute.xlu0 %1075
      %1077 = vrot.lane.b32.xlu0 %v1074, 96
      %v1078 = vpop.permute.xlu0 %1077
      %v1082 = vunpack.c.l.b16 %v948
      %v1083 = vunpack.c.l.b16 %v949
      %v1084 = vunpack.c.l.b16 %v950
      %v1085 = vpack.c.b16 %v1083, %v1082
      %v1086 = vpack.c.b16 %v1084, %v1084
      %v1087 = vrot.slane %v1085, 1
      %v1088 = vrot.slane %v1086, 1
      %v1089 = vsel %vm476, %v1087, %v1088
      %v1092 = vsel %vm275, %v957, %v983
      %v1095 = vsel %vm275, %v958, %v985
      %v1097 = vsel %vm581, %v1092, %v998
      %v1099 = vsel %vm581, %v1095, %v1000
      %v1101 = vsel %vm586, %v1097, %v1013
      %v1103 = vsel %vm586, %v1099, %v1015
      %v1106 = vsel %vm275, %v1026, %v1039
      %v1108 = vsel %vm275, %v1026, %v1041
      %v1110 = vsel %vm581, %v1106, %v1051
      %v1112 = vsel %vm581, %v1108, %v1053
      %v1114 = vsel %vm586, %v1110, %v1076
      %v1116 = vsel %vm586, %v1112, %v1078
      %s1117 = scalar_lea.vmem %s1, 144
      %v1118 = vld [vmem:[%s1117] sm:$0xf]
      %v1119 = vld [vmem:[%s1117 + $0x4] sm:$0xf]
      %v1120 = vld [vmem:[%s1117 + $0x8] sm:$0xf]
      %v1121 = vld [vmem:[%s1117 + $0xc] sm:$0xf]
      %v1122 = vld [vmem:[%s1117 + $0x10] sm:$0xf]
      %v1123 = vld [vmem:[%s1117 + $0x14] sm:$0xf]
      %v1124 = vld [vmem:[%s1117 + $0x18] sm:$0xf]
      %v1125 = vld [vmem:[%s1117 + $0x1c] sm:$0xf]
      %v1126 = vld [vmem:[%s1117 + $0x20] sm:$0xf]
      %v1127 = vld [vmem:[%s1117 + $0x24] sm:$0xf]
      %v1128 = vld [vmem:[%s1117 + $0x28] sm:$0xf]
      %v1129 = vld [vmem:[%s1117 + $0x2c] sm:$0xf]
      %v1130 = vld [vmem:[%s1117 + $0x30] sm:$0xf]
      %v1131 = vld [vmem:[%s1117 + $0x34] sm:$0xf]
      %v1132 = vld [vmem:[%s1117 + $0x38] sm:$0xf]
      %v1133 = vld [vmem:[%s1117 + $0x3c] sm:$0xf]
      %v1134 = vld [vmem:[%s1117 + $0x40] sm:$0xf]
      %v1135 = vld [vmem:[%s1117 + $0x44] sm:$0xf]
      %v1136 = vld [vmem:[%s1117 + $0x48] sm:$0xf]
      %v1137 = vld [vmem:[%s1117 + $0x4c] sm:$0xf]
      %v1138 = vld [vmem:[%s1117 + $0x50] sm:$0xf]
      %v1139 = vld [vmem:[%s1117 + $0x54] sm:$0xf]
      %v1140 = vld [vmem:[%s1117 + $0x58] sm:$0xf]
      %v1141 = vld [vmem:[%s1117 + $0x5c] sm:$0xf]
      %v1142 = vld [vmem:[%s1117 + $0x60] sm:$0xf]
      %v1143 = vld [vmem:[%s1117 + $0x64] sm:$0xf]
      %v1144 = vld [vmem:[%s1117 + $0x68] sm:$0xf]
      %v1145 = vld [vmem:[%s1117 + $0x6c] sm:$0xf]
      %v1146 = vld [vmem:[%s1117 + $0x70] sm:$0xf]
      %v1147 = vld [vmem:[%s1117 + $0x74] sm:$0xf]
      %v1148 = vld [vmem:[%s1117 + $0x78] sm:$0xf]
      %v1149 = vld [vmem:[%s1117 + $0x7c] sm:$0xf]
      %v1150 = vld [vmem:[%s1117 + $0x80] sm:$0xf]
      %v1151 = vld [vmem:[%s1117 + $0x84] sm:$0xf]
      %v1152 = vld [vmem:[%s1117 + $0x88] sm:$0xf]
      %v1153 = vld [vmem:[%s1117 + $0x8c] sm:$0xf]
      %s1154 = scalar_lea.vmem %s2, 1
      %v1155 = vld [vmem:[%s1154] sm:$0x1]
      %v1157 = vlaneseq
      %v1158 = vshrl.u32 %v1157, 7
      %v1159 = vsub.s32 0, %v1158
      %v1160 = vrot.slane %v1155, %v1159
      %v1162 = vshrl.u32 %v1101, 16
      %v1164 = vrot.slane %v1162, 1
      %v1165 = vshll.u32 %v1101, 16
      %v1167 = vrot.slane %v1165, 2
      %v1168 = vor.u32 %v1164, %v1167
      %v1169 = vshrl.u32 %v1103, 16
      %v1171 = vrot.slane %v1169, 1
      %v1172 = vshll.u32 %v1103, 16
      %v1174 = vrot.slane %v1172, 2
      %v1175 = vor.u32 %v1171, %v1174
      %v1176 = vsel %vm647, %v1168, %v1175
      %v1177 = vshrl.u32 %v1114, 16
      %v1179 = vrot.slane %v1177, 1
      %v1180 = vshll.u32 %v1114, 16
      %v1182 = vrot.slane %v1180, 2
      %v1183 = vor.u32 %v1179, %v1182
      %v1184 = vshrl.u32 %v1116, 16
      %v1186 = vrot.slane %v1184, 1
      %v1187 = vshll.u32 %v1116, 16
      %v1189 = vrot.slane %v1187, 2
      %v1190 = vor.u32 %v1186, %v1189
      %v1191 = vsel %vm647, %v1183, %v1190
      %v1193 = vshrl.u32 %v1089, 16
      %v1195 = vrot.slane %v1193, 1
      %v1196 = vshll.u32 %v1089, 16
      %v1198 = vrot.slane %v1196, 2
      %v1199 = vor.u32 %v1195, %v1198
      %v1201 = vshrl.u32 %v1088, 16
      %v1203 = vrot.slane %v1201, 1
      %v1204 = vshll.u32 %v1088, 16
      %v1206 = vrot.slane %v1204, 2
      %v1207 = vor.u32 %v1203, %v1206
      %v1208 = vsel %vm647, %v1199, %v1207
      %v1247 = vunpack.c.l.b16 %v1118
      %v1248 = vunpack.c.l.b16 %v1119
      %v1249 = vunpack.c.l.b16 %v1120
      %v1250 = vunpack.c.l.b16 %v1121
      %v1251 = vunpack.c.l.b16 %v1122
      %v1252 = vunpack.c.l.b16 %v1123
      %v1253 = vunpack.c.l.b16 %v1124
      %v1254 = vunpack.c.l.b16 %v1125
      %v1255 = vunpack.c.l.b16 %v1126
      %v1256 = vunpack.c.l.b16 %v1127
      %v1257 = vunpack.c.l.b16 %v1128
      %v1258 = vunpack.c.l.b16 %v1129
      %v1259 = vunpack.c.l.b16 %v1130
      %v1260 = vunpack.c.l.b16 %v1131
      %v1261 = vunpack.c.l.b16 %v1132
      %v1262 = vunpack.c.l.b16 %v1133
      %v1263 = vunpack.c.l.b16 %v1134
      %v1264 = vunpack.c.l.b16 %v1135
      %v1265 = vunpack.c.l.b16 %v1136
      %v1266 = vunpack.c.l.b16 %v1137
      %v1267 = vunpack.c.l.b16 %v1138
      %v1268 = vunpack.c.l.b16 %v1139
      %v1269 = vunpack.c.l.b16 %v1140
      %v1270 = vunpack.c.l.b16 %v1141
      %v1271 = vunpack.c.l.b16 %v1142
      %v1272 = vunpack.c.l.b16 %v1143
      %v1273 = vunpack.c.l.b16 %v1144
      %v1274 = vunpack.c.l.b16 %v1145
      %v1275 = vunpack.c.l.b16 %v1146
      %v1276 = vunpack.c.l.b16 %v1147
      %v1277 = vunpack.c.l.b16 %v1148
      %v1278 = vunpack.c.l.b16 %v1149
      %v1279 = vunpack.c.l.b16 %v1150
      %v1280 = vunpack.c.l.b16 %v1151
      %v1281 = vunpack.c.l.b16 %v1152
      %v1282 = vunpack.c.l.b16 %v1153
      %v1283 = vpack.c.b16 %v1248, %v1247
      %v1284 = vpack.c.b16 %v1250, %v1249
      %v1285 = vpack.c.b16 %v1252, %v1251
      %v1286 = vpack.c.b16 %v1254, %v1253
      %v1287 = vpack.c.b16 %v1256, %v1255
      %v1288 = vpack.c.b16 %v1258, %v1257
      %v1289 = vpack.c.b16 %v1260, %v1259
      %v1290 = vpack.c.b16 %v1262, %v1261
      %v1291 = vpack.c.b16 %v1264, %v1263
      %v1292 = vpack.c.b16 %v1266, %v1265
      %v1293 = vpack.c.b16 %v1268, %v1267
      %v1294 = vpack.c.b16 %v1270, %v1269
      %v1295 = vpack.c.b16 %v1272, %v1271
      %v1296 = vpack.c.b16 %v1274, %v1273
      %v1297 = vpack.c.b16 %v1276, %v1275
      %v1298 = vpack.c.b16 %v1278, %v1277
      %v1299 = vpack.c.b16 %v1280, %v1279
      %v1300 = vpack.c.b16 %v1282, %v1281
      %v1320 = vsel %vm275, %v1208, 0
      %1322 = vmatprep.subr.bf16.mxu0 0
      %1323 = vmatpush1.bf16.msra.mxu0 %v1290
      %1324 = vmatprep.subr.bf16.mxu0 0
      %1325 = vmatpush1.bf16.msra.mxu0 %v1289
      %1326 = vmatprep.subr.bf16.mxu0 0
      %1327 = vmatpush1.bf16.msra.mxu0 %v1288
      %1328 = vmatprep.subr.bf16.mxu0 0
      %1329 = vmatpush1.bf16.msra.mxu0 %v1287
      %1330 = vmatprep.subr.bf16.mxu0 0
      %1331 = vmatpush1.bf16.msra.mxu0 %v1286
      %1332 = vmatprep.subr.bf16.mxu0 0
      %1333 = vmatpush1.bf16.msra.mxu0 %v1285
      %1334 = vmatprep.subr.bf16.mxu0 0
      %1335 = vmatpush1.bf16.msra.mxu0 %v1284
      %1336 = vmatprep.subr.bf16.mxu0 0
      %1337 = vmatpush1.bf16.msra.mxu0 %v1283
      %1338 = vmatprep.subr.bf16.mxu0 0
      %1339 = vmatpush2.bf16.msra.mxu0 %v1298
      %1340 = vmatprep.subr.bf16.mxu0 0
      %1341 = vmatpush2.bf16.msra.mxu0 %v1297
      %1342 = vmatprep.subr.bf16.mxu0 0
      %1343 = vmatpush2.bf16.msra.mxu0 %v1296
      %1344 = vmatprep.subr.bf16.mxu0 0
      %1345 = vmatpush2.bf16.msra.mxu0 %v1295
      %1346 = vmatprep.subr.bf16.mxu0 0
      %1347 = vmatpush2.bf16.msra.mxu0 %v1294
      %1348 = vmatprep.subr.bf16.mxu0 0
      %1349 = vmatpush2.bf16.msra.mxu0 %v1293
      %1350 = vmatprep.subr.bf16.mxu0 0
      %1351 = vmatpush2.bf16.msra.mxu0 %v1292
      %1352 = vmatprep.subr.bf16.mxu0 0
      %1353 = vmatpush2.bf16.msra.mxu0 %v1291
      %1354 = vmatprep.mubr.bf16.mxu0 %v1191
      %1355 = vmatmul.mubr.bf16.gmra.mxu0 %v1176
      %v1356 = vpop.f32.mrf.mxu0
      %v1357 = vadd.f32 %v1160, %v1356
      %v1358 = vpop.f32.mrf.mxu0
      %v1359 = vpop.f32.mrf.mxu0
      %v1360 = vadd.f32 %v1160, %v1359
      %v1361 = vpop.f32.mrf.mxu0
      %1362 = vdwg.mxu0
      %1363 = vmatprep.subr.bf16.mxu0 0
      %1364 = vmatpush1.bf16.msra.mxu0 0
      %1365 = vmatprep.subr.bf16.mxu0 0
      %1366 = vmatpush1.bf16.msra.mxu0 0
      %1367 = vmatprep.subr.bf16.mxu0 0
      %1368 = vmatpush1.bf16.msra.mxu0 0
      %1369 = vmatprep.subr.bf16.mxu0 0
      %1370 = vmatpush1.bf16.msra.mxu0 0
      %1371 = vmatprep.subr.bf16.mxu0 0
      %1372 = vmatpush1.bf16.msra.mxu0 0
      %1373 = vmatprep.subr.bf16.mxu0 0
      %1374 = vmatpush1.bf16.msra.mxu0 0
      %1375 = vmatprep.subr.bf16.mxu0 0
      %1376 = vmatpush1.bf16.msra.mxu0 %v1300
      %1377 = vmatprep.subr.bf16.mxu0 0
      %1378 = vmatpush1.bf16.msra.mxu0 %v1299
      %1379 = vmatprep.subr.bf16.mxu0 0
      %1380 = vmatpush2.bf16.msra.mxu0 0
      %1381 = vmatprep.subr.bf16.mxu0 0
      %1382 = vmatpush2.bf16.msra.mxu0 0
      %1383 = vmatprep.subr.bf16.mxu0 0
      %1384 = vmatpush2.bf16.msra.mxu0 0
      %1385 = vmatprep.subr.bf16.mxu0 0
      %1386 = vmatpush2.bf16.msra.mxu0 0
      %1387 = vmatprep.subr.bf16.mxu0 0
      %1388 = vmatpush2.bf16.msra.mxu0 0
      %1389 = vmatprep.subr.bf16.mxu0 0
      %1390 = vmatpush2.bf16.msra.mxu0 0
      %1391 = vmatprep.subr.bf16.mxu0 0
      %1392 = vmatpush2.bf16.msra.mxu0 0
      %1393 = vmatprep.subr.bf16.mxu0 0
      %1394 = vmatpush2.bf16.msra.mxu0 0
      %1395 = vmatprep.mubr.bf16.mxu0 0
      %1396 = vmatmul.mubr.bf16.gmra.mxu0 %v1320
      %v1397 = vpop.f32.mrf.mxu0
      %v1398 = vadd.f32 %v1357, %v1397
      %v1399 = vpop.f32.mrf.mxu0
      %v1400 = vpop.f32.mrf.mxu0
      %v1401 = vadd.f32 %v1360, %v1400
      %v1402 = vpop.f32.mrf.mxu0
      %1403 = vdwg.mxu0
      %s1404 = scalar_lea.vmem %s3, 1
      %v1405 = vld [vmem:[%s1404] sm:$0x1]
      %v1407 = vlaneseq
      %v1408 = vshrl.u32 %v1407, 7
      %v1409 = vsub.s32 0, %v1408
      %v1410 = vrot.slane %v1405, %v1409
      %v1412 = vmul.f32 %v1398, %v1410
      %v1413 = vmul.f32 %v1401, %v1410
      %v1414 = vld [vmem:[#allocation3] sm:$0xff]
      %v1415 = vld [vmem:[#allocation3 + $0x8] sm:$0xff]
      %v1416 = vadd.f32 %v1412, %v1414
      %v1417 = vadd.f32 %v1413, %v1415
      %vm1418 = vcmp.ge.f32.partialorder %v1416, 0.0
      %vm1419 = vcmp.ge.f32.partialorder %v1417, 0.0
      %v1420 = vmul.f32 %v1416, 0.2
      %v1421 = vmul.f32 %v1417, 0.2
      %v1422 = vsel %vm1418, %v1416, %v1420
      %v1423 = vsel %vm1419, %v1417, %v1421
      %1424 = vst.msk [vmem:[#allocation3] sm:$0xff] %vm275, %v1422
      %1425 = vst.msk [vmem:[#allocation3 + $0x8] sm:$0xff] %vm275, %v1423
      %v1426 = vpack.c.bf16 %v1423, %v1422
      %v1428 = vunpack.c.l.b16 %v1426
      %v1429 = vunpack.c.h.b16 %v1426
      %v1430 = vpack.c.b16 %v1428, %v1428
      %v1431 = vpack.c.b16 %v1429, %v1429
      %1434 = vst.msk [vmem:[#allocation2 + $0x8] sm:$0xf] %vm260, %v1430
      %1435 = vst.msk [vmem:[#allocation2 + $0xc] sm:$0xf] %vm260, %v1431
      %v1436 = vld [vmem:[#allocation2 + $0x4] sm:$0xe]
      %v1437 = vld [vmem:[#allocation2 + $0x8] sm:$0xf]
      %v1438 = vld [vmem:[#allocation2 + $0xc] sm:$0x3]
      %v1439 = vsel %vm342, %v1436, 0
      %v1440 = vsel %vm343, %v1437, 0
      %v1441 = vsel %vm344, %v1438, 0
      %v1442 = vld [vmem:[#allocation2 + $0x4] sm:$0xc]
      %v1443 = vld [vmem:[#allocation2 + $0xc] sm:$0x7]
      %v1444 = vsel %vm379, %v1442, 0
      %v1445 = vsel %vm380, %v1437, 0
      %v1446 = vsel %vm381, %v1443, 0
      %v1447 = vld [vmem:[#allocation2 + $0x4] sm:$0x8]
      %v1448 = vld [vmem:[#allocation2 + $0xc] sm:$0xf]
      %v1449 = vsel %vm399, %v1447, 0
      %v1450 = vsel %vm400, %v1437, 0
      %v1451 = vsel %vm401, %v1448, 0
      %v1452 = vld [vmem:[#allocation2 + $0x10] sm:$0x1]
      %v1453 = vsel %vm416, %v1437, 0
      %v1454 = vsel %vm417, %v1448, 0
      %v1455 = vsel %vm418, %v1452, 0
      %v1456 = vld [vmem:[#allocation2 + $0x8] sm:$0xe]
      %v1457 = vld [vmem:[#allocation2 + $0x10] sm:$0x3]
      %v1458 = vsel %vm342, %v1456, 0
      %v1459 = vsel %vm343, %v1448, 0
      %v1460 = vsel %vm344, %v1457, 0
      %v1461 = vld [vmem:[#allocation2 + $0x8] sm:$0xc]
      %v1462 = vld [vmem:[#allocation2 + $0x10] sm:$0x7]
      %v1463 = vsel %vm379, %v1461, 0
      %v1464 = vsel %vm380, %v1448, 0
      %v1465 = vsel %vm381, %v1462, 0
      %v1469 = vunpack.c.l.b16 %v1439
      %v1470 = vunpack.c.l.b16 %v1440
      %v1471 = vunpack.c.l.b16 %v1441
      %v1472 = vpack.c.b16 %v1470, %v1469
      %v1473 = vpack.c.b16 %v1471, %v1471
      %v1477 = vunpack.c.l.b16 %v1442
      %v1478 = vunpack.c.l.b16 %v1437
      %v1479 = vunpack.c.l.b16 %v1438
      %v1480 = vpack.c.b16 %v1478, %v1477
      %v1481 = vpack.c.b16 %v1479, %v1479
      %v1483 = vshrl.u32 %v1480, 16
      %v1485 = vshll.u32 %v1480, 16
      %v1487 = vrot.slane %v1485, 1
      %v1488 = vor.u32 %v1483, %v1487
      %v1490 = vshll.u32 %v1481, 16
      %v1492 = vrot.slane %v1490, 1
      %v1493 = vsel %vm448, %v1488, %v1492
      %v1494 = vshrl.u32 %v1481, 16
      %v1496 = vor.u32 %v1494, %v1492
      %1497 = vrot.lane.b32.xlu0 %v1493, 32
      %v1498 = vpop.permute.xlu0 %1497
      %1499 = vrot.lane.b32.xlu0 %v1496, 32
      %v1500 = vpop.permute.xlu0 %1499
      %v1504 = vunpack.c.l.b16 %v1444
      %v1505 = vunpack.c.l.b16 %v1445
      %v1506 = vunpack.c.l.b16 %v1446
      %v1507 = vpack.c.b16 %v1505, %v1504
      %v1508 = vpack.c.b16 %v1506, %v1506
      %v1509 = vrot.slane %v1507, 1
      %v1510 = vrot.slane %v1508, 1
      %v1511 = vsel %vm476, %v1509, %v1510
      %1512 = vrot.lane.b32.xlu0 %v1511, 64
      %v1513 = vpop.permute.xlu0 %1512
      %1514 = vrot.lane.b32.xlu0 %v1510, 64
      %v1515 = vpop.permute.xlu0 %1514
      %v1519 = vunpack.c.l.b16 %v1449
      %v1520 = vunpack.c.l.b16 %v1450
      %v1521 = vunpack.c.l.b16 %v1451
      %v1522 = vpack.c.b16 %v1520, %v1519
      %v1523 = vpack.c.b16 %v1521, %v1521
      %v1524 = vrot.slane %v1522, 2
      %v1525 = vrot.slane %v1523, 2
      %v1526 = vsel %vm492, %v1524, %v1525
      %1527 = vrot.lane.b32.xlu0 %v1526, 96
      %v1528 = vpop.permute.xlu0 %1527
      %1529 = vrot.lane.b32.xlu0 %v1525, 96
      %v1530 = vpop.permute.xlu0 %1529
      %v1532 = vunpack.c.l.b16 %v1448
      %v1533 = vpack.c.b16 %v1532, %v1478
      %v1535 = vshrl.u32 %v1533, 16
      %v1537 = vrot.slane %v1535, 6
      %v1538 = vshll.u32 %v1533, 16
      %v1540 = vrot.slane %v1538, 7
      %v1541 = vor.u32 %v1537, %v1540
      %v1545 = vunpack.c.l.b16 %v1453
      %v1546 = vunpack.c.l.b16 %v1454
      %v1547 = vunpack.c.l.b16 %v1455
      %v1548 = vpack.c.b16 %v1546, %v1545
      %v1549 = vpack.c.b16 %v1547, %v1547
      %v1550 = vrot.slane %v1548, 7
      %v1551 = vrot.slane %v1549, 7
      %v1552 = vsel %vm519, %v1550, %v1551
      %1553 = vrot.lane.b32.xlu0 %v1550, 32
      %v1554 = vpop.permute.xlu0 %1553
      %1555 = vrot.lane.b32.xlu0 %v1552, 32
      %v1556 = vpop.permute.xlu0 %1555
      %v1560 = vunpack.c.l.b16 %v1458
      %v1561 = vunpack.c.l.b16 %v1459
      %v1562 = vunpack.c.l.b16 %v1460
      %v1563 = vpack.c.b16 %v1561, %v1560
      %v1564 = vpack.c.b16 %v1562, %v1562
      %1565 = vrot.lane.b32.xlu0 %v1563, 64
      %v1566 = vpop.permute.xlu0 %1565
      %1567 = vrot.lane.b32.xlu0 %v1564, 64
      %v1568 = vpop.permute.xlu0 %1567
      %v1571 = vunpack.c.l.b16 %v1461
      %v1572 = vunpack.c.l.b16 %v1457
      %v1573 = vpack.c.b16 %v1532, %v1571
      %v1574 = vpack.c.b16 %v1572, %v1572
      %v1576 = vshrl.u32 %v1573, 16
      %v1578 = vshll.u32 %v1573, 16
      %v1580 = vrot.slane %v1578, 1
      %v1581 = vor.u32 %v1576, %v1580
      %v1583 = vshll.u32 %v1574, 16
      %v1585 = vrot.slane %v1583, 1
      %v1586 = vsel %vm448, %v1581, %v1585
      %v1587 = vshrl.u32 %v1574, 16
      %v1589 = vor.u32 %v1587, %v1585
      %1590 = vrot.lane.b32.xlu0 %v1586, 96
      %v1591 = vpop.permute.xlu0 %1590
      %1592 = vrot.lane.b32.xlu0 %v1589, 96
      %v1593 = vpop.permute.xlu0 %1592
      %v1597 = vunpack.c.l.b16 %v1463
      %v1598 = vunpack.c.l.b16 %v1464
      %v1599 = vunpack.c.l.b16 %v1465
      %v1600 = vpack.c.b16 %v1598, %v1597
      %v1601 = vpack.c.b16 %v1599, %v1599
      %v1602 = vrot.slane %v1600, 1
      %v1603 = vrot.slane %v1601, 1
      %v1604 = vsel %vm476, %v1602, %v1603
      %v1607 = vsel %vm275, %v1472, %v1498
      %v1610 = vsel %vm275, %v1473, %v1500
      %v1612 = vsel %vm581, %v1607, %v1513
      %v1614 = vsel %vm581, %v1610, %v1515
      %v1616 = vsel %vm586, %v1612, %v1528
      %v1618 = vsel %vm586, %v1614, %v1530
      %v1621 = vsel %vm275, %v1541, %v1554
      %v1623 = vsel %vm275, %v1541, %v1556
      %v1625 = vsel %vm581, %v1621, %v1566
      %v1627 = vsel %vm581, %v1623, %v1568
      %v1629 = vsel %vm586, %v1625, %v1591
      %v1631 = vsel %vm586, %v1627, %v1593
      %s1632 = scalar_lea.vmem %s1, 288
      %v1633 = vld [vmem:[%s1632] sm:$0xf]
      %v1634 = vld [vmem:[%s1632 + $0x4] sm:$0xf]
      %v1635 = vld [vmem:[%s1632 + $0x8] sm:$0xf]
      %v1636 = vld [vmem:[%s1632 + $0xc] sm:$0xf]
      %v1637 = vld [vmem:[%s1632 + $0x10] sm:$0xf]
      %v1638 = vld [vmem:[%s1632 + $0x14] sm:$0xf]
      %v1639 = vld [vmem:[%s1632 + $0x18] sm:$0xf]
      %v1640 = vld [vmem:[%s1632 + $0x1c] sm:$0xf]
      %v1641 = vld [vmem:[%s1632 + $0x20] sm:$0xf]
      %v1642 = vld [vmem:[%s1632 + $0x24] sm:$0xf]
      %v1643 = vld [vmem:[%s1632 + $0x28] sm:$0xf]
      %v1644 = vld [vmem:[%s1632 + $0x2c] sm:$0xf]
      %v1645 = vld [vmem:[%s1632 + $0x30] sm:$0xf]
      %v1646 = vld [vmem:[%s1632 + $0x34] sm:$0xf]
      %v1647 = vld [vmem:[%s1632 + $0x38] sm:$0xf]
      %v1648 = vld [vmem:[%s1632 + $0x3c] sm:$0xf]
      %v1649 = vld [vmem:[%s1632 + $0x40] sm:$0xf]
      %v1650 = vld [vmem:[%s1632 + $0x44] sm:$0xf]
      %v1651 = vld [vmem:[%s1632 + $0x48] sm:$0xf]
      %v1652 = vld [vmem:[%s1632 + $0x4c] sm:$0xf]
      %v1653 = vld [vmem:[%s1632 + $0x50] sm:$0xf]
      %v1654 = vld [vmem:[%s1632 + $0x54] sm:$0xf]
      %v1655 = vld [vmem:[%s1632 + $0x58] sm:$0xf]
      %v1656 = vld [vmem:[%s1632 + $0x5c] sm:$0xf]
      %v1657 = vld [vmem:[%s1632 + $0x60] sm:$0xf]
      %v1658 = vld [vmem:[%s1632 + $0x64] sm:$0xf]
      %v1659 = vld [vmem:[%s1632 + $0x68] sm:$0xf]
      %v1660 = vld [vmem:[%s1632 + $0x6c] sm:$0xf]
      %v1661 = vld [vmem:[%s1632 + $0x70] sm:$0xf]
      %v1662 = vld [vmem:[%s1632 + $0x74] sm:$0xf]
      %v1663 = vld [vmem:[%s1632 + $0x78] sm:$0xf]
      %v1664 = vld [vmem:[%s1632 + $0x7c] sm:$0xf]
      %v1665 = vld [vmem:[%s1632 + $0x80] sm:$0xf]
      %v1666 = vld [vmem:[%s1632 + $0x84] sm:$0xf]
      %v1667 = vld [vmem:[%s1632 + $0x88] sm:$0xf]
      %v1668 = vld [vmem:[%s1632 + $0x8c] sm:$0xf]
      %s1669 = scalar_lea.vmem %s2, 2
      %v1670 = vld [vmem:[%s1669] sm:$0x1]
      %v1672 = vlaneseq
      %v1673 = vshrl.u32 %v1672, 7
      %v1674 = vsub.s32 0, %v1673
      %v1675 = vrot.slane %v1670, %v1674
      %v1677 = vshrl.u32 %v1616, 16
      %v1679 = vrot.slane %v1677, 1
      %v1680 = vshll.u32 %v1616, 16
      %v1682 = vrot.slane %v1680, 2
      %v1683 = vor.u32 %v1679, %v1682
      %v1684 = vshrl.u32 %v1618, 16
      %v1686 = vrot.slane %v1684, 1
      %v1687 = vshll.u32 %v1618, 16
      %v1689 = vrot.slane %v1687, 2
      %v1690 = vor.u32 %v1686, %v1689
      %v1691 = vsel %vm647, %v1683, %v1690
      %v1692 = vshrl.u32 %v1629, 16
      %v1694 = vrot.slane %v1692, 1
      %v1695 = vshll.u32 %v1629, 16
      %v1697 = vrot.slane %v1695, 2
      %v1698 = vor.u32 %v1694, %v1697
      %v1699 = vshrl.u32 %v1631, 16
      %v1701 = vrot.slane %v1699, 1
      %v1702 = vshll.u32 %v1631, 16
      %v1704 = vrot.slane %v1702, 2
      %v1705 = vor.u32 %v1701, %v1704
      %v1706 = vsel %vm647, %v1698, %v1705
      %v1708 = vshrl.u32 %v1604, 16
      %v1710 = vrot.slane %v1708, 1
      %v1711 = vshll.u32 %v1604, 16
      %v1713 = vrot.slane %v1711, 2
      %v1714 = vor.u32 %v1710, %v1713
      %v1716 = vshrl.u32 %v1603, 16
      %v1718 = vrot.slane %v1716, 1
      %v1719 = vshll.u32 %v1603, 16
      %v1721 = vrot.slane %v1719, 2
      %v1722 = vor.u32 %v1718, %v1721
      %v1723 = vsel %vm647, %v1714, %v1722
      %v1762 = vunpack.c.l.b16 %v1633
      %v1763 = vunpack.c.l.b16 %v1634
      %v1764 = vunpack.c.l.b16 %v1635
      %v1765 = vunpack.c.l.b16 %v1636
      %v1766 = vunpack.c.l.b16 %v1637
      %v1767 = vunpack.c.l.b16 %v1638
      %v1768 = vunpack.c.l.b16 %v1639
      %v1769 = vunpack.c.l.b16 %v1640
      %v1770 = vunpack.c.l.b16 %v1641
      %v1771 = vunpack.c.l.b16 %v1642
      %v1772 = vunpack.c.l.b16 %v1643
      %v1773 = vunpack.c.l.b16 %v1644
      %v1774 = vunpack.c.l.b16 %v1645
      %v1775 = vunpack.c.l.b16 %v1646
      %v1776 = vunpack.c.l.b16 %v1647
      %v1777 = vunpack.c.l.b16 %v1648
      %v1778 = vunpack.c.l.b16 %v1649
      %v1779 = vunpack.c.l.b16 %v1650
      %v1780 = vunpack.c.l.b16 %v1651
      %v1781 = vunpack.c.l.b16 %v1652
      %v1782 = vunpack.c.l.b16 %v1653
      %v1783 = vunpack.c.l.b16 %v1654
      %v1784 = vunpack.c.l.b16 %v1655
      %v1785 = vunpack.c.l.b16 %v1656
      %v1786 = vunpack.c.l.b16 %v1657
      %v1787 = vunpack.c.l.b16 %v1658
      %v1788 = vunpack.c.l.b16 %v1659
      %v1789 = vunpack.c.l.b16 %v1660
      %v1790 = vunpack.c.l.b16 %v1661
      %v1791 = vunpack.c.l.b16 %v1662
      %v1792 = vunpack.c.l.b16 %v1663
      %v1793 = vunpack.c.l.b16 %v1664
      %v1794 = vunpack.c.l.b16 %v1665
      %v1795 = vunpack.c.l.b16 %v1666
      %v1796 = vunpack.c.l.b16 %v1667
      %v1797 = vunpack.c.l.b16 %v1668
      %v1798 = vpack.c.b16 %v1763, %v1762
      %v1799 = vpack.c.b16 %v1765, %v1764
      %v1800 = vpack.c.b16 %v1767, %v1766
      %v1801 = vpack.c.b16 %v1769, %v1768
      %v1802 = vpack.c.b16 %v1771, %v1770
      %v1803 = vpack.c.b16 %v1773, %v1772
      %v1804 = vpack.c.b16 %v1775, %v1774
      %v1805 = vpack.c.b16 %v1777, %v1776
      %v1806 = vpack.c.b16 %v1779, %v1778
      %v1807 = vpack.c.b16 %v1781, %v1780
      %v1808 = vpack.c.b16 %v1783, %v1782
      %v1809 = vpack.c.b16 %v1785, %v1784
      %v1810 = vpack.c.b16 %v1787, %v1786
      %v1811 = vpack.c.b16 %v1789, %v1788
      %v1812 = vpack.c.b16 %v1791, %v1790
      %v1813 = vpack.c.b16 %v1793, %v1792
      %v1814 = vpack.c.b16 %v1795, %v1794
      %v1815 = vpack.c.b16 %v1797, %v1796
      %v1835 = vsel %vm275, %v1723, 0
      %1837 = vmatprep.subr.bf16.mxu0 0
      %1838 = vmatpush1.bf16.msra.mxu0 %v1805
      %1839 = vmatprep.subr.bf16.mxu0 0
      %1840 = vmatpush1.bf16.msra.mxu0 %v1804
      %1841 = vmatprep.subr.bf16.mxu0 0
      %1842 = vmatpush1.bf16.msra.mxu0 %v1803
      %1843 = vmatprep.subr.bf16.mxu0 0
      %1844 = vmatpush1.bf16.msra.mxu0 %v1802
      %1845 = vmatprep.subr.bf16.mxu0 0
      %1846 = vmatpush1.bf16.msra.mxu0 %v1801
      %1847 = vmatprep.subr.bf16.mxu0 0
      %1848 = vmatpush1.bf16.msra.mxu0 %v1800
      %1849 = vmatprep.subr.bf16.mxu0 0
      %1850 = vmatpush1.bf16.msra.mxu0 %v1799
      %1851 = vmatprep.subr.bf16.mxu0 0
      %1852 = vmatpush1.bf16.msra.mxu0 %v1798
      %1853 = vmatprep.subr.bf16.mxu0 0
      %1854 = vmatpush2.bf16.msra.mxu0 %v1813
      %1855 = vmatprep.subr.bf16.mxu0 0
      %1856 = vmatpush2.bf16.msra.mxu0 %v1812
      %1857 = vmatprep.subr.bf16.mxu0 0
      %1858 = vmatpush2.bf16.msra.mxu0 %v1811
      %1859 = vmatprep.subr.bf16.mxu0 0
      %1860 = vmatpush2.bf16.msra.mxu0 %v1810
      %1861 = vmatprep.subr.bf16.mxu0 0
      %1862 = vmatpush2.bf16.msra.mxu0 %v1809
      %1863 = vmatprep.subr.bf16.mxu0 0
      %1864 = vmatpush2.bf16.msra.mxu0 %v1808
      %1865 = vmatprep.subr.bf16.mxu0 0
      %1866 = vmatpush2.bf16.msra.mxu0 %v1807
      %1867 = vmatprep.subr.bf16.mxu0 0
      %1868 = vmatpush2.bf16.msra.mxu0 %v1806
      %1869 = vmatprep.mubr.bf16.mxu0 %v1706
      %1870 = vmatmul.mubr.bf16.gmra.mxu0 %v1691
      %v1871 = vpop.f32.mrf.mxu0
      %v1872 = vadd.f32 %v1675, %v1871
      %v1873 = vpop.f32.mrf.mxu0
      %v1874 = vpop.f32.mrf.mxu0
      %v1875 = vadd.f32 %v1675, %v1874
      %v1876 = vpop.f32.mrf.mxu0
      %1877 = vdwg.mxu0
      %1878 = vmatprep.subr.bf16.mxu0 0
      %1879 = vmatpush1.bf16.msra.mxu0 0
      %1880 = vmatprep.subr.bf16.mxu0 0
      %1881 = vmatpush1.bf16.msra.mxu0 0
      %1882 = vmatprep.subr.bf16.mxu0 0
      %1883 = vmatpush1.bf16.msra.mxu0 0
      %1884 = vmatprep.subr.bf16.mxu0 0
      %1885 = vmatpush1.bf16.msra.mxu0 0
      %1886 = vmatprep.subr.bf16.mxu0 0
      %1887 = vmatpush1.bf16.msra.mxu0 0
      %1888 = vmatprep.subr.bf16.mxu0 0
      %1889 = vmatpush1.bf16.msra.mxu0 0
      %1890 = vmatprep.subr.bf16.mxu0 0
      %1891 = vmatpush1.bf16.msra.mxu0 %v1815
      %1892 = vmatprep.subr.bf16.mxu0 0
      %1893 = vmatpush1.bf16.msra.mxu0 %v1814
      %1894 = vmatprep.subr.bf16.mxu0 0
      %1895 = vmatpush2.bf16.msra.mxu0 0
      %1896 = vmatprep.subr.bf16.mxu0 0
      %1897 = vmatpush2.bf16.msra.mxu0 0
      %1898 = vmatprep.subr.bf16.mxu0 0
      %1899 = vmatpush2.bf16.msra.mxu0 0
      %1900 = vmatprep.subr.bf16.mxu0 0
      %1901 = vmatpush2.bf16.msra.mxu0 0
      %1902 = vmatprep.subr.bf16.mxu0 0
      %1903 = vmatpush2.bf16.msra.mxu0 0
      %1904 = vmatprep.subr.bf16.mxu0 0
      %1905 = vmatpush2.bf16.msra.mxu0 0
      %1906 = vmatprep.subr.bf16.mxu0 0
      %1907 = vmatpush2.bf16.msra.mxu0 0
      %1908 = vmatprep.subr.bf16.mxu0 0
      %1909 = vmatpush2.bf16.msra.mxu0 0
      %1910 = vmatprep.mubr.bf16.mxu0 0
      %1911 = vmatmul.mubr.bf16.gmra.mxu0 %v1835
      %v1912 = vpop.f32.mrf.mxu0
      %v1913 = vadd.f32 %v1872, %v1912
      %v1914 = vpop.f32.mrf.mxu0
      %v1915 = vpop.f32.mrf.mxu0
      %v1916 = vadd.f32 %v1875, %v1915
      %v1917 = vpop.f32.mrf.mxu0
      %1918 = vdwg.mxu0
      %s1919 = scalar_lea.vmem %s3, 2
      %v1920 = vld [vmem:[%s1919] sm:$0x1]
      %v1922 = vlaneseq
      %v1923 = vshrl.u32 %v1922, 7
      %v1924 = vsub.s32 0, %v1923
      %v1925 = vrot.slane %v1920, %v1924
      %v1927 = vmul.f32 %v1913, %v1925
      %v1928 = vmul.f32 %v1916, %v1925
      %v1929 = vld [vmem:[#allocation3] sm:$0xff]
      %v1930 = vld [vmem:[#allocation3 + $0x8] sm:$0xff]
      %v1931 = vadd.f32 %v1927, %v1929
      %v1932 = vadd.f32 %v1928, %v1930
      %vm1933 = vcmp.ge.f32.partialorder %v1931, 0.0
      %vm1934 = vcmp.ge.f32.partialorder %v1932, 0.0
      %v1935 = vmul.f32 %v1931, 0.2
      %v1936 = vmul.f32 %v1932, 0.2
      %v1937 = vsel %vm1933, %v1931, %v1935
      %v1938 = vsel %vm1934, %v1932, %v1936
      %1939 = vst.msk [vmem:[#allocation3] sm:$0xff] %vm275, %v1937
      %1940 = vst.msk [vmem:[#allocation3 + $0x8] sm:$0xff] %vm275, %v1938
      %v1941 = vpack.c.bf16 %v1938, %v1937
      %v1943 = vunpack.c.l.b16 %v1941
      %v1944 = vunpack.c.h.b16 %v1941
      %v1945 = vpack.c.b16 %v1943, %v1943
      %v1946 = vpack.c.b16 %v1944, %v1944
      %1949 = vst.msk [vmem:[#allocation2 + $0x8] sm:$0xf] %vm260, %v1945
      %1950 = vst.msk [vmem:[#allocation2 + $0xc] sm:$0xf] %vm260, %v1946
      %v1951 = vld [vmem:[#allocation2 + $0x4] sm:$0xe]
      %v1952 = vld [vmem:[#allocation2 + $0x8] sm:$0xf]
      %v1953 = vld [vmem:[#allocation2 + $0xc] sm:$0x3]
      %v1954 = vsel %vm342, %v1951, 0
      %v1955 = vsel %vm343, %v1952, 0
      %v1956 = vsel %vm344, %v1953, 0
      %v1957 = vld [vmem:[#allocation2 + $0x4] sm:$0xc]
      %v1958 = vld [vmem:[#allocation2 + $0xc] sm:$0x7]
      %v1959 = vsel %vm379, %v1957, 0
      %v1960 = vsel %vm380, %v1952, 0
      %v1961 = vsel %vm381, %v1958, 0
      %v1962 = vld [vmem:[#allocation2 + $0x4] sm:$0x8]
      %v1963 = vld [vmem:[#allocation2 + $0xc] sm:$0xf]
      %v1964 = vsel %vm399, %v1962, 0
      %v1965 = vsel %vm400, %v1952, 0
      %v1966 = vsel %vm401, %v1963, 0
      %v1967 = vld [vmem:[#allocation2 + $0x10] sm:$0x1]
      %v1968 = vsel %vm416, %v1952, 0
      %v1969 = vsel %vm417, %v1963, 0
      %v1970 = vsel %vm418, %v1967, 0
      %v1971 = vld [vmem:[#allocation2 + $0x8] sm:$0xe]
      %v1972 = vld [vmem:[#allocation2 + $0x10] sm:$0x3]
      %v1973 = vsel %vm342, %v1971, 0
      %v1974 = vsel %vm343, %v1963, 0
      %v1975 = vsel %vm344, %v1972, 0
      %v1976 = vld [vmem:[#allocation2 + $0x8] sm:$0xc]
      %v1977 = vld [vmem:[#allocation2 + $0x10] sm:$0x7]
      %v1978 = vsel %vm379, %v1976, 0
      %v1979 = vsel %vm380, %v1963, 0
      %v1980 = vsel %vm381, %v1977, 0
      %v1984 = vunpack.c.l.b16 %v1954
      %v1985 = vunpack.c.l.b16 %v1955
      %v1986 = vunpack.c.l.b16 %v1956
      %v1987 = vpack.c.b16 %v1985, %v1984
      %v1988 = vpack.c.b16 %v1986, %v1986
      %v1992 = vunpack.c.l.b16 %v1957
      %v1993 = vunpack.c.l.b16 %v1952
      %v1994 = vunpack.c.l.b16 %v1953
      %v1995 = vpack.c.b16 %v1993, %v1992
      %v1996 = vpack.c.b16 %v1994, %v1994
      %v1998 = vshrl.u32 %v1995, 16
      %v2000 = vshll.u32 %v1995, 16
      %v2002 = vrot.slane %v2000, 1
      %v2003 = vor.u32 %v1998, %v2002
      %v2005 = vshll.u32 %v1996, 16
      %v2007 = vrot.slane %v2005, 1
      %v2008 = vsel %vm448, %v2003, %v2007
      %v2009 = vshrl.u32 %v1996, 16
      %v2011 = vor.u32 %v2009, %v2007
      %2012 = vrot.lane.b32.xlu0 %v2008, 32
      %v2013 = vpop.permute.xlu0 %2012
      %2014 = vrot.lane.b32.xlu0 %v2011, 32
      %v2015 = vpop.permute.xlu0 %2014
      %v2019 = vunpack.c.l.b16 %v1959
      %v2020 = vunpack.c.l.b16 %v1960
      %v2021 = vunpack.c.l.b16 %v1961
      %v2022 = vpack.c.b16 %v2020, %v2019
      %v2023 = vpack.c.b16 %v2021, %v2021
      %v2024 = vrot.slane %v2022, 1
      %v2025 = vrot.slane %v2023, 1
      %v2026 = vsel %vm476, %v2024, %v2025
      %2027 = vrot.lane.b32.xlu0 %v2026, 64
      %v2028 = vpop.permute.xlu0 %2027
      %2029 = vrot.lane.b32.xlu0 %v2025, 64
      %v2030 = vpop.permute.xlu0 %2029
      %v2034 = vunpack.c.l.b16 %v1964
      %v2035 = vunpack.c.l.b16 %v1965
      %v2036 = vunpack.c.l.b16 %v1966
      %v2037 = vpack.c.b16 %v2035, %v2034
      %v2038 = vpack.c.b16 %v2036, %v2036
      %v2039 = vrot.slane %v2037, 2
      %v2040 = vrot.slane %v2038, 2
      %v2041 = vsel %vm492, %v2039, %v2040
      %2042 = vrot.lane.b32.xlu0 %v2041, 96
      %v2043 = vpop.permute.xlu0 %2042
      %2044 = vrot.lane.b32.xlu0 %v2040, 96
      %v2045 = vpop.permute.xlu0 %2044
      %v2047 = vunpack.c.l.b16 %v1963
      %v2048 = vpack.c.b16 %v2047, %v1993
      %v2050 = vshrl.u32 %v2048, 16
      %v2052 = vrot.slane %v2050, 6
      %v2053 = vshll.u32 %v2048, 16
      %v2055 = vrot.slane %v2053, 7
      %v2056 = vor.u32 %v2052, %v2055
      %v2060 = vunpack.c.l.b16 %v1968
      %v2061 = vunpack.c.l.b16 %v1969
      %v2062 = vunpack.c.l.b16 %v1970
      %v2063 = vpack.c.b16 %v2061, %v2060
      %v2064 = vpack.c.b16 %v2062, %v2062
      %v2065 = vrot.slane %v2063, 7
      %v2066 = vrot.slane %v2064, 7
      %v2067 = vsel %vm519, %v2065, %v2066
      %2068 = vrot.lane.b32.xlu0 %v2065, 32
      %v2069 = vpop.permute.xlu0 %2068
      %2070 = vrot.lane.b32.xlu0 %v2067, 32
      %v2071 = vpop.permute.xlu0 %2070
      %v2075 = vunpack.c.l.b16 %v1973
      %v2076 = vunpack.c.l.b16 %v1974
      %v2077 = vunpack.c.l.b16 %v1975
      %v2078 = vpack.c.b16 %v2076, %v2075
      %v2079 = vpack.c.b16 %v2077, %v2077
      %2080 = vrot.lane.b32.xlu0 %v2078, 64
      %v2081 = vpop.permute.xlu0 %2080
      %2082 = vrot.lane.b32.xlu0 %v2079, 64
      %v2083 = vpop.permute.xlu0 %2082
      %v2086 = vunpack.c.l.b16 %v1976
      %v2087 = vunpack.c.l.b16 %v1972
      %v2088 = vpack.c.b16 %v2047, %v2086
      %v2089 = vpack.c.b16 %v2087, %v2087
      %v2091 = vshrl.u32 %v2088, 16
      %v2093 = vshll.u32 %v2088, 16
      %v2095 = vrot.slane %v2093, 1
      %v2096 = vor.u32 %v2091, %v2095
      %v2098 = vshll.u32 %v2089, 16
      %v2100 = vrot.slane %v2098, 1
      %v2101 = vsel %vm448, %v2096, %v2100
      %v2102 = vshrl.u32 %v2089, 16
      %v2104 = vor.u32 %v2102, %v2100
      %2105 = vrot.lane.b32.xlu0 %v2101, 96
      %v2106 = vpop.permute.xlu0 %2105
      %2107 = vrot.lane.b32.xlu0 %v2104, 96
      %v2108 = vpop.permute.xlu0 %2107
      %v2112 = vunpack.c.l.b16 %v1978
      %v2113 = vunpack.c.l.b16 %v1979
      %v2114 = vunpack.c.l.b16 %v1980
      %v2115 = vpack.c.b16 %v2113, %v2112
      %v2116 = vpack.c.b16 %v2114, %v2114
      %v2117 = vrot.slane %v2115, 1
      %v2118 = vrot.slane %v2116, 1
      %v2119 = vsel %vm476, %v2117, %v2118
      %v2122 = vsel %vm275, %v1987, %v2013
      %v2125 = vsel %vm275, %v1988, %v2015
      %v2127 = vsel %vm581, %v2122, %v2028
      %v2129 = vsel %vm581, %v2125, %v2030
      %v2131 = vsel %vm586, %v2127, %v2043
      %v2133 = vsel %vm586, %v2129, %v2045
      %v2136 = vsel %vm275, %v2056, %v2069
      %v2138 = vsel %vm275, %v2056, %v2071
      %v2140 = vsel %vm581, %v2136, %v2081
      %v2142 = vsel %vm581, %v2138, %v2083
      %v2144 = vsel %vm586, %v2140, %v2106
      %v2146 = vsel %vm586, %v2142, %v2108
      %s2147 = scalar_lea.vmem %s1, 432
      %v2148 = vld [vmem:[%s2147] sm:$0xf]
      %v2149 = vld [vmem:[%s2147 + $0x4] sm:$0xf]
      %v2150 = vld [vmem:[%s2147 + $0x8] sm:$0xf]
      %v2151 = vld [vmem:[%s2147 + $0xc] sm:$0xf]
      %v2152 = vld [vmem:[%s2147 + $0x10] sm:$0xf]
      %v2153 = vld [vmem:[%s2147 + $0x14] sm:$0xf]
      %v2154 = vld [vmem:[%s2147 + $0x18] sm:$0xf]
      %v2155 = vld [vmem:[%s2147 + $0x1c] sm:$0xf]
      %v2156 = vld [vmem:[%s2147 + $0x20] sm:$0xf]
      %v2157 = vld [vmem:[%s2147 + $0x24] sm:$0xf]
      %v2158 = vld [vmem:[%s2147 + $0x28] sm:$0xf]
      %v2159 = vld [vmem:[%s2147 + $0x2c] sm:$0xf]
      %v2160 = vld [vmem:[%s2147 + $0x30] sm:$0xf]
      %v2161 = vld [vmem:[%s2147 + $0x34] sm:$0xf]
      %v2162 = vld [vmem:[%s2147 + $0x38] sm:$0xf]
      %v2163 = vld [vmem:[%s2147 + $0x3c] sm:$0xf]
      %v2164 = vld [vmem:[%s2147 + $0x40] sm:$0xf]
      %v2165 = vld [vmem:[%s2147 + $0x44] sm:$0xf]
      %v2166 = vld [vmem:[%s2147 + $0x48] sm:$0xf]
      %v2167 = vld [vmem:[%s2147 + $0x4c] sm:$0xf]
      %v2168 = vld [vmem:[%s2147 + $0x50] sm:$0xf]
      %v2169 = vld [vmem:[%s2147 + $0x54] sm:$0xf]
      %v2170 = vld [vmem:[%s2147 + $0x58] sm:$0xf]
      %v2171 = vld [vmem:[%s2147 + $0x5c] sm:$0xf]
      %v2172 = vld [vmem:[%s2147 + $0x60] sm:$0xf]
      %v2173 = vld [vmem:[%s2147 + $0x64] sm:$0xf]
      %v2174 = vld [vmem:[%s2147 + $0x68] sm:$0xf]
      %v2175 = vld [vmem:[%s2147 + $0x6c] sm:$0xf]
      %v2176 = vld [vmem:[%s2147 + $0x70] sm:$0xf]
      %v2177 = vld [vmem:[%s2147 + $0x74] sm:$0xf]
      %v2178 = vld [vmem:[%s2147 + $0x78] sm:$0xf]
      %v2179 = vld [vmem:[%s2147 + $0x7c] sm:$0xf]
      %v2180 = vld [vmem:[%s2147 + $0x80] sm:$0xf]
      %v2181 = vld [vmem:[%s2147 + $0x84] sm:$0xf]
      %v2182 = vld [vmem:[%s2147 + $0x88] sm:$0xf]
      %v2183 = vld [vmem:[%s2147 + $0x8c] sm:$0xf]
      %s2184 = scalar_lea.vmem %s2, 3
      %v2185 = vld [vmem:[%s2184] sm:$0x1]
      %v2187 = vlaneseq
      %v2188 = vshrl.u32 %v2187, 7
      %v2189 = vsub.s32 0, %v2188
      %v2190 = vrot.slane %v2185, %v2189
      %v2192 = vshrl.u32 %v2131, 16
      %v2194 = vrot.slane %v2192, 1
      %v2195 = vshll.u32 %v2131, 16
      %v2197 = vrot.slane %v2195, 2
      %v2198 = vor.u32 %v2194, %v2197
      %v2199 = vshrl.u32 %v2133, 16
      %v2201 = vrot.slane %v2199, 1
      %v2202 = vshll.u32 %v2133, 16
      %v2204 = vrot.slane %v2202, 2
      %v2205 = vor.u32 %v2201, %v2204
      %v2206 = vsel %vm647, %v2198, %v2205
      %v2207 = vshrl.u32 %v2144, 16
      %v2209 = vrot.slane %v2207, 1
      %v2210 = vshll.u32 %v2144, 16
      %v2212 = vrot.slane %v2210, 2
      %v2213 = vor.u32 %v2209, %v2212
      %v2214 = vshrl.u32 %v2146, 16
      %v2216 = vrot.slane %v2214, 1
      %v2217 = vshll.u32 %v2146, 16
      %v2219 = vrot.slane %v2217, 2
      %v2220 = vor.u32 %v2216, %v2219
      %v2221 = vsel %vm647, %v2213, %v2220
      %v2223 = vshrl.u32 %v2119, 16
      %v2225 = vrot.slane %v2223, 1
      %v2226 = vshll.u32 %v2119, 16
      %v2228 = vrot.slane %v2226, 2
      %v2229 = vor.u32 %v2225, %v2228
      %v2231 = vshrl.u32 %v2118, 16
      %v2233 = vrot.slane %v2231, 1
      %v2234 = vshll.u32 %v2118, 16
      %v2236 = vrot.slane %v2234, 2
      %v2237 = vor.u32 %v2233, %v2236
      %v2238 = vsel %vm647, %v2229, %v2237
      %v2277 = vunpack.c.l.b16 %v2148
      %v2278 = vunpack.c.l.b16 %v2149
      %v2279 = vunpack.c.l.b16 %v2150
      %v2280 = vunpack.c.l.b16 %v2151
      %v2281 = vunpack.c.l.b16 %v2152
      %v2282 = vunpack.c.l.b16 %v2153
      %v2283 = vunpack.c.l.b16 %v2154
      %v2284 = vunpack.c.l.b16 %v2155
      %v2285 = vunpack.c.l.b16 %v2156
      %v2286 = vunpack.c.l.b16 %v2157
      %v2287 = vunpack.c.l.b16 %v2158
      %v2288 = vunpack.c.l.b16 %v2159
      %v2289 = vunpack.c.l.b16 %v2160
      %v2290 = vunpack.c.l.b16 %v2161
      %v2291 = vunpack.c.l.b16 %v2162
      %v2292 = vunpack.c.l.b16 %v2163
      %v2293 = vunpack.c.l.b16 %v2164
      %v2294 = vunpack.c.l.b16 %v2165
      %v2295 = vunpack.c.l.b16 %v2166
      %v2296 = vunpack.c.l.b16 %v2167
      %v2297 = vunpack.c.l.b16 %v2168
      %v2298 = vunpack.c.l.b16 %v2169
      %v2299 = vunpack.c.l.b16 %v2170
      %v2300 = vunpack.c.l.b16 %v2171
      %v2301 = vunpack.c.l.b16 %v2172
      %v2302 = vunpack.c.l.b16 %v2173
      %v2303 = vunpack.c.l.b16 %v2174
      %v2304 = vunpack.c.l.b16 %v2175
      %v2305 = vunpack.c.l.b16 %v2176
      %v2306 = vunpack.c.l.b16 %v2177
      %v2307 = vunpack.c.l.b16 %v2178
      %v2308 = vunpack.c.l.b16 %v2179
      %v2309 = vunpack.c.l.b16 %v2180
      %v2310 = vunpack.c.l.b16 %v2181
      %v2311 = vunpack.c.l.b16 %v2182
      %v2312 = vunpack.c.l.b16 %v2183
      %v2313 = vpack.c.b16 %v2278, %v2277
      %v2314 = vpack.c.b16 %v2280, %v2279
      %v2315 = vpack.c.b16 %v2282, %v2281
      %v2316 = vpack.c.b16 %v2284, %v2283
      %v2317 = vpack.c.b16 %v2286, %v2285
      %v2318 = vpack.c.b16 %v2288, %v2287
      %v2319 = vpack.c.b16 %v2290, %v2289
      %v2320 = vpack.c.b16 %v2292, %v2291
      %v2321 = vpack.c.b16 %v2294, %v2293
      %v2322 = vpack.c.b16 %v2296, %v2295
      %v2323 = vpack.c.b16 %v2298, %v2297
      %v2324 = vpack.c.b16 %v2300, %v2299
      %v2325 = vpack.c.b16 %v2302, %v2301
      %v2326 = vpack.c.b16 %v2304, %v2303
      %v2327 = vpack.c.b16 %v2306, %v2305
      %v2328 = vpack.c.b16 %v2308, %v2307
      %v2329 = vpack.c.b16 %v2310, %v2309
      %v2330 = vpack.c.b16 %v2312, %v2311
      %v2350 = vsel %vm275, %v2238, 0
      %2352 = vmatprep.subr.bf16.mxu0 0
      %2353 = vmatpush1.bf16.msra.mxu0 %v2320
      %2354 = vmatprep.subr.bf16.mxu0 0
      %2355 = vmatpush1.bf16.msra.mxu0 %v2319
      %2356 = vmatprep.subr.bf16.mxu0 0
      %2357 = vmatpush1.bf16.msra.mxu0 %v2318
      %2358 = vmatprep.subr.bf16.mxu0 0
      %2359 = vmatpush1.bf16.msra.mxu0 %v2317
      %2360 = vmatprep.subr.bf16.mxu0 0
      %2361 = vmatpush1.bf16.msra.mxu0 %v2316
      %2362 = vmatprep.subr.bf16.mxu0 0
      %2363 = vmatpush1.bf16.msra.mxu0 %v2315
      %2364 = vmatprep.subr.bf16.mxu0 0
      %2365 = vmatpush1.bf16.msra.mxu0 %v2314
      %2366 = vmatprep.subr.bf16.mxu0 0
      %2367 = vmatpush1.bf16.msra.mxu0 %v2313
      %2368 = vmatprep.subr.bf16.mxu0 0
      %2369 = vmatpush2.bf16.msra.mxu0 %v2328
      %2370 = vmatprep.subr.bf16.mxu0 0
      %2371 = vmatpush2.bf16.msra.mxu0 %v2327
      %2372 = vmatprep.subr.bf16.mxu0 0
      %2373 = vmatpush2.bf16.msra.mxu0 %v2326
      %2374 = vmatprep.subr.bf16.mxu0 0
      %2375 = vmatpush2.bf16.msra.mxu0 %v2325
      %2376 = vmatprep.subr.bf16.mxu0 0
      %2377 = vmatpush2.bf16.msra.mxu0 %v2324
      %2378 = vmatprep.subr.bf16.mxu0 0
      %2379 = vmatpush2.bf16.msra.mxu0 %v2323
      %2380 = vmatprep.subr.bf16.mxu0 0
      %2381 = vmatpush2.bf16.msra.mxu0 %v2322
      %2382 = vmatprep.subr.bf16.mxu0 0
      %2383 = vmatpush2.bf16.msra.mxu0 %v2321
      %2384 = vmatprep.mubr.bf16.mxu0 %v2221
      %2385 = vmatmul.mubr.bf16.gmra.mxu0 %v2206
      %v2386 = vpop.f32.mrf.mxu0
      %v2387 = vadd.f32 %v2190, %v2386
      %v2388 = vpop.f32.mrf.mxu0
      %v2389 = vpop.f32.mrf.mxu0
      %v2390 = vadd.f32 %v2190, %v2389
      %v2391 = vpop.f32.mrf.mxu0
      %2392 = vdwg.mxu0
      %2393 = vmatprep.subr.bf16.mxu0 0
      %2394 = vmatpush1.bf16.msra.mxu0 0
      %2395 = vmatprep.subr.bf16.mxu0 0
      %2396 = vmatpush1.bf16.msra.mxu0 0
      %2397 = vmatprep.subr.bf16.mxu0 0
      %2398 = vmatpush1.bf16.msra.mxu0 0
      %2399 = vmatprep.subr.bf16.mxu0 0
      %2400 = vmatpush1.bf16.msra.mxu0 0
      %2401 = vmatprep.subr.bf16.mxu0 0
      %2402 = vmatpush1.bf16.msra.mxu0 0
      %2403 = vmatprep.subr.bf16.mxu0 0
      %2404 = vmatpush1.bf16.msra.mxu0 0
      %2405 = vmatprep.subr.bf16.mxu0 0
      %2406 = vmatpush1.bf16.msra.mxu0 %v2330
      %2407 = vmatprep.subr.bf16.mxu0 0
      %2408 = vmatpush1.bf16.msra.mxu0 %v2329
      %2409 = vmatprep.subr.bf16.mxu0 0
      %2410 = vmatpush2.bf16.msra.mxu0 0
      %2411 = vmatprep.subr.bf16.mxu0 0
      %2412 = vmatpush2.bf16.msra.mxu0 0
      %2413 = vmatprep.subr.bf16.mxu0 0
      %2414 = vmatpush2.bf16.msra.mxu0 0
      %2415 = vmatprep.subr.bf16.mxu0 0
      %2416 = vmatpush2.bf16.msra.mxu0 0
      %2417 = vmatprep.subr.bf16.mxu0 0
      %2418 = vmatpush2.bf16.msra.mxu0 0
      %2419 = vmatprep.subr.bf16.mxu0 0
      %2420 = vmatpush2.bf16.msra.mxu0 0
      %2421 = vmatprep.subr.bf16.mxu0 0
      %2422 = vmatpush2.bf16.msra.mxu0 0
      %2423 = vmatprep.subr.bf16.mxu0 0
      %2424 = vmatpush2.bf16.msra.mxu0 0
      %2425 = vmatprep.mubr.bf16.mxu0 0
      %2426 = vmatmul.mubr.bf16.gmra.mxu0 %v2350
      %v2427 = vpop.f32.mrf.mxu0
      %v2428 = vadd.f32 %v2387, %v2427
      %v2429 = vpop.f32.mrf.mxu0
      %v2430 = vpop.f32.mrf.mxu0
      %v2431 = vadd.f32 %v2390, %v2430
      %v2432 = vpop.f32.mrf.mxu0
      %2433 = vdwg.mxu0
      %s2434 = scalar_lea.vmem %s3, 3
      %v2435 = vld [vmem:[%s2434] sm:$0x1]
      %v2437 = vlaneseq
      %v2438 = vshrl.u32 %v2437, 7
      %v2439 = vsub.s32 0, %v2438
      %v2440 = vrot.slane %v2435, %v2439
      %v2442 = vmul.f32 %v2428, %v2440
      %v2443 = vmul.f32 %v2431, %v2440
      %v2444 = vld [vmem:[#allocation3] sm:$0xff]
      %v2445 = vld [vmem:[#allocation3 + $0x8] sm:$0xff]
      %v2446 = vadd.f32 %v2442, %v2444
      %v2447 = vadd.f32 %v2443, %v2445
      %vm2448 = vcmp.ge.f32.partialorder %v2446, 0.0
      %vm2449 = vcmp.ge.f32.partialorder %v2447, 0.0
      %v2450 = vmul.f32 %v2446, 0.2
      %v2451 = vmul.f32 %v2447, 0.2
      %v2452 = vsel %vm2448, %v2446, %v2450
      %v2453 = vsel %vm2449, %v2447, %v2451
      %2454 = vst.msk [vmem:[#allocation3] sm:$0xff] %vm275, %v2452
      %2455 = vst.msk [vmem:[#allocation3 + $0x8] sm:$0xff] %vm275, %v2453
      %v2456 = vpack.c.bf16 %v2453, %v2452
      %v2458 = vunpack.c.l.b16 %v2456
      %v2459 = vunpack.c.h.b16 %v2456
      %v2460 = vpack.c.b16 %v2458, %v2458
      %v2461 = vpack.c.b16 %v2459, %v2459
      %2464 = vst.msk [vmem:[#allocation2 + $0x8] sm:$0xf] %vm260, %v2460
      %2465 = vst.msk [vmem:[#allocation2 + $0xc] sm:$0xf] %vm260, %v2461
      %v2466 = vld [vmem:[#allocation2 + $0x4] sm:$0xe]
      %v2467 = vld [vmem:[#allocation2 + $0x8] sm:$0xf]
      %v2468 = vld [vmem:[#allocation2 + $0xc] sm:$0x3]
      %v2469 = vsel %vm342, %v2466, 0
      %v2470 = vsel %vm343, %v2467, 0
      %v2471 = vsel %vm344, %v2468, 0
      %v2472 = vld [vmem:[#allocation2 + $0x4] sm:$0xc]
      %v2473 = vld [vmem:[#allocation2 + $0xc] sm:$0x7]
      %v2474 = vsel %vm379, %v2472, 0
      %v2475 = vsel %vm380, %v2467, 0
      %v2476 = vsel %vm381, %v2473, 0
      %v2477 = vld [vmem:[#allocation2 + $0x4] sm:$0x8]
      %v2478 = vld [vmem:[#allocation2 + $0xc] sm:$0xf]
      %v2479 = vsel %vm399, %v2477, 0
      %v2480 = vsel %vm400, %v2467, 0
      %v2481 = vsel %vm401, %v2478, 0
      %v2482 = vld [vmem:[#allocation2 + $0x10] sm:$0x1]
      %v2483 = vsel %vm416, %v2467, 0
      %v2484 = vsel %vm417, %v2478, 0
      %v2485 = vsel %vm418, %v2482, 0
      %v2486 = vld [vmem:[#allocation2 + $0x8] sm:$0xe]
      %v2487 = vld [vmem:[#allocation2 + $0x10] sm:$0x3]
      %v2488 = vsel %vm342, %v2486, 0
      %v2489 = vsel %vm343, %v2478, 0
      %v2490 = vsel %vm344, %v2487, 0
      %v2491 = vld [vmem:[#allocation2 + $0x8] sm:$0xc]
      %v2492 = vld [vmem:[#allocation2 + $0x10] sm:$0x7]
      %v2493 = vsel %vm379, %v2491, 0
      %v2494 = vsel %vm380, %v2478, 0
      %v2495 = vsel %vm381, %v2492, 0
      %v2499 = vunpack.c.l.b16 %v2469
      %v2500 = vunpack.c.l.b16 %v2470
      %v2501 = vunpack.c.l.b16 %v2471
      %v2502 = vpack.c.b16 %v2500, %v2499
      %v2503 = vpack.c.b16 %v2501, %v2501
      %v2507 = vunpack.c.l.b16 %v2472
      %v2508 = vunpack.c.l.b16 %v2467
      %v2509 = vunpack.c.l.b16 %v2468
      %v2510 = vpack.c.b16 %v2508, %v2507
      %v2511 = vpack.c.b16 %v2509, %v2509
      %v2513 = vshrl.u32 %v2510, 16
      %v2515 = vshll.u32 %v2510, 16
      %v2517 = vrot.slane %v2515, 1
      %v2518 = vor.u32 %v2513, %v2517
      %v2520 = vshll.u32 %v2511, 16
      %v2522 = vrot.slane %v2520, 1
      %v2523 = vsel %vm448, %v2518, %v2522
      %v2524 = vshrl.u32 %v2511, 16
      %v2526 = vor.u32 %v2524, %v2522
      %2527 = vrot.lane.b32.xlu0 %v2523, 32
      %v2528 = vpop.permute.xlu0 %2527
      %2529 = vrot.lane.b32.xlu0 %v2526, 32
      %v2530 = vpop.permute.xlu0 %2529
      %v2534 = vunpack.c.l.b16 %v2474
      %v2535 = vunpack.c.l.b16 %v2475
      %v2536 = vunpack.c.l.b16 %v2476
      %v2537 = vpack.c.b16 %v2535, %v2534
      %v2538 = vpack.c.b16 %v2536, %v2536
      %v2539 = vrot.slane %v2537, 1
      %v2540 = vrot.slane %v2538, 1
      %v2541 = vsel %vm476, %v2539, %v2540
      %2542 = vrot.lane.b32.xlu0 %v2541, 64
      %v2543 = vpop.permute.xlu0 %2542
      %2544 = vrot.lane.b32.xlu0 %v2540, 64
      %v2545 = vpop.permute.xlu0 %2544
      %v2549 = vunpack.c.l.b16 %v2479
      %v2550 = vunpack.c.l.b16 %v2480
      %v2551 = vunpack.c.l.b16 %v2481
      %v2552 = vpack.c.b16 %v2550, %v2549
      %v2553 = vpack.c.b16 %v2551, %v2551
      %v2554 = vrot.slane %v2552, 2
      %v2555 = vrot.slane %v2553, 2
      %v2556 = vsel %vm492, %v2554, %v2555
      %2557 = vrot.lane.b32.xlu0 %v2556, 96
      %v2558 = vpop.permute.xlu0 %2557
      %2559 = vrot.lane.b32.xlu0 %v2555, 96
      %v2560 = vpop.permute.xlu0 %2559
      %v2562 = vunpack.c.l.b16 %v2478
      %v2563 = vpack.c.b16 %v2562, %v2508
      %v2565 = vshrl.u32 %v2563, 16
      %v2567 = vrot.slane %v2565, 6
      %v2568 = vshll.u32 %v2563, 16
      %v2570 = vrot.slane %v2568, 7
      %v2571 = vor.u32 %v2567, %v2570
      %v2575 = vunpack.c.l.b16 %v2483
      %v2576 = vunpack.c.l.b16 %v2484
      %v2577 = vunpack.c.l.b16 %v2485
      %v2578 = vpack.c.b16 %v2576, %v2575
      %v2579 = vpack.c.b16 %v2577, %v2577
      %v2580 = vrot.slane %v2578, 7
      %v2581 = vrot.slane %v2579, 7
      %v2582 = vsel %vm519, %v2580, %v2581
      %2583 = vrot.lane.b32.xlu0 %v2580, 32
      %v2584 = vpop.permute.xlu0 %2583
      %2585 = vrot.lane.b32.xlu0 %v2582, 32
      %v2586 = vpop.permute.xlu0 %2585
      %v2590 = vunpack.c.l.b16 %v2488
      %v2591 = vunpack.c.l.b16 %v2489
      %v2592 = vunpack.c.l.b16 %v2490
      %v2593 = vpack.c.b16 %v2591, %v2590
      %v2594 = vpack.c.b16 %v2592, %v2592
      %2595 = vrot.lane.b32.xlu0 %v2593, 64
      %v2596 = vpop.permute.xlu0 %2595
      %2597 = vrot.lane.b32.xlu0 %v2594, 64
      %v2598 = vpop.permute.xlu0 %2597
      %v2601 = vunpack.c.l.b16 %v2491
      %v2602 = vunpack.c.l.b16 %v2487
      %v2603 = vpack.c.b16 %v2562, %v2601
      %v2604 = vpack.c.b16 %v2602, %v2602
      %v2606 = vshrl.u32 %v2603, 16
      %v2608 = vshll.u32 %v2603, 16
      %v2610 = vrot.slane %v2608, 1
      %v2611 = vor.u32 %v2606, %v2610
      %v2613 = vshll.u32 %v2604, 16
      %v2615 = vrot.slane %v2613, 1
      %v2616 = vsel %vm448, %v2611, %v2615
      %v2617 = vshrl.u32 %v2604, 16
      %v2619 = vor.u32 %v2617, %v2615
      %2620 = vrot.lane.b32.xlu0 %v2616, 96
      %v2621 = vpop.permute.xlu0 %2620
      %2622 = vrot.lane.b32.xlu0 %v2619, 96
      %v2623 = vpop.permute.xlu0 %2622
      %v2627 = vunpack.c.l.b16 %v2493
      %v2628 = vunpack.c.l.b16 %v2494
      %v2629 = vunpack.c.l.b16 %v2495
      %v2630 = vpack.c.b16 %v2628, %v2627
      %v2631 = vpack.c.b16 %v2629, %v2629
      %v2632 = vrot.slane %v2630, 1
      %v2633 = vrot.slane %v2631, 1
      %v2634 = vsel %vm476, %v2632, %v2633
      %v2637 = vsel %vm275, %v2502, %v2528
      %v2640 = vsel %vm275, %v2503, %v2530
      %v2642 = vsel %vm581, %v2637, %v2543
      %v2644 = vsel %vm581, %v2640, %v2545
      %v2646 = vsel %vm586, %v2642, %v2558
      %v2648 = vsel %vm586, %v2644, %v2560
      %v2651 = vsel %vm275, %v2571, %v2584
      %v2653 = vsel %vm275, %v2571, %v2586
      %v2655 = vsel %vm581, %v2651, %v2596
      %v2657 = vsel %vm581, %v2653, %v2598
      %v2659 = vsel %vm586, %v2655, %v2621
      %v2661 = vsel %vm586, %v2657, %v2623
      %s2662 = scalar_lea.vmem %s1, 576
      %v2663 = vld [vmem:[%s2662] sm:$0xf]
      %v2664 = vld [vmem:[%s2662 + $0x4] sm:$0xf]
      %v2665 = vld [vmem:[%s2662 + $0x8] sm:$0xf]
      %v2666 = vld [vmem:[%s2662 + $0xc] sm:$0xf]
      %v2667 = vld [vmem:[%s2662 + $0x10] sm:$0xf]
      %v2668 = vld [vmem:[%s2662 + $0x14] sm:$0xf]
      %v2669 = vld [vmem:[%s2662 + $0x18] sm:$0xf]
      %v2670 = vld [vmem:[%s2662 + $0x1c] sm:$0xf]
      %v2671 = vld [vmem:[%s2662 + $0x20] sm:$0xf]
      %v2672 = vld [vmem:[%s2662 + $0x24] sm:$0xf]
      %v2673 = vld [vmem:[%s2662 + $0x28] sm:$0xf]
      %v2674 = vld [vmem:[%s2662 + $0x2c] sm:$0xf]
      %v2675 = vld [vmem:[%s2662 + $0x30] sm:$0xf]
      %v2676 = vld [vmem:[%s2662 + $0x34] sm:$0xf]
      %v2677 = vld [vmem:[%s2662 + $0x38] sm:$0xf]
      %v2678 = vld [vmem:[%s2662 + $0x3c] sm:$0xf]
      %v2679 = vld [vmem:[%s2662 + $0x40] sm:$0xf]
      %v2680 = vld [vmem:[%s2662 + $0x44] sm:$0xf]
      %v2681 = vld [vmem:[%s2662 + $0x48] sm:$0xf]
      %v2682 = vld [vmem:[%s2662 + $0x4c] sm:$0xf]
      %v2683 = vld [vmem:[%s2662 + $0x50] sm:$0xf]
      %v2684 = vld [vmem:[%s2662 + $0x54] sm:$0xf]
      %v2685 = vld [vmem:[%s2662 + $0x58] sm:$0xf]
      %v2686 = vld [vmem:[%s2662 + $0x5c] sm:$0xf]
      %v2687 = vld [vmem:[%s2662 + $0x60] sm:$0xf]
      %v2688 = vld [vmem:[%s2662 + $0x64] sm:$0xf]
      %v2689 = vld [vmem:[%s2662 + $0x68] sm:$0xf]
      %v2690 = vld [vmem:[%s2662 + $0x6c] sm:$0xf]
      %v2691 = vld [vmem:[%s2662 + $0x70] sm:$0xf]
      %v2692 = vld [vmem:[%s2662 + $0x74] sm:$0xf]
      %v2693 = vld [vmem:[%s2662 + $0x78] sm:$0xf]
      %v2694 = vld [vmem:[%s2662 + $0x7c] sm:$0xf]
      %v2695 = vld [vmem:[%s2662 + $0x80] sm:$0xf]
      %v2696 = vld [vmem:[%s2662 + $0x84] sm:$0xf]
      %v2697 = vld [vmem:[%s2662 + $0x88] sm:$0xf]
      %v2698 = vld [vmem:[%s2662 + $0x8c] sm:$0xf]
      %s2699 = scalar_lea.vmem %s2, 4
      %v2700 = vld [vmem:[%s2699] sm:$0x1]
      %v2702 = vlaneseq
      %v2703 = vshrl.u32 %v2702, 7
      %v2704 = vsub.s32 0, %v2703
      %v2705 = vrot.slane %v2700, %v2704
      %v2707 = vshrl.u32 %v2646, 16
      %v2709 = vrot.slane %v2707, 1
      %v2710 = vshll.u32 %v2646, 16
      %v2712 = vrot.slane %v2710, 2
      %v2713 = vor.u32 %v2709, %v2712
      %v2714 = vshrl.u32 %v2648, 16
      %v2716 = vrot.slane %v2714, 1
      %v2717 = vshll.u32 %v2648, 16
      %v2719 = vrot.slane %v2717, 2
      %v2720 = vor.u32 %v2716, %v2719
      %v2721 = vsel %vm647, %v2713, %v2720
      %v2722 = vshrl.u32 %v2659, 16
      %v2724 = vrot.slane %v2722, 1
      %v2725 = vshll.u32 %v2659, 16
      %v2727 = vrot.slane %v2725, 2
      %v2728 = vor.u32 %v2724, %v2727
      %v2729 = vshrl.u32 %v2661, 16
      %v2731 = vrot.slane %v2729, 1
      %v2732 = vshll.u32 %v2661, 16
      %v2734 = vrot.slane %v2732, 2
      %v2735 = vor.u32 %v2731, %v2734
      %v2736 = vsel %vm647, %v2728, %v2735
      %v2738 = vshrl.u32 %v2634, 16
      %v2740 = vrot.slane %v2738, 1
      %v2741 = vshll.u32 %v2634, 16
      %v2743 = vrot.slane %v2741, 2
      %v2744 = vor.u32 %v2740, %v2743
      %v2746 = vshrl.u32 %v2633, 16
      %v2748 = vrot.slane %v2746, 1
      %v2749 = vshll.u32 %v2633, 16
      %v2751 = vrot.slane %v2749, 2
      %v2752 = vor.u32 %v2748, %v2751
      %v2753 = vsel %vm647, %v2744, %v2752
      %v2792 = vunpack.c.l.b16 %v2663
      %v2793 = vunpack.c.l.b16 %v2664
      %v2794 = vunpack.c.l.b16 %v2665
      %v2795 = vunpack.c.l.b16 %v2666
      %v2796 = vunpack.c.l.b16 %v2667
      %v2797 = vunpack.c.l.b16 %v2668
      %v2798 = vunpack.c.l.b16 %v2669
      %v2799 = vunpack.c.l.b16 %v2670
      %v2800 = vunpack.c.l.b16 %v2671
      %v2801 = vunpack.c.l.b16 %v2672
      %v2802 = vunpack.c.l.b16 %v2673
      %v2803 = vunpack.c.l.b16 %v2674
      %v2804 = vunpack.c.l.b16 %v2675
      %v2805 = vunpack.c.l.b16 %v2676
      %v2806 = vunpack.c.l.b16 %v2677
      %v2807 = vunpack.c.l.b16 %v2678
      %v2808 = vunpack.c.l.b16 %v2679
      %v2809 = vunpack.c.l.b16 %v2680
      %v2810 = vunpack.c.l.b16 %v2681
      %v2811 = vunpack.c.l.b16 %v2682
      %v2812 = vunpack.c.l.b16 %v2683
      %v2813 = vunpack.c.l.b16 %v2684
      %v2814 = vunpack.c.l.b16 %v2685
      %v2815 = vunpack.c.l.b16 %v2686
      %v2816 = vunpack.c.l.b16 %v2687
      %v2817 = vunpack.c.l.b16 %v2688
      %v2818 = vunpack.c.l.b16 %v2689
      %v2819 = vunpack.c.l.b16 %v2690
      %v2820 = vunpack.c.l.b16 %v2691
      %v2821 = vunpack.c.l.b16 %v2692
      %v2822 = vunpack.c.l.b16 %v2693
      %v2823 = vunpack.c.l.b16 %v2694
      %v2824 = vunpack.c.l.b16 %v2695
      %v2825 = vunpack.c.l.b16 %v2696
      %v2826 = vunpack.c.l.b16 %v2697
      %v2827 = vunpack.c.l.b16 %v2698
      %v2828 = vpack.c.b16 %v2793, %v2792
      %v2829 = vpack.c.b16 %v2795, %v2794
      %v2830 = vpack.c.b16 %v2797, %v2796
      %v2831 = vpack.c.b16 %v2799, %v2798
      %v2832 = vpack.c.b16 %v2801, %v2800
      %v2833 = vpack.c.b16 %v2803, %v2802
      %v2834 = vpack.c.b16 %v2805, %v2804
      %v2835 = vpack.c.b16 %v2807, %v2806
      %v2836 = vpack.c.b16 %v2809, %v2808
      %v2837 = vpack.c.b16 %v2811, %v2810
      %v2838 = vpack.c.b16 %v2813, %v2812
      %v2839 = vpack.c.b16 %v2815, %v2814
      %v2840 = vpack.c.b16 %v2817, %v2816
      %v2841 = vpack.c.b16 %v2819, %v2818
      %v2842 = vpack.c.b16 %v2821, %v2820
      %v2843 = vpack.c.b16 %v2823, %v2822
      %v2844 = vpack.c.b16 %v2825, %v2824
      %v2845 = vpack.c.b16 %v2827, %v2826
      %v2865 = vsel %vm275, %v2753, 0
      %2867 = vmatprep.subr.bf16.mxu0 0
      %2868 = vmatpush1.bf16.msra.mxu0 %v2835
      %2869 = vmatprep.subr.bf16.mxu0 0
      %2870 = vmatpush1.bf16.msra.mxu0 %v2834
      %2871 = vmatprep.subr.bf16.mxu0 0
      %2872 = vmatpush1.bf16.msra.mxu0 %v2833
      %2873 = vmatprep.subr.bf16.mxu0 0
      %2874 = vmatpush1.bf16.msra.mxu0 %v2832
      %2875 = vmatprep.subr.bf16.mxu0 0
      %2876 = vmatpush1.bf16.msra.mxu0 %v2831
      %2877 = vmatprep.subr.bf16.mxu0 0
      %2878 = vmatpush1.bf16.msra.mxu0 %v2830
      %2879 = vmatprep.subr.bf16.mxu0 0
      %2880 = vmatpush1.bf16.msra.mxu0 %v2829
      %2881 = vmatprep.subr.bf16.mxu0 0
      %2882 = vmatpush1.bf16.msra.mxu0 %v2828
      %2883 = vmatprep.subr.bf16.mxu0 0
      %2884 = vmatpush2.bf16.msra.mxu0 %v2843
      %2885 = vmatprep.subr.bf16.mxu0 0
      %2886 = vmatpush2.bf16.msra.mxu0 %v2842
      %2887 = vmatprep.subr.bf16.mxu0 0
      %2888 = vmatpush2.bf16.msra.mxu0 %v2841
      %2889 = vmatprep.subr.bf16.mxu0 0
      %2890 = vmatpush2.bf16.msra.mxu0 %v2840
      %2891 = vmatprep.subr.bf16.mxu0 0
      %2892 = vmatpush2.bf16.msra.mxu0 %v2839
      %2893 = vmatprep.subr.bf16.mxu0 0
      %2894 = vmatpush2.bf16.msra.mxu0 %v2838
      %2895 = vmatprep.subr.bf16.mxu0 0
      %2896 = vmatpush2.bf16.msra.mxu0 %v2837
      %2897 = vmatprep.subr.bf16.mxu0 0
      %2898 = vmatpush2.bf16.msra.mxu0 %v2836
      %2899 = vmatprep.mubr.bf16.mxu0 %v2736
      %2900 = vmatmul.mubr.bf16.gmra.mxu0 %v2721
      %v2901 = vpop.f32.mrf.mxu0
      %v2902 = vadd.f32 %v2705, %v2901
      %v2903 = vpop.f32.mrf.mxu0
      %v2904 = vpop.f32.mrf.mxu0
      %v2905 = vadd.f32 %v2705, %v2904
      %v2906 = vpop.f32.mrf.mxu0
      %2907 = vdwg.mxu0
      %2908 = vmatprep.subr.bf16.mxu0 0
      %2909 = vmatpush1.bf16.msra.mxu0 0
      %2910 = vmatprep.subr.bf16.mxu0 0
      %2911 = vmatpush1.bf16.msra.mxu0 0
      %2912 = vmatprep.subr.bf16.mxu0 0
      %2913 = vmatpush1.bf16.msra.mxu0 0
      %2914 = vmatprep.subr.bf16.mxu0 0
      %2915 = vmatpush1.bf16.msra.mxu0 0
      %2916 = vmatprep.subr.bf16.mxu0 0
      %2917 = vmatpush1.bf16.msra.mxu0 0
      %2918 = vmatprep.subr.bf16.mxu0 0
      %2919 = vmatpush1.bf16.msra.mxu0 0
      %2920 = vmatprep.subr.bf16.mxu0 0
      %2921 = vmatpush1.bf16.msra.mxu0 %v2845
      %2922 = vmatprep.subr.bf16.mxu0 0
      %2923 = vmatpush1.bf16.msra.mxu0 %v2844
      %2924 = vmatprep.subr.bf16.mxu0 0
      %2925 = vmatpush2.bf16.msra.mxu0 0
      %2926 = vmatprep.subr.bf16.mxu0 0
      %2927 = vmatpush2.bf16.msra.mxu0 0
      %2928 = vmatprep.subr.bf16.mxu0 0
      %2929 = vmatpush2.bf16.msra.mxu0 0
      %2930 = vmatprep.subr.bf16.mxu0 0
      %2931 = vmatpush2.bf16.msra.mxu0 0
      %2932 = vmatprep.subr.bf16.mxu0 0
      %2933 = vmatpush2.bf16.msra.mxu0 0
      %2934 = vmatprep.subr.bf16.mxu0 0
      %2935 = vmatpush2.bf16.msra.mxu0 0
      %2936 = vmatprep.subr.bf16.mxu0 0
      %2937 = vmatpush2.bf16.msra.mxu0 0
      %2938 = vmatprep.subr.bf16.mxu0 0
      %2939 = vmatpush2.bf16.msra.mxu0 0
      %2940 = vmatprep.mubr.bf16.mxu0 0
      %2941 = vmatmul.mubr.bf16.gmra.mxu0 %v2865
      %v2942 = vpop.f32.mrf.mxu0
      %v2943 = vadd.f32 %v2902, %v2942
      %v2944 = vpop.f32.mrf.mxu0
      %v2945 = vpop.f32.mrf.mxu0
      %v2946 = vadd.f32 %v2905, %v2945
      %v2947 = vpop.f32.mrf.mxu0
      %2948 = vdwg.mxu0
      %s2949 = scalar_lea.vmem %s3, 4
      %v2950 = vld [vmem:[%s2949] sm:$0x1]
      %v2952 = vlaneseq
      %v2953 = vshrl.u32 %v2952, 7
      %v2954 = vsub.s32 0, %v2953
      %v2955 = vrot.slane %v2950, %v2954
      %v2957 = vmul.f32 %v2943, %v2955
      %v2958 = vmul.f32 %v2946, %v2955
      %v2959 = vld [vmem:[#allocation3] sm:$0xff]
      %v2960 = vld [vmem:[#allocation3 + $0x8] sm:$0xff]
      %v2961 = vadd.f32 %v2957, %v2959
      %v2962 = vadd.f32 %v2958, %v2960
      %vm2963 = vcmp.ge.f32.partialorder %v2961, 0.0
      %vm2964 = vcmp.ge.f32.partialorder %v2962, 0.0
      %v2965 = vmul.f32 %v2961, 0.2
      %v2966 = vmul.f32 %v2962, 0.2
      %v2967 = vsel %vm2963, %v2961, %v2965
      %v2968 = vsel %vm2964, %v2962, %v2966
      %2969 = vst.msk [vmem:[#allocation3] sm:$0xff] %vm275, %v2967
      %2970 = vst.msk [vmem:[#allocation3 + $0x8] sm:$0xff] %vm275, %v2968
      %v2971 = vpack.c.bf16 %v2968, %v2967
      %v2973 = vunpack.c.l.b16 %v2971
      %v2974 = vunpack.c.h.b16 %v2971
      %v2975 = vpack.c.b16 %v2973, %v2973
      %v2976 = vpack.c.b16 %v2974, %v2974
      %2979 = vst.msk [vmem:[#allocation2 + $0x8] sm:$0xf] %vm260, %v2975
      %2980 = vst.msk [vmem:[#allocation2 + $0xc] sm:$0xf] %vm260, %v2976
      %v2981 = vld [vmem:[#allocation2 + $0x4] sm:$0xe]
      %v2982 = vld [vmem:[#allocation2 + $0x8] sm:$0xf]
      %v2983 = vld [vmem:[#allocation2 + $0xc] sm:$0x3]
      %v2984 = vsel %vm342, %v2981, 0
      %v2985 = vsel %vm343, %v2982, 0
      %v2986 = vsel %vm344, %v2983, 0
      %v2987 = vld [vmem:[#allocation2 + $0x4] sm:$0xc]
      %v2988 = vld [vmem:[#allocation2 + $0xc] sm:$0x7]
      %v2989 = vsel %vm379, %v2987, 0
      %v2990 = vsel %vm380, %v2982, 0
      %v2991 = vsel %vm381, %v2988, 0
      %v2992 = vld [vmem:[#allocation2 + $0x4] sm:$0x8]
      %v2993 = vld [vmem:[#allocation2 + $0xc] sm:$0xf]
      %v2994 = vsel %vm399, %v2992, 0
      %v2995 = vsel %vm400, %v2982, 0
      %v2996 = vsel %vm401, %v2993, 0
      %v2997 = vld [vmem:[#allocation2 + $0x10] sm:$0x1]
      %v2998 = vsel %vm416, %v2982, 0
      %v2999 = vsel %vm417, %v2993, 0
      %v3000 = vsel %vm418, %v2997, 0
      %v3001 = vld [vmem:[#allocation2 + $0x8] sm:$0xe]
      %v3002 = vld [vmem:[#allocation2 + $0x10] sm:$0x3]
      %v3003 = vsel %vm342, %v3001, 0
      %v3004 = vsel %vm343, %v2993, 0
      %v3005 = vsel %vm344, %v3002, 0
      %v3006 = vld [vmem:[#allocation2 + $0x8] sm:$0xc]
      %v3007 = vld [vmem:[#allocation2 + $0x10] sm:$0x7]
      %v3008 = vsel %vm379, %v3006, 0
      %v3009 = vsel %vm380, %v2993, 0
      %v3010 = vsel %vm381, %v3007, 0
      %v3014 = vunpack.c.l.b16 %v2984
      %v3015 = vunpack.c.l.b16 %v2985
      %v3016 = vunpack.c.l.b16 %v2986
      %v3017 = vpack.c.b16 %v3015, %v3014
      %v3018 = vpack.c.b16 %v3016, %v3016
      %v3022 = vunpack.c.l.b16 %v2987
      %v3023 = vunpack.c.l.b16 %v2982
      %v3024 = vunpack.c.l.b16 %v2983
      %v3025 = vpack.c.b16 %v3023, %v3022
      %v3026 = vpack.c.b16 %v3024, %v3024
      %v3028 = vshrl.u32 %v3025, 16
      %v3030 = vshll.u32 %v3025, 16
      %v3032 = vrot.slane %v3030, 1
      %v3033 = vor.u32 %v3028, %v3032
      %v3035 = vshll.u32 %v3026, 16
      %v3037 = vrot.slane %v3035, 1
      %v3038 = vsel %vm448, %v3033, %v3037
      %v3039 = vshrl.u32 %v3026, 16
      %v3041 = vor.u32 %v3039, %v3037
      %3042 = vrot.lane.b32.xlu0 %v3038, 32
      %v3043 = vpop.permute.xlu0 %3042
      %3044 = vrot.lane.b32.xlu0 %v3041, 32
      %v3045 = vpop.permute.xlu0 %3044
      %v3049 = vunpack.c.l.b16 %v2989
      %v3050 = vunpack.c.l.b16 %v2990
      %v3051 = vunpack.c.l.b16 %v2991
      %v3052 = vpack.c.b16 %v3050, %v3049
      %v3053 = vpack.c.b16 %v3051, %v3051
      %v3054 = vrot.slane %v3052, 1
      %v3055 = vrot.slane %v3053, 1
      %v3056 = vsel %vm476, %v3054, %v3055
      %3057 = vrot.lane.b32.xlu0 %v3056, 64
      %v3058 = vpop.permute.xlu0 %3057
      %3059 = vrot.lane.b32.xlu0 %v3055, 64
      %v3060 = vpop.permute.xlu0 %3059
      %v3064 = vunpack.c.l.b16 %v2994
      %v3065 = vunpack.c.l.b16 %v2995
      %v3066 = vunpack.c.l.b16 %v2996
      %v3067 = vpack.c.b16 %v3065, %v3064
      %v3068 = vpack.c.b16 %v3066, %v3066
      %v3069 = vrot.slane %v3067, 2
      %v3070 = vrot.slane %v3068, 2
      %v3071 = vsel %vm492, %v3069, %v3070
      %3072 = vrot.lane.b32.xlu0 %v3071, 96
      %v3073 = vpop.permute.xlu0 %3072
      %3074 = vrot.lane.b32.xlu0 %v3070, 96
      %v3075 = vpop.permute.xlu0 %3074
      %v3077 = vunpack.c.l.b16 %v2993
      %v3078 = vpack.c.b16 %v3077, %v3023
      %v3080 = vshrl.u32 %v3078, 16
      %v3082 = vrot.slane %v3080, 6
      %v3083 = vshll.u32 %v3078, 16
      %v3085 = vrot.slane %v3083, 7
      %v3086 = vor.u32 %v3082, %v3085
      %v3090 = vunpack.c.l.b16 %v2998
      %v3091 = vunpack.c.l.b16 %v2999
      %v3092 = vunpack.c.l.b16 %v3000
      %v3093 = vpack.c.b16 %v3091, %v3090
      %v3094 = vpack.c.b16 %v3092, %v3092
      %v3095 = vrot.slane %v3093, 7
      %v3096 = vrot.slane %v3094, 7
      %v3097 = vsel %vm519, %v3095, %v3096
      %3098 = vrot.lane.b32.xlu0 %v3095, 32
      %v3099 = vpop.permute.xlu0 %3098
      %3100 = vrot.lane.b32.xlu0 %v3097, 32
      %v3101 = vpop.permute.xlu0 %3100
      %v3105 = vunpack.c.l.b16 %v3003
      %v3106 = vunpack.c.l.b16 %v3004
      %v3107 = vunpack.c.l.b16 %v3005
      %v3108 = vpack.c.b16 %v3106, %v3105
      %v3109 = vpack.c.b16 %v3107, %v3107
      %3110 = vrot.lane.b32.xlu0 %v3108, 64
      %v3111 = vpop.permute.xlu0 %3110
      %3112 = vrot.lane.b32.xlu0 %v3109, 64
      %v3113 = vpop.permute.xlu0 %3112
      %v3116 = vunpack.c.l.b16 %v3006
      %v3117 = vunpack.c.l.b16 %v3002
      %v3118 = vpack.c.b16 %v3077, %v3116
      %v3119 = vpack.c.b16 %v3117, %v3117
      %v3121 = vshrl.u32 %v3118, 16
      %v3123 = vshll.u32 %v3118, 16
      %v3125 = vrot.slane %v3123, 1
      %v3126 = vor.u32 %v3121, %v3125
      %v3128 = vshll.u32 %v3119, 16
      %v3130 = vrot.slane %v3128, 1
      %v3131 = vsel %vm448, %v3126, %v3130
      %v3132 = vshrl.u32 %v3119, 16
      %v3134 = vor.u32 %v3132, %v3130
      %3135 = vrot.lane.b32.xlu0 %v3131, 96
      %v3136 = vpop.permute.xlu0 %3135
      %3137 = vrot.lane.b32.xlu0 %v3134, 96
      %v3138 = vpop.permute.xlu0 %3137
      %v3142 = vunpack.c.l.b16 %v3008
      %v3143 = vunpack.c.l.b16 %v3009
      %v3144 = vunpack.c.l.b16 %v3010
      %v3145 = vpack.c.b16 %v3143, %v3142
      %v3146 = vpack.c.b16 %v3144, %v3144
      %v3147 = vrot.slane %v3145, 1
      %v3148 = vrot.slane %v3146, 1
      %v3149 = vsel %vm476, %v3147, %v3148
      %v3152 = vsel %vm275, %v3017, %v3043
      %v3155 = vsel %vm275, %v3018, %v3045
      %v3157 = vsel %vm581, %v3152, %v3058
      %v3159 = vsel %vm581, %v3155, %v3060
      %v3161 = vsel %vm586, %v3157, %v3073
      %v3163 = vsel %vm586, %v3159, %v3075
      %v3166 = vsel %vm275, %v3086, %v3099
      %v3168 = vsel %vm275, %v3086, %v3101
      %v3170 = vsel %vm581, %v3166, %v3111
      %v3172 = vsel %vm581, %v3168, %v3113
      %v3174 = vsel %vm586, %v3170, %v3136
      %v3176 = vsel %vm586, %v3172, %v3138
      %s3177 = scalar_lea.vmem %s1, 720
      %v3178 = vld [vmem:[%s3177] sm:$0xf]
      %v3179 = vld [vmem:[%s3177 + $0x4] sm:$0xf]
      %v3180 = vld [vmem:[%s3177 + $0x8] sm:$0xf]
      %v3181 = vld [vmem:[%s3177 + $0xc] sm:$0xf]
      %v3182 = vld [vmem:[%s3177 + $0x10] sm:$0xf]
      %v3183 = vld [vmem:[%s3177 + $0x14] sm:$0xf]
      %v3184 = vld [vmem:[%s3177 + $0x18] sm:$0xf]
      %v3185 = vld [vmem:[%s3177 + $0x1c] sm:$0xf]
      %v3186 = vld [vmem:[%s3177 + $0x20] sm:$0xf]
      %v3187 = vld [vmem:[%s3177 + $0x24] sm:$0xf]
      %v3188 = vld [vmem:[%s3177 + $0x28] sm:$0xf]
      %v3189 = vld [vmem:[%s3177 + $0x2c] sm:$0xf]
      %v3190 = vld [vmem:[%s3177 + $0x30] sm:$0xf]
      %v3191 = vld [vmem:[%s3177 + $0x34] sm:$0xf]
      %v3192 = vld [vmem:[%s3177 + $0x38] sm:$0xf]
      %v3193 = vld [vmem:[%s3177 + $0x3c] sm:$0xf]
      %v3194 = vld [vmem:[%s3177 + $0x40] sm:$0xf]
      %v3195 = vld [vmem:[%s3177 + $0x44] sm:$0xf]
      %v3196 = vld [vmem:[%s3177 + $0x48] sm:$0xf]
      %v3197 = vld [vmem:[%s3177 + $0x4c] sm:$0xf]
      %v3198 = vld [vmem:[%s3177 + $0x50] sm:$0xf]
      %v3199 = vld [vmem:[%s3177 + $0x54] sm:$0xf]
      %v3200 = vld [vmem:[%s3177 + $0x58] sm:$0xf]
      %v3201 = vld [vmem:[%s3177 + $0x5c] sm:$0xf]
      %v3202 = vld [vmem:[%s3177 + $0x60] sm:$0xf]
      %v3203 = vld [vmem:[%s3177 + $0x64] sm:$0xf]
      %v3204 = vld [vmem:[%s3177 + $0x68] sm:$0xf]
      %v3205 = vld [vmem:[%s3177 + $0x6c] sm:$0xf]
      %v3206 = vld [vmem:[%s3177 + $0x70] sm:$0xf]
      %v3207 = vld [vmem:[%s3177 + $0x74] sm:$0xf]
      %v3208 = vld [vmem:[%s3177 + $0x78] sm:$0xf]
      %v3209 = vld [vmem:[%s3177 + $0x7c] sm:$0xf]
      %v3210 = vld [vmem:[%s3177 + $0x80] sm:$0xf]
      %v3211 = vld [vmem:[%s3177 + $0x84] sm:$0xf]
      %v3212 = vld [vmem:[%s3177 + $0x88] sm:$0xf]
      %v3213 = vld [vmem:[%s3177 + $0x8c] sm:$0xf]
      %s3214 = scalar_lea.vmem %s2, 5
      %v3215 = vld [vmem:[%s3214] sm:$0x1]
      %v3217 = vlaneseq
      %v3218 = vshrl.u32 %v3217, 7
      %v3219 = vsub.s32 0, %v3218
      %v3220 = vrot.slane %v3215, %v3219
      %v3222 = vshrl.u32 %v3161, 16
      %v3224 = vrot.slane %v3222, 1
      %v3225 = vshll.u32 %v3161, 16
      %v3227 = vrot.slane %v3225, 2
      %v3228 = vor.u32 %v3224, %v3227
      %v3229 = vshrl.u32 %v3163, 16
      %v3231 = vrot.slane %v3229, 1
      %v3232 = vshll.u32 %v3163, 16
      %v3234 = vrot.slane %v3232, 2
      %v3235 = vor.u32 %v3231, %v3234
      %v3236 = vsel %vm647, %v3228, %v3235
      %v3237 = vshrl.u32 %v3174, 16
      %v3239 = vrot.slane %v3237, 1
      %v3240 = vshll.u32 %v3174, 16
      %v3242 = vrot.slane %v3240, 2
      %v3243 = vor.u32 %v3239, %v3242
      %v3244 = vshrl.u32 %v3176, 16
      %v3246 = vrot.slane %v3244, 1
      %v3247 = vshll.u32 %v3176, 16
      %v3249 = vrot.slane %v3247, 2
      %v3250 = vor.u32 %v3246, %v3249
      %v3251 = vsel %vm647, %v3243, %v3250
      %v3253 = vshrl.u32 %v3149, 16
      %v3255 = vrot.slane %v3253, 1
      %v3256 = vshll.u32 %v3149, 16
      %v3258 = vrot.slane %v3256, 2
      %v3259 = vor.u32 %v3255, %v3258
      %v3261 = vshrl.u32 %v3148, 16
      %v3263 = vrot.slane %v3261, 1
      %v3264 = vshll.u32 %v3148, 16
      %v3266 = vrot.slane %v3264, 2
      %v3267 = vor.u32 %v3263, %v3266
      %v3268 = vsel %vm647, %v3259, %v3267
      %v3307 = vunpack.c.l.b16 %v3178
      %v3308 = vunpack.c.l.b16 %v3179
      %v3309 = vunpack.c.l.b16 %v3180
      %v3310 = vunpack.c.l.b16 %v3181
      %v3311 = vunpack.c.l.b16 %v3182
      %v3312 = vunpack.c.l.b16 %v3183
      %v3313 = vunpack.c.l.b16 %v3184
      %v3314 = vunpack.c.l.b16 %v3185
      %v3315 = vunpack.c.l.b16 %v3186
      %v3316 = vunpack.c.l.b16 %v3187
      %v3317 = vunpack.c.l.b16 %v3188
      %v3318 = vunpack.c.l.b16 %v3189
      %v3319 = vunpack.c.l.b16 %v3190
      %v3320 = vunpack.c.l.b16 %v3191
      %v3321 = vunpack.c.l.b16 %v3192
      %v3322 = vunpack.c.l.b16 %v3193
      %v3323 = vunpack.c.l.b16 %v3194
      %v3324 = vunpack.c.l.b16 %v3195
      %v3325 = vunpack.c.l.b16 %v3196
      %v3326 = vunpack.c.l.b16 %v3197
      %v3327 = vunpack.c.l.b16 %v3198
      %v3328 = vunpack.c.l.b16 %v3199
      %v3329 = vunpack.c.l.b16 %v3200
      %v3330 = vunpack.c.l.b16 %v3201
      %v3331 = vunpack.c.l.b16 %v3202
      %v3332 = vunpack.c.l.b16 %v3203
      %v3333 = vunpack.c.l.b16 %v3204
      %v3334 = vunpack.c.l.b16 %v3205
      %v3335 = vunpack.c.l.b16 %v3206
      %v3336 = vunpack.c.l.b16 %v3207
      %v3337 = vunpack.c.l.b16 %v3208
      %v3338 = vunpack.c.l.b16 %v3209
      %v3339 = vunpack.c.l.b16 %v3210
      %v3340 = vunpack.c.l.b16 %v3211
      %v3341 = vunpack.c.l.b16 %v3212
      %v3342 = vunpack.c.l.b16 %v3213
      %v3343 = vpack.c.b16 %v3308, %v3307
      %v3344 = vpack.c.b16 %v3310, %v3309
      %v3345 = vpack.c.b16 %v3312, %v3311
      %v3346 = vpack.c.b16 %v3314, %v3313
      %v3347 = vpack.c.b16 %v3316, %v3315
      %v3348 = vpack.c.b16 %v3318, %v3317
      %v3349 = vpack.c.b16 %v3320, %v3319
      %v3350 = vpack.c.b16 %v3322, %v3321
      %v3351 = vpack.c.b16 %v3324, %v3323
      %v3352 = vpack.c.b16 %v3326, %v3325
      %v3353 = vpack.c.b16 %v3328, %v3327
      %v3354 = vpack.c.b16 %v3330, %v3329
      %v3355 = vpack.c.b16 %v3332, %v3331
      %v3356 = vpack.c.b16 %v3334, %v3333
      %v3357 = vpack.c.b16 %v3336, %v3335
      %v3358 = vpack.c.b16 %v3338, %v3337
      %v3359 = vpack.c.b16 %v3340, %v3339
      %v3360 = vpack.c.b16 %v3342, %v3341
      %v3380 = vsel %vm275, %v3268, 0
      %3382 = vmatprep.subr.bf16.mxu0 0
      %3383 = vmatpush1.bf16.msra.mxu0 %v3350
      %3384 = vmatprep.subr.bf16.mxu0 0
      %3385 = vmatpush1.bf16.msra.mxu0 %v3349
      %3386 = vmatprep.subr.bf16.mxu0 0
      %3387 = vmatpush1.bf16.msra.mxu0 %v3348
      %3388 = vmatprep.subr.bf16.mxu0 0
      %3389 = vmatpush1.bf16.msra.mxu0 %v3347
      %3390 = vmatprep.subr.bf16.mxu0 0
      %3391 = vmatpush1.bf16.msra.mxu0 %v3346
      %3392 = vmatprep.subr.bf16.mxu0 0
      %3393 = vmatpush1.bf16.msra.mxu0 %v3345
      %3394 = vmatprep.subr.bf16.mxu0 0
      %3395 = vmatpush1.bf16.msra.mxu0 %v3344
      %3396 = vmatprep.subr.bf16.mxu0 0
      %3397 = vmatpush1.bf16.msra.mxu0 %v3343
      %3398 = vmatprep.subr.bf16.mxu0 0
      %3399 = vmatpush2.bf16.msra.mxu0 %v3358
      %3400 = vmatprep.subr.bf16.mxu0 0
      %3401 = vmatpush2.bf16.msra.mxu0 %v3357
      %3402 = vmatprep.subr.bf16.mxu0 0
      %3403 = vmatpush2.bf16.msra.mxu0 %v3356
      %3404 = vmatprep.subr.bf16.mxu0 0
      %3405 = vmatpush2.bf16.msra.mxu0 %v3355
      %3406 = vmatprep.subr.bf16.mxu0 0
      %3407 = vmatpush2.bf16.msra.mxu0 %v3354
      %3408 = vmatprep.subr.bf16.mxu0 0
      %3409 = vmatpush2.bf16.msra.mxu0 %v3353
      %3410 = vmatprep.subr.bf16.mxu0 0
      %3411 = vmatpush2.bf16.msra.mxu0 %v3352
      %3412 = vmatprep.subr.bf16.mxu0 0
      %3413 = vmatpush2.bf16.msra.mxu0 %v3351
      %3414 = vmatprep.mubr.bf16.mxu0 %v3251
      %3415 = vmatmul.mubr.bf16.gmra.mxu0 %v3236
      %v3416 = vpop.f32.mrf.mxu0
      %v3417 = vadd.f32 %v3220, %v3416
      %v3418 = vpop.f32.mrf.mxu0
      %v3419 = vpop.f32.mrf.mxu0
      %v3420 = vadd.f32 %v3220, %v3419
      %v3421 = vpop.f32.mrf.mxu0
      %3422 = vdwg.mxu0
      %3423 = vmatprep.subr.bf16.mxu0 0
      %3424 = vmatpush1.bf16.msra.mxu0 0
      %3425 = vmatprep.subr.bf16.mxu0 0
      %3426 = vmatpush1.bf16.msra.mxu0 0
      %3427 = vmatprep.subr.bf16.mxu0 0
      %3428 = vmatpush1.bf16.msra.mxu0 0
      %3429 = vmatprep.subr.bf16.mxu0 0
      %3430 = vmatpush1.bf16.msra.mxu0 0
      %3431 = vmatprep.subr.bf16.mxu0 0
      %3432 = vmatpush1.bf16.msra.mxu0 0
      %3433 = vmatprep.subr.bf16.mxu0 0
      %3434 = vmatpush1.bf16.msra.mxu0 0
      %3435 = vmatprep.subr.bf16.mxu0 0
      %3436 = vmatpush1.bf16.msra.mxu0 %v3360
      %3437 = vmatprep.subr.bf16.mxu0 0
      %3438 = vmatpush1.bf16.msra.mxu0 %v3359
      %3439 = vmatprep.subr.bf16.mxu0 0
      %3440 = vmatpush2.bf16.msra.mxu0 0
      %3441 = vmatprep.subr.bf16.mxu0 0
      %3442 = vmatpush2.bf16.msra.mxu0 0
      %3443 = vmatprep.subr.bf16.mxu0 0
      %3444 = vmatpush2.bf16.msra.mxu0 0
      %3445 = vmatprep.subr.bf16.mxu0 0
      %3446 = vmatpush2.bf16.msra.mxu0 0
      %3447 = vmatprep.subr.bf16.mxu0 0
      %3448 = vmatpush2.bf16.msra.mxu0 0
      %3449 = vmatprep.subr.bf16.mxu0 0
      %3450 = vmatpush2.bf16.msra.mxu0 0
      %3451 = vmatprep.subr.bf16.mxu0 0
      %3452 = vmatpush2.bf16.msra.mxu0 0
      %3453 = vmatprep.subr.bf16.mxu0 0
      %3454 = vmatpush2.bf16.msra.mxu0 0
      %3455 = vmatprep.mubr.bf16.mxu0 0
      %3456 = vmatmul.mubr.bf16.gmra.mxu0 %v3380
      %v3457 = vpop.f32.mrf.mxu0
      %v3458 = vadd.f32 %v3417, %v3457
      %v3459 = vpop.f32.mrf.mxu0
      %v3460 = vpop.f32.mrf.mxu0
      %v3461 = vadd.f32 %v3420, %v3460
      %v3462 = vpop.f32.mrf.mxu0
      %3463 = vdwg.mxu0
      %s3464 = scalar_lea.vmem %s3, 5
      %v3465 = vld [vmem:[%s3464] sm:$0x1]
      %v3467 = vlaneseq
      %v3468 = vshrl.u32 %v3467, 7
      %v3469 = vsub.s32 0, %v3468
      %v3470 = vrot.slane %v3465, %v3469
      %v3472 = vmul.f32 %v3458, %v3470
      %v3473 = vmul.f32 %v3461, %v3470
      %v3474 = vld [vmem:[#allocation3] sm:$0xff]
      %v3475 = vld [vmem:[#allocation3 + $0x8] sm:$0xff]
      %v3476 = vadd.f32 %v3472, %v3474
      %v3477 = vadd.f32 %v3473, %v3475
      %vm3478 = vcmp.ge.f32.partialorder %v3476, 0.0
      %vm3479 = vcmp.ge.f32.partialorder %v3477, 0.0
      %v3480 = vmul.f32 %v3476, 0.2
      %v3481 = vmul.f32 %v3477, 0.2
      %v3482 = vsel %vm3478, %v3476, %v3480
      %v3483 = vsel %vm3479, %v3477, %v3481
      %3484 = vst.msk [vmem:[#allocation3] sm:$0xff] %vm275, %v3482
      %3485 = vst.msk [vmem:[#allocation3 + $0x8] sm:$0xff] %vm275, %v3483
      %v3486 = vpack.c.bf16 %v3483, %v3482
      %v3488 = vunpack.c.l.b16 %v3486
      %v3489 = vunpack.c.h.b16 %v3486
      %v3490 = vpack.c.b16 %v3488, %v3488
      %v3491 = vpack.c.b16 %v3489, %v3489
      %3494 = vst.msk [vmem:[#allocation2 + $0x8] sm:$0xf] %vm260, %v3490
      %3495 = vst.msk [vmem:[#allocation2 + $0xc] sm:$0xf] %vm260, %v3491
      %v3496 = vld [vmem:[#allocation2 + $0x4] sm:$0xe]
      %v3497 = vld [vmem:[#allocation2 + $0x8] sm:$0xf]
      %v3498 = vld [vmem:[#allocation2 + $0xc] sm:$0x3]
      %v3499 = vsel %vm342, %v3496, 0
      %v3500 = vsel %vm343, %v3497, 0
      %v3501 = vsel %vm344, %v3498, 0
      %v3502 = vld [vmem:[#allocation2 + $0x4] sm:$0xc]
      %v3503 = vld [vmem:[#allocation2 + $0xc] sm:$0x7]
      %v3504 = vsel %vm379, %v3502, 0
      %v3505 = vsel %vm380, %v3497, 0
      %v3506 = vsel %vm381, %v3503, 0
      %v3507 = vld [vmem:[#allocation2 + $0x4] sm:$0x8]
      %v3508 = vld [vmem:[#allocation2 + $0xc] sm:$0xf]
      %v3509 = vsel %vm399, %v3507, 0
      %v3510 = vsel %vm400, %v3497, 0
      %v3511 = vsel %vm401, %v3508, 0
      %v3512 = vld [vmem:[#allocation2 + $0x10] sm:$0x1]
      %v3513 = vsel %vm416, %v3497, 0
      %v3514 = vsel %vm417, %v3508, 0
      %v3515 = vsel %vm418, %v3512, 0
      %v3516 = vld [vmem:[#allocation2 + $0x8] sm:$0xe]
      %v3517 = vld [vmem:[#allocation2 + $0x10] sm:$0x3]
      %v3518 = vsel %vm342, %v3516, 0
      %v3519 = vsel %vm343, %v3508, 0
      %v3520 = vsel %vm344, %v3517, 0
      %v3521 = vld [vmem:[#allocation2 + $0x8] sm:$0xc]
      %v3522 = vld [vmem:[#allocation2 + $0x10] sm:$0x7]
      %v3523 = vsel %vm379, %v3521, 0
      %v3524 = vsel %vm380, %v3508, 0
      %v3525 = vsel %vm381, %v3522, 0
      %v3529 = vunpack.c.l.b16 %v3499
      %v3530 = vunpack.c.l.b16 %v3500
      %v3531 = vunpack.c.l.b16 %v3501
      %v3532 = vpack.c.b16 %v3530, %v3529
      %v3533 = vpack.c.b16 %v3531, %v3531
      %v3537 = vunpack.c.l.b16 %v3502
      %v3538 = vunpack.c.l.b16 %v3497
      %v3539 = vunpack.c.l.b16 %v3498
      %v3540 = vpack.c.b16 %v3538, %v3537
      %v3541 = vpack.c.b16 %v3539, %v3539
      %v3543 = vshrl.u32 %v3540, 16
      %v3545 = vshll.u32 %v3540, 16
      %v3547 = vrot.slane %v3545, 1
      %v3548 = vor.u32 %v3543, %v3547
      %v3550 = vshll.u32 %v3541, 16
      %v3552 = vrot.slane %v3550, 1
      %v3553 = vsel %vm448, %v3548, %v3552
      %v3554 = vshrl.u32 %v3541, 16
      %v3556 = vor.u32 %v3554, %v3552
      %3557 = vrot.lane.b32.xlu0 %v3553, 32
      %v3558 = vpop.permute.xlu0 %3557
      %3559 = vrot.lane.b32.xlu0 %v3556, 32
      %v3560 = vpop.permute.xlu0 %3559
      %v3564 = vunpack.c.l.b16 %v3504
      %v3565 = vunpack.c.l.b16 %v3505
      %v3566 = vunpack.c.l.b16 %v3506
      %v3567 = vpack.c.b16 %v3565, %v3564
      %v3568 = vpack.c.b16 %v3566, %v3566
      %v3569 = vrot.slane %v3567, 1
      %v3570 = vrot.slane %v3568, 1
      %v3571 = vsel %vm476, %v3569, %v3570
      %3572 = vrot.lane.b32.xlu0 %v3571, 64
      %v3573 = vpop.permute.xlu0 %3572
      %3574 = vrot.lane.b32.xlu0 %v3570, 64
      %v3575 = vpop.permute.xlu0 %3574
      %v3579 = vunpack.c.l.b16 %v3509
      %v3580 = vunpack.c.l.b16 %v3510
      %v3581 = vunpack.c.l.b16 %v3511
      %v3582 = vpack.c.b16 %v3580, %v3579
      %v3583 = vpack.c.b16 %v3581, %v3581
      %v3584 = vrot.slane %v3582, 2
      %v3585 = vrot.slane %v3583, 2
      %v3586 = vsel %vm492, %v3584, %v3585
      %3587 = vrot.lane.b32.xlu0 %v3586, 96
      %v3588 = vpop.permute.xlu0 %3587
      %3589 = vrot.lane.b32.xlu0 %v3585, 96
      %v3590 = vpop.permute.xlu0 %3589
      %v3592 = vunpack.c.l.b16 %v3508
      %v3593 = vpack.c.b16 %v3592, %v3538
      %v3595 = vshrl.u32 %v3593, 16
      %v3597 = vrot.slane %v3595, 6
      %v3598 = vshll.u32 %v3593, 16
      %v3600 = vrot.slane %v3598, 7
      %v3601 = vor.u32 %v3597, %v3600
      %v3605 = vunpack.c.l.b16 %v3513
      %v3606 = vunpack.c.l.b16 %v3514
      %v3607 = vunpack.c.l.b16 %v3515
      %v3608 = vpack.c.b16 %v3606, %v3605
      %v3609 = vpack.c.b16 %v3607, %v3607
      %v3610 = vrot.slane %v3608, 7
      %v3611 = vrot.slane %v3609, 7
      %v3612 = vsel %vm519, %v3610, %v3611
      %3613 = vrot.lane.b32.xlu0 %v3610, 32
      %v3614 = vpop.permute.xlu0 %3613
      %3615 = vrot.lane.b32.xlu0 %v3612, 32
      %v3616 = vpop.permute.xlu0 %3615
      %v3620 = vunpack.c.l.b16 %v3518
      %v3621 = vunpack.c.l.b16 %v3519
      %v3622 = vunpack.c.l.b16 %v3520
      %v3623 = vpack.c.b16 %v3621, %v3620
      %v3624 = vpack.c.b16 %v3622, %v3622
      %3625 = vrot.lane.b32.xlu0 %v3623, 64
      %v3626 = vpop.permute.xlu0 %3625
      %3627 = vrot.lane.b32.xlu0 %v3624, 64
      %v3628 = vpop.permute.xlu0 %3627
      %v3631 = vunpack.c.l.b16 %v3521
      %v3632 = vunpack.c.l.b16 %v3517
      %v3633 = vpack.c.b16 %v3592, %v3631
      %v3634 = vpack.c.b16 %v3632, %v3632
      %v3636 = vshrl.u32 %v3633, 16
      %v3638 = vshll.u32 %v3633, 16
      %v3640 = vrot.slane %v3638, 1
      %v3641 = vor.u32 %v3636, %v3640
      %v3643 = vshll.u32 %v3634, 16
      %v3645 = vrot.slane %v3643, 1
      %v3646 = vsel %vm448, %v3641, %v3645
      %v3647 = vshrl.u32 %v3634, 16
      %v3649 = vor.u32 %v3647, %v3645
      %3650 = vrot.lane.b32.xlu0 %v3646, 96
      %v3651 = vpop.permute.xlu0 %3650
      %3652 = vrot.lane.b32.xlu0 %v3649, 96
      %v3653 = vpop.permute.xlu0 %3652
      %v3657 = vunpack.c.l.b16 %v3523
      %v3658 = vunpack.c.l.b16 %v3524
      %v3659 = vunpack.c.l.b16 %v3525
      %v3660 = vpack.c.b16 %v3658, %v3657
      %v3661 = vpack.c.b16 %v3659, %v3659
      %v3662 = vrot.slane %v3660, 1
      %v3663 = vrot.slane %v3661, 1
      %v3664 = vsel %vm476, %v3662, %v3663
      %v3667 = vsel %vm275, %v3532, %v3558
      %v3670 = vsel %vm275, %v3533, %v3560
      %v3672 = vsel %vm581, %v3667, %v3573
      %v3674 = vsel %vm581, %v3670, %v3575
      %v3676 = vsel %vm586, %v3672, %v3588
      %v3678 = vsel %vm586, %v3674, %v3590
      %v3681 = vsel %vm275, %v3601, %v3614
      %v3683 = vsel %vm275, %v3601, %v3616
      %v3685 = vsel %vm581, %v3681, %v3626
      %v3687 = vsel %vm581, %v3683, %v3628
      %v3689 = vsel %vm586, %v3685, %v3651
      %v3691 = vsel %vm586, %v3687, %v3653
      %s3692 = scalar_lea.vmem %s1, 864
      %v3693 = vld [vmem:[%s3692] sm:$0xf]
      %v3694 = vld [vmem:[%s3692 + $0x4] sm:$0xf]
      %v3695 = vld [vmem:[%s3692 + $0x8] sm:$0xf]
      %v3696 = vld [vmem:[%s3692 + $0xc] sm:$0xf]
      %v3697 = vld [vmem:[%s3692 + $0x10] sm:$0xf]
      %v3698 = vld [vmem:[%s3692 + $0x14] sm:$0xf]
      %v3699 = vld [vmem:[%s3692 + $0x18] sm:$0xf]
      %v3700 = vld [vmem:[%s3692 + $0x1c] sm:$0xf]
      %v3701 = vld [vmem:[%s3692 + $0x20] sm:$0xf]
      %v3702 = vld [vmem:[%s3692 + $0x24] sm:$0xf]
      %v3703 = vld [vmem:[%s3692 + $0x28] sm:$0xf]
      %v3704 = vld [vmem:[%s3692 + $0x2c] sm:$0xf]
      %v3705 = vld [vmem:[%s3692 + $0x30] sm:$0xf]
      %v3706 = vld [vmem:[%s3692 + $0x34] sm:$0xf]
      %v3707 = vld [vmem:[%s3692 + $0x38] sm:$0xf]
      %v3708 = vld [vmem:[%s3692 + $0x3c] sm:$0xf]
      %v3709 = vld [vmem:[%s3692 + $0x40] sm:$0xf]
      %v3710 = vld [vmem:[%s3692 + $0x44] sm:$0xf]
      %v3711 = vld [vmem:[%s3692 + $0x48] sm:$0xf]
      %v3712 = vld [vmem:[%s3692 + $0x4c] sm:$0xf]
      %v3713 = vld [vmem:[%s3692 + $0x50] sm:$0xf]
      %v3714 = vld [vmem:[%s3692 + $0x54] sm:$0xf]
      %v3715 = vld [vmem:[%s3692 + $0x58] sm:$0xf]
      %v3716 = vld [vmem:[%s3692 + $0x5c] sm:$0xf]
      %v3717 = vld [vmem:[%s3692 + $0x60] sm:$0xf]
      %v3718 = vld [vmem:[%s3692 + $0x64] sm:$0xf]
      %v3719 = vld [vmem:[%s3692 + $0x68] sm:$0xf]
      %v3720 = vld [vmem:[%s3692 + $0x6c] sm:$0xf]
      %v3721 = vld [vmem:[%s3692 + $0x70] sm:$0xf]
      %v3722 = vld [vmem:[%s3692 + $0x74] sm:$0xf]
      %v3723 = vld [vmem:[%s3692 + $0x78] sm:$0xf]
      %v3724 = vld [vmem:[%s3692 + $0x7c] sm:$0xf]
      %v3725 = vld [vmem:[%s3692 + $0x80] sm:$0xf]
      %v3726 = vld [vmem:[%s3692 + $0x84] sm:$0xf]
      %v3727 = vld [vmem:[%s3692 + $0x88] sm:$0xf]
      %v3728 = vld [vmem:[%s3692 + $0x8c] sm:$0xf]
      %s3729 = scalar_lea.vmem %s2, 6
      %v3730 = vld [vmem:[%s3729] sm:$0x1]
      %v3732 = vlaneseq
      %v3733 = vshrl.u32 %v3732, 7
      %v3734 = vsub.s32 0, %v3733
      %v3735 = vrot.slane %v3730, %v3734
      %v3737 = vshrl.u32 %v3676, 16
      %v3739 = vrot.slane %v3737, 1
      %v3740 = vshll.u32 %v3676, 16
      %v3742 = vrot.slane %v3740, 2
      %v3743 = vor.u32 %v3739, %v3742
      %v3744 = vshrl.u32 %v3678, 16
      %v3746 = vrot.slane %v3744, 1
      %v3747 = vshll.u32 %v3678, 16
      %v3749 = vrot.slane %v3747, 2
      %v3750 = vor.u32 %v3746, %v3749
      %v3751 = vsel %vm647, %v3743, %v3750
      %v3752 = vshrl.u32 %v3689, 16
      %v3754 = vrot.slane %v3752, 1
      %v3755 = vshll.u32 %v3689, 16
      %v3757 = vrot.slane %v3755, 2
      %v3758 = vor.u32 %v3754, %v3757
      %v3759 = vshrl.u32 %v3691, 16
      %v3761 = vrot.slane %v3759, 1
      %v3762 = vshll.u32 %v3691, 16
      %v3764 = vrot.slane %v3762, 2
      %v3765 = vor.u32 %v3761, %v3764
      %v3766 = vsel %vm647, %v3758, %v3765
      %v3768 = vshrl.u32 %v3664, 16
      %v3770 = vrot.slane %v3768, 1
      %v3771 = vshll.u32 %v3664, 16
      %v3773 = vrot.slane %v3771, 2
      %v3774 = vor.u32 %v3770, %v3773
      %v3776 = vshrl.u32 %v3663, 16
      %v3778 = vrot.slane %v3776, 1
      %v3779 = vshll.u32 %v3663, 16
      %v3781 = vrot.slane %v3779, 2
      %v3782 = vor.u32 %v3778, %v3781
      %v3783 = vsel %vm647, %v3774, %v3782
      %v3822 = vunpack.c.l.b16 %v3693
      %v3823 = vunpack.c.l.b16 %v3694
      %v3824 = vunpack.c.l.b16 %v3695
      %v3825 = vunpack.c.l.b16 %v3696
      %v3826 = vunpack.c.l.b16 %v3697
      %v3827 = vunpack.c.l.b16 %v3698
      %v3828 = vunpack.c.l.b16 %v3699
      %v3829 = vunpack.c.l.b16 %v3700
      %v3830 = vunpack.c.l.b16 %v3701
      %v3831 = vunpack.c.l.b16 %v3702
      %v3832 = vunpack.c.l.b16 %v3703
      %v3833 = vunpack.c.l.b16 %v3704
      %v3834 = vunpack.c.l.b16 %v3705
      %v3835 = vunpack.c.l.b16 %v3706
      %v3836 = vunpack.c.l.b16 %v3707
      %v3837 = vunpack.c.l.b16 %v3708
      %v3838 = vunpack.c.l.b16 %v3709
      %v3839 = vunpack.c.l.b16 %v3710
      %v3840 = vunpack.c.l.b16 %v3711
      %v3841 = vunpack.c.l.b16 %v3712
      %v3842 = vunpack.c.l.b16 %v3713
      %v3843 = vunpack.c.l.b16 %v3714
      %v3844 = vunpack.c.l.b16 %v3715
      %v3845 = vunpack.c.l.b16 %v3716
      %v3846 = vunpack.c.l.b16 %v3717
      %v3847 = vunpack.c.l.b16 %v3718
      %v3848 = vunpack.c.l.b16 %v3719
      %v3849 = vunpack.c.l.b16 %v3720
      %v3850 = vunpack.c.l.b16 %v3721
      %v3851 = vunpack.c.l.b16 %v3722
      %v3852 = vunpack.c.l.b16 %v3723
      %v3853 = vunpack.c.l.b16 %v3724
      %v3854 = vunpack.c.l.b16 %v3725
      %v3855 = vunpack.c.l.b16 %v3726
      %v3856 = vunpack.c.l.b16 %v3727
      %v3857 = vunpack.c.l.b16 %v3728
      %v3858 = vpack.c.b16 %v3823, %v3822
      %v3859 = vpack.c.b16 %v3825, %v3824
      %v3860 = vpack.c.b16 %v3827, %v3826
      %v3861 = vpack.c.b16 %v3829, %v3828
      %v3862 = vpack.c.b16 %v3831, %v3830
      %v3863 = vpack.c.b16 %v3833, %v3832
      %v3864 = vpack.c.b16 %v3835, %v3834
      %v3865 = vpack.c.b16 %v3837, %v3836
      %v3866 = vpack.c.b16 %v3839, %v3838
      %v3867 = vpack.c.b16 %v3841, %v3840
      %v3868 = vpack.c.b16 %v3843, %v3842
      %v3869 = vpack.c.b16 %v3845, %v3844
      %v3870 = vpack.c.b16 %v3847, %v3846
      %v3871 = vpack.c.b16 %v3849, %v3848
      %v3872 = vpack.c.b16 %v3851, %v3850
      %v3873 = vpack.c.b16 %v3853, %v3852
      %v3874 = vpack.c.b16 %v3855, %v3854
      %v3875 = vpack.c.b16 %v3857, %v3856
      %v3895 = vsel %vm275, %v3783, 0
      %3897 = vmatprep.subr.bf16.mxu0 0
      %3898 = vmatpush1.bf16.msra.mxu0 %v3865
      %3899 = vmatprep.subr.bf16.mxu0 0
      %3900 = vmatpush1.bf16.msra.mxu0 %v3864
      %3901 = vmatprep.subr.bf16.mxu0 0
      %3902 = vmatpush1.bf16.msra.mxu0 %v3863
      %3903 = vmatprep.subr.bf16.mxu0 0
      %3904 = vmatpush1.bf16.msra.mxu0 %v3862
      %3905 = vmatprep.subr.bf16.mxu0 0
      %3906 = vmatpush1.bf16.msra.mxu0 %v3861
      %3907 = vmatprep.subr.bf16.mxu0 0
      %3908 = vmatpush1.bf16.msra.mxu0 %v3860
      %3909 = vmatprep.subr.bf16.mxu0 0
      %3910 = vmatpush1.bf16.msra.mxu0 %v3859
      %3911 = vmatprep.subr.bf16.mxu0 0
      %3912 = vmatpush1.bf16.msra.mxu0 %v3858
      %3913 = vmatprep.subr.bf16.mxu0 0
      %3914 = vmatpush2.bf16.msra.mxu0 %v3873
      %3915 = vmatprep.subr.bf16.mxu0 0
      %3916 = vmatpush2.bf16.msra.mxu0 %v3872
      %3917 = vmatprep.subr.bf16.mxu0 0
      %3918 = vmatpush2.bf16.msra.mxu0 %v3871
      %3919 = vmatprep.subr.bf16.mxu0 0
      %3920 = vmatpush2.bf16.msra.mxu0 %v3870
      %3921 = vmatprep.subr.bf16.mxu0 0
      %3922 = vmatpush2.bf16.msra.mxu0 %v3869
      %3923 = vmatprep.subr.bf16.mxu0 0
      %3924 = vmatpush2.bf16.msra.mxu0 %v3868
      %3925 = vmatprep.subr.bf16.mxu0 0
      %3926 = vmatpush2.bf16.msra.mxu0 %v3867
      %3927 = vmatprep.subr.bf16.mxu0 0
      %3928 = vmatpush2.bf16.msra.mxu0 %v3866
      %3929 = vmatprep.mubr.bf16.mxu0 %v3766
      %3930 = vmatmul.mubr.bf16.gmra.mxu0 %v3751
      %v3931 = vpop.f32.mrf.mxu0
      %v3932 = vadd.f32 %v3735, %v3931
      %v3933 = vpop.f32.mrf.mxu0
      %v3934 = vpop.f32.mrf.mxu0
      %v3935 = vadd.f32 %v3735, %v3934
      %v3936 = vpop.f32.mrf.mxu0
      %3937 = vdwg.mxu0
      %3938 = vmatprep.subr.bf16.mxu0 0
      %3939 = vmatpush1.bf16.msra.mxu0 0
      %3940 = vmatprep.subr.bf16.mxu0 0
      %3941 = vmatpush1.bf16.msra.mxu0 0
      %3942 = vmatprep.subr.bf16.mxu0 0
      %3943 = vmatpush1.bf16.msra.mxu0 0
      %3944 = vmatprep.subr.bf16.mxu0 0
      %3945 = vmatpush1.bf16.msra.mxu0 0
      %3946 = vmatprep.subr.bf16.mxu0 0
      %3947 = vmatpush1.bf16.msra.mxu0 0
      %3948 = vmatprep.subr.bf16.mxu0 0
      %3949 = vmatpush1.bf16.msra.mxu0 0
      %3950 = vmatprep.subr.bf16.mxu0 0
      %3951 = vmatpush1.bf16.msra.mxu0 %v3875
      %3952 = vmatprep.subr.bf16.mxu0 0
      %3953 = vmatpush1.bf16.msra.mxu0 %v3874
      %3954 = vmatprep.subr.bf16.mxu0 0
      %3955 = vmatpush2.bf16.msra.mxu0 0
      %3956 = vmatprep.subr.bf16.mxu0 0
      %3957 = vmatpush2.bf16.msra.mxu0 0
      %3958 = vmatprep.subr.bf16.mxu0 0
      %3959 = vmatpush2.bf16.msra.mxu0 0
      %3960 = vmatprep.subr.bf16.mxu0 0
      %3961 = vmatpush2.bf16.msra.mxu0 0
      %3962 = vmatprep.subr.bf16.mxu0 0
      %3963 = vmatpush2.bf16.msra.mxu0 0
      %3964 = vmatprep.subr.bf16.mxu0 0
      %3965 = vmatpush2.bf16.msra.mxu0 0
      %3966 = vmatprep.subr.bf16.mxu0 0
      %3967 = vmatpush2.bf16.msra.mxu0 0
      %3968 = vmatprep.subr.bf16.mxu0 0
      %3969 = vmatpush2.bf16.msra.mxu0 0
      %3970 = vmatprep.mubr.bf16.mxu0 0
      %3971 = vmatmul.mubr.bf16.gmra.mxu0 %v3895
      %v3972 = vpop.f32.mrf.mxu0
      %v3973 = vadd.f32 %v3932, %v3972
      %v3974 = vpop.f32.mrf.mxu0
      %v3975 = vpop.f32.mrf.mxu0
      %v3976 = vadd.f32 %v3935, %v3975
      %v3977 = vpop.f32.mrf.mxu0
      %3978 = vdwg.mxu0
      %s3979 = scalar_lea.vmem %s3, 6
      %v3980 = vld [vmem:[%s3979] sm:$0x1]
      %v3982 = vlaneseq
      %v3983 = vshrl.u32 %v3982, 7
      %v3984 = vsub.s32 0, %v3983
      %v3985 = vrot.slane %v3980, %v3984
      %v3987 = vmul.f32 %v3973, %v3985
      %v3988 = vmul.f32 %v3976, %v3985
      %v3989 = vld [vmem:[#allocation3] sm:$0xff]
      %v3990 = vld [vmem:[#allocation3 + $0x8] sm:$0xff]
      %v3991 = vadd.f32 %v3987, %v3989
      %v3992 = vadd.f32 %v3988, %v3990
      %vm3993 = vcmp.ge.f32.partialorder %v3991, 0.0
      %vm3994 = vcmp.ge.f32.partialorder %v3992, 0.0
      %v3995 = vmul.f32 %v3991, 0.2
      %v3996 = vmul.f32 %v3992, 0.2
      %v3997 = vsel %vm3993, %v3991, %v3995
      %v3998 = vsel %vm3994, %v3992, %v3996
      %3999 = vst.msk [vmem:[#allocation3] sm:$0xff] %vm275, %v3997
      %4000 = vst.msk [vmem:[#allocation3 + $0x8] sm:$0xff] %vm275, %v3998
      %v4001 = vpack.c.bf16 %v3998, %v3997
      %v4003 = vunpack.c.l.b16 %v4001
      %v4004 = vunpack.c.h.b16 %v4001
      %v4005 = vpack.c.b16 %v4003, %v4003
      %v4006 = vpack.c.b16 %v4004, %v4004
      %4009 = vst.msk [vmem:[#allocation2 + $0x8] sm:$0xf] %vm260, %v4005
      %4010 = vst.msk [vmem:[#allocation2 + $0xc] sm:$0xf] %vm260, %v4006
      %v4011 = vld [vmem:[#allocation2 + $0x4] sm:$0xe]
      %v4012 = vld [vmem:[#allocation2 + $0x8] sm:$0xf]
      %v4013 = vld [vmem:[#allocation2 + $0xc] sm:$0x3]
      %v4014 = vsel %vm342, %v4011, 0
      %v4015 = vsel %vm343, %v4012, 0
      %v4016 = vsel %vm344, %v4013, 0
      %v4017 = vld [vmem:[#allocation2 + $0x4] sm:$0xc]
      %v4018 = vld [vmem:[#allocation2 + $0xc] sm:$0x7]
      %v4019 = vsel %vm379, %v4017, 0
      %v4020 = vsel %vm380, %v4012, 0
      %v4021 = vsel %vm381, %v4018, 0
      %v4022 = vld [vmem:[#allocation2 + $0x4] sm:$0x8]
      %v4023 = vld [vmem:[#allocation2 + $0xc] sm:$0xf]
      %v4024 = vsel %vm399, %v4022, 0
      %v4025 = vsel %vm400, %v4012, 0
      %v4026 = vsel %vm401, %v4023, 0
      %v4027 = vld [vmem:[#allocation2 + $0x10] sm:$0x1]
      %v4028 = vsel %vm416, %v4012, 0
      %v4029 = vsel %vm417, %v4023, 0
      %v4030 = vsel %vm418, %v4027, 0
      %v4031 = vld [vmem:[#allocation2 + $0x8] sm:$0xe]
      %v4032 = vld [vmem:[#allocation2 + $0x10] sm:$0x3]
      %v4033 = vsel %vm342, %v4031, 0
      %v4034 = vsel %vm343, %v4023, 0
      %v4035 = vsel %vm344, %v4032, 0
      %v4036 = vld [vmem:[#allocation2 + $0x8] sm:$0xc]
      %v4037 = vld [vmem:[#allocation2 + $0x10] sm:$0x7]
      %v4038 = vsel %vm379, %v4036, 0
      %v4039 = vsel %vm380, %v4023, 0
      %v4040 = vsel %vm381, %v4037, 0
      %v4044 = vunpack.c.l.b16 %v4014
      %v4045 = vunpack.c.l.b16 %v4015
      %v4046 = vunpack.c.l.b16 %v4016
      %v4047 = vpack.c.b16 %v4045, %v4044
      %v4048 = vpack.c.b16 %v4046, %v4046
      %v4052 = vunpack.c.l.b16 %v4017
      %v4053 = vunpack.c.l.b16 %v4012
      %v4054 = vunpack.c.l.b16 %v4013
      %v4055 = vpack.c.b16 %v4053, %v4052
      %v4056 = vpack.c.b16 %v4054, %v4054
      %v4058 = vshrl.u32 %v4055, 16
      %v4060 = vshll.u32 %v4055, 16
      %v4062 = vrot.slane %v4060, 1
      %v4063 = vor.u32 %v4058, %v4062
      %v4065 = vshll.u32 %v4056, 16
      %v4067 = vrot.slane %v4065, 1
      %v4068 = vsel %vm448, %v4063, %v4067
      %v4069 = vshrl.u32 %v4056, 16
      %v4071 = vor.u32 %v4069, %v4067
      %4072 = vrot.lane.b32.xlu0 %v4068, 32
      %v4073 = vpop.permute.xlu0 %4072
      %4074 = vrot.lane.b32.xlu0 %v4071, 32
      %v4075 = vpop.permute.xlu0 %4074
      %v4079 = vunpack.c.l.b16 %v4019
      %v4080 = vunpack.c.l.b16 %v4020
      %v4081 = vunpack.c.l.b16 %v4021
      %v4082 = vpack.c.b16 %v4080, %v4079
      %v4083 = vpack.c.b16 %v4081, %v4081
      %v4084 = vrot.slane %v4082, 1
      %v4085 = vrot.slane %v4083, 1
      %v4086 = vsel %vm476, %v4084, %v4085
      %4087 = vrot.lane.b32.xlu0 %v4086, 64
      %v4088 = vpop.permute.xlu0 %4087
      %4089 = vrot.lane.b32.xlu0 %v4085, 64
      %v4090 = vpop.permute.xlu0 %4089
      %v4094 = vunpack.c.l.b16 %v4024
      %v4095 = vunpack.c.l.b16 %v4025
      %v4096 = vunpack.c.l.b16 %v4026
      %v4097 = vpack.c.b16 %v4095, %v4094
      %v4098 = vpack.c.b16 %v4096, %v4096
      %v4099 = vrot.slane %v4097, 2
      %v4100 = vrot.slane %v4098, 2
      %v4101 = vsel %vm492, %v4099, %v4100
      %4102 = vrot.lane.b32.xlu0 %v4101, 96
      %v4103 = vpop.permute.xlu0 %4102
      %4104 = vrot.lane.b32.xlu0 %v4100, 96
      %v4105 = vpop.permute.xlu0 %4104
      %v4107 = vunpack.c.l.b16 %v4023
      %v4108 = vpack.c.b16 %v4107, %v4053
      %v4110 = vshrl.u32 %v4108, 16
      %v4112 = vrot.slane %v4110, 6
      %v4113 = vshll.u32 %v4108, 16
      %v4115 = vrot.slane %v4113, 7
      %v4116 = vor.u32 %v4112, %v4115
      %v4120 = vunpack.c.l.b16 %v4028
      %v4121 = vunpack.c.l.b16 %v4029
      %v4122 = vunpack.c.l.b16 %v4030
      %v4123 = vpack.c.b16 %v4121, %v4120
      %v4124 = vpack.c.b16 %v4122, %v4122
      %v4125 = vrot.slane %v4123, 7
      %v4126 = vrot.slane %v4124, 7
      %v4127 = vsel %vm519, %v4125, %v4126
      %4128 = vrot.lane.b32.xlu0 %v4125, 32
      %v4129 = vpop.permute.xlu0 %4128
      %4130 = vrot.lane.b32.xlu0 %v4127, 32
      %v4131 = vpop.permute.xlu0 %4130
      %v4135 = vunpack.c.l.b16 %v4033
      %v4136 = vunpack.c.l.b16 %v4034
      %v4137 = vunpack.c.l.b16 %v4035
      %v4138 = vpack.c.b16 %v4136, %v4135
      %v4139 = vpack.c.b16 %v4137, %v4137
      %4140 = vrot.lane.b32.xlu0 %v4138, 64
      %v4141 = vpop.permute.xlu0 %4140
      %4142 = vrot.lane.b32.xlu0 %v4139, 64
      %v4143 = vpop.permute.xlu0 %4142
      %v4146 = vunpack.c.l.b16 %v4036
      %v4147 = vunpack.c.l.b16 %v4032
      %v4148 = vpack.c.b16 %v4107, %v4146
      %v4149 = vpack.c.b16 %v4147, %v4147
      %v4151 = vshrl.u32 %v4148, 16
      %v4153 = vshll.u32 %v4148, 16
      %v4155 = vrot.slane %v4153, 1
      %v4156 = vor.u32 %v4151, %v4155
      %v4158 = vshll.u32 %v4149, 16
      %v4160 = vrot.slane %v4158, 1
      %v4161 = vsel %vm448, %v4156, %v4160
      %v4162 = vshrl.u32 %v4149, 16
      %v4164 = vor.u32 %v4162, %v4160
      %4165 = vrot.lane.b32.xlu0 %v4161, 96
      %v4166 = vpop.permute.xlu0 %4165
      %4167 = vrot.lane.b32.xlu0 %v4164, 96
      %v4168 = vpop.permute.xlu0 %4167
      %v4172 = vunpack.c.l.b16 %v4038
      %v4173 = vunpack.c.l.b16 %v4039
      %v4174 = vunpack.c.l.b16 %v4040
      %v4175 = vpack.c.b16 %v4173, %v4172
      %v4176 = vpack.c.b16 %v4174, %v4174
      %v4177 = vrot.slane %v4175, 1
      %v4178 = vrot.slane %v4176, 1
      %v4179 = vsel %vm476, %v4177, %v4178
      %v4182 = vsel %vm275, %v4047, %v4073
      %v4185 = vsel %vm275, %v4048, %v4075
      %v4187 = vsel %vm581, %v4182, %v4088
      %v4189 = vsel %vm581, %v4185, %v4090
      %v4191 = vsel %vm586, %v4187, %v4103
      %v4193 = vsel %vm586, %v4189, %v4105
      %v4196 = vsel %vm275, %v4116, %v4129
      %v4198 = vsel %vm275, %v4116, %v4131
      %v4200 = vsel %vm581, %v4196, %v4141
      %v4202 = vsel %vm581, %v4198, %v4143
      %v4204 = vsel %vm586, %v4200, %v4166
      %v4206 = vsel %vm586, %v4202, %v4168
      %s4207 = scalar_lea.vmem %s1, 1008
      %v4208 = vld [vmem:[%s4207] sm:$0xf]
      %v4209 = vld [vmem:[%s4207 + $0x4] sm:$0xf]
      %v4210 = vld [vmem:[%s4207 + $0x8] sm:$0xf]
      %v4211 = vld [vmem:[%s4207 + $0xc] sm:$0xf]
      %v4212 = vld [vmem:[%s4207 + $0x10] sm:$0xf]
      %v4213 = vld [vmem:[%s4207 + $0x14] sm:$0xf]
      %v4214 = vld [vmem:[%s4207 + $0x18] sm:$0xf]
      %v4215 = vld [vmem:[%s4207 + $0x1c] sm:$0xf]
      %v4216 = vld [vmem:[%s4207 + $0x20] sm:$0xf]
      %v4217 = vld [vmem:[%s4207 + $0x24] sm:$0xf]
      %v4218 = vld [vmem:[%s4207 + $0x28] sm:$0xf]
      %v4219 = vld [vmem:[%s4207 + $0x2c] sm:$0xf]
      %v4220 = vld [vmem:[%s4207 + $0x30] sm:$0xf]
      %v4221 = vld [vmem:[%s4207 + $0x34] sm:$0xf]
      %v4222 = vld [vmem:[%s4207 + $0x38] sm:$0xf]
      %v4223 = vld [vmem:[%s4207 + $0x3c] sm:$0xf]
      %v4224 = vld [vmem:[%s4207 + $0x40] sm:$0xf]
      %v4225 = vld [vmem:[%s4207 + $0x44] sm:$0xf]
      %v4226 = vld [vmem:[%s4207 + $0x48] sm:$0xf]
      %v4227 = vld [vmem:[%s4207 + $0x4c] sm:$0xf]
      %v4228 = vld [vmem:[%s4207 + $0x50] sm:$0xf]
      %v4229 = vld [vmem:[%s4207 + $0x54] sm:$0xf]
      %v4230 = vld [vmem:[%s4207 + $0x58] sm:$0xf]
      %v4231 = vld [vmem:[%s4207 + $0x5c] sm:$0xf]
      %v4232 = vld [vmem:[%s4207 + $0x60] sm:$0xf]
      %v4233 = vld [vmem:[%s4207 + $0x64] sm:$0xf]
      %v4234 = vld [vmem:[%s4207 + $0x68] sm:$0xf]
      %v4235 = vld [vmem:[%s4207 + $0x6c] sm:$0xf]
      %v4236 = vld [vmem:[%s4207 + $0x70] sm:$0xf]
      %v4237 = vld [vmem:[%s4207 + $0x74] sm:$0xf]
      %v4238 = vld [vmem:[%s4207 + $0x78] sm:$0xf]
      %v4239 = vld [vmem:[%s4207 + $0x7c] sm:$0xf]
      %v4240 = vld [vmem:[%s4207 + $0x80] sm:$0xf]
      %v4241 = vld [vmem:[%s4207 + $0x84] sm:$0xf]
      %v4242 = vld [vmem:[%s4207 + $0x88] sm:$0xf]
      %v4243 = vld [vmem:[%s4207 + $0x8c] sm:$0xf]
      %s4244 = scalar_lea.vmem %s2, 7
      %v4245 = vld [vmem:[%s4244] sm:$0x1]
      %v4247 = vlaneseq
      %v4248 = vshrl.u32 %v4247, 7
      %v4249 = vsub.s32 0, %v4248
      %v4250 = vrot.slane %v4245, %v4249
      %v4252 = vshrl.u32 %v4191, 16
      %v4254 = vrot.slane %v4252, 1
      %v4255 = vshll.u32 %v4191, 16
      %v4257 = vrot.slane %v4255, 2
      %v4258 = vor.u32 %v4254, %v4257
      %v4259 = vshrl.u32 %v4193, 16
      %v4261 = vrot.slane %v4259, 1
      %v4262 = vshll.u32 %v4193, 16
      %v4264 = vrot.slane %v4262, 2
      %v4265 = vor.u32 %v4261, %v4264
      %v4266 = vsel %vm647, %v4258, %v4265
      %v4267 = vshrl.u32 %v4204, 16
      %v4269 = vrot.slane %v4267, 1
      %v4270 = vshll.u32 %v4204, 16
      %v4272 = vrot.slane %v4270, 2
      %v4273 = vor.u32 %v4269, %v4272
      %v4274 = vshrl.u32 %v4206, 16
      %v4276 = vrot.slane %v4274, 1
      %v4277 = vshll.u32 %v4206, 16
      %v4279 = vrot.slane %v4277, 2
      %v4280 = vor.u32 %v4276, %v4279
      %v4281 = vsel %vm647, %v4273, %v4280
      %v4283 = vshrl.u32 %v4179, 16
      %v4285 = vrot.slane %v4283, 1
      %v4286 = vshll.u32 %v4179, 16
      %v4288 = vrot.slane %v4286, 2
      %v4289 = vor.u32 %v4285, %v4288
      %v4291 = vshrl.u32 %v4178, 16
      %v4293 = vrot.slane %v4291, 1
      %v4294 = vshll.u32 %v4178, 16
      %v4296 = vrot.slane %v4294, 2
      %v4297 = vor.u32 %v4293, %v4296
      %v4298 = vsel %vm647, %v4289, %v4297
      %v4337 = vunpack.c.l.b16 %v4208
      %v4338 = vunpack.c.l.b16 %v4209
      %v4339 = vunpack.c.l.b16 %v4210
      %v4340 = vunpack.c.l.b16 %v4211
      %v4341 = vunpack.c.l.b16 %v4212
      %v4342 = vunpack.c.l.b16 %v4213
      %v4343 = vunpack.c.l.b16 %v4214
      %v4344 = vunpack.c.l.b16 %v4215
      %v4345 = vunpack.c.l.b16 %v4216
      %v4346 = vunpack.c.l.b16 %v4217
      %v4347 = vunpack.c.l.b16 %v4218
      %v4348 = vunpack.c.l.b16 %v4219
      %v4349 = vunpack.c.l.b16 %v4220
      %v4350 = vunpack.c.l.b16 %v4221
      %v4351 = vunpack.c.l.b16 %v4222
      %v4352 = vunpack.c.l.b16 %v4223
      %v4353 = vunpack.c.l.b16 %v4224
      %v4354 = vunpack.c.l.b16 %v4225
      %v4355 = vunpack.c.l.b16 %v4226
      %v4356 = vunpack.c.l.b16 %v4227
      %v4357 = vunpack.c.l.b16 %v4228
      %v4358 = vunpack.c.l.b16 %v4229
      %v4359 = vunpack.c.l.b16 %v4230
      %v4360 = vunpack.c.l.b16 %v4231
      %v4361 = vunpack.c.l.b16 %v4232
      %v4362 = vunpack.c.l.b16 %v4233
      %v4363 = vunpack.c.l.b16 %v4234
      %v4364 = vunpack.c.l.b16 %v4235
      %v4365 = vunpack.c.l.b16 %v4236
      %v4366 = vunpack.c.l.b16 %v4237
      %v4367 = vunpack.c.l.b16 %v4238
      %v4368 = vunpack.c.l.b16 %v4239
      %v4369 = vunpack.c.l.b16 %v4240
      %v4370 = vunpack.c.l.b16 %v4241
      %v4371 = vunpack.c.l.b16 %v4242
      %v4372 = vunpack.c.l.b16 %v4243
      %v4373 = vpack.c.b16 %v4338, %v4337
      %v4374 = vpack.c.b16 %v4340, %v4339
      %v4375 = vpack.c.b16 %v4342, %v4341
      %v4376 = vpack.c.b16 %v4344, %v4343
      %v4377 = vpack.c.b16 %v4346, %v4345
      %v4378 = vpack.c.b16 %v4348, %v4347
      %v4379 = vpack.c.b16 %v4350, %v4349
      %v4380 = vpack.c.b16 %v4352, %v4351
      %v4381 = vpack.c.b16 %v4354, %v4353
      %v4382 = vpack.c.b16 %v4356, %v4355
      %v4383 = vpack.c.b16 %v4358, %v4357
      %v4384 = vpack.c.b16 %v4360, %v4359
      %v4385 = vpack.c.b16 %v4362, %v4361
      %v4386 = vpack.c.b16 %v4364, %v4363
      %v4387 = vpack.c.b16 %v4366, %v4365
      %v4388 = vpack.c.b16 %v4368, %v4367
      %v4389 = vpack.c.b16 %v4370, %v4369
      %v4390 = vpack.c.b16 %v4372, %v4371
      %v4410 = vsel %vm275, %v4298, 0
      %4412 = vmatprep.subr.bf16.mxu0 0
      %4413 = vmatpush1.bf16.msra.mxu0 %v4380
      %4414 = vmatprep.subr.bf16.mxu0 0
      %4415 = vmatpush1.bf16.msra.mxu0 %v4379
      %4416 = vmatprep.subr.bf16.mxu0 0
      %4417 = vmatpush1.bf16.msra.mxu0 %v4378
      %4418 = vmatprep.subr.bf16.mxu0 0
      %4419 = vmatpush1.bf16.msra.mxu0 %v4377
      %4420 = vmatprep.subr.bf16.mxu0 0
      %4421 = vmatpush1.bf16.msra.mxu0 %v4376
      %4422 = vmatprep.subr.bf16.mxu0 0
      %4423 = vmatpush1.bf16.msra.mxu0 %v4375
      %4424 = vmatprep.subr.bf16.mxu0 0
      %4425 = vmatpush1.bf16.msra.mxu0 %v4374
      %4426 = vmatprep.subr.bf16.mxu0 0
      %4427 = vmatpush1.bf16.msra.mxu0 %v4373
      %4428 = vmatprep.subr.bf16.mxu0 0
      %4429 = vmatpush2.bf16.msra.mxu0 %v4388
      %4430 = vmatprep.subr.bf16.mxu0 0
      %4431 = vmatpush2.bf16.msra.mxu0 %v4387
      %4432 = vmatprep.subr.bf16.mxu0 0
      %4433 = vmatpush2.bf16.msra.mxu0 %v4386
      %4434 = vmatprep.subr.bf16.mxu0 0
      %4435 = vmatpush2.bf16.msra.mxu0 %v4385
      %4436 = vmatprep.subr.bf16.mxu0 0
      %4437 = vmatpush2.bf16.msra.mxu0 %v4384
      %4438 = vmatprep.subr.bf16.mxu0 0
      %4439 = vmatpush2.bf16.msra.mxu0 %v4383
      %4440 = vmatprep.subr.bf16.mxu0 0
      %4441 = vmatpush2.bf16.msra.mxu0 %v4382
      %4442 = vmatprep.subr.bf16.mxu0 0
      %4443 = vmatpush2.bf16.msra.mxu0 %v4381
      %4444 = vmatprep.mubr.bf16.mxu0 %v4281
      %4445 = vmatmul.mubr.bf16.gmra.mxu0 %v4266
      %v4446 = vpop.f32.mrf.mxu0
      %v4447 = vadd.f32 %v4250, %v4446
      %v4448 = vpop.f32.mrf.mxu0
      %v4449 = vpop.f32.mrf.mxu0
      %v4450 = vadd.f32 %v4250, %v4449
      %v4451 = vpop.f32.mrf.mxu0
      %4452 = vdwg.mxu0
      %4453 = vmatprep.subr.bf16.mxu0 0
      %4454 = vmatpush1.bf16.msra.mxu0 0
      %4455 = vmatprep.subr.bf16.mxu0 0
      %4456 = vmatpush1.bf16.msra.mxu0 0
      %4457 = vmatprep.subr.bf16.mxu0 0
      %4458 = vmatpush1.bf16.msra.mxu0 0
      %4459 = vmatprep.subr.bf16.mxu0 0
      %4460 = vmatpush1.bf16.msra.mxu0 0
      %4461 = vmatprep.subr.bf16.mxu0 0
      %4462 = vmatpush1.bf16.msra.mxu0 0
      %4463 = vmatprep.subr.bf16.mxu0 0
      %4464 = vmatpush1.bf16.msra.mxu0 0
      %4465 = vmatprep.subr.bf16.mxu0 0
      %4466 = vmatpush1.bf16.msra.mxu0 %v4390
      %4467 = vmatprep.subr.bf16.mxu0 0
      %4468 = vmatpush1.bf16.msra.mxu0 %v4389
      %4469 = vmatprep.subr.bf16.mxu0 0
      %4470 = vmatpush2.bf16.msra.mxu0 0
      %4471 = vmatprep.subr.bf16.mxu0 0
      %4472 = vmatpush2.bf16.msra.mxu0 0
      %4473 = vmatprep.subr.bf16.mxu0 0
      %4474 = vmatpush2.bf16.msra.mxu0 0
      %4475 = vmatprep.subr.bf16.mxu0 0
      %4476 = vmatpush2.bf16.msra.mxu0 0
      %4477 = vmatprep.subr.bf16.mxu0 0
      %4478 = vmatpush2.bf16.msra.mxu0 0
      %4479 = vmatprep.subr.bf16.mxu0 0
      %4480 = vmatpush2.bf16.msra.mxu0 0
      %4481 = vmatprep.subr.bf16.mxu0 0
      %4482 = vmatpush2.bf16.msra.mxu0 0
      %4483 = vmatprep.subr.bf16.mxu0 0
      %4484 = vmatpush2.bf16.msra.mxu0 0
      %4485 = vmatprep.mubr.bf16.mxu0 0
      %4486 = vmatmul.mubr.bf16.gmra.mxu0 %v4410
      %v4487 = vpop.f32.mrf.mxu0
      %v4488 = vadd.f32 %v4447, %v4487
      %v4489 = vpop.f32.mrf.mxu0
      %v4490 = vpop.f32.mrf.mxu0
      %v4491 = vadd.f32 %v4450, %v4490
      %v4492 = vpop.f32.mrf.mxu0
      %4493 = vdwg.mxu0
      %s4494 = scalar_lea.vmem %s3, 7
      %v4495 = vld [vmem:[%s4494] sm:$0x1]
      %v4497 = vlaneseq
      %v4498 = vshrl.u32 %v4497, 7
      %v4499 = vsub.s32 0, %v4498
      %v4500 = vrot.slane %v4495, %v4499
      %v4502 = vmul.f32 %v4488, %v4500
      %v4503 = vmul.f32 %v4491, %v4500
      %v4504 = vld [vmem:[#allocation3] sm:$0xff]
      %v4505 = vld [vmem:[#allocation3 + $0x8] sm:$0xff]
      %v4506 = vadd.f32 %v4502, %v4504
      %v4507 = vadd.f32 %v4503, %v4505
      %vm4508 = vcmp.ge.f32.partialorder %v4506, 0.0
      %vm4509 = vcmp.ge.f32.partialorder %v4507, 0.0
      %v4510 = vmul.f32 %v4506, 0.2
      %v4511 = vmul.f32 %v4507, 0.2
      %v4512 = vsel %vm4508, %v4506, %v4510
      %v4513 = vsel %vm4509, %v4507, %v4511
      %4514 = vst.msk [vmem:[#allocation3] sm:$0xff] %vm275, %v4512
      %4515 = vst.msk [vmem:[#allocation3 + $0x8] sm:$0xff] %vm275, %v4513
      %v4516 = vpack.c.bf16 %v4513, %v4512
      %v4518 = vunpack.c.l.b16 %v4516
      %v4519 = vunpack.c.h.b16 %v4516
      %v4520 = vpack.c.b16 %v4518, %v4518
      %v4521 = vpack.c.b16 %v4519, %v4519
      %4524 = vst.msk [vmem:[#allocation2 + $0x8] sm:$0xf] %vm260, %v4520
      %4525 = vst.msk [vmem:[#allocation2 + $0xc] sm:$0xf] %vm260, %v4521
      %v4526 = vld [vmem:[#allocation2 + $0x4] sm:$0xe]
      %v4527 = vld [vmem:[#allocation2 + $0x8] sm:$0xf]
      %v4528 = vld [vmem:[#allocation2 + $0xc] sm:$0x3]
      %v4529 = vsel %vm342, %v4526, 0
      %v4530 = vsel %vm343, %v4527, 0
      %v4531 = vsel %vm344, %v4528, 0
      %v4532 = vld [vmem:[#allocation2 + $0x4] sm:$0xc]
      %v4533 = vld [vmem:[#allocation2 + $0xc] sm:$0x7]
      %v4534 = vsel %vm379, %v4532, 0
      %v4535 = vsel %vm380, %v4527, 0
      %v4536 = vsel %vm381, %v4533, 0
      %v4537 = vld [vmem:[#allocation2 + $0x4] sm:$0x8]
      %v4538 = vld [vmem:[#allocation2 + $0xc] sm:$0xf]
      %v4539 = vsel %vm399, %v4537, 0
      %v4540 = vsel %vm400, %v4527, 0
      %v4541 = vsel %vm401, %v4538, 0
      %v4542 = vld [vmem:[#allocation2 + $0x10] sm:$0x1]
      %v4543 = vsel %vm416, %v4527, 0
      %v4544 = vsel %vm417, %v4538, 0
      %v4545 = vsel %vm418, %v4542, 0
      %v4546 = vld [vmem:[#allocation2 + $0x8] sm:$0xe]
      %v4547 = vld [vmem:[#allocation2 + $0x10] sm:$0x3]
      %v4548 = vsel %vm342, %v4546, 0
      %v4549 = vsel %vm343, %v4538, 0
      %v4550 = vsel %vm344, %v4547, 0
      %v4551 = vld [vmem:[#allocation2 + $0x8] sm:$0xc]
      %v4552 = vld [vmem:[#allocation2 + $0x10] sm:$0x7]
      %v4553 = vsel %vm379, %v4551, 0
      %v4554 = vsel %vm380, %v4538, 0
      %v4555 = vsel %vm381, %v4552, 0
      %v4559 = vunpack.c.l.b16 %v4529
      %v4560 = vunpack.c.l.b16 %v4530
      %v4561 = vunpack.c.l.b16 %v4531
      %v4562 = vpack.c.b16 %v4560, %v4559
      %v4563 = vpack.c.b16 %v4561, %v4561
      %v4567 = vunpack.c.l.b16 %v4532
      %v4568 = vunpack.c.l.b16 %v4527
      %v4569 = vunpack.c.l.b16 %v4528
      %v4570 = vpack.c.b16 %v4568, %v4567
      %v4571 = vpack.c.b16 %v4569, %v4569
      %v4573 = vshrl.u32 %v4570, 16
      %v4575 = vshll.u32 %v4570, 16
      %v4577 = vrot.slane %v4575, 1
      %v4578 = vor.u32 %v4573, %v4577
      %v4580 = vshll.u32 %v4571, 16
      %v4582 = vrot.slane %v4580, 1
      %v4583 = vsel %vm448, %v4578, %v4582
      %v4584 = vshrl.u32 %v4571, 16
      %v4586 = vor.u32 %v4584, %v4582
      %4587 = vrot.lane.b32.xlu0 %v4583, 32
      %v4588 = vpop.permute.xlu0 %4587
      %4589 = vrot.lane.b32.xlu0 %v4586, 32
      %v4590 = vpop.permute.xlu0 %4589
      %v4594 = vunpack.c.l.b16 %v4534
      %v4595 = vunpack.c.l.b16 %v4535
      %v4596 = vunpack.c.l.b16 %v4536
      %v4597 = vpack.c.b16 %v4595, %v4594
      %v4598 = vpack.c.b16 %v4596, %v4596
      %v4599 = vrot.slane %v4597, 1
      %v4600 = vrot.slane %v4598, 1
      %v4601 = vsel %vm476, %v4599, %v4600
      %4602 = vrot.lane.b32.xlu0 %v4601, 64
      %v4603 = vpop.permute.xlu0 %4602
      %4604 = vrot.lane.b32.xlu0 %v4600, 64
      %v4605 = vpop.permute.xlu0 %4604
      %v4609 = vunpack.c.l.b16 %v4539
      %v4610 = vunpack.c.l.b16 %v4540
      %v4611 = vunpack.c.l.b16 %v4541
      %v4612 = vpack.c.b16 %v4610, %v4609
      %v4613 = vpack.c.b16 %v4611, %v4611
      %v4614 = vrot.slane %v4612, 2
      %v4615 = vrot.slane %v4613, 2
      %v4616 = vsel %vm492, %v4614, %v4615
      %4617 = vrot.lane.b32.xlu0 %v4616, 96
      %v4618 = vpop.permute.xlu0 %4617
      %4619 = vrot.lane.b32.xlu0 %v4615, 96
      %v4620 = vpop.permute.xlu0 %4619
      %v4622 = vunpack.c.l.b16 %v4538
      %v4623 = vpack.c.b16 %v4622, %v4568
      %v4625 = vshrl.u32 %v4623, 16
      %v4627 = vrot.slane %v4625, 6
      %v4628 = vshll.u32 %v4623, 16
      %v4630 = vrot.slane %v4628, 7
      %v4631 = vor.u32 %v4627, %v4630
      %v4635 = vunpack.c.l.b16 %v4543
      %v4636 = vunpack.c.l.b16 %v4544
      %v4637 = vunpack.c.l.b16 %v4545
      %v4638 = vpack.c.b16 %v4636, %v4635
      %v4639 = vpack.c.b16 %v4637, %v4637
      %v4640 = vrot.slane %v4638, 7
      %v4641 = vrot.slane %v4639, 7
      %v4642 = vsel %vm519, %v4640, %v4641
      %4643 = vrot.lane.b32.xlu0 %v4640, 32
      %v4644 = vpop.permute.xlu0 %4643
      %4645 = vrot.lane.b32.xlu0 %v4642, 32
      %v4646 = vpop.permute.xlu0 %4645
      %v4650 = vunpack.c.l.b16 %v4548
      %v4651 = vunpack.c.l.b16 %v4549
      %v4652 = vunpack.c.l.b16 %v4550
      %v4653 = vpack.c.b16 %v4651, %v4650
      %v4654 = vpack.c.b16 %v4652, %v4652
      %4655 = vrot.lane.b32.xlu0 %v4653, 64
      %v4656 = vpop.permute.xlu0 %4655
      %4657 = vrot.lane.b32.xlu0 %v4654, 64
      %v4658 = vpop.permute.xlu0 %4657
      %v4661 = vunpack.c.l.b16 %v4551
      %v4662 = vunpack.c.l.b16 %v4547
      %v4663 = vpack.c.b16 %v4622, %v4661
      %v4664 = vpack.c.b16 %v4662, %v4662
      %v4666 = vshrl.u32 %v4663, 16
      %v4668 = vshll.u32 %v4663, 16
      %v4670 = vrot.slane %v4668, 1
      %v4671 = vor.u32 %v4666, %v4670
      %v4673 = vshll.u32 %v4664, 16
      %v4675 = vrot.slane %v4673, 1
      %v4676 = vsel %vm448, %v4671, %v4675
      %v4677 = vshrl.u32 %v4664, 16
      %v4679 = vor.u32 %v4677, %v4675
      %4680 = vrot.lane.b32.xlu0 %v4676, 96
      %v4681 = vpop.permute.xlu0 %4680
      %4682 = vrot.lane.b32.xlu0 %v4679, 96
      %v4683 = vpop.permute.xlu0 %4682
      %v4687 = vunpack.c.l.b16 %v4553
      %v4688 = vunpack.c.l.b16 %v4554
      %v4689 = vunpack.c.l.b16 %v4555
      %v4690 = vpack.c.b16 %v4688, %v4687
      %v4691 = vpack.c.b16 %v4689, %v4689
      %v4692 = vrot.slane %v4690, 1
      %v4693 = vrot.slane %v4691, 1
      %v4694 = vsel %vm476, %v4692, %v4693
      %v4697 = vsel %vm275, %v4562, %v4588
      %v4700 = vsel %vm275, %v4563, %v4590
      %v4702 = vsel %vm581, %v4697, %v4603
      %v4704 = vsel %vm581, %v4700, %v4605
      %v4706 = vsel %vm586, %v4702, %v4618
      %v4708 = vsel %vm586, %v4704, %v4620
      %v4711 = vsel %vm275, %v4631, %v4644
      %v4713 = vsel %vm275, %v4631, %v4646
      %v4715 = vsel %vm581, %v4711, %v4656
      %v4717 = vsel %vm581, %v4713, %v4658
      %v4719 = vsel %vm586, %v4715, %v4681
      %v4721 = vsel %vm586, %v4717, %v4683
      %v4722 = vld [vmem:[%s4] sm:$0xf]
      %v4723 = vld [vmem:[%s4 + $0x4] sm:$0xf]
      %v4724 = vld [vmem:[%s4 + $0x8] sm:$0xf]
      %v4725 = vld [vmem:[%s4 + $0xc] sm:$0xf]
      %v4726 = vld [vmem:[%s4 + $0x10] sm:$0xf]
      %v4727 = vld [vmem:[%s4 + $0x14] sm:$0xf]
      %v4728 = vld [vmem:[%s4 + $0x18] sm:$0xf]
      %v4729 = vld [vmem:[%s4 + $0x1c] sm:$0xf]
      %v4730 = vld [vmem:[%s4 + $0x20] sm:$0xf]
      %v4731 = vld [vmem:[%s4 + $0x24] sm:$0xf]
      %v4732 = vld [vmem:[%s4 + $0x28] sm:$0xf]
      %v4733 = vld [vmem:[%s4 + $0x2c] sm:$0xf]
      %v4734 = vld [vmem:[%s4 + $0x30] sm:$0xf]
      %v4735 = vld [vmem:[%s4 + $0x34] sm:$0xf]
      %v4736 = vld [vmem:[%s4 + $0x38] sm:$0xf]
      %v4737 = vld [vmem:[%s4 + $0x3c] sm:$0xf]
      %v4738 = vld [vmem:[%s4 + $0x40] sm:$0xf]
      %v4739 = vld [vmem:[%s4 + $0x44] sm:$0xf]
      %v4740 = vld [vmem:[%s4 + $0x48] sm:$0xf]
      %v4741 = vld [vmem:[%s4 + $0x4c] sm:$0xf]
      %v4742 = vld [vmem:[%s4 + $0x50] sm:$0xf]
      %v4743 = vld [vmem:[%s4 + $0x54] sm:$0xf]
      %v4744 = vld [vmem:[%s4 + $0x58] sm:$0xf]
      %v4745 = vld [vmem:[%s4 + $0x5c] sm:$0xf]
      %v4746 = vld [vmem:[%s4 + $0x60] sm:$0xf]
      %v4747 = vld [vmem:[%s4 + $0x64] sm:$0xf]
      %v4748 = vld [vmem:[%s4 + $0x68] sm:$0xf]
      %v4749 = vld [vmem:[%s4 + $0x6c] sm:$0xf]
      %v4750 = vld [vmem:[%s4 + $0x70] sm:$0xf]
      %v4751 = vld [vmem:[%s4 + $0x74] sm:$0xf]
      %v4752 = vld [vmem:[%s4 + $0x78] sm:$0xf]
      %v4753 = vld [vmem:[%s4 + $0x7c] sm:$0xf]
      %v4754 = vld [vmem:[%s4 + $0x80] sm:$0xf]
      %v4755 = vld [vmem:[%s4 + $0x84] sm:$0xf]
      %v4756 = vld [vmem:[%s4 + $0x88] sm:$0xf]
      %v4757 = vld [vmem:[%s4 + $0x8c] sm:$0xf]
      %v4758 = vld [vmem:[%s5] sm:$0x1]
      %v4760 = vlaneseq
      %v4761 = vshrl.u32 %v4760, 7
      %v4762 = vsub.s32 0, %v4761
      %v4763 = vrot.slane %v4758, %v4762
      %v4765 = vshrl.u32 %v4706, 16
      %v4767 = vrot.slane %v4765, 1
      %v4768 = vshll.u32 %v4706, 16
      %v4770 = vrot.slane %v4768, 2
      %v4771 = vor.u32 %v4767, %v4770
      %v4772 = vshrl.u32 %v4708, 16
      %v4774 = vrot.slane %v4772, 1
      %v4775 = vshll.u32 %v4708, 16
      %v4777 = vrot.slane %v4775, 2
      %v4778 = vor.u32 %v4774, %v4777
      %v4779 = vsel %vm647, %v4771, %v4778
      %v4780 = vshrl.u32 %v4719, 16
      %v4782 = vrot.slane %v4780, 1
      %v4783 = vshll.u32 %v4719, 16
      %v4785 = vrot.slane %v4783, 2
      %v4786 = vor.u32 %v4782, %v4785
      %v4787 = vshrl.u32 %v4721, 16
      %v4789 = vrot.slane %v4787, 1
      %v4790 = vshll.u32 %v4721, 16
      %v4792 = vrot.slane %v4790, 2
      %v4793 = vor.u32 %v4789, %v4792
      %v4794 = vsel %vm647, %v4786, %v4793
      %v4796 = vshrl.u32 %v4694, 16
      %v4798 = vrot.slane %v4796, 1
      %v4799 = vshll.u32 %v4694, 16
      %v4801 = vrot.slane %v4799, 2
      %v4802 = vor.u32 %v4798, %v4801
      %v4804 = vshrl.u32 %v4693, 16
      %v4806 = vrot.slane %v4804, 1
      %v4807 = vshll.u32 %v4693, 16
      %v4809 = vrot.slane %v4807, 2
      %v4810 = vor.u32 %v4806, %v4809
      %v4811 = vsel %vm647, %v4802, %v4810
      %v4850 = vunpack.c.l.b16 %v4722
      %v4851 = vunpack.c.l.b16 %v4723
      %v4852 = vunpack.c.l.b16 %v4724
      %v4853 = vunpack.c.l.b16 %v4725
      %v4854 = vunpack.c.l.b16 %v4726
      %v4855 = vunpack.c.l.b16 %v4727
      %v4856 = vunpack.c.l.b16 %v4728
      %v4857 = vunpack.c.l.b16 %v4729
      %v4858 = vunpack.c.l.b16 %v4730
      %v4859 = vunpack.c.l.b16 %v4731
      %v4860 = vunpack.c.l.b16 %v4732
      %v4861 = vunpack.c.l.b16 %v4733
      %v4862 = vunpack.c.l.b16 %v4734
      %v4863 = vunpack.c.l.b16 %v4735
      %v4864 = vunpack.c.l.b16 %v4736
      %v4865 = vunpack.c.l.b16 %v4737
      %v4866 = vunpack.c.l.b16 %v4738
      %v4867 = vunpack.c.l.b16 %v4739
      %v4868 = vunpack.c.l.b16 %v4740
      %v4869 = vunpack.c.l.b16 %v4741
      %v4870 = vunpack.c.l.b16 %v4742
      %v4871 = vunpack.c.l.b16 %v4743
      %v4872 = vunpack.c.l.b16 %v4744
      %v4873 = vunpack.c.l.b16 %v4745
      %v4874 = vunpack.c.l.b16 %v4746
      %v4875 = vunpack.c.l.b16 %v4747
      %v4876 = vunpack.c.l.b16 %v4748
      %v4877 = vunpack.c.l.b16 %v4749
      %v4878 = vunpack.c.l.b16 %v4750
      %v4879 = vunpack.c.l.b16 %v4751
      %v4880 = vunpack.c.l.b16 %v4752
      %v4881 = vunpack.c.l.b16 %v4753
      %v4882 = vunpack.c.l.b16 %v4754
      %v4883 = vunpack.c.l.b16 %v4755
      %v4884 = vunpack.c.l.b16 %v4756
      %v4885 = vunpack.c.l.b16 %v4757
      %v4886 = vpack.c.b16 %v4851, %v4850
      %v4887 = vpack.c.b16 %v4853, %v4852
      %v4888 = vpack.c.b16 %v4855, %v4854
      %v4889 = vpack.c.b16 %v4857, %v4856
      %v4890 = vpack.c.b16 %v4859, %v4858
      %v4891 = vpack.c.b16 %v4861, %v4860
      %v4892 = vpack.c.b16 %v4863, %v4862
      %v4893 = vpack.c.b16 %v4865, %v4864
      %v4894 = vpack.c.b16 %v4867, %v4866
      %v4895 = vpack.c.b16 %v4869, %v4868
      %v4896 = vpack.c.b16 %v4871, %v4870
      %v4897 = vpack.c.b16 %v4873, %v4872
      %v4898 = vpack.c.b16 %v4875, %v4874
      %v4899 = vpack.c.b16 %v4877, %v4876
      %v4900 = vpack.c.b16 %v4879, %v4878
      %v4901 = vpack.c.b16 %v4881, %v4880
      %v4902 = vpack.c.b16 %v4883, %v4882
      %v4903 = vpack.c.b16 %v4885, %v4884
      %v4923 = vsel %vm275, %v4811, 0
      %4925 = vmatprep.subr.bf16.mxu0 0
      %4926 = vmatpush1.bf16.msra.mxu0 %v4893
      %4927 = vmatprep.subr.bf16.mxu0 0
      %4928 = vmatpush1.bf16.msra.mxu0 %v4892
      %4929 = vmatprep.subr.bf16.mxu0 0
      %4930 = vmatpush1.bf16.msra.mxu0 %v4891
      %4931 = vmatprep.subr.bf16.mxu0 0
      %4932 = vmatpush1.bf16.msra.mxu0 %v4890
      %4933 = vmatprep.subr.bf16.mxu0 0
      %4934 = vmatpush1.bf16.msra.mxu0 %v4889
      %4935 = vmatprep.subr.bf16.mxu0 0
      %4936 = vmatpush1.bf16.msra.mxu0 %v4888
      %4937 = vmatprep.subr.bf16.mxu0 0
      %4938 = vmatpush1.bf16.msra.mxu0 %v4887
      %4939 = vmatprep.subr.bf16.mxu0 0
      %4940 = vmatpush1.bf16.msra.mxu0 %v4886
      %4941 = vmatprep.subr.bf16.mxu0 0
      %4942 = vmatpush2.bf16.msra.mxu0 %v4901
      %4943 = vmatprep.subr.bf16.mxu0 0
      %4944 = vmatpush2.bf16.msra.mxu0 %v4900
      %4945 = vmatprep.subr.bf16.mxu0 0
      %4946 = vmatpush2.bf16.msra.mxu0 %v4899
      %4947 = vmatprep.subr.bf16.mxu0 0
      %4948 = vmatpush2.bf16.msra.mxu0 %v4898
      %4949 = vmatprep.subr.bf16.mxu0 0
      %4950 = vmatpush2.bf16.msra.mxu0 %v4897
      %4951 = vmatprep.subr.bf16.mxu0 0
      %4952 = vmatpush2.bf16.msra.mxu0 %v4896
      %4953 = vmatprep.subr.bf16.mxu0 0
      %4954 = vmatpush2.bf16.msra.mxu0 %v4895
      %4955 = vmatprep.subr.bf16.mxu0 0
      %4956 = vmatpush2.bf16.msra.mxu0 %v4894
      %4957 = vmatprep.mubr.bf16.mxu0 %v4794
      %4958 = vmatmul.mubr.bf16.gmra.mxu0 %v4779
      %v4959 = vpop.f32.mrf.mxu0
      %v4960 = vadd.f32 %v4763, %v4959
      %v4961 = vpop.f32.mrf.mxu0
      %v4962 = vpop.f32.mrf.mxu0
      %v4963 = vadd.f32 %v4763, %v4962
      %v4964 = vpop.f32.mrf.mxu0
      %4965 = vdwg.mxu0
      %4966 = vmatprep.subr.bf16.mxu0 0
      %4967 = vmatpush1.bf16.msra.mxu0 0
      %4968 = vmatprep.subr.bf16.mxu0 0
      %4969 = vmatpush1.bf16.msra.mxu0 0
      %4970 = vmatprep.subr.bf16.mxu0 0
      %4971 = vmatpush1.bf16.msra.mxu0 0
      %4972 = vmatprep.subr.bf16.mxu0 0
      %4973 = vmatpush1.bf16.msra.mxu0 0
      %4974 = vmatprep.subr.bf16.mxu0 0
      %4975 = vmatpush1.bf16.msra.mxu0 0
      %4976 = vmatprep.subr.bf16.mxu0 0
      %4977 = vmatpush1.bf16.msra.mxu0 0
      %4978 = vmatprep.subr.bf16.mxu0 0
      %4979 = vmatpush1.bf16.msra.mxu0 %v4903
      %4980 = vmatprep.subr.bf16.mxu0 0
      %4981 = vmatpush1.bf16.msra.mxu0 %v4902
      %4982 = vmatprep.subr.bf16.mxu0 0
      %4983 = vmatpush2.bf16.msra.mxu0 0
      %4984 = vmatprep.subr.bf16.mxu0 0
      %4985 = vmatpush2.bf16.msra.mxu0 0
      %4986 = vmatprep.subr.bf16.mxu0 0
      %4987 = vmatpush2.bf16.msra.mxu0 0
      %4988 = vmatprep.subr.bf16.mxu0 0
      %4989 = vmatpush2.bf16.msra.mxu0 0
      %4990 = vmatprep.subr.bf16.mxu0 0
      %4991 = vmatpush2.bf16.msra.mxu0 0
      %4992 = vmatprep.subr.bf16.mxu0 0
      %4993 = vmatpush2.bf16.msra.mxu0 0
      %4994 = vmatprep.subr.bf16.mxu0 0
      %4995 = vmatpush2.bf16.msra.mxu0 0
      %4996 = vmatprep.subr.bf16.mxu0 0
      %4997 = vmatpush2.bf16.msra.mxu0 0
      %4998 = vmatprep.mubr.bf16.mxu0 0
      %4999 = vmatmul.mubr.bf16.gmra.mxu0 %v4923
      %v5000 = vpop.f32.mrf.mxu0
      %v5001 = vadd.f32 %v4960, %v5000
      %v5002 = vpop.f32.mrf.mxu0
      %v5003 = vpop.f32.mrf.mxu0
      %v5004 = vadd.f32 %v4963, %v5003
      %v5005 = vpop.f32.mrf.mxu0
      %5006 = vdwg.mxu0
      %5007 = vst.msk [vmem:[%s251] sm:$0xff] %vm586, %v5001
      %5008 = vst.msk [vmem:[%s251 + $0x8] sm:$0xff] %vm586, %v5004
      %p5009 = scmp.lt.s32.totalorder %s17, 1
      %s5010 = scalar_select %p5009, %s17, 1
      %s5011 = smul.addr %s5010, 2
      %s5012 = smul.addr %s5011, 8
      %s5013 = scalar_lea.vmem %s6, %s5012
      // Predicated region
      $region45: #{ifblock_forward.5} parent=43 // pred_check
        %p5014 = pneg %p166
      $region46: #{ifblock_forward.5} parent=43 // pred_check_branch
        %5016 = sbr.rel (%p5014) target = $region48
      $region47: #{ifblock_forward.5} parent=43 // pred_region
        _
      $region48: #{ifblock_forward.5} parent=43 // pred_fallthru
        _
    $region44: #{ifblock_forward.5} parent=5 // pred_fallthru
      _
    %p5017 = scmp.le.s32.totalorder 2, %s12
    // Predicated region
    $region49: #{ifblock_forward.5} parent=5 // pred_check
      %p5018 = pneg %p5017
    $region50: #{ifblock_forward.5} parent=5 // pred_check_branch
      %5020 = sbr.rel (%p5018) target = $region52
    $region51: #{ifblock_forward.5} parent=5 // pred_region
      %s5021 = ssub.s32 %s12, 2
      // Predicated region
      $region53: #{ifblock_forward.5} parent=51 // pred_check
        %p5022 = pneg %p172
      $region54: #{ifblock_forward.5} parent=51 // pred_check_branch
        %5024 = sbr.rel (%p5022) target = $region56
      $region55: #{ifblock_forward.5} parent=51 // pred_region
        %p5025 = scmp.lt.s32.totalorder %s18, 1
        %s5026 = scalar_select %p5025, %s18, 1
        %s5027 = smul.addr %s5026, 2
        %s5028 = smul.addr %s5027, 8
        %s5029 = scalar_lea.vmem %s6, %s5028
      $region56: #{ifblock_forward.5} parent=51 // pred_fallthru
        _
    $region52: #{ifblock_forward.5} parent=5 // pred_fallthru
      _
  $region6: #{ifblock_forward.5} parent=0 // loop_footer
    %s16 = sadd.s32 1, %s12
  $region7: #{ifblock_forward.5} parent=0 // loop_footer_branch
    %11 = sbr.rel target = $region3
  $region8: #{ifblock_forward.5} parent=0 // loop_exit
    _

</llo_original>
